<compile_context>
chip_gen: v7x
topology: tpu7x:2x2x1
jax: 0.10.0
libtpu: 0.0.40
codegen_flags: <defaults>
</compile_context>

<pallas_src>
import jax
import jax.numpy as jnp
from jax.experimental import pallas as pl
from jax.experimental.pallas import tpu as pltpu

C_IN = 3
C_OUT = 16
H = W = 224            # fc1 = Linear(16*112*112, 2) forces 224x224 inputs
HP = WP = 112          # spatial size after 2x2/2 max pool
NPOS = HP * WP         # 12544 pooled positions per image
TPOS = 6272            # pooled positions per grid step (12544 = 2 * 6272, 6272 = 49 * 128)
NH = NPOS // TPOS      # 2 position chunks per image
NTAP = 9 * C_IN        # 27 conv taps
LT = 896               # lane sub-tile inside the kernel (896 = 7 * 128, divides TPOS)
NSUB = TPOS // LT      # 7 sub-tiles per grid step


def _fused_kernel(x_ref, wt_ref, bc_ref, wfc_ref, o_ref):
    # x_ref   (1, 4, 27, TPOS)      bf16 : im2col patches (quadrant, tap, pooled position)
    # wt_ref  (16, 27)              bf16 : conv weight, rows = out channel, cols = (dy, dx, ci)
    # bc_ref  (16, 1)               f32  : conv bias
    # wfc_ref (NH, 2, 16, TPOS)     bf16 : fc weight, RESIDENT for the whole call
    # o_ref   (1, 1, 1, 2)          f32  : partial logits for this (image, position-chunk)
    h = pl.program_id(1)

    w = wt_ref[...]            # (16, 27) bf16, hoisted
    b = bc_ref[...]            # (16, 1)  f32,  hoisted

    acc0 = jnp.zeros((), jnp.float32)
    acc1 = jnp.zeros((), jnp.float32)

    # Sub-tiled fused epilogue: each (16, LT) slab stays in registers.
    for t in range(NSUB):
        lo = t * LT
        # 4 independent quadrant matmuls (MXU streams back-to-back), then tree max.
        d0 = jnp.dot(w, x_ref[0, 0, :, lo:lo + LT], preferred_element_type=jnp.float32)
        d1 = jnp.dot(w, x_ref[0, 1, :, lo:lo + LT], preferred_element_type=jnp.float32)
        d2 = jnp.dot(w, x_ref[0, 2, :, lo:lo + LT], preferred_element_type=jnp.float32)
        d3 = jnp.dot(w, x_ref[0, 3, :, lo:lo + LT], preferred_element_type=jnp.float32)
        z = jnp.maximum(jnp.maximum(d0, d1), jnp.maximum(d2, d3))
        # 2x2 max-pool == max over quadrants; bias is uniform & ReLU is monotone -> apply once.
        p = jnp.maximum(z + b, 0.0)                       # (16, LT) pooled ReLU activations

        # Fused fc1 for this sub-tile (resident bf16 weights, f32 accumulation).
        w0 = wfc_ref[h, 0, :, lo:lo + LT].astype(jnp.float32)
        w1 = wfc_ref[h, 1, :, lo:lo + LT].astype(jnp.float32)
        acc0 = acc0 + jnp.sum(p * w0)
        acc1 = acc1 + jnp.sum(p * w1)

    cls = jax.lax.broadcasted_iota(jnp.int32, (1, 1, 1, 2), 3)
    o_ref[...] = jnp.where(cls == 0, acc0, acc1)


def fused_forward(patches, wt, bc, wfc):
    B = patches.shape[0]
    return pl.pallas_call(
        _fused_kernel,
        out_shape=jax.ShapeDtypeStruct((B, NH, 1, 2), jnp.float32),
        grid=(B, NH),
        in_specs=[
            pl.BlockSpec((1, 4, NTAP, TPOS), lambda b, h: (b, 0, 0, h)),
            pl.BlockSpec((C_OUT, NTAP), lambda b, h: (0, 0)),
            pl.BlockSpec((C_OUT, 1), lambda b, h: (0, 0)),
            # Full-array block + constant index map -> fetched once, resident across the grid.
            pl.BlockSpec((NH, 2, C_OUT, TPOS), lambda b, h: (0, 0, 0, 0)),
        ],
        out_specs=pl.BlockSpec((1, 1, 1, 2), lambda b, h: (b, h, 0, 0)),
        compiler_params=pltpu.CompilerParams(
            dimension_semantics=("parallel", "parallel")),
    )(patches, wt, bc, wfc)


def simple_cnn_forward(x, conv_w, conv_b, fc_w, fc_b):
    """x: (B, 3, 224, 224) NCHW, PyTorch parameter layouts. Returns (B, 2)."""
    B = x.shape[0]
    # --- glue: pooling-quadrant im2col (data movement only); done in bf16 to halve traffic ---
    x_bf = x.astype(jnp.bfloat16)
    x_pad = jnp.pad(x_bf, ((0, 0), (0, 0), (1, 1), (1, 1)))        # (B, 3, 226, 226)
    quads = []
    for r in range(2):
        for s in range(2):
            taps = []
            for dy in range(3):
                for dx in range(3):
                    taps.append(x_pad[:, :,
                                      r + dy: r + dy + 2 * HP - 1: 2,
                                      s + dx: s + dx + 2 * WP - 1: 2])   # (B, 3, 112, 112)
            quads.append(jnp.stack(taps, axis=1))                   # (B, 9, 3, 112, 112)
    patches = jnp.stack(quads, axis=1)                              # (B, 4, 9, 3, 112, 112)
    patches = patches.reshape(B, 4, NTAP, NPOS)                     # bf16

    # conv weight (O, I, 3, 3) -> (O, dy, dx, ci) -> (16, 27), same tap order as patches.
    wt = jnp.transpose(conv_w, (0, 2, 3, 1)).reshape(C_OUT, NTAP).astype(jnp.bfloat16)
    bc = conv_b.reshape(C_OUT, 1).astype(jnp.float32)
    # fc weight (2, 16*112*112) -> (2, 16, NH, TPOS) -> (NH, 2, 16, TPOS); matches PyTorch's
    # CHW flatten order with the pooled-position axis split into (chunk, in-chunk position).
    wfc = fc_w.reshape(2, C_OUT, NH, TPOS).transpose(2, 0, 1, 3).astype(jnp.bfloat16)

    partial = fused_forward(patches, wt, bc, wfc)                   # (B, NH, 1, 2)
    return partial.sum(axis=(1, 2)) + fc_b.astype(jnp.float32)      # (B, 2)


def reference_forward(x, conv_w, conv_b, fc_w, fc_b):
    """Pure-JAX replica of the PyTorch forward pass (for verification)."""
    y = jax.lax.conv_general_dilated(
        x, conv_w, window_strides=(1, 1), padding=((1, 1), (1, 1)),
        dimension_numbers=("NCHW", "OIHW", "NCHW"))
    y = y + conv_b[None, :, None, None]
    y = jnp.maximum(y, 0.0)
    y = jax.lax.reduce_window(y, -jnp.inf, jax.lax.max,
                              window_dimensions=(1, 1, 2, 2),
                              window_strides=(1, 1, 2, 2), padding="VALID")
    y = y.reshape(x.shape[0], -1)
    return y @ fc_w.T + fc_b


if __name__ == "__main__":
    B = 2
    key = jax.random.PRNGKey(0)
    kx, k1, k2, k3, k4 = jax.random.split(key, 5)

    x = jax.random.normal(kx, (B, C_IN, H, W), jnp.float32)
    conv_w = jax.random.normal(k1, (C_OUT, C_IN, 3, 3), jnp.float32) * 0.1
    conv_b = jax.random.normal(k2, (C_OUT,), jnp.float32) * 0.1
    fc_w = jax.random.normal(k3, (2, C_OUT * NPOS), jnp.float32) * 0.01
    fc_b = jax.random.normal(k4, (2,), jnp.float32) * 0.01

    out = jax.jit(simple_cnn_forward)(x, conv_w, conv_b, fc_w, fc_b)
    out = jax.block_until_ready(out)

    ref = jax.block_until_ready(reference_forward(x, conv_w, conv_b, fc_w, fc_b))
    assert out.shape == (B, 2), out.shape
    # bf16 patches / conv weights / fc weights (all with f32 accumulation) -> loose-ish atol.
    if not bool(jnp.allclose(out, ref, atol=1e-1, rtol=5e-2)):
        raise AssertionError(
            f"Pallas output mismatch: max abs diff = {float(jnp.max(jnp.abs(out - ref)))}")
    print("KERNEL_OK")
</pallas_src>

<mosaic_0001>
module attributes {stable_mosaic.version = 11 : i64} {
  func.func @_fused_kernel(%arg0: i32, %arg1: i32, %arg2: memref<1x4x27x6272xbf16, #tpu.memory_space<vmem>>, %arg3: memref<16x27xbf16, #tpu.memory_space<vmem>>, %arg4: memref<16x1xf32, #tpu.memory_space<vmem>>, %arg5: memref<2x2x16x6272xbf16, #tpu.memory_space<vmem>>, %arg6: memref<1x1x1x2xf32, #tpu.memory_space<vmem>>) attributes {dimension_semantics = [#tpu.dimension_semantics<parallel>, #tpu.dimension_semantics<parallel>], iteration_bounds = array<i64: 2, 2>, scalar_prefetch = 0 : i64, scratch_operands = 0 : i64, tpu.core_type = #tpu.core_type<tc>, window_params = [{transform_indices = @transform_0, window_bounds = array<i64: 1, 4, 27, 6272>}, {pipeline_mode = #tpu.pipeline_mode<synchronous>, transform_indices = @transform_1, window_bounds = array<i64: 16, 27>}, {pipeline_mode = #tpu.pipeline_mode<synchronous>, transform_indices = @transform_2, window_bounds = array<i64: 16, 1>}, {pipeline_mode = #tpu.pipeline_mode<synchronous>, transform_indices = @transform_3, window_bounds = array<i64: 2, 2, 16, 6272>}, {transform_indices = @transform_4, window_bounds = array<i64: 1, 1, 1, 2>}]} {
    %c0 = arith.constant 0 : index
    %c0_0 = arith.constant 0 : index
    %0 = vector.load %arg3[%c0, %c0_0] : memref<16x27xbf16, #tpu.memory_space<vmem>>, vector<16x27xbf16>
    %c0_1 = arith.constant 0 : index
    %c0_2 = arith.constant 0 : index
    %1 = vector.load %arg4[%c0_1, %c0_2] : memref<16x1xf32, #tpu.memory_space<vmem>>, vector<16x1xf32>
    %c0_3 = arith.constant 0 : index
    %c0_4 = arith.constant 0 : index
    %c0_5 = arith.constant 0 : index
    %c0_6 = arith.constant 0 : index
    %2 = vector.load %arg2[%c0_3, %c0_4, %c0_5, %c0_6] : memref<1x4x27x6272xbf16, #tpu.memory_space<vmem>>, vector<1x1x27x896xbf16>
    %3 = vector.shape_cast %2 : vector<1x1x27x896xbf16> to vector<27x896xbf16>
    %cst = arith.constant dense<0.000000e+00> : vector<16x896xf32>
    %4 = tpu.matmul %0, %3, %cst {dimension_numbers = #tpu.dot_dimension_numbers<[1], [0], [0], [1], [0, 0, 1, 1], [], []>} : vector<16x27xbf16>, vector<27x896xbf16>, vector<16x896xf32> -> vector<16x896xf32>
    %c0_7 = arith.constant 0 : index
    %c1 = arith.constant 1 : index
    %c0_8 = arith.constant 0 : index
    %c0_9 = arith.constant 0 : index
    %5 = vector.load %arg2[%c0_7, %c1, %c0_8, %c0_9] : memref<1x4x27x6272xbf16, #tpu.memory_space<vmem>>, vector<1x1x27x896xbf16>
    %6 = vector.shape_cast %5 : vector<1x1x27x896xbf16> to vector<27x896xbf16>
    %cst_10 = arith.constant dense<0.000000e+00> : vector<16x896xf32>
    %7 = tpu.matmul %0, %6, %cst_10 {dimension_numbers = #tpu.dot_dimension_numbers<[1], [0], [0], [1], [0, 0, 1, 1], [], []>} : vector<16x27xbf16>, vector<27x896xbf16>, vector<16x896xf32> -> vector<16x896xf32>
    %c0_11 = arith.constant 0 : index
    %c2 = arith.constant 2 : index
    %c0_12 = arith.constant 0 : index
    %c0_13 = arith.constant 0 : index
    %8 = vector.load %arg2[%c0_11, %c2, %c0_12, %c0_13] : memref<1x4x27x6272xbf16, #tpu.memory_space<vmem>>, vector<1x1x27x896xbf16>
    %9 = vector.shape_cast %8 : vector<1x1x27x896xbf16> to vector<27x896xbf16>
    %cst_14 = arith.constant dense<0.000000e+00> : vector<16x896xf32>
    %10 = tpu.matmul %0, %9, %cst_14 {dimension_numbers = #tpu.dot_dimension_numbers<[1], [0], [0], [1], [0, 0, 1, 1], [], []>} : vector<16x27xbf16>, vector<27x896xbf16>, vector<16x896xf32> -> vector<16x896xf32>
    %c0_15 = arith.constant 0 : index
    %c3 = arith.constant 3 : index
    %c0_16 = arith.constant 0 : index
    %c0_17 = arith.constant 0 : index
    %11 = vector.load %arg2[%c0_15, %c3, %c0_16, %c0_17] : memref<1x4x27x6272xbf16, #tpu.memory_space<vmem>>, vector<1x1x27x896xbf16>
    %12 = vector.shape_cast %11 : vector<1x1x27x896xbf16> to vector<27x896xbf16>
    %cst_18 = arith.constant dense<0.000000e+00> : vector<16x896xf32>
    %13 = tpu.matmul %0, %12, %cst_18 {dimension_numbers = #tpu.dot_dimension_numbers<[1], [0], [0], [1], [0, 0, 1, 1], [], []>} : vector<16x27xbf16>, vector<27x896xbf16>, vector<16x896xf32> -> vector<16x896xf32>
    %14 = arith.maximumf %4, %7 : vector<16x896xf32>
    %15 = arith.maximumf %10, %13 : vector<16x896xf32>
    %16 = arith.maximumf %14, %15 : vector<16x896xf32>
    %17 = vector.broadcast %1 : vector<16x1xf32> to vector<16x896xf32>
    %18 = arith.addf %16, %17 : vector<16x896xf32>
    %cst_19 = arith.constant 0.000000e+00 : f32
    %19 = vector.broadcast %cst_19 : f32 to vector<16x896xf32>
    %20 = arith.maximumf %18, %19 : vector<16x896xf32>
    %21 = arith.index_cast %arg1 : i32 to index
    %c0_20 = arith.constant 0 : index
    %c0_21 = arith.constant 0 : index
    %c0_22 = arith.constant 0 : index
    %22 = vector.load %arg5[%21, %c0_20, %c0_21, %c0_22] : memref<2x2x16x6272xbf16, #tpu.memory_space<vmem>>, vector<1x1x16x896xbf16>
    %23 = vector.shape_cast %22 : vector<1x1x16x896xbf16> to vector<16x896xbf16>
    %24 = arith.extf %23 : vector<16x896xbf16> to vector<16x896xf32>
    %25 = arith.index_cast %arg1 : i32 to index
    %c1_23 = arith.constant 1 : index
    %c0_24 = arith.constant 0 : index
    %c0_25 = arith.constant 0 : index
    %26 = vector.load %arg5[%25, %c1_23, %c0_24, %c0_25] : memref<2x2x16x6272xbf16, #tpu.memory_space<vmem>>, vector<1x1x16x896xbf16>
    %27 = vector.shape_cast %26 : vector<1x1x16x896xbf16> to vector<16x896xbf16>
    %28 = arith.extf %27 : vector<16x896xbf16> to vector<16x896xf32>
    %29 = arith.mulf %20, %24 : vector<16x896xf32>
    %30 = vector.shape_cast %29 : vector<16x896xf32> to vector<1x16x896xf32>
    %cst_26 = arith.constant dense<0.000000e+00> : vector<1xf32>
    %31 = vector.multi_reduction <add>, %30, %cst_26 [1, 2] : vector<1x16x896xf32> to vector<1xf32>
    %32 = vector.shape_cast %31 : vector<1xf32> to vector<1x1x1xf32>
    %33 = vector.extract %32[0, 0, 0] : f32 from vector<1x1x1xf32>
    %cst_27 = arith.constant 0.000000e+00 : f32
    %34 = arith.addf %cst_27, %33 : f32
    %35 = arith.mulf %20, %28 : vector<16x896xf32>
    %36 = vector.shape_cast %35 : vector<16x896xf32> to vector<1x16x896xf32>
    %cst_28 = arith.constant dense<0.000000e+00> : vector<1xf32>
    %37 = vector.multi_reduction <add>, %36, %cst_28 [1, 2] : vector<1x16x896xf32> to vector<1xf32>
    %38 = vector.shape_cast %37 : vector<1xf32> to vector<1x1x1xf32>
    %39 = vector.extract %38[0, 0, 0] : f32 from vector<1x1x1xf32>
    %cst_29 = arith.constant 0.000000e+00 : f32
    %40 = arith.addf %cst_29, %39 : f32
    %c0_30 = arith.constant 0 : index
    %c0_31 = arith.constant 0 : index
    %c0_32 = arith.constant 0 : index
    %c896 = arith.constant 896 : index
    %41 = vector.load %arg2[%c0_30, %c0_31, %c0_32, %c896] : memref<1x4x27x6272xbf16, #tpu.memory_space<vmem>>, vector<1x1x27x896xbf16>
    %42 = vector.shape_cast %41 : vector<1x1x27x896xbf16> to vector<27x896xbf16>
    %cst_33 = arith.constant dense<0.000000e+00> : vector<16x896xf32>
    %43 = tpu.matmul %0, %42, %cst_33 {dimension_numbers = #tpu.dot_dimension_numbers<[1], [0], [0], [1], [0, 0, 1, 1], [], []>} : vector<16x27xbf16>, vector<27x896xbf16>, vector<16x896xf32> -> vector<16x896xf32>
    %c0_34 = arith.constant 0 : index
    %c1_35 = arith.constant 1 : index
    %c0_36 = arith.constant 0 : index
    %c896_37 = arith.constant 896 : index
    %44 = vector.load %arg2[%c0_34, %c1_35, %c0_36, %c896_37] : memref<1x4x27x6272xbf16, #tpu.memory_space<vmem>>, vector<1x1x27x896xbf16>
    %45 = vector.shape_cast %44 : vector<1x1x27x896xbf16> to vector<27x896xbf16>
    %cst_38 = arith.constant dense<0.000000e+00> : vector<16x896xf32>
    %46 = tpu.matmul %0, %45, %cst_38 {dimension_numbers = #tpu.dot_dimension_numbers<[1], [0], [0], [1], [0, 0, 1, 1], [], []>} : vector<16x27xbf16>, vector<27x896xbf16>, vector<16x896xf32> -> vector<16x896xf32>
    %c0_39 = arith.constant 0 : index
    %c2_40 = arith.constant 2 : index
    %c0_41 = arith.constant 0 : index
    %c896_42 = arith.constant 896 : index
    %47 = vector.load %arg2[%c0_39, %c2_40, %c0_41, %c896_42] : memref<1x4x27x6272xbf16, #tpu.memory_space<vmem>>, vector<1x1x27x896xbf16>
    %48 = vector.shape_cast %47 : vector<1x1x27x896xbf16> to vector<27x896xbf16>
    %cst_43 = arith.constant dense<0.000000e+00> : vector<16x896xf32>
    %49 = tpu.matmul %0, %48, %cst_43 {dimension_numbers = #tpu.dot_dimension_numbers<[1], [0], [0], [1], [0, 0, 1, 1], [], []>} : vector<16x27xbf16>, vector<27x896xbf16>, vector<16x896xf32> -> vector<16x896xf32>
    %c0_44 = arith.constant 0 : index
    %c3_45 = arith.constant 3 : index
    %c0_46 = arith.constant 0 : index
    %c896_47 = arith.constant 896 : index
    %50 = vector.load %arg2[%c0_44, %c3_45, %c0_46, %c896_47] : memref<1x4x27x6272xbf16, #tpu.memory_space<vmem>>, vector<1x1x27x896xbf16>
    %51 = vector.shape_cast %50 : vector<1x1x27x896xbf16> to vector<27x896xbf16>
    %cst_48 = arith.constant dense<0.000000e+00> : vector<16x896xf32>
    %52 = tpu.matmul %0, %51, %cst_48 {dimension_numbers = #tpu.dot_dimension_numbers<[1], [0], [0], [1], [0, 0, 1, 1], [], []>} : vector<16x27xbf16>, vector<27x896xbf16>, vector<16x896xf32> -> vector<16x896xf32>
    %53 = arith.maximumf %43, %46 : vector<16x896xf32>
    %54 = arith.maximumf %49, %52 : vector<16x896xf32>
    %55 = arith.maximumf %53, %54 : vector<16x896xf32>
    %56 = vector.broadcast %1 : vector<16x1xf32> to vector<16x896xf32>
    %57 = arith.addf %55, %56 : vector<16x896xf32>
    %cst_49 = arith.constant 0.000000e+00 : f32
    %58 = vector.broadcast %cst_49 : f32 to vector<16x896xf32>
    %59 = arith.maximumf %57, %58 : vector<16x896xf32>
    %60 = arith.index_cast %arg1 : i32 to index
    %c0_50 = arith.constant 0 : index
    %c0_51 = arith.constant 0 : index
    %c896_52 = arith.constant 896 : index
    %61 = vector.load %arg5[%60, %c0_50, %c0_51, %c896_52] : memref<2x2x16x6272xbf16, #tpu.memory_space<vmem>>, vector<1x1x16x896xbf16>
    %62 = vector.shape_cast %61 : vector<1x1x16x896xbf16> to vector<16x896xbf16>
    %63 = arith.extf %62 : vector<16x896xbf16> to vector<16x896xf32>
    %64 = arith.index_cast %arg1 : i32 to index
    %c1_53 = arith.constant 1 : index
    %c0_54 = arith.constant 0 : index
    %c896_55 = arith.constant 896 : index
    %65 = vector.load %arg5[%64, %c1_53, %c0_54, %c896_55] : memref<2x2x16x6272xbf16, #tpu.memory_space<vmem>>, vector<1x1x16x896xbf16>
    %66 = vector.shape_cast %65 : vector<1x1x16x896xbf16> to vector<16x896xbf16>
    %67 = arith.extf %66 : vector<16x896xbf16> to vector<16x896xf32>
    %68 = arith.mulf %59, %63 : vector<16x896xf32>
    %69 = vector.shape_cast %68 : vector<16x896xf32> to vector<1x16x896xf32>
    %cst_56 = arith.constant dense<0.000000e+00> : vector<1xf32>
    %70 = vector.multi_reduction <add>, %69, %cst_56 [1, 2] : vector<1x16x896xf32> to vector<1xf32>
    %71 = vector.shape_cast %70 : vector<1xf32> to vector<1x1x1xf32>
    %72 = vector.extract %71[0, 0, 0] : f32 from vector<1x1x1xf32>
    %73 = arith.addf %34, %72 : f32
    %74 = arith.mulf %59, %67 : vector<16x896xf32>
    %75 = vector.shape_cast %74 : vector<16x896xf32> to vector<1x16x896xf32>
    %cst_57 = arith.constant dense<0.000000e+00> : vector<1xf32>
    %76 = vector.multi_reduction <add>, %75, %cst_57 [1, 2] : vector<1x16x896xf32> to vector<1xf32>
    %77 = vector.shape_cast %76 : vector<1xf32> to vector<1x1x1xf32>
    %78 = vector.extract %77[0, 0, 0] : f32 from vector<1x1x1xf32>
    %79 = arith.addf %40, %78 : f32
    %c0_58 = arith.constant 0 : index
    %c0_59 = arith.constant 0 : index
    %c0_60 = arith.constant 0 : index
    %c1792 = arith.constant 1792 : index
    %80 = vector.load %arg2[%c0_58, %c0_59, %c0_60, %c1792] : memref<1x4x27x6272xbf16, #tpu.memory_space<vmem>>, vector<1x1x27x896xbf16>
    %81 = vector.shape_cast %80 : vector<1x1x27x896xbf16> to vector<27x896xbf16>
    %cst_61 = arith.constant dense<0.000000e+00> : vector<16x896xf32>
    %82 = tpu.matmul %0, %81, %cst_61 {dimension_numbers = #tpu.dot_dimension_numbers<[1], [0], [0], [1], [0, 0, 1, 1], [], []>} : vector<16x27xbf16>, vector<27x896xbf16>, vector<16x896xf32> -> vector<16x896xf32>
    %c0_62 = arith.constant 0 : index
    %c1_63 = arith.constant 1 : index
    %c0_64 = arith.constant 0 : index
    %c1792_65 = arith.constant 1792 : index
    %83 = vector.load %arg2[%c0_62, %c1_63, %c0_64, %c1792_65] : memref<1x4x27x6272xbf16, #tpu.memory_space<vmem>>, vector<1x1x27x896xbf16>
    %84 = vector.shape_cast %83 : vector<1x1x27x896xbf16> to vector<27x896xbf16>
    %cst_66 = arith.constant dense<0.000000e+00> : vector<16x896xf32>
    %85 = tpu.matmul %0, %84, %cst_66 {dimension_numbers = #tpu.dot_dimension_numbers<[1], [0], [0], [1], [0, 0, 1, 1], [], []>} : vector<16x27xbf16>, vector<27x896xbf16>, vector<16x896xf32> -> vector<16x896xf32>
    %c0_67 = arith.constant 0 : index
    %c2_68 = arith.constant 2 : index
    %c0_69 = arith.constant 0 : index
    %c1792_70 = arith.constant 1792 : index
    %86 = vector.load %arg2[%c0_67, %c2_68, %c0_69, %c1792_70] : memref<1x4x27x6272xbf16, #tpu.memory_space<vmem>>, vector<1x1x27x896xbf16>
    %87 = vector.shape_cast %86 : vector<1x1x27x896xbf16> to vector<27x896xbf16>
    %cst_71 = arith.constant dense<0.000000e+00> : vector<16x896xf32>
    %88 = tpu.matmul %0, %87, %cst_71 {dimension_numbers = #tpu.dot_dimension_numbers<[1], [0], [0], [1], [0, 0, 1, 1], [], []>} : vector<16x27xbf16>, vector<27x896xbf16>, vector<16x896xf32> -> vector<16x896xf32>
    %c0_72 = arith.constant 0 : index
    %c3_73 = arith.constant 3 : index
    %c0_74 = arith.constant 0 : index
    %c1792_75 = arith.constant 1792 : index
    %89 = vector.load %arg2[%c0_72, %c3_73, %c0_74, %c1792_75] : memref<1x4x27x6272xbf16, #tpu.memory_space<vmem>>, vector<1x1x27x896xbf16>
    %90 = vector.shape_cast %89 : vector<1x1x27x896xbf16> to vector<27x896xbf16>
    %cst_76 = arith.constant dense<0.000000e+00> : vector<16x896xf32>
    %91 = tpu.matmul %0, %90, %cst_76 {dimension_numbers = #tpu.dot_dimension_numbers<[1], [0], [0], [1], [0, 0, 1, 1], [], []>} : vector<16x27xbf16>, vector<27x896xbf16>, vector<16x896xf32> -> vector<16x896xf32>
    %92 = arith.maximumf %82, %85 : vector<16x896xf32>
    %93 = arith.maximumf %88, %91 : vector<16x896xf32>
    %94 = arith.maximumf %92, %93 : vector<16x896xf32>
    %95 = vector.broadcast %1 : vector<16x1xf32> to vector<16x896xf32>
    %96 = arith.addf %94, %95 : vector<16x896xf32>
    %cst_77 = arith.constant 0.000000e+00 : f32
    %97 = vector.broadcast %cst_77 : f32 to vector<16x896xf32>
    %98 = arith.maximumf %96, %97 : vector<16x896xf32>
    %99 = arith.index_cast %arg1 : i32 to index
    %c0_78 = arith.constant 0 : index
    %c0_79 = arith.constant 0 : index
    %c1792_80 = arith.constant 1792 : index
    %100 = vector.load %arg5[%99, %c0_78, %c0_79, %c1792_80] : memref<2x2x16x6272xbf16, #tpu.memory_space<vmem>>, vector<1x1x16x896xbf16>
    %101 = vector.shape_cast %100 : vector<1x1x16x896xbf16> to vector<16x896xbf16>
    %102 = arith.extf %101 : vector<16x896xbf16> to vector<16x896xf32>
    %103 = arith.index_cast %arg1 : i32 to index
    %c1_81 = arith.constant 1 : index
    %c0_82 = arith.constant 0 : index
    %c1792_83 = arith.constant 1792 : index
    %104 = vector.load %arg5[%103, %c1_81, %c0_82, %c1792_83] : memref<2x2x16x6272xbf16, #tpu.memory_space<vmem>>, vector<1x1x16x896xbf16>
    %105 = vector.shape_cast %104 : vector<1x1x16x896xbf16> to vector<16x896xbf16>
    %106 = arith.extf %105 : vector<16x896xbf16> to vector<16x896xf32>
    %107 = arith.mulf %98, %102 : vector<16x896xf32>
    %108 = vector.shape_cast %107 : vector<16x896xf32> to vector<1x16x896xf32>
    %cst_84 = arith.constant dense<0.000000e+00> : vector<1xf32>
    %109 = vector.multi_reduction <add>, %108, %cst_84 [1, 2] : vector<1x16x896xf32> to vector<1xf32>
    %110 = vector.shape_cast %109 : vector<1xf32> to vector<1x1x1xf32>
    %111 = vector.extract %110[0, 0, 0] : f32 from vector<1x1x1xf32>
    %112 = arith.addf %73, %111 : f32
    %113 = arith.mulf %98, %106 : vector<16x896xf32>
    %114 = vector.shape_cast %113 : vector<16x896xf32> to vector<1x16x896xf32>
    %cst_85 = arith.constant dense<0.000000e+00> : vector<1xf32>
    %115 = vector.multi_reduction <add>, %114, %cst_85 [1, 2] : vector<1x16x896xf32> to vector<1xf32>
    %116 = vector.shape_cast %115 : vector<1xf32> to vector<1x1x1xf32>
    %117 = vector.extract %116[0, 0, 0] : f32 from vector<1x1x1xf32>
    %118 = arith.addf %79, %117 : f32
    %c0_86 = arith.constant 0 : index
    %c0_87 = arith.constant 0 : index
    %c0_88 = arith.constant 0 : index
    %c2688 = arith.constant 2688 : index
    %119 = vector.load %arg2[%c0_86, %c0_87, %c0_88, %c2688] : memref<1x4x27x6272xbf16, #tpu.memory_space<vmem>>, vector<1x1x27x896xbf16>
    %120 = vector.shape_cast %119 : vector<1x1x27x896xbf16> to vector<27x896xbf16>
    %cst_89 = arith.constant dense<0.000000e+00> : vector<16x896xf32>
    %121 = tpu.matmul %0, %120, %cst_89 {dimension_numbers = #tpu.dot_dimension_numbers<[1], [0], [0], [1], [0, 0, 1, 1], [], []>} : vector<16x27xbf16>, vector<27x896xbf16>, vector<16x896xf32> -> vector<16x896xf32>
    %c0_90 = arith.constant 0 : index
    %c1_91 = arith.constant 1 : index
    %c0_92 = arith.constant 0 : index
    %c2688_93 = arith.constant 2688 : index
    %122 = vector.load %arg2[%c0_90, %c1_91, %c0_92, %c2688_93] : memref<1x4x27x6272xbf16, #tpu.memory_space<vmem>>, vector<1x1x27x896xbf16>
    %123 = vector.shape_cast %122 : vector<1x1x27x896xbf16> to vector<27x896xbf16>
    %cst_94 = arith.constant dense<0.000000e+00> : vector<16x896xf32>
    %124 = tpu.matmul %0, %123, %cst_94 {dimension_numbers = #tpu.dot_dimension_numbers<[1], [0], [0], [1], [0, 0, 1, 1], [], []>} : vector<16x27xbf16>, vector<27x896xbf16>, vector<16x896xf32> -> vector<16x896xf32>
    %c0_95 = arith.constant 0 : index
    %c2_96 = arith.constant 2 : index
    %c0_97 = arith.constant 0 : index
    %c2688_98 = arith.constant 2688 : index
    %125 = vector.load %arg2[%c0_95, %c2_96, %c0_97, %c2688_98] : memref<1x4x27x6272xbf16, #tpu.memory_space<vmem>>, vector<1x1x27x896xbf16>
    %126 = vector.shape_cast %125 : vector<1x1x27x896xbf16> to vector<27x896xbf16>
    %cst_99 = arith.constant dense<0.000000e+00> : vector<16x896xf32>
    %127 = tpu.matmul %0, %126, %cst_99 {dimension_numbers = #tpu.dot_dimension_numbers<[1], [0], [0], [1], [0, 0, 1, 1], [], []>} : vector<16x27xbf16>, vector<27x896xbf16>, vector<16x896xf32> -> vector<16x896xf32>
    %c0_100 = arith.constant 0 : index
    %c3_101 = arith.constant 3 : index
    %c0_102 = arith.constant 0 : index
    %c2688_103 = arith.constant 2688 : index
    %128 = vector.load %arg2[%c0_100, %c3_101, %c0_102, %c2688_103] : memref<1x4x27x6272xbf16, #tpu.memory_space<vmem>>, vector<1x1x27x896xbf16>
    %129 = vector.shape_cast %128 : vector<1x1x27x896xbf16> to vector<27x896xbf16>
    %cst_104 = arith.constant dense<0.000000e+00> : vector<16x896xf32>
    %130 = tpu.matmul %0, %129, %cst_104 {dimension_numbers = #tpu.dot_dimension_numbers<[1], [0], [0], [1], [0, 0, 1, 1], [], []>} : vector<16x27xbf16>, vector<27x896xbf16>, vector<16x896xf32> -> vector<16x896xf32>
    %131 = arith.maximumf %121, %124 : vector<16x896xf32>
    %132 = arith.maximumf %127, %130 : vector<16x896xf32>
    %133 = arith.maximumf %131, %132 : vector<16x896xf32>
    %134 = vector.broadcast %1 : vector<16x1xf32> to vector<16x896xf32>
    %135 = arith.addf %133, %134 : vector<16x896xf32>
    %cst_105 = arith.constant 0.000000e+00 : f32
    %136 = vector.broadcast %cst_105 : f32 to vector<16x896xf32>
    %137 = arith.maximumf %135, %136 : vector<16x896xf32>
    %138 = arith.index_cast %arg1 : i32 to index
    %c0_106 = arith.constant 0 : index
    %c0_107 = arith.constant 0 : index
    %c2688_108 = arith.constant 2688 : index
    %139 = vector.load %arg5[%138, %c0_106, %c0_107, %c2688_108] : memref<2x2x16x6272xbf16, #tpu.memory_space<vmem>>, vector<1x1x16x896xbf16>
    %140 = vector.shape_cast %139 : vector<1x1x16x896xbf16> to vector<16x896xbf16>
    %141 = arith.extf %140 : vector<16x896xbf16> to vector<16x896xf32>
    %142 = arith.index_cast %arg1 : i32 to index
    %c1_109 = arith.constant 1 : index
    %c0_110 = arith.constant 0 : index
    %c2688_111 = arith.constant 2688 : index
    %143 = vector.load %arg5[%142, %c1_109, %c0_110, %c2688_111] : memref<2x2x16x6272xbf16, #tpu.memory_space<vmem>>, vector<1x1x16x896xbf16>
    %144 = vector.shape_cast %143 : vector<1x1x16x896xbf16> to vector<16x896xbf16>
    %145 = arith.extf %144 : vector<16x896xbf16> to vector<16x896xf32>
    %146 = arith.mulf %137, %141 : vector<16x896xf32>
    %147 = vector.shape_cast %146 : vector<16x896xf32> to vector<1x16x896xf32>
    %cst_112 = arith.constant dense<0.000000e+00> : vector<1xf32>
    %148 = vector.multi_reduction <add>, %147, %cst_112 [1, 2] : vector<1x16x896xf32> to vector<1xf32>
    %149 = vector.shape_cast %148 : vector<1xf32> to vector<1x1x1xf32>
    %150 = vector.extract %149[0, 0, 0] : f32 from vector<1x1x1xf32>
    %151 = arith.addf %112, %150 : f32
    %152 = arith.mulf %137, %145 : vector<16x896xf32>
    %153 = vector.shape_cast %152 : vector<16x896xf32> to vector<1x16x896xf32>
    %cst_113 = arith.constant dense<0.000000e+00> : vector<1xf32>
    %154 = vector.multi_reduction <add>, %153, %cst_113 [1, 2] : vector<1x16x896xf32> to vector<1xf32>
    %155 = vector.shape_cast %154 : vector<1xf32> to vector<1x1x1xf32>
    %156 = vector.extract %155[0, 0, 0] : f32 from vector<1x1x1xf32>
    %157 = arith.addf %118, %156 : f32
    %c0_114 = arith.constant 0 : index
    %c0_115 = arith.constant 0 : index
    %c0_116 = arith.constant 0 : index
    %c3584 = arith.constant 3584 : index
    %158 = vector.load %arg2[%c0_114, %c0_115, %c0_116, %c3584] : memref<1x4x27x6272xbf16, #tpu.memory_space<vmem>>, vector<1x1x27x896xbf16>
    %159 = vector.shape_cast %158 : vector<1x1x27x896xbf16> to vector<27x896xbf16>
    %cst_117 = arith.constant dense<0.000000e+00> : vector<16x896xf32>
    %160 = tpu.matmul %0, %159, %cst_117 {dimension_numbers = #tpu.dot_dimension_numbers<[1], [0], [0], [1], [0, 0, 1, 1], [], []>} : vector<16x27xbf16>, vector<27x896xbf16>, vector<16x896xf32> -> vector<16x896xf32>
    %c0_118 = arith.constant 0 : index
    %c1_119 = arith.constant 1 : index
    %c0_120 = arith.constant 0 : index
    %c3584_121 = arith.constant 3584 : index
    %161 = vector.load %arg2[%c0_118, %c1_119, %c0_120, %c3584_121] : memref<1x4x27x6272xbf16, #tpu.memory_space<vmem>>, vector<1x1x27x896xbf16>
    %162 = vector.shape_cast %161 : vector<1x1x27x896xbf16> to vector<27x896xbf16>
    %cst_122 = arith.constant dense<0.000000e+00> : vector<16x896xf32>
    %163 = tpu.matmul %0, %162, %cst_122 {dimension_numbers = #tpu.dot_dimension_numbers<[1], [0], [0], [1], [0, 0, 1, 1], [], []>} : vector<16x27xbf16>, vector<27x896xbf16>, vector<16x896xf32> -> vector<16x896xf32>
    %c0_123 = arith.constant 0 : index
    %c2_124 = arith.constant 2 : index
    %c0_125 = arith.constant 0 : index
    %c3584_126 = arith.constant 3584 : index
    %164 = vector.load %arg2[%c0_123, %c2_124, %c0_125, %c3584_126] : memref<1x4x27x6272xbf16, #tpu.memory_space<vmem>>, vector<1x1x27x896xbf16>
    %165 = vector.shape_cast %164 : vector<1x1x27x896xbf16> to vector<27x896xbf16>
    %cst_127 = arith.constant dense<0.000000e+00> : vector<16x896xf32>
    %166 = tpu.matmul %0, %165, %cst_127 {dimension_numbers = #tpu.dot_dimension_numbers<[1], [0], [0], [1], [0, 0, 1, 1], [], []>} : vector<16x27xbf16>, vector<27x896xbf16>, vector<16x896xf32> -> vector<16x896xf32>
    %c0_128 = arith.constant 0 : index
    %c3_129 = arith.constant 3 : index
    %c0_130 = arith.constant 0 : index
    %c3584_131 = arith.constant 3584 : index
    %167 = vector.load %arg2[%c0_128, %c3_129, %c0_130, %c3584_131] : memref<1x4x27x6272xbf16, #tpu.memory_space<vmem>>, vector<1x1x27x896xbf16>
    %168 = vector.shape_cast %167 : vector<1x1x27x896xbf16> to vector<27x896xbf16>
    %cst_132 = arith.constant dense<0.000000e+00> : vector<16x896xf32>
    %169 = tpu.matmul %0, %168, %cst_132 {dimension_numbers = #tpu.dot_dimension_numbers<[1], [0], [0], [1], [0, 0, 1, 1], [], []>} : vector<16x27xbf16>, vector<27x896xbf16>, vector<16x896xf32> -> vector<16x896xf32>
    %170 = arith.maximumf %160, %163 : vector<16x896xf32>
    %171 = arith.maximumf %166, %169 : vector<16x896xf32>
    %172 = arith.maximumf %170, %171 : vector<16x896xf32>
    %173 = vector.broadcast %1 : vector<16x1xf32> to vector<16x896xf32>
    %174 = arith.addf %172, %173 : vector<16x896xf32>
    %cst_133 = arith.constant 0.000000e+00 : f32
    %175 = vector.broadcast %cst_133 : f32 to vector<16x896xf32>
    %176 = arith.maximumf %174, %175 : vector<16x896xf32>
    %177 = arith.index_cast %arg1 : i32 to index
    %c0_134 = arith.constant 0 : index
    %c0_135 = arith.constant 0 : index
    %c3584_136 = arith.constant 3584 : index
    %178 = vector.load %arg5[%177, %c0_134, %c0_135, %c3584_136] : memref<2x2x16x6272xbf16, #tpu.memory_space<vmem>>, vector<1x1x16x896xbf16>
    %179 = vector.shape_cast %178 : vector<1x1x16x896xbf16> to vector<16x896xbf16>
    %180 = arith.extf %179 : vector<16x896xbf16> to vector<16x896xf32>
    %181 = arith.index_cast %arg1 : i32 to index
    %c1_137 = arith.constant 1 : index
    %c0_138 = arith.constant 0 : index
    %c3584_139 = arith.constant 3584 : index
    %182 = vector.load %arg5[%181, %c1_137, %c0_138, %c3584_139] : memref<2x2x16x6272xbf16, #tpu.memory_space<vmem>>, vector<1x1x16x896xbf16>
    %183 = vector.shape_cast %182 : vector<1x1x16x896xbf16> to vector<16x896xbf16>
    %184 = arith.extf %183 : vector<16x896xbf16> to vector<16x896xf32>
    %185 = arith.mulf %176, %180 : vector<16x896xf32>
    %186 = vector.shape_cast %185 : vector<16x896xf32> to vector<1x16x896xf32>
    %cst_140 = arith.constant dense<0.000000e+00> : vector<1xf32>
    %187 = vector.multi_reduction <add>, %186, %cst_140 [1, 2] : vector<1x16x896xf32> to vector<1xf32>
    %188 = vector.shape_cast %187 : vector<1xf32> to vector<1x1x1xf32>
    %189 = vector.extract %188[0, 0, 0] : f32 from vector<1x1x1xf32>
    %190 = arith.addf %151, %189 : f32
    %191 = arith.mulf %176, %184 : vector<16x896xf32>
    %192 = vector.shape_cast %191 : vector<16x896xf32> to vector<1x16x896xf32>
    %cst_141 = arith.constant dense<0.000000e+00> : vector<1xf32>
    %193 = vector.multi_reduction <add>, %192, %cst_141 [1, 2] : vector<1x16x896xf32> to vector<1xf32>
    %194 = vector.shape_cast %193 : vector<1xf32> to vector<1x1x1xf32>
    %195 = vector.extract %194[0, 0, 0] : f32 from vector<1x1x1xf32>
    %196 = arith.addf %157, %195 : f32
    %c0_142 = arith.constant 0 : index
    %c0_143 = arith.constant 0 : index
    %c0_144 = arith.constant 0 : index
    %c4480 = arith.constant 4480 : index
    %197 = vector.load %arg2[%c0_142, %c0_143, %c0_144, %c4480] : memref<1x4x27x6272xbf16, #tpu.memory_space<vmem>>, vector<1x1x27x896xbf16>
    %198 = vector.shape_cast %197 : vector<1x1x27x896xbf16> to vector<27x896xbf16>
    %cst_145 = arith.constant dense<0.000000e+00> : vector<16x896xf32>
    %199 = tpu.matmul %0, %198, %cst_145 {dimension_numbers = #tpu.dot_dimension_numbers<[1], [0], [0], [1], [0, 0, 1, 1], [], []>} : vector<16x27xbf16>, vector<27x896xbf16>, vector<16x896xf32> -> vector<16x896xf32>
    %c0_146 = arith.constant 0 : index
    %c1_147 = arith.constant 1 : index
    %c0_148 = arith.constant 0 : index
    %c4480_149 = arith.constant 4480 : index
    %200 = vector.load %arg2[%c0_146, %c1_147, %c0_148, %c4480_149] : memref<1x4x27x6272xbf16, #tpu.memory_space<vmem>>, vector<1x1x27x896xbf16>
    %201 = vector.shape_cast %200 : vector<1x1x27x896xbf16> to vector<27x896xbf16>
    %cst_150 = arith.constant dense<0.000000e+00> : vector<16x896xf32>
    %202 = tpu.matmul %0, %201, %cst_150 {dimension_numbers = #tpu.dot_dimension_numbers<[1], [0], [0], [1], [0, 0, 1, 1], [], []>} : vector<16x27xbf16>, vector<27x896xbf16>, vector<16x896xf32> -> vector<16x896xf32>
    %c0_151 = arith.constant 0 : index
    %c2_152 = arith.constant 2 : index
    %c0_153 = arith.constant 0 : index
    %c4480_154 = arith.constant 4480 : index
    %203 = vector.load %arg2[%c0_151, %c2_152, %c0_153, %c4480_154] : memref<1x4x27x6272xbf16, #tpu.memory_space<vmem>>, vector<1x1x27x896xbf16>
    %204 = vector.shape_cast %203 : vector<1x1x27x896xbf16> to vector<27x896xbf16>
    %cst_155 = arith.constant dense<0.000000e+00> : vector<16x896xf32>
    %205 = tpu.matmul %0, %204, %cst_155 {dimension_numbers = #tpu.dot_dimension_numbers<[1], [0], [0], [1], [0, 0, 1, 1], [], []>} : vector<16x27xbf16>, vector<27x896xbf16>, vector<16x896xf32> -> vector<16x896xf32>
    %c0_156 = arith.constant 0 : index
    %c3_157 = arith.constant 3 : index
    %c0_158 = arith.constant 0 : index
    %c4480_159 = arith.constant 4480 : index
    %206 = vector.load %arg2[%c0_156, %c3_157, %c0_158, %c4480_159] : memref<1x4x27x6272xbf16, #tpu.memory_space<vmem>>, vector<1x1x27x896xbf16>
    %207 = vector.shape_cast %206 : vector<1x1x27x896xbf16> to vector<27x896xbf16>
    %cst_160 = arith.constant dense<0.000000e+00> : vector<16x896xf32>
    %208 = tpu.matmul %0, %207, %cst_160 {dimension_numbers = #tpu.dot_dimension_numbers<[1], [0], [0], [1], [0, 0, 1, 1], [], []>} : vector<16x27xbf16>, vector<27x896xbf16>, vector<16x896xf32> -> vector<16x896xf32>
    %209 = arith.maximumf %199, %202 : vector<16x896xf32>
    %210 = arith.maximumf %205, %208 : vector<16x896xf32>
    %211 = arith.maximumf %209, %210 : vector<16x896xf32>
    %212 = vector.broadcast %1 : vector<16x1xf32> to vector<16x896xf32>
    %213 = arith.addf %211, %212 : vector<16x896xf32>
    %cst_161 = arith.constant 0.000000e+00 : f32
    %214 = vector.broadcast %cst_161 : f32 to vector<16x896xf32>
    %215 = arith.maximumf %213, %214 : vector<16x896xf32>
    %216 = arith.index_cast %arg1 : i32 to index
    %c0_162 = arith.constant 0 : index
    %c0_163 = arith.constant 0 : index
    %c4480_164 = arith.constant 4480 : index
    %217 = vector.load %arg5[%216, %c0_162, %c0_163, %c4480_164] : memref<2x2x16x6272xbf16, #tpu.memory_space<vmem>>, vector<1x1x16x896xbf16>
    %218 = vector.shape_cast %217 : vector<1x1x16x896xbf16> to vector<16x896xbf16>
    %219 = arith.extf %218 : vector<16x896xbf16> to vector<16x896xf32>
    %220 = arith.index_cast %arg1 : i32 to index
    %c1_165 = arith.constant 1 : index
    %c0_166 = arith.constant 0 : index
    %c4480_167 = arith.constant 4480 : index
    %221 = vector.load %arg5[%220, %c1_165, %c0_166, %c4480_167] : memref<2x2x16x6272xbf16, #tpu.memory_space<vmem>>, vector<1x1x16x896xbf16>
    %222 = vector.shape_cast %221 : vector<1x1x16x896xbf16> to vector<16x896xbf16>
    %223 = arith.extf %222 : vector<16x896xbf16> to vector<16x896xf32>
    %224 = arith.mulf %215, %219 : vector<16x896xf32>
    %225 = vector.shape_cast %224 : vector<16x896xf32> to vector<1x16x896xf32>
    %cst_168 = arith.constant dense<0.000000e+00> : vector<1xf32>
    %226 = vector.multi_reduction <add>, %225, %cst_168 [1, 2] : vector<1x16x896xf32> to vector<1xf32>
    %227 = vector.shape_cast %226 : vector<1xf32> to vector<1x1x1xf32>
    %228 = vector.extract %227[0, 0, 0] : f32 from vector<1x1x1xf32>
    %229 = arith.addf %190, %228 : f32
    %230 = arith.mulf %215, %223 : vector<16x896xf32>
    %231 = vector.shape_cast %230 : vector<16x896xf32> to vector<1x16x896xf32>
    %cst_169 = arith.constant dense<0.000000e+00> : vector<1xf32>
    %232 = vector.multi_reduction <add>, %231, %cst_169 [1, 2] : vector<1x16x896xf32> to vector<1xf32>
    %233 = vector.shape_cast %232 : vector<1xf32> to vector<1x1x1xf32>
    %234 = vector.extract %233[0, 0, 0] : f32 from vector<1x1x1xf32>
    %235 = arith.addf %196, %234 : f32
    %c0_170 = arith.constant 0 : index
    %c0_171 = arith.constant 0 : index
    %c0_172 = arith.constant 0 : index
    %c5376 = arith.constant 5376 : index
    %236 = vector.load %arg2[%c0_170, %c0_171, %c0_172, %c5376] : memref<1x4x27x6272xbf16, #tpu.memory_space<vmem>>, vector<1x1x27x896xbf16>
    %237 = vector.shape_cast %236 : vector<1x1x27x896xbf16> to vector<27x896xbf16>
    %cst_173 = arith.constant dense<0.000000e+00> : vector<16x896xf32>
    %238 = tpu.matmul %0, %237, %cst_173 {dimension_numbers = #tpu.dot_dimension_numbers<[1], [0], [0], [1], [0, 0, 1, 1], [], []>} : vector<16x27xbf16>, vector<27x896xbf16>, vector<16x896xf32> -> vector<16x896xf32>
    %c0_174 = arith.constant 0 : index
    %c1_175 = arith.constant 1 : index
    %c0_176 = arith.constant 0 : index
    %c5376_177 = arith.constant 5376 : index
    %239 = vector.load %arg2[%c0_174, %c1_175, %c0_176, %c5376_177] : memref<1x4x27x6272xbf16, #tpu.memory_space<vmem>>, vector<1x1x27x896xbf16>
    %240 = vector.shape_cast %239 : vector<1x1x27x896xbf16> to vector<27x896xbf16>
    %cst_178 = arith.constant dense<0.000000e+00> : vector<16x896xf32>
    %241 = tpu.matmul %0, %240, %cst_178 {dimension_numbers = #tpu.dot_dimension_numbers<[1], [0], [0], [1], [0, 0, 1, 1], [], []>} : vector<16x27xbf16>, vector<27x896xbf16>, vector<16x896xf32> -> vector<16x896xf32>
    %c0_179 = arith.constant 0 : index
    %c2_180 = arith.constant 2 : index
    %c0_181 = arith.constant 0 : index
    %c5376_182 = arith.constant 5376 : index
    %242 = vector.load %arg2[%c0_179, %c2_180, %c0_181, %c5376_182] : memref<1x4x27x6272xbf16, #tpu.memory_space<vmem>>, vector<1x1x27x896xbf16>
    %243 = vector.shape_cast %242 : vector<1x1x27x896xbf16> to vector<27x896xbf16>
    %cst_183 = arith.constant dense<0.000000e+00> : vector<16x896xf32>
    %244 = tpu.matmul %0, %243, %cst_183 {dimension_numbers = #tpu.dot_dimension_numbers<[1], [0], [0], [1], [0, 0, 1, 1], [], []>} : vector<16x27xbf16>, vector<27x896xbf16>, vector<16x896xf32> -> vector<16x896xf32>
    %c0_184 = arith.constant 0 : index
    %c3_185 = arith.constant 3 : index
    %c0_186 = arith.constant 0 : index
    %c5376_187 = arith.constant 5376 : index
    %245 = vector.load %arg2[%c0_184, %c3_185, %c0_186, %c5376_187] : memref<1x4x27x6272xbf16, #tpu.memory_space<vmem>>, vector<1x1x27x896xbf16>
    %246 = vector.shape_cast %245 : vector<1x1x27x896xbf16> to vector<27x896xbf16>
    %cst_188 = arith.constant dense<0.000000e+00> : vector<16x896xf32>
    %247 = tpu.matmul %0, %246, %cst_188 {dimension_numbers = #tpu.dot_dimension_numbers<[1], [0], [0], [1], [0, 0, 1, 1], [], []>} : vector<16x27xbf16>, vector<27x896xbf16>, vector<16x896xf32> -> vector<16x896xf32>
    %248 = arith.maximumf %238, %241 : vector<16x896xf32>
    %249 = arith.maximumf %244, %247 : vector<16x896xf32>
    %250 = arith.maximumf %248, %249 : vector<16x896xf32>
    %251 = vector.broadcast %1 : vector<16x1xf32> to vector<16x896xf32>
    %252 = arith.addf %250, %251 : vector<16x896xf32>
    %cst_189 = arith.constant 0.000000e+00 : f32
    %253 = vector.broadcast %cst_189 : f32 to vector<16x896xf32>
    %254 = arith.maximumf %252, %253 : vector<16x896xf32>
    %255 = arith.index_cast %arg1 : i32 to index
    %c0_190 = arith.constant 0 : index
    %c0_191 = arith.constant 0 : index
    %c5376_192 = arith.constant 5376 : index
    %256 = vector.load %arg5[%255, %c0_190, %c0_191, %c5376_192] : memref<2x2x16x6272xbf16, #tpu.memory_space<vmem>>, vector<1x1x16x896xbf16>
    %257 = vector.shape_cast %256 : vector<1x1x16x896xbf16> to vector<16x896xbf16>
    %258 = arith.extf %257 : vector<16x896xbf16> to vector<16x896xf32>
    %259 = arith.index_cast %arg1 : i32 to index
    %c1_193 = arith.constant 1 : index
    %c0_194 = arith.constant 0 : index
    %c5376_195 = arith.constant 5376 : index
    %260 = vector.load %arg5[%259, %c1_193, %c0_194, %c5376_195] : memref<2x2x16x6272xbf16, #tpu.memory_space<vmem>>, vector<1x1x16x896xbf16>
    %261 = vector.shape_cast %260 : vector<1x1x16x896xbf16> to vector<16x896xbf16>
    %262 = arith.extf %261 : vector<16x896xbf16> to vector<16x896xf32>
    %263 = arith.mulf %254, %258 : vector<16x896xf32>
    %264 = vector.shape_cast %263 : vector<16x896xf32> to vector<1x16x896xf32>
    %cst_196 = arith.constant dense<0.000000e+00> : vector<1xf32>
    %265 = vector.multi_reduction <add>, %264, %cst_196 [1, 2] : vector<1x16x896xf32> to vector<1xf32>
    %266 = vector.shape_cast %265 : vector<1xf32> to vector<1x1x1xf32>
    %267 = vector.extract %266[0, 0, 0] : f32 from vector<1x1x1xf32>
    %268 = arith.addf %229, %267 : f32
    %269 = arith.mulf %254, %262 : vector<16x896xf32>
    %270 = vector.shape_cast %269 : vector<16x896xf32> to vector<1x16x896xf32>
    %cst_197 = arith.constant dense<0.000000e+00> : vector<1xf32>
    %271 = vector.multi_reduction <add>, %270, %cst_197 [1, 2] : vector<1x16x896xf32> to vector<1xf32>
    %272 = vector.shape_cast %271 : vector<1xf32> to vector<1x1x1xf32>
    %273 = vector.extract %272[0, 0, 0] : f32 from vector<1x1x1xf32>
    %274 = arith.addf %235, %273 : f32
    %275 = tpu.iota {dimensions = array<i32: 3>} : vector<1x1x1x2xi32>
    %c0_i32 = arith.constant 0 : i32
    %276 = vector.broadcast %c0_i32 : i32 to vector<1x1x1x2xi32>
    %277 = arith.cmpi eq, %275, %276 : vector<1x1x1x2xi32>
    %278 = vector.broadcast %268 : f32 to vector<1x1x1x2xf32>
    %279 = vector.broadcast %274 : f32 to vector<1x1x1x2xf32>
    %280 = arith.select %277, %278, %279 : vector<1x1x1x2xi1>, vector<1x1x1x2xf32>
    %c0_198 = arith.constant 0 : index
    %c0_199 = arith.constant 0 : index
    %c0_200 = arith.constant 0 : index
    %c0_201 = arith.constant 0 : index
    %281 = vector.load %arg6[%c0_198, %c0_199, %c0_200, %c0_201] : memref<1x1x1x2xf32, #tpu.memory_space<vmem>>, vector<1x1x1x2xf32>
    tpu.vector_store %arg6[%c0_198, %c0_199, %c0_200, %c0_201], %280 {strides = array<i32>} : memref<1x1x1x2xf32, #tpu.memory_space<vmem>>, vector<1x1x1x2xf32>,
    return
  }
  func.func @transform_0(%arg0: i32, %arg1: i32) -> (i32, i32, i32, i32) {
    %c0_i32 = arith.constant 0 : i32
    %c0_i32_0 = arith.constant 0 : i32
    %c0_i32_1 = arith.constant 0 : i32
    return %arg0, %c0_i32, %c0_i32_0, %arg1 : i32, i32, i32, i32
  }
  func.func @transform_1(%arg0: i32, %arg1: i32) -> (i32, i32) {
    %c0_i32 = arith.constant 0 : i32
    %c0_i32_0 = arith.constant 0 : i32
    %c0_i32_1 = arith.constant 0 : i32
    return %c0_i32, %c0_i32_0 : i32, i32
  }
  func.func @transform_2(%arg0: i32, %arg1: i32) -> (i32, i32) {
    %c0_i32 = arith.constant 0 : i32
    %c0_i32_0 = arith.constant 0 : i32
    %c0_i32_1 = arith.constant 0 : i32
    return %c0_i32, %c0_i32_0 : i32, i32
  }
  func.func @transform_3(%arg0: i32, %arg1: i32) -> (i32, i32, i32, i32) {
    %c0_i32 = arith.constant 0 : i32
    %c0_i32_0 = arith.constant 0 : i32
    %c0_i32_1 = arith.constant 0 : i32
    %c0_i32_2 = arith.constant 0 : i32
    %c0_i32_3 = arith.constant 0 : i32
    return %c0_i32, %c0_i32_0, %c0_i32_1, %c0_i32_2 : i32, i32, i32, i32
  }
  func.func @transform_4(%arg0: i32, %arg1: i32) -> (i32, i32, i32, i32) {
    %c0_i32 = arith.constant 0 : i32
    %c0_i32_0 = arith.constant 0 : i32
    %c0_i32_1 = arith.constant 0 : i32
    return %arg0, %arg1, %c0_i32, %c0_i32_0 : i32, i32, i32, i32
  }
}

</mosaic_0001>

<llo_original>
// kernel: simple_cnn_forward.1
$region0: #{simple_cnn_forward.1}
  #allocation0 [shape = 'u32[]', space=smem, size = 0x4, offset = 0x4, fixed_abs, tag = 'smem constant byte address 0x4 - core index']
  #allocation1 [shape = 'u32[144,128]{1,0:T(1,128)}', space=vmem, size = 0x12000, scoped, tag = 'internal scratch']
  %s0 = inlined_call_operand.vmem [shape: bf16[2,4,27,12544], index: 0, kind: input, shape index: {}]
  %s1 = inlined_call_operand.vmem [shape: bf16[16,27], index: 1, kind: input, shape index: {}]
  %s2 = inlined_call_operand.vmem [shape: f32[16,1], index: 2, kind: input, shape index: {}]
  %s3 = inlined_call_operand.vmem [shape: bf16[2,2,16,6272], index: 3, kind: input, shape index: {}]
  %s4 = inlined_call_operand.vmem [shape: f32[2,2,1,2], index: 4, kind: output, shape index: {}]
  %s5 = sld [smem:[#allocation0]]
  $region75: #{simple_cnn_forward.1} parent=0
    _
  %s7 = ssub.s32 1, %s5
  %s8 = scalar_select 0, %s7, %s5
  $region1: #{simple_cnn_forward.1} parent=0
    #allocation2 [shape = 'u8[3211264]{0}', space=vmem, size = 0x310000, scoped, tag = 'input window, operand 0']
    loop: start=0, step=1, limit=6
    $region2: #{simple_cnn_forward.1} parent=1 // loop_pre_header
      _
    $region3: #{simple_cnn_forward.1} parent=1 // loop_header
      %s10 = sphi 0, %s14
      %p11 = scmp.ge.s32.totalorder %s10, 6
      %s17 = sphi 0, %s29
      %s18 = sphi 0, %s25
      %s19 = sphi 0, %s17
      %s20 = sphi 0, %s18
      %s21 = sphi 0, %s19
      %s22 = sphi 0, %s20
      %s34 = sphi 0, %s36
      %s37 = sphi 0, %s34
      %s38 = sphi 0, %s37
      %s54 = sphi 0, %s38
      %s58 = sphi 0, %s58
      %s60 = sphi 0, %s58
      %s61 = sphi 0, %s60
      %s75 = sphi 0, %s61
      %s79 = sphi 0, %s79
      %s81 = sphi 0, %s79
      %s82 = sphi 0, %s81
      %s96 = sphi 0, %s82
      %s100 = sphi 0, %s100
      %s102 = sphi 0, %s100
      %s103 = sphi 0, %s102
      %s117 = sphi 0, %s103
      %s125 = sphi 0, %s127
      %s128 = sphi 0, %s125
      %s129 = sphi 0, %s128
      %s145 = sphi 0, %s129
    $region4: #{simple_cnn_forward.1} parent=1 // loop_header_branch
      %13 = sbr.rel (%p11) target = $region8
    $region5: #{simple_cnn_forward.1} parent=1 // loop_body
      %s15 = ssub.s32 %s10, 1
      %s16 = ssub.s32 %s10, 2
      %s23 = sadd.s32 1, %s18
      %p24 = scmp.ge.s32.totalorder %s23, 2
      %s25 = scalar_select %p24, 0, %s23
      %s26 = sadd.s32 1, %s17
      %s27 = scalar_select %p24, %s26, %s17
      %p28 = scmp.ge.s32.totalorder %s27, 2
      %s29 = scalar_select %p28, 0, %s27
      %s30 = ssub.s32 %s17, %s29
      %s31 = ssub.s32 %s18, %s25
      %s32 = sor.u32 %s30, %s31
      %p33 = scmp.eq.s32.totalorder %s32, 0
      %s35 = sadd.s32 %s34, 1
      %s36 = scalar_select %p33, %s34, %s35
      %p39 = pneg %p33
      %p40 = scmp.eq.s32.totalorder %s10, 3
      %p41 = por %p39, %p40
      %p42 = scmp.ne.s32.totalorder %s34, %s37
      %p43 = scmp.eq.s32.totalorder %s10, 0
      %p44 = por %p42, %p43
      %p45 = scmp.ne.s32.totalorder %s34, %s37
      %p46 = scmp.eq.s32.totalorder %s15, 3
      %p47 = por %p45, %p46
      %p48 = scmp.ne.s32.totalorder %s37, %s38
      %p49 = scmp.eq.s32.totalorder %s15, 0
      %p50 = por %p48, %p49
      %p51 = scmp.ne.s32.totalorder %s37, %s38
      %p52 = scmp.eq.s32.totalorder %s16, 3
      %p53 = por %p51, %p52
      %p55 = scmp.ne.s32.totalorder %s38, %s54
      %p56 = scmp.eq.s32.totalorder %s16, 0
      %p57 = por %p55, %p56
      %s59 = sadd.s32 %s58, 1
      %p62 = scmp.eq.s32.totalorder %s10, 3
      %p63 = scmp.ne.s32.totalorder %s58, %s60
      %p64 = scmp.eq.s32.totalorder %s10, 0
      %p65 = por %p63, %p64
      %p66 = scmp.ne.s32.totalorder %s58, %s60
      %p67 = scmp.eq.s32.totalorder %s15, 3
      %p68 = por %p66, %p67
      %p69 = scmp.ne.s32.totalorder %s60, %s61
      %p70 = scmp.eq.s32.totalorder %s15, 0
      %p71 = por %p69, %p70
      %p72 = scmp.ne.s32.totalorder %s60, %s61
      %p73 = scmp.eq.s32.totalorder %s16, 3
      %p74 = por %p72, %p73
      %p76 = scmp.ne.s32.totalorder %s61, %s75
      %p77 = scmp.eq.s32.totalorder %s16, 0
      %p78 = por %p76, %p77
      %s80 = sadd.s32 %s79, 1
      %p83 = scmp.eq.s32.totalorder %s10, 3
      %p84 = scmp.ne.s32.totalorder %s79, %s81
      %p85 = scmp.eq.s32.totalorder %s10, 0
      %p86 = por %p84, %p85
      %p87 = scmp.ne.s32.totalorder %s79, %s81
      %p88 = scmp.eq.s32.totalorder %s15, 3
      %p89 = por %p87, %p88
      %p90 = scmp.ne.s32.totalorder %s81, %s82
      %p91 = scmp.eq.s32.totalorder %s15, 0
      %p92 = por %p90, %p91
      %p93 = scmp.ne.s32.totalorder %s81, %s82
      %p94 = scmp.eq.s32.totalorder %s16, 3
      %p95 = por %p93, %p94
      %p97 = scmp.ne.s32.totalorder %s82, %s96
      %p98 = scmp.eq.s32.totalorder %s16, 0
      %p99 = por %p97, %p98
      %s101 = sadd.s32 %s100, 1
      %p104 = scmp.eq.s32.totalorder %s10, 3
      %p105 = scmp.ne.s32.totalorder %s100, %s102
      %p106 = scmp.eq.s32.totalorder %s10, 0
      %p107 = por %p105, %p106
      %p108 = scmp.ne.s32.totalorder %s100, %s102
      %p109 = scmp.eq.s32.totalorder %s15, 3
      %p110 = por %p108, %p109
      %p111 = scmp.ne.s32.totalorder %s102, %s103
      %p112 = scmp.eq.s32.totalorder %s15, 0
      %p113 = por %p111, %p112
      %p114 = scmp.ne.s32.totalorder %s102, %s103
      %p115 = scmp.eq.s32.totalorder %s16, 3
      %p116 = por %p114, %p115
      %p118 = scmp.ne.s32.totalorder %s103, %s117
      %p119 = scmp.eq.s32.totalorder %s16, 0
      %p120 = por %p118, %p119
      %s121 = ssub.s32 %s17, %s29
      %s122 = ssub.s32 %s18, %s25
      %s123 = sor.u32 %s121, %s122
      %p124 = scmp.eq.s32.totalorder %s123, 0
      %s126 = sadd.s32 %s125, 1
      %s127 = scalar_select %p124, %s125, %s126
      %p130 = pneg %p124
      %p131 = scmp.eq.s32.totalorder %s10, 3
      %p132 = por %p130, %p131
      %p133 = scmp.ne.s32.totalorder %s125, %s128
      %p134 = scmp.eq.s32.totalorder %s10, 0
      %p135 = por %p133, %p134
      %p136 = scmp.ne.s32.totalorder %s125, %s128
      %p137 = scmp.eq.s32.totalorder %s15, 3
      %p138 = por %p136, %p137
      %p139 = scmp.ne.s32.totalorder %s128, %s129
      %p140 = scmp.eq.s32.totalorder %s15, 0
      %p141 = por %p139, %p140
      %p142 = scmp.ne.s32.totalorder %s128, %s129
      %p143 = scmp.eq.s32.totalorder %s16, 3
      %p144 = por %p142, %p143
      %p146 = scmp.ne.s32.totalorder %s129, %s145
      %p147 = scmp.eq.s32.totalorder %s16, 0
      %p148 = por %p146, %p147
      %p149 = scmp.le.s32.totalorder 1, %s10
      %p150 = scmp.lt.s32.totalorder %s10, 5
      %p151 = pnand %p149, %p150
      %p152 = pneg %p151
      // Predicated region
      $region9: #{simple_cnn_forward.1} parent=5 // pred_check
        _
      $region10: #{simple_cnn_forward.1} parent=5 // pred_check_branch
        %154 = sbr.rel (%p151) target = $region12
      $region11: #{simple_cnn_forward.1} parent=5 // pred_region
        %s155 = ssub.s32 %s10, 1
        // Predicated region
        $region13: #{simple_cnn_forward.1} parent=11 // pred_check
          %p156 = pneg %p71
        $region14: #{simple_cnn_forward.1} parent=11 // pred_check_branch
          %158 = sbr.rel (%p156) target = $region16
        $region15: #{simple_cnn_forward.1} parent=11 // pred_region
          _
        $region16: #{simple_cnn_forward.1} parent=11 // pred_fallthru
          _
        // Predicated region
        $region17: #{simple_cnn_forward.1} parent=11 // pred_check
          %p159 = pneg %p92
        $region18: #{simple_cnn_forward.1} parent=11 // pred_check_branch
          %161 = sbr.rel (%p159) target = $region20
        $region19: #{simple_cnn_forward.1} parent=11 // pred_region
          _
        $region20: #{simple_cnn_forward.1} parent=11 // pred_fallthru
          _
        // Predicated region
        $region21: #{simple_cnn_forward.1} parent=11 // pred_check
          %p162 = pneg %p113
        $region22: #{simple_cnn_forward.1} parent=11 // pred_check_branch
          %164 = sbr.rel (%p162) target = $region24
        $region23: #{simple_cnn_forward.1} parent=11 // pred_region
          _
        $region24: #{simple_cnn_forward.1} parent=11 // pred_fallthru
          _
      $region12: #{simple_cnn_forward.1} parent=5 // pred_fallthru
        _
      %p165 = scmp.lt.s32.totalorder %s10, 4
      // Predicated region
      $region25: #{simple_cnn_forward.1} parent=5 // pred_check
        %p166 = pneg %p165
      $region26: #{simple_cnn_forward.1} parent=5 // pred_check_branch
        %168 = sbr.rel (%p166) target = $region28
      $region27: #{simple_cnn_forward.1} parent=5 // pred_region
        // Predicated region
        $region29: #{simple_cnn_forward.1} parent=27 // pred_check
          %p169 = pneg %p44
        $region30: #{simple_cnn_forward.1} parent=27 // pred_check_branch
          %171 = sbr.rel (%p169) target = $region32
        $region31: #{simple_cnn_forward.1} parent=27 // pred_region
          %s172 = sand.u32 %s34, 1
          %s173 = sand.u32 %s34, 1
          %s174 = smul.addr %s173, 3136
          %s175 = scalar_lea.vmem [#allocation2], %s174
          %s176 = smul.u32 49, %s18
          %s177 = smul.addr %s17, 1568
          %s178 = sadd.s32 %s176, %s177
          %s179 = smul.addr %s178, 4
          %s180 = scalar_lea.vmem %s0, %s179
          // Predicated region
          $region33: #{simple_cnn_forward.1} parent=31 // pred_check
            _
          $region34: #{simple_cnn_forward.1} parent=31 // pred_check_branch
            %182 = sbr.rel (0) target = $region36
          $region35: #{simple_cnn_forward.1} parent=31 // pred_region
            // Predicated region
            $region37: #{simple_cnn_forward.1} parent=35 // pred_check
              _
            $region38: #{simple_cnn_forward.1} parent=35 // pred_check_branch
              %184 = sbr.rel (0) target = $region40
            $region39: #{simple_cnn_forward.1} parent=35 // pred_region
              %s185 = scalar_lea.vmem %s180, 192
              %s186 = scalar_lea.vmem %s175, 192 [#allocation2]
              loop: start=0, step=1, limit=1
              $region41: #{simple_cnn_forward.1} parent=39 // loop_pre_header
                _
              $region42: #{simple_cnn_forward.1} parent=39 // loop_header
                %s188 = sphi 0, %s192
                %p189 = scmp.ge.s32.totalorder %s188, 1
                %s193 = sphi %s180, %s180
                %s194 = sphi %s175, %s175
              $region43: #{simple_cnn_forward.1} parent=39 // loop_header_branch
                %191 = sbr.rel (%p189) target = $region47
              $region44: #{simple_cnn_forward.1} parent=39 // loop_body
                %v195 = vld [vmem:[%s193] sm:$0xff]
                %196 = vst [vmem:[%s194] sm:$0xff] %v195
                %v197 = vld [vmem:[%s193 + $0x8] sm:$0xff]
                %198 = vst [vmem:[%s194 + $0x8] sm:$0xff] %v197
                %v199 = vld [vmem:[%s193 + $0x10] sm:$0xff]
                %200 = vst [vmem:[%s194 + $0x10] sm:$0xff] %v199
                %v201 = vld [vmem:[%s193 + $0x18] sm:$0xff]
                %202 = vst [vmem:[%s194 + $0x18] sm:$0xff] %v201
                %v203 = vld [vmem:[%s193 + $0x20] sm:$0xff]
                %204 = vst [vmem:[%s194 + $0x20] sm:$0xff] %v203
                %v205 = vld [vmem:[%s193 + $0x28] sm:$0xff]
                %206 = vst [vmem:[%s194 + $0x28] sm:$0xff] %v205
                %v207 = vld [vmem:[%s193 + $0x30] sm:$0xff]
                %208 = vst [vmem:[%s194 + $0x30] sm:$0xff] %v207
                %v209 = vld [vmem:[%s193 + $0x38] sm:$0xff]
                %210 = vst [vmem:[%s194 + $0x38] sm:$0xff] %v209
                %v211 = vld [vmem:[%s193 + $0x40] sm:$0xff]
                %212 = vst [vmem:[%s194 + $0x40] sm:$0xff] %v211
                %v213 = vld [vmem:[%s193 + $0x48] sm:$0xff]
                %214 = vst [vmem:[%s194 + $0x48] sm:$0xff] %v213
                %v215 = vld [vmem:[%s193 + $0x50] sm:$0xff]
                %216 = vst [vmem:[%s194 + $0x50] sm:$0xff] %v215
                %v217 = vld [vmem:[%s193 + $0x58] sm:$0xff]
                %218 = vst [vmem:[%s194 + $0x58] sm:$0xff] %v217
                %v219 = vld [vmem:[%s193 + $0x60] sm:$0xff]
                %220 = vst [vmem:[%s194 + $0x60] sm:$0xff] %v219
                %v221 = vld [vmem:[%s193 + $0x68] sm:$0xff]
                %222 = vst [vmem:[%s194 + $0x68] sm:$0xff] %v221
                %v223 = vld [vmem:[%s193 + $0x70] sm:$0xff]
                %224 = vst [vmem:[%s194 + $0x70] sm:$0xff] %v223
                %v225 = vld [vmem:[%s193 + $0x78] sm:$0xff]
                %226 = vst [vmem:[%s194 + $0x78] sm:$0xff] %v225
                %v227 = vld [vmem:[%s193 + $0x80] sm:$0xff]
                %228 = vst [vmem:[%s194 + $0x80] sm:$0xff] %v227
                %v229 = vld [vmem:[%s193 + $0x88] sm:$0xff]
                %230 = vst [vmem:[%s194 + $0x88] sm:$0xff] %v229
                %v231 = vld [vmem:[%s193 + $0x90] sm:$0xff]
                %232 = vst [vmem:[%s194 + $0x90] sm:$0xff] %v231
                %v233 = vld [vmem:[%s193 + $0x98] sm:$0xff]
                %234 = vst [vmem:[%s194 + $0x98] sm:$0xff] %v233
                %v235 = vld [vmem:[%s193 + $0xa0] sm:$0xff]
                %236 = vst [vmem:[%s194 + $0xa0] sm:$0xff] %v235
                %v237 = vld [vmem:[%s193 + $0xa8] sm:$0xff]
                %238 = vst [vmem:[%s194 + $0xa8] sm:$0xff] %v237
                %v239 = vld [vmem:[%s193 + $0xb0] sm:$0xff]
                %240 = vst [vmem:[%s194 + $0xb0] sm:$0xff] %v239
                %v241 = vld [vmem:[%s193 + $0xb8] sm:$0xff]
                %242 = vst [vmem:[%s194 + $0xb8] sm:$0xff] %v241
                %v243 = vld [vmem:[%s193 + $0x188] sm:$0xff]
                %244 = vst [vmem:[%s194 + $0xc4] sm:$0xff] %v243
                %v245 = vld [vmem:[%s193 + $0x190] sm:$0xff]
                %246 = vst [vmem:[%s194 + $0xcc] sm:$0xff] %v245
                %v247 = vld [vmem:[%s193 + $0x198] sm:$0xff]
                %248 = vst [vmem:[%s194 + $0xd4] sm:$0xff] %v247
                %v249 = vld [vmem:[%s193 + $0x1a0] sm:$0xff]
                %250 = vst [vmem:[%s194 + $0xdc] sm:$0xff] %v249
                %v251 = vld [vmem:[%s193 + $0x1a8] sm:$0xff]
                %252 = vst [vmem:[%s194 + $0xe4] sm:$0xff] %v251
                %v253 = vld [vmem:[%s193 + $0x1b0] sm:$0xff]
                %254 = vst [vmem:[%s194 + $0xec] sm:$0xff] %v253
                %v255 = vld [vmem:[%s193 + $0x1b8] sm:$0xff]
                %256 = vst [vmem:[%s194 + $0xf4] sm:$0xff] %v255
                %v257 = vld [vmem:[%s193 + $0x1c0] sm:$0xff]
                %258 = vst [vmem:[%s194 + $0xfc] sm:$0xff] %v257
                %v259 = vld [vmem:[%s193 + $0x1c8] sm:$0xff]
                %260 = vst [vmem:[%s194 + $0x104] sm:$0xff] %v259
                %v261 = vld [vmem:[%s193 + $0x1d0] sm:$0xff]
                %262 = vst [vmem:[%s194 + $0x10c] sm:$0xff] %v261
                %v263 = vld [vmem:[%s193 + $0x1d8] sm:$0xff]
                %264 = vst [vmem:[%s194 + $0x114] sm:$0xff] %v263
                %v265 = vld [vmem:[%s193 + $0x1e0] sm:$0xff]
                %266 = vst [vmem:[%s194 + $0x11c] sm:$0xff] %v265
                %v267 = vld [vmem:[%s193 + $0x1e8] sm:$0xff]
                %268 = vst [vmem:[%s194 + $0x124] sm:$0xff] %v267
                %v269 = vld [vmem:[%s193 + $0x1f0] sm:$0xff]
                %270 = vst [vmem:[%s194 + $0x12c] sm:$0xff] %v269
                %v271 = vld [vmem:[%s193 + $0x1f8] sm:$0xff]
                %272 = vst [vmem:[%s194 + $0x134] sm:$0xff] %v271
                %v273 = vld [vmem:[%s193 + $0x200] sm:$0xff]
                %274 = vst [vmem:[%s194 + $0x13c] sm:$0xff] %v273
                %v275 = vld [vmem:[%s193 + $0x208] sm:$0xff]
                %276 = vst [vmem:[%s194 + $0x144] sm:$0xff] %v275
                %v277 = vld [vmem:[%s193 + $0x210] sm:$0xff]
                %278 = vst [vmem:[%s194 + $0x14c] sm:$0xff] %v277
                %v279 = vld [vmem:[%s193 + $0x218] sm:$0xff]
                %280 = vst [vmem:[%s194 + $0x154] sm:$0xff] %v279
                %v281 = vld [vmem:[%s193 + $0x220] sm:$0xff]
                %282 = vst [vmem:[%s194 + $0x15c] sm:$0xff] %v281
                %v283 = vld [vmem:[%s193 + $0x228] sm:$0xff]
                %284 = vst [vmem:[%s194 + $0x164] sm:$0xff] %v283
                %v285 = vld [vmem:[%s193 + $0x230] sm:$0xff]
                %286 = vst [vmem:[%s194 + $0x16c] sm:$0xff] %v285
                %v287 = vld [vmem:[%s193 + $0x238] sm:$0xff]
                %288 = vst [vmem:[%s194 + $0x174] sm:$0xff] %v287
                %v289 = vld [vmem:[%s193 + $0x240] sm:$0xff]
                %290 = vst [vmem:[%s194 + $0x17c] sm:$0xff] %v289
                %v291 = vld [vmem:[%s193 + $0x310] sm:$0xff]
                %292 = vst [vmem:[%s194 + $0x188] sm:$0xff] %v291
                %v293 = vld [vmem:[%s193 + $0x318] sm:$0xff]
                %294 = vst [vmem:[%s194 + $0x190] sm:$0xff] %v293
                %v295 = vld [vmem:[%s193 + $0x320] sm:$0xff]
                %296 = vst [vmem:[%s194 + $0x198] sm:$0xff] %v295
                %v297 = vld [vmem:[%s193 + $0x328] sm:$0xff]
                %298 = vst [vmem:[%s194 + $0x1a0] sm:$0xff] %v297
                %v299 = vld [vmem:[%s193 + $0x330] sm:$0xff]
                %300 = vst [vmem:[%s194 + $0x1a8] sm:$0xff] %v299
                %v301 = vld [vmem:[%s193 + $0x338] sm:$0xff]
                %302 = vst [vmem:[%s194 + $0x1b0] sm:$0xff] %v301
                %v303 = vld [vmem:[%s193 + $0x340] sm:$0xff]
                %304 = vst [vmem:[%s194 + $0x1b8] sm:$0xff] %v303
                %v305 = vld [vmem:[%s193 + $0x348] sm:$0xff]
                %306 = vst [vmem:[%s194 + $0x1c0] sm:$0xff] %v305
                %v307 = vld [vmem:[%s193 + $0x350] sm:$0xff]
                %308 = vst [vmem:[%s194 + $0x1c8] sm:$0xff] %v307
                %v309 = vld [vmem:[%s193 + $0x358] sm:$0xff]
                %310 = vst [vmem:[%s194 + $0x1d0] sm:$0xff] %v309
                %v311 = vld [vmem:[%s193 + $0x360] sm:$0xff]
                %312 = vst [vmem:[%s194 + $0x1d8] sm:$0xff] %v311
                %v313 = vld [vmem:[%s193 + $0x368] sm:$0xff]
                %314 = vst [vmem:[%s194 + $0x1e0] sm:$0xff] %v313
                %v315 = vld [vmem:[%s193 + $0x370] sm:$0xff]
                %316 = vst [vmem:[%s194 + $0x1e8] sm:$0xff] %v315
                %v317 = vld [vmem:[%s193 + $0x378] sm:$0xff]
                %318 = vst [vmem:[%s194 + $0x1f0] sm:$0xff] %v317
                %v319 = vld [vmem:[%s193 + $0x380] sm:$0xff]
                %320 = vst [vmem:[%s194 + $0x1f8] sm:$0xff] %v319
                %v321 = vld [vmem:[%s193 + $0x388] sm:$0xff]
                %322 = vst [vmem:[%s194 + $0x200] sm:$0xff] %v321
                %v323 = vld [vmem:[%s193 + $0x390] sm:$0xff]
                %324 = vst [vmem:[%s194 + $0x208] sm:$0xff] %v323
                %v325 = vld [vmem:[%s193 + $0x398] sm:$0xff]
                %326 = vst [vmem:[%s194 + $0x210] sm:$0xff] %v325
                %v327 = vld [vmem:[%s193 + $0x3a0] sm:$0xff]
                %328 = vst [vmem:[%s194 + $0x218] sm:$0xff] %v327
                %v329 = vld [vmem:[%s193 + $0x3a8] sm:$0xff]
                %330 = vst [vmem:[%s194 + $0x220] sm:$0xff] %v329
                %v331 = vld [vmem:[%s193 + $0x3b0] sm:$0xff]
                %332 = vst [vmem:[%s194 + $0x228] sm:$0xff] %v331
                %v333 = vld [vmem:[%s193 + $0x3b8] sm:$0xff]
                %334 = vst [vmem:[%s194 + $0x230] sm:$0xff] %v333
                %v335 = vld [vmem:[%s193 + $0x3c0] sm:$0xff]
                %336 = vst [vmem:[%s194 + $0x238] sm:$0xff] %v335
                %v337 = vld [vmem:[%s193 + $0x3c8] sm:$0xff]
                %338 = vst [vmem:[%s194 + $0x240] sm:$0xff] %v337
                %v339 = vld [vmem:[%s193 + $0x498] sm:$0xff]
                %340 = vst [vmem:[%s194 + $0x24c] sm:$0xff] %v339
                %v341 = vld [vmem:[%s193 + $0x4a0] sm:$0xff]
                %342 = vst [vmem:[%s194 + $0x254] sm:$0xff] %v341
                %v343 = vld [vmem:[%s193 + $0x4a8] sm:$0xff]
                %344 = vst [vmem:[%s194 + $0x25c] sm:$0xff] %v343
                %v345 = vld [vmem:[%s193 + $0x4b0] sm:$0xff]
                %346 = vst [vmem:[%s194 + $0x264] sm:$0xff] %v345
                %v347 = vld [vmem:[%s193 + $0x4b8] sm:$0xff]
                %348 = vst [vmem:[%s194 + $0x26c] sm:$0xff] %v347
                %v349 = vld [vmem:[%s193 + $0x4c0] sm:$0xff]
                %350 = vst [vmem:[%s194 + $0x274] sm:$0xff] %v349
                %v351 = vld [vmem:[%s193 + $0x4c8] sm:$0xff]
                %352 = vst [vmem:[%s194 + $0x27c] sm:$0xff] %v351
                %v353 = vld [vmem:[%s193 + $0x4d0] sm:$0xff]
                %354 = vst [vmem:[%s194 + $0x284] sm:$0xff] %v353
                %v355 = vld [vmem:[%s193 + $0x4d8] sm:$0xff]
                %356 = vst [vmem:[%s194 + $0x28c] sm:$0xff] %v355
                %v357 = vld [vmem:[%s193 + $0x4e0] sm:$0xff]
                %358 = vst [vmem:[%s194 + $0x294] sm:$0xff] %v357
                %v359 = vld [vmem:[%s193 + $0x4e8] sm:$0xff]
                %360 = vst [vmem:[%s194 + $0x29c] sm:$0xff] %v359
                %v361 = vld [vmem:[%s193 + $0x4f0] sm:$0xff]
                %362 = vst [vmem:[%s194 + $0x2a4] sm:$0xff] %v361
                %v363 = vld [vmem:[%s193 + $0x4f8] sm:$0xff]
                %364 = vst [vmem:[%s194 + $0x2ac] sm:$0xff] %v363
                %v365 = vld [vmem:[%s193 + $0x500] sm:$0xff]
                %366 = vst [vmem:[%s194 + $0x2b4] sm:$0xff] %v365
                %v367 = vld [vmem:[%s193 + $0x508] sm:$0xff]
                %368 = vst [vmem:[%s194 + $0x2bc] sm:$0xff] %v367
                %v369 = vld [vmem:[%s193 + $0x510] sm:$0xff]
                %370 = vst [vmem:[%s194 + $0x2c4] sm:$0xff] %v369
                %v371 = vld [vmem:[%s193 + $0x518] sm:$0xff]
                %372 = vst [vmem:[%s194 + $0x2cc] sm:$0xff] %v371
                %v373 = vld [vmem:[%s193 + $0x520] sm:$0xff]
                %374 = vst [vmem:[%s194 + $0x2d4] sm:$0xff] %v373
                %v375 = vld [vmem:[%s193 + $0x528] sm:$0xff]
                %376 = vst [vmem:[%s194 + $0x2dc] sm:$0xff] %v375
                %v377 = vld [vmem:[%s193 + $0x530] sm:$0xff]
                %378 = vst [vmem:[%s194 + $0x2e4] sm:$0xff] %v377
                %v379 = vld [vmem:[%s193 + $0x538] sm:$0xff]
                %380 = vst [vmem:[%s194 + $0x2ec] sm:$0xff] %v379
                %v381 = vld [vmem:[%s193 + $0x540] sm:$0xff]
                %382 = vst [vmem:[%s194 + $0x2f4] sm:$0xff] %v381
                %v383 = vld [vmem:[%s193 + $0x548] sm:$0xff]
                %384 = vst [vmem:[%s194 + $0x2fc] sm:$0xff] %v383
                %v385 = vld [vmem:[%s193 + $0x550] sm:$0xff]
                %386 = vst [vmem:[%s194 + $0x304] sm:$0xff] %v385
                %v387 = vld [vmem:[%s193 + $0x620] sm:$0xff]
                %388 = vst [vmem:[%s194 + $0x310] sm:$0xff] %v387
                %v389 = vld [vmem:[%s193 + $0x628] sm:$0xff]
                %390 = vst [vmem:[%s194 + $0x318] sm:$0xff] %v389
                %v391 = vld [vmem:[%s193 + $0x630] sm:$0xff]
                %392 = vst [vmem:[%s194 + $0x320] sm:$0xff] %v391
                %v393 = vld [vmem:[%s193 + $0x638] sm:$0xff]
                %394 = vst [vmem:[%s194 + $0x328] sm:$0xff] %v393
                %v395 = vld [vmem:[%s193 + $0x640] sm:$0xff]
                %396 = vst [vmem:[%s194 + $0x330] sm:$0xff] %v395
                %v397 = vld [vmem:[%s193 + $0x648] sm:$0xff]
                %398 = vst [vmem:[%s194 + $0x338] sm:$0xff] %v397
                %v399 = vld [vmem:[%s193 + $0x650] sm:$0xff]
                %400 = vst [vmem:[%s194 + $0x340] sm:$0xff] %v399
                %v401 = vld [vmem:[%s193 + $0x658] sm:$0xff]
                %402 = vst [vmem:[%s194 + $0x348] sm:$0xff] %v401
                %v403 = vld [vmem:[%s193 + $0x660] sm:$0xff]
                %404 = vst [vmem:[%s194 + $0x350] sm:$0xff] %v403
                %v405 = vld [vmem:[%s193 + $0x668] sm:$0xff]
                %406 = vst [vmem:[%s194 + $0x358] sm:$0xff] %v405
                %v407 = vld [vmem:[%s193 + $0x670] sm:$0xff]
                %408 = vst [vmem:[%s194 + $0x360] sm:$0xff] %v407
                %v409 = vld [vmem:[%s193 + $0x678] sm:$0xff]
                %410 = vst [vmem:[%s194 + $0x368] sm:$0xff] %v409
                %v411 = vld [vmem:[%s193 + $0x680] sm:$0xff]
                %412 = vst [vmem:[%s194 + $0x370] sm:$0xff] %v411
                %v413 = vld [vmem:[%s193 + $0x688] sm:$0xff]
                %414 = vst [vmem:[%s194 + $0x378] sm:$0xff] %v413
                %v415 = vld [vmem:[%s193 + $0x690] sm:$0xff]
                %416 = vst [vmem:[%s194 + $0x380] sm:$0xff] %v415
                %v417 = vld [vmem:[%s193 + $0x698] sm:$0xff]
                %418 = vst [vmem:[%s194 + $0x388] sm:$0xff] %v417
                %v419 = vld [vmem:[%s193 + $0x6a0] sm:$0xff]
                %420 = vst [vmem:[%s194 + $0x390] sm:$0xff] %v419
                %v421 = vld [vmem:[%s193 + $0x6a8] sm:$0xff]
                %422 = vst [vmem:[%s194 + $0x398] sm:$0xff] %v421
                %v423 = vld [vmem:[%s193 + $0x6b0] sm:$0xff]
                %424 = vst [vmem:[%s194 + $0x3a0] sm:$0xff] %v423
                %v425 = vld [vmem:[%s193 + $0x6b8] sm:$0xff]
                %426 = vst [vmem:[%s194 + $0x3a8] sm:$0xff] %v425
                %v427 = vld [vmem:[%s193 + $0x6c0] sm:$0xff]
                %428 = vst [vmem:[%s194 + $0x3b0] sm:$0xff] %v427
                %v429 = vld [vmem:[%s193 + $0x6c8] sm:$0xff]
                %430 = vst [vmem:[%s194 + $0x3b8] sm:$0xff] %v429
                %v431 = vld [vmem:[%s193 + $0x6d0] sm:$0xff]
                %432 = vst [vmem:[%s194 + $0x3c0] sm:$0xff] %v431
                %v433 = vld [vmem:[%s193 + $0x6d8] sm:$0xff]
                %434 = vst [vmem:[%s194 + $0x3c8] sm:$0xff] %v433
                %v435 = vld [vmem:[%s193 + $0x7a8] sm:$0xff]
                %436 = vst [vmem:[%s194 + $0x3d4] sm:$0xff] %v435
                %v437 = vld [vmem:[%s193 + $0x7b0] sm:$0xff]
                %438 = vst [vmem:[%s194 + $0x3dc] sm:$0xff] %v437
                %v439 = vld [vmem:[%s193 + $0x7b8] sm:$0xff]
                %440 = vst [vmem:[%s194 + $0x3e4] sm:$0xff] %v439
                %v441 = vld [vmem:[%s193 + $0x7c0] sm:$0xff]
                %442 = vst [vmem:[%s194 + $0x3ec] sm:$0xff] %v441
                %v443 = vld [vmem:[%s193 + $0x7c8] sm:$0xff]
                %444 = vst [vmem:[%s194 + $0x3f4] sm:$0xff] %v443
                %v445 = vld [vmem:[%s193 + $0x7d0] sm:$0xff]
                %446 = vst [vmem:[%s194 + $0x3fc] sm:$0xff] %v445
                %v447 = vld [vmem:[%s193 + $0x7d8] sm:$0xff]
                %448 = vst [vmem:[%s194 + $0x404] sm:$0xff] %v447
                %v449 = vld [vmem:[%s193 + $0x7e0] sm:$0xff]
                %450 = vst [vmem:[%s194 + $0x40c] sm:$0xff] %v449
                %v451 = vld [vmem:[%s193 + $0x7e8] sm:$0xff]
                %452 = vst [vmem:[%s194 + $0x414] sm:$0xff] %v451
                %v453 = vld [vmem:[%s193 + $0x7f0] sm:$0xff]
                %454 = vst [vmem:[%s194 + $0x41c] sm:$0xff] %v453
                %v455 = vld [vmem:[%s193 + $0x7f8] sm:$0xff]
                %456 = vst [vmem:[%s194 + $0x424] sm:$0xff] %v455
                %v457 = vld [vmem:[%s193 + $0x800] sm:$0xff]
                %458 = vst [vmem:[%s194 + $0x42c] sm:$0xff] %v457
                %v459 = vld [vmem:[%s193 + $0x808] sm:$0xff]
                %460 = vst [vmem:[%s194 + $0x434] sm:$0xff] %v459
                %v461 = vld [vmem:[%s193 + $0x810] sm:$0xff]
                %462 = vst [vmem:[%s194 + $0x43c] sm:$0xff] %v461
                %v463 = vld [vmem:[%s193 + $0x818] sm:$0xff]
                %464 = vst [vmem:[%s194 + $0x444] sm:$0xff] %v463
                %v465 = vld [vmem:[%s193 + $0x820] sm:$0xff]
                %466 = vst [vmem:[%s194 + $0x44c] sm:$0xff] %v465
                %v467 = vld [vmem:[%s193 + $0x828] sm:$0xff]
                %468 = vst [vmem:[%s194 + $0x454] sm:$0xff] %v467
                %v469 = vld [vmem:[%s193 + $0x830] sm:$0xff]
                %470 = vst [vmem:[%s194 + $0x45c] sm:$0xff] %v469
                %v471 = vld [vmem:[%s193 + $0x838] sm:$0xff]
                %472 = vst [vmem:[%s194 + $0x464] sm:$0xff] %v471
                %v473 = vld [vmem:[%s193 + $0x840] sm:$0xff]
                %474 = vst [vmem:[%s194 + $0x46c] sm:$0xff] %v473
                %v475 = vld [vmem:[%s193 + $0x848] sm:$0xff]
                %476 = vst [vmem:[%s194 + $0x474] sm:$0xff] %v475
                %v477 = vld [vmem:[%s193 + $0x850] sm:$0xff]
                %478 = vst [vmem:[%s194 + $0x47c] sm:$0xff] %v477
                %v479 = vld [vmem:[%s193 + $0x858] sm:$0xff]
                %480 = vst [vmem:[%s194 + $0x484] sm:$0xff] %v479
                %v481 = vld [vmem:[%s193 + $0x860] sm:$0xff]
                %482 = vst [vmem:[%s194 + $0x48c] sm:$0xff] %v481
                %v483 = vld [vmem:[%s193 + $0x930] sm:$0xff]
                %484 = vst [vmem:[%s194 + $0x498] sm:$0xff] %v483
                %v485 = vld [vmem:[%s193 + $0x938] sm:$0xff]
                %486 = vst [vmem:[%s194 + $0x4a0] sm:$0xff] %v485
                %v487 = vld [vmem:[%s193 + $0x940] sm:$0xff]
                %488 = vst [vmem:[%s194 + $0x4a8] sm:$0xff] %v487
                %v489 = vld [vmem:[%s193 + $0x948] sm:$0xff]
                %490 = vst [vmem:[%s194 + $0x4b0] sm:$0xff] %v489
                %v491 = vld [vmem:[%s193 + $0x950] sm:$0xff]
                %492 = vst [vmem:[%s194 + $0x4b8] sm:$0xff] %v491
                %v493 = vld [vmem:[%s193 + $0x958] sm:$0xff]
                %494 = vst [vmem:[%s194 + $0x4c0] sm:$0xff] %v493
                %v495 = vld [vmem:[%s193 + $0x960] sm:$0xff]
                %496 = vst [vmem:[%s194 + $0x4c8] sm:$0xff] %v495
                %v497 = vld [vmem:[%s193 + $0x968] sm:$0xff]
                %498 = vst [vmem:[%s194 + $0x4d0] sm:$0xff] %v497
                %v499 = vld [vmem:[%s193 + $0x970] sm:$0xff]
                %500 = vst [vmem:[%s194 + $0x4d8] sm:$0xff] %v499
                %v501 = vld [vmem:[%s193 + $0x978] sm:$0xff]
                %502 = vst [vmem:[%s194 + $0x4e0] sm:$0xff] %v501
                %v503 = vld [vmem:[%s193 + $0x980] sm:$0xff]
                %504 = vst [vmem:[%s194 + $0x4e8] sm:$0xff] %v503
                %v505 = vld [vmem:[%s193 + $0x988] sm:$0xff]
                %506 = vst [vmem:[%s194 + $0x4f0] sm:$0xff] %v505
                %v507 = vld [vmem:[%s193 + $0x990] sm:$0xff]
                %508 = vst [vmem:[%s194 + $0x4f8] sm:$0xff] %v507
                %v509 = vld [vmem:[%s193 + $0x998] sm:$0xff]
                %510 = vst [vmem:[%s194 + $0x500] sm:$0xff] %v509
                %v511 = vld [vmem:[%s193 + $0x9a0] sm:$0xff]
                %512 = vst [vmem:[%s194 + $0x508] sm:$0xff] %v511
                %v513 = vld [vmem:[%s193 + $0x9a8] sm:$0xff]
                %514 = vst [vmem:[%s194 + $0x510] sm:$0xff] %v513
                %v515 = vld [vmem:[%s193 + $0x9b0] sm:$0xff]
                %516 = vst [vmem:[%s194 + $0x518] sm:$0xff] %v515
                %v517 = vld [vmem:[%s193 + $0x9b8] sm:$0xff]
                %518 = vst [vmem:[%s194 + $0x520] sm:$0xff] %v517
                %v519 = vld [vmem:[%s193 + $0x9c0] sm:$0xff]
                %520 = vst [vmem:[%s194 + $0x528] sm:$0xff] %v519
                %v521 = vld [vmem:[%s193 + $0x9c8] sm:$0xff]
                %522 = vst [vmem:[%s194 + $0x530] sm:$0xff] %v521
                %v523 = vld [vmem:[%s193 + $0x9d0] sm:$0xff]
                %524 = vst [vmem:[%s194 + $0x538] sm:$0xff] %v523
                %v525 = vld [vmem:[%s193 + $0x9d8] sm:$0xff]
                %526 = vst [vmem:[%s194 + $0x540] sm:$0xff] %v525
                %v527 = vld [vmem:[%s193 + $0x9e0] sm:$0xff]
                %528 = vst [vmem:[%s194 + $0x548] sm:$0xff] %v527
                %v529 = vld [vmem:[%s193 + $0x9e8] sm:$0xff]
                %530 = vst [vmem:[%s194 + $0x550] sm:$0xff] %v529
                %v531 = vld [vmem:[%s193 + $0xab8] sm:$0xff]
                %532 = vst [vmem:[%s194 + $0x55c] sm:$0xff] %v531
                %v533 = vld [vmem:[%s193 + $0xac0] sm:$0xff]
                %534 = vst [vmem:[%s194 + $0x564] sm:$0xff] %v533
                %v535 = vld [vmem:[%s193 + $0xac8] sm:$0xff]
                %536 = vst [vmem:[%s194 + $0x56c] sm:$0xff] %v535
                %v537 = vld [vmem:[%s193 + $0xad0] sm:$0xff]
                %538 = vst [vmem:[%s194 + $0x574] sm:$0xff] %v537
                %v539 = vld [vmem:[%s193 + $0xad8] sm:$0xff]
                %540 = vst [vmem:[%s194 + $0x57c] sm:$0xff] %v539
                %v541 = vld [vmem:[%s193 + $0xae0] sm:$0xff]
                %542 = vst [vmem:[%s194 + $0x584] sm:$0xff] %v541
                %v543 = vld [vmem:[%s193 + $0xae8] sm:$0xff]
                %544 = vst [vmem:[%s194 + $0x58c] sm:$0xff] %v543
                %v545 = vld [vmem:[%s193 + $0xaf0] sm:$0xff]
                %546 = vst [vmem:[%s194 + $0x594] sm:$0xff] %v545
                %v547 = vld [vmem:[%s193 + $0xaf8] sm:$0xff]
                %548 = vst [vmem:[%s194 + $0x59c] sm:$0xff] %v547
                %v549 = vld [vmem:[%s193 + $0xb00] sm:$0xff]
                %550 = vst [vmem:[%s194 + $0x5a4] sm:$0xff] %v549
                %v551 = vld [vmem:[%s193 + $0xb08] sm:$0xff]
                %552 = vst [vmem:[%s194 + $0x5ac] sm:$0xff] %v551
                %v553 = vld [vmem:[%s193 + $0xb10] sm:$0xff]
                %554 = vst [vmem:[%s194 + $0x5b4] sm:$0xff] %v553
                %v555 = vld [vmem:[%s193 + $0xb18] sm:$0xff]
                %556 = vst [vmem:[%s194 + $0x5bc] sm:$0xff] %v555
                %v557 = vld [vmem:[%s193 + $0xb20] sm:$0xff]
                %558 = vst [vmem:[%s194 + $0x5c4] sm:$0xff] %v557
                %v559 = vld [vmem:[%s193 + $0xb28] sm:$0xff]
                %560 = vst [vmem:[%s194 + $0x5cc] sm:$0xff] %v559
                %v561 = vld [vmem:[%s193 + $0xb30] sm:$0xff]
                %562 = vst [vmem:[%s194 + $0x5d4] sm:$0xff] %v561
                %v563 = vld [vmem:[%s193 + $0xb38] sm:$0xff]
                %564 = vst [vmem:[%s194 + $0x5dc] sm:$0xff] %v563
                %v565 = vld [vmem:[%s193 + $0xb40] sm:$0xff]
                %566 = vst [vmem:[%s194 + $0x5e4] sm:$0xff] %v565
                %v567 = vld [vmem:[%s193 + $0xb48] sm:$0xff]
                %568 = vst [vmem:[%s194 + $0x5ec] sm:$0xff] %v567
                %v569 = vld [vmem:[%s193 + $0xb50] sm:$0xff]
                %570 = vst [vmem:[%s194 + $0x5f4] sm:$0xff] %v569
                %v571 = vld [vmem:[%s193 + $0xb58] sm:$0xff]
                %572 = vst [vmem:[%s194 + $0x5fc] sm:$0xff] %v571
                %v573 = vld [vmem:[%s193 + $0xb60] sm:$0xff]
                %574 = vst [vmem:[%s194 + $0x604] sm:$0xff] %v573
                %v575 = vld [vmem:[%s193 + $0xb68] sm:$0xff]
                %576 = vst [vmem:[%s194 + $0x60c] sm:$0xff] %v575
                %v577 = vld [vmem:[%s193 + $0xb70] sm:$0xff]
                %578 = vst [vmem:[%s194 + $0x614] sm:$0xff] %v577
                %v579 = vld [vmem:[%s193 + $0xc40] sm:$0xff]
                %580 = vst [vmem:[%s194 + $0x620] sm:$0xff] %v579
                %v581 = vld [vmem:[%s193 + $0xc48] sm:$0xff]
                %582 = vst [vmem:[%s194 + $0x628] sm:$0xff] %v581
                %v583 = vld [vmem:[%s193 + $0xc50] sm:$0xff]
                %584 = vst [vmem:[%s194 + $0x630] sm:$0xff] %v583
                %v585 = vld [vmem:[%s193 + $0xc58] sm:$0xff]
                %586 = vst [vmem:[%s194 + $0x638] sm:$0xff] %v585
                %v587 = vld [vmem:[%s193 + $0xc60] sm:$0xff]
                %588 = vst [vmem:[%s194 + $0x640] sm:$0xff] %v587
                %v589 = vld [vmem:[%s193 + $0xc68] sm:$0xff]
                %590 = vst [vmem:[%s194 + $0x648] sm:$0xff] %v589
                %v591 = vld [vmem:[%s193 + $0xc70] sm:$0xff]
                %592 = vst [vmem:[%s194 + $0x650] sm:$0xff] %v591
                %v593 = vld [vmem:[%s193 + $0xc78] sm:$0xff]
                %594 = vst [vmem:[%s194 + $0x658] sm:$0xff] %v593
                %v595 = vld [vmem:[%s193 + $0xc80] sm:$0xff]
                %596 = vst [vmem:[%s194 + $0x660] sm:$0xff] %v595
                %v597 = vld [vmem:[%s193 + $0xc88] sm:$0xff]
                %598 = vst [vmem:[%s194 + $0x668] sm:$0xff] %v597
                %v599 = vld [vmem:[%s193 + $0xc90] sm:$0xff]
                %600 = vst [vmem:[%s194 + $0x670] sm:$0xff] %v599
                %v601 = vld [vmem:[%s193 + $0xc98] sm:$0xff]
                %602 = vst [vmem:[%s194 + $0x678] sm:$0xff] %v601
                %v603 = vld [vmem:[%s193 + $0xca0] sm:$0xff]
                %604 = vst [vmem:[%s194 + $0x680] sm:$0xff] %v603
                %v605 = vld [vmem:[%s193 + $0xca8] sm:$0xff]
                %606 = vst [vmem:[%s194 + $0x688] sm:$0xff] %v605
                %v607 = vld [vmem:[%s193 + $0xcb0] sm:$0xff]
                %608 = vst [vmem:[%s194 + $0x690] sm:$0xff] %v607
                %v609 = vld [vmem:[%s193 + $0xcb8] sm:$0xff]
                %610 = vst [vmem:[%s194 + $0x698] sm:$0xff] %v609
                %v611 = vld [vmem:[%s193 + $0xcc0] sm:$0xff]
                %612 = vst [vmem:[%s194 + $0x6a0] sm:$0xff] %v611
                %v613 = vld [vmem:[%s193 + $0xcc8] sm:$0xff]
                %614 = vst [vmem:[%s194 + $0x6a8] sm:$0xff] %v613
                %v615 = vld [vmem:[%s193 + $0xcd0] sm:$0xff]
                %616 = vst [vmem:[%s194 + $0x6b0] sm:$0xff] %v615
                %v617 = vld [vmem:[%s193 + $0xcd8] sm:$0xff]
                %618 = vst [vmem:[%s194 + $0x6b8] sm:$0xff] %v617
                %v619 = vld [vmem:[%s193 + $0xce0] sm:$0xff]
                %620 = vst [vmem:[%s194 + $0x6c0] sm:$0xff] %v619
                %v621 = vld [vmem:[%s193 + $0xce8] sm:$0xff]
                %622 = vst [vmem:[%s194 + $0x6c8] sm:$0xff] %v621
                %v623 = vld [vmem:[%s193 + $0xcf0] sm:$0xff]
                %624 = vst [vmem:[%s194 + $0x6d0] sm:$0xff] %v623
                %v625 = vld [vmem:[%s193 + $0xcf8] sm:$0xff]
                %626 = vst [vmem:[%s194 + $0x6d8] sm:$0xff] %v625
                %v627 = vld [vmem:[%s193 + $0xdc8] sm:$0xff]
                %628 = vst [vmem:[%s194 + $0x6e4] sm:$0xff] %v627
                %v629 = vld [vmem:[%s193 + $0xdd0] sm:$0xff]
                %630 = vst [vmem:[%s194 + $0x6ec] sm:$0xff] %v629
                %v631 = vld [vmem:[%s193 + $0xdd8] sm:$0xff]
                %632 = vst [vmem:[%s194 + $0x6f4] sm:$0xff] %v631
                %v633 = vld [vmem:[%s193 + $0xde0] sm:$0xff]
                %634 = vst [vmem:[%s194 + $0x6fc] sm:$0xff] %v633
                %v635 = vld [vmem:[%s193 + $0xde8] sm:$0xff]
                %636 = vst [vmem:[%s194 + $0x704] sm:$0xff] %v635
                %v637 = vld [vmem:[%s193 + $0xdf0] sm:$0xff]
                %638 = vst [vmem:[%s194 + $0x70c] sm:$0xff] %v637
                %v639 = vld [vmem:[%s193 + $0xdf8] sm:$0xff]
                %640 = vst [vmem:[%s194 + $0x714] sm:$0xff] %v639
                %v641 = vld [vmem:[%s193 + $0xe00] sm:$0xff]
                %642 = vst [vmem:[%s194 + $0x71c] sm:$0xff] %v641
                %v643 = vld [vmem:[%s193 + $0xe08] sm:$0xff]
                %644 = vst [vmem:[%s194 + $0x724] sm:$0xff] %v643
                %v645 = vld [vmem:[%s193 + $0xe10] sm:$0xff]
                %646 = vst [vmem:[%s194 + $0x72c] sm:$0xff] %v645
                %v647 = vld [vmem:[%s193 + $0xe18] sm:$0xff]
                %648 = vst [vmem:[%s194 + $0x734] sm:$0xff] %v647
                %v649 = vld [vmem:[%s193 + $0xe20] sm:$0xff]
                %650 = vst [vmem:[%s194 + $0x73c] sm:$0xff] %v649
                %v651 = vld [vmem:[%s193 + $0xe28] sm:$0xff]
                %652 = vst [vmem:[%s194 + $0x744] sm:$0xff] %v651
                %v653 = vld [vmem:[%s193 + $0xe30] sm:$0xff]
                %654 = vst [vmem:[%s194 + $0x74c] sm:$0xff] %v653
                %v655 = vld [vmem:[%s193 + $0xe38] sm:$0xff]
                %656 = vst [vmem:[%s194 + $0x754] sm:$0xff] %v655
                %v657 = vld [vmem:[%s193 + $0xe40] sm:$0xff]
                %658 = vst [vmem:[%s194 + $0x75c] sm:$0xff] %v657
                %v659 = vld [vmem:[%s193 + $0xe48] sm:$0xff]
                %660 = vst [vmem:[%s194 + $0x764] sm:$0xff] %v659
                %v661 = vld [vmem:[%s193 + $0xe50] sm:$0xff]
                %662 = vst [vmem:[%s194 + $0x76c] sm:$0xff] %v661
                %v663 = vld [vmem:[%s193 + $0xe58] sm:$0xff]
                %664 = vst [vmem:[%s194 + $0x774] sm:$0xff] %v663
                %v665 = vld [vmem:[%s193 + $0xe60] sm:$0xff]
                %666 = vst [vmem:[%s194 + $0x77c] sm:$0xff] %v665
                %v667 = vld [vmem:[%s193 + $0xe68] sm:$0xff]
                %668 = vst [vmem:[%s194 + $0x784] sm:$0xff] %v667
                %v669 = vld [vmem:[%s193 + $0xe70] sm:$0xff]
                %670 = vst [vmem:[%s194 + $0x78c] sm:$0xff] %v669
                %v671 = vld [vmem:[%s193 + $0xe78] sm:$0xff]
                %672 = vst [vmem:[%s194 + $0x794] sm:$0xff] %v671
                %v673 = vld [vmem:[%s193 + $0xe80] sm:$0xff]
                %674 = vst [vmem:[%s194 + $0x79c] sm:$0xff] %v673
                %v675 = vld [vmem:[%s193 + $0xf50] sm:$0xff]
                %676 = vst [vmem:[%s194 + $0x7a8] sm:$0xff] %v675
                %v677 = vld [vmem:[%s193 + $0xf58] sm:$0xff]
                %678 = vst [vmem:[%s194 + $0x7b0] sm:$0xff] %v677
                %v679 = vld [vmem:[%s193 + $0xf60] sm:$0xff]
                %680 = vst [vmem:[%s194 + $0x7b8] sm:$0xff] %v679
                %v681 = vld [vmem:[%s193 + $0xf68] sm:$0xff]
                %682 = vst [vmem:[%s194 + $0x7c0] sm:$0xff] %v681
                %v683 = vld [vmem:[%s193 + $0xf70] sm:$0xff]
                %684 = vst [vmem:[%s194 + $0x7c8] sm:$0xff] %v683
                %v685 = vld [vmem:[%s193 + $0xf78] sm:$0xff]
                %686 = vst [vmem:[%s194 + $0x7d0] sm:$0xff] %v685
                %v687 = vld [vmem:[%s193 + $0xf80] sm:$0xff]
                %688 = vst [vmem:[%s194 + $0x7d8] sm:$0xff] %v687
                %v689 = vld [vmem:[%s193 + $0xf88] sm:$0xff]
                %690 = vst [vmem:[%s194 + $0x7e0] sm:$0xff] %v689
                %v691 = vld [vmem:[%s193 + $0xf90] sm:$0xff]
                %692 = vst [vmem:[%s194 + $0x7e8] sm:$0xff] %v691
                %v693 = vld [vmem:[%s193 + $0xf98] sm:$0xff]
                %694 = vst [vmem:[%s194 + $0x7f0] sm:$0xff] %v693
                %v695 = vld [vmem:[%s193 + $0xfa0] sm:$0xff]
                %696 = vst [vmem:[%s194 + $0x7f8] sm:$0xff] %v695
                %v697 = vld [vmem:[%s193 + $0xfa8] sm:$0xff]
                %698 = vst [vmem:[%s194 + $0x800] sm:$0xff] %v697
                %v699 = vld [vmem:[%s193 + $0xfb0] sm:$0xff]
                %700 = vst [vmem:[%s194 + $0x808] sm:$0xff] %v699
                %v701 = vld [vmem:[%s193 + $0xfb8] sm:$0xff]
                %702 = vst [vmem:[%s194 + $0x810] sm:$0xff] %v701
                %v703 = vld [vmem:[%s193 + $0xfc0] sm:$0xff]
                %704 = vst [vmem:[%s194 + $0x818] sm:$0xff] %v703
                %v705 = vld [vmem:[%s193 + $0xfc8] sm:$0xff]
                %706 = vst [vmem:[%s194 + $0x820] sm:$0xff] %v705
                %v707 = vld [vmem:[%s193 + $0xfd0] sm:$0xff]
                %708 = vst [vmem:[%s194 + $0x828] sm:$0xff] %v707
                %v709 = vld [vmem:[%s193 + $0xfd8] sm:$0xff]
                %710 = vst [vmem:[%s194 + $0x830] sm:$0xff] %v709
                %v711 = vld [vmem:[%s193 + $0xfe0] sm:$0xff]
                %712 = vst [vmem:[%s194 + $0x838] sm:$0xff] %v711
                %v713 = vld [vmem:[%s193 + $0xfe8] sm:$0xff]
                %714 = vst [vmem:[%s194 + $0x840] sm:$0xff] %v713
                %v715 = vld [vmem:[%s193 + $0xff0] sm:$0xff]
                %716 = vst [vmem:[%s194 + $0x848] sm:$0xff] %v715
                %v717 = vld [vmem:[%s193 + $0xff8] sm:$0xff]
                %718 = vst [vmem:[%s194 + $0x850] sm:$0xff] %v717
                %v719 = vld [vmem:[%s193 + $0x1000] sm:$0xff]
                %720 = vst [vmem:[%s194 + $0x858] sm:$0xff] %v719
                %v721 = vld [vmem:[%s193 + $0x1008] sm:$0xff]
                %722 = vst [vmem:[%s194 + $0x860] sm:$0xff] %v721
                %v723 = vld [vmem:[%s193 + $0x10d8] sm:$0xff]
                %724 = vst [vmem:[%s194 + $0x86c] sm:$0xff] %v723
                %v725 = vld [vmem:[%s193 + $0x10e0] sm:$0xff]
                %726 = vst [vmem:[%s194 + $0x874] sm:$0xff] %v725
                %v727 = vld [vmem:[%s193 + $0x10e8] sm:$0xff]
                %728 = vst [vmem:[%s194 + $0x87c] sm:$0xff] %v727
                %v729 = vld [vmem:[%s193 + $0x10f0] sm:$0xff]
                %730 = vst [vmem:[%s194 + $0x884] sm:$0xff] %v729
                %v731 = vld [vmem:[%s193 + $0x10f8] sm:$0xff]
                %732 = vst [vmem:[%s194 + $0x88c] sm:$0xff] %v731
                %v733 = vld [vmem:[%s193 + $0x1100] sm:$0xff]
                %734 = vst [vmem:[%s194 + $0x894] sm:$0xff] %v733
                %v735 = vld [vmem:[%s193 + $0x1108] sm:$0xff]
                %736 = vst [vmem:[%s194 + $0x89c] sm:$0xff] %v735
                %v737 = vld [vmem:[%s193 + $0x1110] sm:$0xff]
                %738 = vst [vmem:[%s194 + $0x8a4] sm:$0xff] %v737
                %v739 = vld [vmem:[%s193 + $0x1118] sm:$0xff]
                %740 = vst [vmem:[%s194 + $0x8ac] sm:$0xff] %v739
                %v741 = vld [vmem:[%s193 + $0x1120] sm:$0xff]
                %742 = vst [vmem:[%s194 + $0x8b4] sm:$0xff] %v741
                %v743 = vld [vmem:[%s193 + $0x1128] sm:$0xff]
                %744 = vst [vmem:[%s194 + $0x8bc] sm:$0xff] %v743
                %v745 = vld [vmem:[%s193 + $0x1130] sm:$0xff]
                %746 = vst [vmem:[%s194 + $0x8c4] sm:$0xff] %v745
                %v747 = vld [vmem:[%s193 + $0x1138] sm:$0xff]
                %748 = vst [vmem:[%s194 + $0x8cc] sm:$0xff] %v747
                %v749 = vld [vmem:[%s193 + $0x1140] sm:$0xff]
                %750 = vst [vmem:[%s194 + $0x8d4] sm:$0xff] %v749
                %v751 = vld [vmem:[%s193 + $0x1148] sm:$0xff]
                %752 = vst [vmem:[%s194 + $0x8dc] sm:$0xff] %v751
                %v753 = vld [vmem:[%s193 + $0x1150] sm:$0xff]
                %754 = vst [vmem:[%s194 + $0x8e4] sm:$0xff] %v753
                %v755 = vld [vmem:[%s193 + $0x1158] sm:$0xff]
                %756 = vst [vmem:[%s194 + $0x8ec] sm:$0xff] %v755
                %v757 = vld [vmem:[%s193 + $0x1160] sm:$0xff]
                %758 = vst [vmem:[%s194 + $0x8f4] sm:$0xff] %v757
                %v759 = vld [vmem:[%s193 + $0x1168] sm:$0xff]
                %760 = vst [vmem:[%s194 + $0x8fc] sm:$0xff] %v759
                %v761 = vld [vmem:[%s193 + $0x1170] sm:$0xff]
                %762 = vst [vmem:[%s194 + $0x904] sm:$0xff] %v761
                %v763 = vld [vmem:[%s193 + $0x1178] sm:$0xff]
                %764 = vst [vmem:[%s194 + $0x90c] sm:$0xff] %v763
                %v765 = vld [vmem:[%s193 + $0x1180] sm:$0xff]
                %766 = vst [vmem:[%s194 + $0x914] sm:$0xff] %v765
                %v767 = vld [vmem:[%s193 + $0x1188] sm:$0xff]
                %768 = vst [vmem:[%s194 + $0x91c] sm:$0xff] %v767
                %v769 = vld [vmem:[%s193 + $0x1190] sm:$0xff]
                %770 = vst [vmem:[%s194 + $0x924] sm:$0xff] %v769
                %v771 = vld [vmem:[%s193 + $0x1260] sm:$0xff]
                %772 = vst [vmem:[%s194 + $0x930] sm:$0xff] %v771
                %v773 = vld [vmem:[%s193 + $0x1268] sm:$0xff]
                %774 = vst [vmem:[%s194 + $0x938] sm:$0xff] %v773
                %v775 = vld [vmem:[%s193 + $0x1270] sm:$0xff]
                %776 = vst [vmem:[%s194 + $0x940] sm:$0xff] %v775
                %v777 = vld [vmem:[%s193 + $0x1278] sm:$0xff]
                %778 = vst [vmem:[%s194 + $0x948] sm:$0xff] %v777
                %v779 = vld [vmem:[%s193 + $0x1280] sm:$0xff]
                %780 = vst [vmem:[%s194 + $0x950] sm:$0xff] %v779
                %v781 = vld [vmem:[%s193 + $0x1288] sm:$0xff]
                %782 = vst [vmem:[%s194 + $0x958] sm:$0xff] %v781
                %v783 = vld [vmem:[%s193 + $0x1290] sm:$0xff]
                %784 = vst [vmem:[%s194 + $0x960] sm:$0xff] %v783
                %v785 = vld [vmem:[%s193 + $0x1298] sm:$0xff]
                %786 = vst [vmem:[%s194 + $0x968] sm:$0xff] %v785
                %v787 = vld [vmem:[%s193 + $0x12a0] sm:$0xff]
                %788 = vst [vmem:[%s194 + $0x970] sm:$0xff] %v787
                %v789 = vld [vmem:[%s193 + $0x12a8] sm:$0xff]
                %790 = vst [vmem:[%s194 + $0x978] sm:$0xff] %v789
                %v791 = vld [vmem:[%s193 + $0x12b0] sm:$0xff]
                %792 = vst [vmem:[%s194 + $0x980] sm:$0xff] %v791
                %v793 = vld [vmem:[%s193 + $0x12b8] sm:$0xff]
                %794 = vst [vmem:[%s194 + $0x988] sm:$0xff] %v793
                %v795 = vld [vmem:[%s193 + $0x12c0] sm:$0xff]
                %796 = vst [vmem:[%s194 + $0x990] sm:$0xff] %v795
                %v797 = vld [vmem:[%s193 + $0x12c8] sm:$0xff]
                %798 = vst [vmem:[%s194 + $0x998] sm:$0xff] %v797
                %v799 = vld [vmem:[%s193 + $0x12d0] sm:$0xff]
                %800 = vst [vmem:[%s194 + $0x9a0] sm:$0xff] %v799
                %v801 = vld [vmem:[%s193 + $0x12d8] sm:$0xff]
                %802 = vst [vmem:[%s194 + $0x9a8] sm:$0xff] %v801
                %v803 = vld [vmem:[%s193 + $0x12e0] sm:$0xff]
                %804 = vst [vmem:[%s194 + $0x9b0] sm:$0xff] %v803
                %v805 = vld [vmem:[%s193 + $0x12e8] sm:$0xff]
                %806 = vst [vmem:[%s194 + $0x9b8] sm:$0xff] %v805
                %v807 = vld [vmem:[%s193 + $0x12f0] sm:$0xff]
                %808 = vst [vmem:[%s194 + $0x9c0] sm:$0xff] %v807
                %v809 = vld [vmem:[%s193 + $0x12f8] sm:$0xff]
                %810 = vst [vmem:[%s194 + $0x9c8] sm:$0xff] %v809
                %v811 = vld [vmem:[%s193 + $0x1300] sm:$0xff]
                %812 = vst [vmem:[%s194 + $0x9d0] sm:$0xff] %v811
                %v813 = vld [vmem:[%s193 + $0x1308] sm:$0xff]
                %814 = vst [vmem:[%s194 + $0x9d8] sm:$0xff] %v813
                %v815 = vld [vmem:[%s193 + $0x1310] sm:$0xff]
                %816 = vst [vmem:[%s194 + $0x9e0] sm:$0xff] %v815
                %v817 = vld [vmem:[%s193 + $0x1318] sm:$0xff]
                %818 = vst [vmem:[%s194 + $0x9e8] sm:$0xff] %v817
                %v819 = vld [vmem:[%s193 + $0x13e8] sm:$0xff]
                %820 = vst [vmem:[%s194 + $0x9f4] sm:$0xff] %v819
                %v821 = vld [vmem:[%s193 + $0x13f0] sm:$0xff]
                %822 = vst [vmem:[%s194 + $0x9fc] sm:$0xff] %v821
                %v823 = vld [vmem:[%s193 + $0x13f8] sm:$0xff]
                %824 = vst [vmem:[%s194 + $0xa04] sm:$0xff] %v823
                %v825 = vld [vmem:[%s193 + $0x1400] sm:$0xff]
                %826 = vst [vmem:[%s194 + $0xa0c] sm:$0xff] %v825
                %v827 = vld [vmem:[%s193 + $0x1408] sm:$0xff]
                %828 = vst [vmem:[%s194 + $0xa14] sm:$0xff] %v827
                %v829 = vld [vmem:[%s193 + $0x1410] sm:$0xff]
                %830 = vst [vmem:[%s194 + $0xa1c] sm:$0xff] %v829
                %v831 = vld [vmem:[%s193 + $0x1418] sm:$0xff]
                %832 = vst [vmem:[%s194 + $0xa24] sm:$0xff] %v831
                %v833 = vld [vmem:[%s193 + $0x1420] sm:$0xff]
                %834 = vst [vmem:[%s194 + $0xa2c] sm:$0xff] %v833
                %v835 = vld [vmem:[%s193 + $0x1428] sm:$0xff]
                %836 = vst [vmem:[%s194 + $0xa34] sm:$0xff] %v835
                %v837 = vld [vmem:[%s193 + $0x1430] sm:$0xff]
                %838 = vst [vmem:[%s194 + $0xa3c] sm:$0xff] %v837
                %v839 = vld [vmem:[%s193 + $0x1438] sm:$0xff]
                %840 = vst [vmem:[%s194 + $0xa44] sm:$0xff] %v839
                %v841 = vld [vmem:[%s193 + $0x1440] sm:$0xff]
                %842 = vst [vmem:[%s194 + $0xa4c] sm:$0xff] %v841
                %v843 = vld [vmem:[%s193 + $0x1448] sm:$0xff]
                %844 = vst [vmem:[%s194 + $0xa54] sm:$0xff] %v843
                %v845 = vld [vmem:[%s193 + $0x1450] sm:$0xff]
                %846 = vst [vmem:[%s194 + $0xa5c] sm:$0xff] %v845
                %v847 = vld [vmem:[%s193 + $0x1458] sm:$0xff]
                %848 = vst [vmem:[%s194 + $0xa64] sm:$0xff] %v847
                %v849 = vld [vmem:[%s193 + $0x1460] sm:$0xff]
                %850 = vst [vmem:[%s194 + $0xa6c] sm:$0xff] %v849
                %v851 = vld [vmem:[%s193 + $0x1468] sm:$0xff]
                %852 = vst [vmem:[%s194 + $0xa74] sm:$0xff] %v851
                %v853 = vld [vmem:[%s193 + $0x1470] sm:$0xff]
                %854 = vst [vmem:[%s194 + $0xa7c] sm:$0xff] %v853
                %v855 = vld [vmem:[%s193 + $0x1478] sm:$0xff]
                %856 = vst [vmem:[%s194 + $0xa84] sm:$0xff] %v855
                %v857 = vld [vmem:[%s193 + $0x1480] sm:$0xff]
                %858 = vst [vmem:[%s194 + $0xa8c] sm:$0xff] %v857
                %v859 = vld [vmem:[%s193 + $0x1488] sm:$0xff]
                %860 = vst [vmem:[%s194 + $0xa94] sm:$0xff] %v859
                %v861 = vld [vmem:[%s193 + $0x1490] sm:$0xff]
                %862 = vst [vmem:[%s194 + $0xa9c] sm:$0xff] %v861
                %v863 = vld [vmem:[%s193 + $0x1498] sm:$0xff]
                %864 = vst [vmem:[%s194 + $0xaa4] sm:$0xff] %v863
                %v865 = vld [vmem:[%s193 + $0x14a0] sm:$0xff]
                %866 = vst [vmem:[%s194 + $0xaac] sm:$0xff] %v865
                %v867 = vld [vmem:[%s193 + $0x1570] sm:$0xff]
                %868 = vst [vmem:[%s194 + $0xab8] sm:$0xff] %v867
                %v869 = vld [vmem:[%s193 + $0x1578] sm:$0xff]
                %870 = vst [vmem:[%s194 + $0xac0] sm:$0xff] %v869
                %v871 = vld [vmem:[%s193 + $0x1580] sm:$0xff]
                %872 = vst [vmem:[%s194 + $0xac8] sm:$0xff] %v871
                %v873 = vld [vmem:[%s193 + $0x1588] sm:$0xff]
                %874 = vst [vmem:[%s194 + $0xad0] sm:$0xff] %v873
                %v875 = vld [vmem:[%s193 + $0x1590] sm:$0xff]
                %876 = vst [vmem:[%s194 + $0xad8] sm:$0xff] %v875
                %v877 = vld [vmem:[%s193 + $0x1598] sm:$0xff]
                %878 = vst [vmem:[%s194 + $0xae0] sm:$0xff] %v877
                %v879 = vld [vmem:[%s193 + $0x15a0] sm:$0xff]
                %880 = vst [vmem:[%s194 + $0xae8] sm:$0xff] %v879
                %v881 = vld [vmem:[%s193 + $0x15a8] sm:$0xff]
                %882 = vst [vmem:[%s194 + $0xaf0] sm:$0xff] %v881
                %v883 = vld [vmem:[%s193 + $0x15b0] sm:$0xff]
                %884 = vst [vmem:[%s194 + $0xaf8] sm:$0xff] %v883
                %v885 = vld [vmem:[%s193 + $0x15b8] sm:$0xff]
                %886 = vst [vmem:[%s194 + $0xb00] sm:$0xff] %v885
                %v887 = vld [vmem:[%s193 + $0x15c0] sm:$0xff]
                %888 = vst [vmem:[%s194 + $0xb08] sm:$0xff] %v887
                %v889 = vld [vmem:[%s193 + $0x15c8] sm:$0xff]
                %890 = vst [vmem:[%s194 + $0xb10] sm:$0xff] %v889
                %v891 = vld [vmem:[%s193 + $0x15d0] sm:$0xff]
                %892 = vst [vmem:[%s194 + $0xb18] sm:$0xff] %v891
                %v893 = vld [vmem:[%s193 + $0x15d8] sm:$0xff]
                %894 = vst [vmem:[%s194 + $0xb20] sm:$0xff] %v893
                %v895 = vld [vmem:[%s193 + $0x15e0] sm:$0xff]
                %896 = vst [vmem:[%s194 + $0xb28] sm:$0xff] %v895
                %v897 = vld [vmem:[%s193 + $0x15e8] sm:$0xff]
                %898 = vst [vmem:[%s194 + $0xb30] sm:$0xff] %v897
                %v899 = vld [vmem:[%s193 + $0x15f0] sm:$0xff]
                %900 = vst [vmem:[%s194 + $0xb38] sm:$0xff] %v899
                %v901 = vld [vmem:[%s193 + $0x15f8] sm:$0xff]
                %902 = vst [vmem:[%s194 + $0xb40] sm:$0xff] %v901
                %v903 = vld [vmem:[%s193 + $0x1600] sm:$0xff]
                %904 = vst [vmem:[%s194 + $0xb48] sm:$0xff] %v903
                %v905 = vld [vmem:[%s193 + $0x1608] sm:$0xff]
                %906 = vst [vmem:[%s194 + $0xb50] sm:$0xff] %v905
                %v907 = vld [vmem:[%s193 + $0x1610] sm:$0xff]
                %908 = vst [vmem:[%s194 + $0xb58] sm:$0xff] %v907
                %v909 = vld [vmem:[%s193 + $0x1618] sm:$0xff]
                %910 = vst [vmem:[%s194 + $0xb60] sm:$0xff] %v909
                %v911 = vld [vmem:[%s193 + $0x1620] sm:$0xff]
                %912 = vst [vmem:[%s194 + $0xb68] sm:$0xff] %v911
                %v913 = vld [vmem:[%s193 + $0x1628] sm:$0xff]
                %914 = vst [vmem:[%s194 + $0xb70] sm:$0xff] %v913
                %v915 = vld [vmem:[%s193 + $0x16f8] sm:$0xff]
                %916 = vst [vmem:[%s194 + $0xb7c] sm:$0xff] %v915
                %v917 = vld [vmem:[%s193 + $0x1700] sm:$0xff]
                %918 = vst [vmem:[%s194 + $0xb84] sm:$0xff] %v917
                %v919 = vld [vmem:[%s193 + $0x1708] sm:$0xff]
                %920 = vst [vmem:[%s194 + $0xb8c] sm:$0xff] %v919
                %v921 = vld [vmem:[%s193 + $0x1710] sm:$0xff]
                %922 = vst [vmem:[%s194 + $0xb94] sm:$0xff] %v921
                %v923 = vld [vmem:[%s193 + $0x1718] sm:$0xff]
                %924 = vst [vmem:[%s194 + $0xb9c] sm:$0xff] %v923
                %v925 = vld [vmem:[%s193 + $0x1720] sm:$0xff]
                %926 = vst [vmem:[%s194 + $0xba4] sm:$0xff] %v925
                %v927 = vld [vmem:[%s193 + $0x1728] sm:$0xff]
                %928 = vst [vmem:[%s194 + $0xbac] sm:$0xff] %v927
                %v929 = vld [vmem:[%s193 + $0x1730] sm:$0xff]
                %930 = vst [vmem:[%s194 + $0xbb4] sm:$0xff] %v929
                %v931 = vld [vmem:[%s193 + $0x1738] sm:$0xff]
                %932 = vst [vmem:[%s194 + $0xbbc] sm:$0xff] %v931
                %v933 = vld [vmem:[%s193 + $0x1740] sm:$0xff]
                %934 = vst [vmem:[%s194 + $0xbc4] sm:$0xff] %v933
                %v935 = vld [vmem:[%s193 + $0x1748] sm:$0xff]
                %936 = vst [vmem:[%s194 + $0xbcc] sm:$0xff] %v935
                %v937 = vld [vmem:[%s193 + $0x1750] sm:$0xff]
                %938 = vst [vmem:[%s194 + $0xbd4] sm:$0xff] %v937
                %v939 = vld [vmem:[%s193 + $0x1758] sm:$0xff]
                %940 = vst [vmem:[%s194 + $0xbdc] sm:$0xff] %v939
                %v941 = vld [vmem:[%s193 + $0x1760] sm:$0xff]
                %942 = vst [vmem:[%s194 + $0xbe4] sm:$0xff] %v941
                %v943 = vld [vmem:[%s193 + $0x1768] sm:$0xff]
                %944 = vst [vmem:[%s194 + $0xbec] sm:$0xff] %v943
                %v945 = vld [vmem:[%s193 + $0x1770] sm:$0xff]
                %946 = vst [vmem:[%s194 + $0xbf4] sm:$0xff] %v945
                %v947 = vld [vmem:[%s193 + $0x1778] sm:$0xff]
                %948 = vst [vmem:[%s194 + $0xbfc] sm:$0xff] %v947
                %v949 = vld [vmem:[%s193 + $0x1780] sm:$0xff]
                %950 = vst [vmem:[%s194 + $0xc04] sm:$0xff] %v949
                %v951 = vld [vmem:[%s193 + $0x1788] sm:$0xff]
                %952 = vst [vmem:[%s194 + $0xc0c] sm:$0xff] %v951
                %v953 = vld [vmem:[%s193 + $0x1790] sm:$0xff]
                %954 = vst [vmem:[%s194 + $0xc14] sm:$0xff] %v953
                %v955 = vld [vmem:[%s193 + $0x1798] sm:$0xff]
                %956 = vst [vmem:[%s194 + $0xc1c] sm:$0xff] %v955
                %v957 = vld [vmem:[%s193 + $0x17a0] sm:$0xff]
                %958 = vst [vmem:[%s194 + $0xc24] sm:$0xff] %v957
                %v959 = vld [vmem:[%s193 + $0x17a8] sm:$0xff]
                %960 = vst [vmem:[%s194 + $0xc2c] sm:$0xff] %v959
                %v961 = vld [vmem:[%s193 + $0x17b0] sm:$0xff]
                %962 = vst [vmem:[%s194 + $0xc34] sm:$0xff] %v961
              $region45: #{simple_cnn_forward.1} parent=39 // loop_footer
                %s192 = sadd.s32 1, %s188
              $region46: #{simple_cnn_forward.1} parent=39 // loop_footer_branch
                %187 = sbr.rel target = $region42
              $region47: #{simple_cnn_forward.1} parent=39 // loop_exit
                _
              loop: start=0, step=1, limit=1
              $region48: #{simple_cnn_forward.1} parent=39 // loop_pre_header
                _
              $region49: #{simple_cnn_forward.1} parent=39 // loop_header
                %s965 = sphi 0, %s969
                %p966 = scmp.ge.s32.totalorder %s965, 1
                %s970 = sphi %s185, %s185
                %s971 = sphi %s186, %s186
              $region50: #{simple_cnn_forward.1} parent=39 // loop_header_branch
                %968 = sbr.rel (%p966) target = $region54
              $region51: #{simple_cnn_forward.1} parent=39 // loop_body
                %v972 = vld [vmem:[%s970] sm:$0xf]
                %973 = vst [vmem:[%s971] sm:$0xf] %v972
                %v974 = vld [vmem:[%s970 + $0x188] sm:$0xf]
                %975 = vst [vmem:[%s971 + $0xc4] sm:$0xf] %v974
                %v976 = vld [vmem:[%s970 + $0x310] sm:$0xf]
                %977 = vst [vmem:[%s971 + $0x188] sm:$0xf] %v976
                %v978 = vld [vmem:[%s970 + $0x498] sm:$0xf]
                %979 = vst [vmem:[%s971 + $0x24c] sm:$0xf] %v978
                %v980 = vld [vmem:[%s970 + $0x620] sm:$0xf]
                %981 = vst [vmem:[%s971 + $0x310] sm:$0xf] %v980
                %v982 = vld [vmem:[%s970 + $0x7a8] sm:$0xf]
                %983 = vst [vmem:[%s971 + $0x3d4] sm:$0xf] %v982
                %v984 = vld [vmem:[%s970 + $0x930] sm:$0xf]
                %985 = vst [vmem:[%s971 + $0x498] sm:$0xf] %v984
                %v986 = vld [vmem:[%s970 + $0xab8] sm:$0xf]
                %987 = vst [vmem:[%s971 + $0x55c] sm:$0xf] %v986
                %v988 = vld [vmem:[%s970 + $0xc40] sm:$0xf]
                %989 = vst [vmem:[%s971 + $0x620] sm:$0xf] %v988
                %v990 = vld [vmem:[%s970 + $0xdc8] sm:$0xf]
                %991 = vst [vmem:[%s971 + $0x6e4] sm:$0xf] %v990
                %v992 = vld [vmem:[%s970 + $0xf50] sm:$0xf]
                %993 = vst [vmem:[%s971 + $0x7a8] sm:$0xf] %v992
                %v994 = vld [vmem:[%s970 + $0x10d8] sm:$0xf]
                %995 = vst [vmem:[%s971 + $0x86c] sm:$0xf] %v994
                %v996 = vld [vmem:[%s970 + $0x1260] sm:$0xf]
                %997 = vst [vmem:[%s971 + $0x930] sm:$0xf] %v996
                %v998 = vld [vmem:[%s970 + $0x13e8] sm:$0xf]
                %999 = vst [vmem:[%s971 + $0x9f4] sm:$0xf] %v998
                %v1000 = vld [vmem:[%s970 + $0x1570] sm:$0xf]
                %1001 = vst [vmem:[%s971 + $0xab8] sm:$0xf] %v1000
                %v1002 = vld [vmem:[%s970 + $0x16f8] sm:$0xf]
                %1003 = vst [vmem:[%s971 + $0xb7c] sm:$0xf] %v1002
              $region52: #{simple_cnn_forward.1} parent=39 // loop_footer
                %s969 = sadd.s32 1, %s965
              $region53: #{simple_cnn_forward.1} parent=39 // loop_footer_branch
                %964 = sbr.rel target = $region49
              $region54: #{simple_cnn_forward.1} parent=39 // loop_exit
                _
            $region40: #{simple_cnn_forward.1} parent=35 // pred_fallthru
              _
          $region36: #{simple_cnn_forward.1} parent=31 // pred_fallthru
            _
          %1004 = vnop
        $region32: #{simple_cnn_forward.1} parent=27 // pred_fallthru
          _
      $region28: #{simple_cnn_forward.1} parent=5 // pred_fallthru
        _
      %p1005 = scmp.le.s32.totalorder 1, %s10
      %p1006 = scmp.lt.s32.totalorder %s10, 5
      %p1007 = pnand %p1005, %p1006
      %p1008 = pneg %p1007
      // Predicated region
      $region55: #{simple_cnn_forward.1} parent=5 // pred_check
        _
      $region56: #{simple_cnn_forward.1} parent=5 // pred_check_branch
        %1010 = sbr.rel (%p1007) target = $region58
      $region57: #{simple_cnn_forward.1} parent=5 // pred_region
        %s1011 = ssub.s32 %s10, 1
        %s1012 = sand.u32 %s37, 1
        %s1013 = sand.u32 %s37, 1
        %s1014 = smul.addr %s1013, 3136
        %s1015 = scalar_lea.vmem [#allocation2], %s1014
        // Predicated region
        $region59: #{simple_cnn_forward.1} parent=57 // pred_check
          %p1016 = pneg %p50
        $region60: #{simple_cnn_forward.1} parent=57 // pred_check_branch
          %1018 = sbr.rel (%p1016) target = $region62
        $region61: #{simple_cnn_forward.1} parent=57 // pred_region
          _
        $region62: #{simple_cnn_forward.1} parent=57 // pred_fallthru
          _
        %s1019 = sand.u32 %s37, 1
        %s1020 = sand.u32 %s37, 1
        %s1021 = smul.addr %s1020, 3136
        %s1022 = scalar_lea.vmem [#allocation2], %s1021
        %p1023 = pneg %p50
        %p1024 = pneg %p47
        %p1025 = pneg %p71
        %p1026 = pneg %p68
        %p1027 = pneg %p92
        %p1028 = pneg %p89
        %p1029 = pneg %p113
        %p1030 = pneg %p110
        %p1031 = pneg %p141
        %p1032 = pneg %p138
        %p1033 = scmp.lt.s32.totalorder %s19, 1
        %s1034 = scalar_select %p1033, %s19, 1
        %p1035 = scmp.lt.s32.totalorder %s20, 1
        %s1036 = scalar_select %p1035, %s20, 1
        %s1037 = smul.addr %s1034, 2
        %s1038 = sadd.s32 %s1036, %s1037
        %s1039 = scalar_lea.vmem %s4, %s1038
        %s1040 = smul.u32 49, %s20
        %p1041 = scmp.lt.s32.totalorder %s19, 1
        %s1042 = scalar_select %p1041, %s19, 1
        %p1043 = scmp.lt.s32.totalorder %s20, 1
        %s1044 = scalar_select %p1043, %s20, 1
        %s1045 = smul.addr %s1042, 2
        %s1046 = sadd.s32 %s1044, %s1045
        %s1047 = scalar_lea.vmem %s4, %s1046
        %v1049 = vld [vmem:[%s1] sm:$0xf]
        %v1050 = vld [vmem:[%s1 + $0x4] sm:$0xf]
        %v1051 = vld [vmem:[%s2] sm:$0xff]
        %v1052 = vld [vmem:[%s2 + $0x8] sm:$0xff]
        %v1053 = vld [vmem:[%s1015] sm:$0xff]
        %v1054 = vld [vmem:[%s1015 + $0x8] sm:$0xff]
        %v1055 = vld [vmem:[%s1015 + $0x10] sm:$0xff]
        %v1056 = vld [vmem:[%s1015 + $0x18] sm:$0xf]
        %v1057 = vld [vmem:[%s1015 + $0xc4] sm:$0xff]
        %v1058 = vld [vmem:[%s1015 + $0xcc] sm:$0xff]
        %v1059 = vld [vmem:[%s1015 + $0xd4] sm:$0xff]
        %v1060 = vld [vmem:[%s1015 + $0xdc] sm:$0xf]
        %v1061 = vld [vmem:[%s1015 + $0x188] sm:$0xff]
        %v1062 = vld [vmem:[%s1015 + $0x190] sm:$0xff]
        %v1063 = vld [vmem:[%s1015 + $0x198] sm:$0xff]
        %v1064 = vld [vmem:[%s1015 + $0x1a0] sm:$0xf]
        %v1065 = vld [vmem:[%s1015 + $0x24c] sm:$0x33]
        %v1066 = vld [vmem:[%s1015 + $0x254] sm:$0x33]
        %v1067 = vld [vmem:[%s1015 + $0x25c] sm:$0x33]
        %v1068 = vld [vmem:[%s1015 + $0x264] sm:$0x3]
        %v1071 = vunpack.c.l.b16 %v1049
        %v1072 = vunpack.c.l.b16 %v1050
        %v1073 = vpack.c.b16 %v1072, %v1071
        %v1090 = vunpack.c.l.b16 %v1053
        %v1091 = vunpack.c.h.b16 %v1053
        %v1092 = vunpack.c.l.b16 %v1054
        %v1093 = vunpack.c.h.b16 %v1054
        %v1094 = vunpack.c.l.b16 %v1055
        %v1095 = vunpack.c.h.b16 %v1055
        %v1096 = vunpack.c.l.b16 %v1056
        %v1097 = vunpack.c.l.b16 %v1057
        %v1098 = vunpack.c.h.b16 %v1057
        %v1099 = vunpack.c.l.b16 %v1058
        %v1100 = vunpack.c.h.b16 %v1058
        %v1101 = vunpack.c.l.b16 %v1059
        %v1102 = vunpack.c.h.b16 %v1059
        %v1103 = vunpack.c.l.b16 %v1060
        %v1104 = vunpack.c.l.b16 %v1061
        %v1105 = vunpack.c.h.b16 %v1061
        %v1106 = vunpack.c.l.b16 %v1062
        %v1107 = vunpack.c.h.b16 %v1062
        %v1108 = vunpack.c.l.b16 %v1063
        %v1109 = vunpack.c.h.b16 %v1063
        %v1110 = vunpack.c.l.b16 %v1064
        %v1111 = vunpack.c.l.b16 %v1065
        %v1112 = vunpack.c.h.b16 %v1065
        %v1113 = vunpack.c.l.b16 %v1066
        %v1114 = vunpack.c.h.b16 %v1066
        %v1115 = vunpack.c.l.b16 %v1067
        %v1116 = vunpack.c.h.b16 %v1067
        %v1117 = vunpack.c.l.b16 %v1068
        %v1118 = vpack.c.b16 %v1097, %v1090
        %v1119 = vpack.c.b16 %v1098, %v1091
        %v1120 = vpack.c.b16 %v1099, %v1092
        %v1121 = vpack.c.b16 %v1100, %v1093
        %v1122 = vpack.c.b16 %v1101, %v1094
        %v1123 = vpack.c.b16 %v1102, %v1095
        %v1124 = vpack.c.b16 %v1103, %v1096
        %v1125 = vpack.c.b16 %v1111, %v1104
        %v1126 = vpack.c.b16 %v1112, %v1105
        %v1127 = vpack.c.b16 %v1113, %v1106
        %v1128 = vpack.c.b16 %v1114, %v1107
        %v1129 = vpack.c.b16 %v1115, %v1108
        %v1130 = vpack.c.b16 %v1116, %v1109
        %v1131 = vpack.c.b16 %v1117, %v1110
        %vm1139 = vcmask 220160
        %v1141 = vsel %vm1139, %v1073, 0
        %vm1143 = vcmask 1044480
        %vm1144 = vcmask 1045504
        %v1145 = vsel %vm1143, 4294967295, 65535
        %v1146 = vsel %vm1144, %v1145, 0
        %v1148 = vand.u32 %v1125, %v1146
        %v1151 = vand.u32 %v1126, %v1146
        %v1154 = vand.u32 %v1127, %v1146
        %v1157 = vand.u32 %v1128, %v1146
        %v1160 = vand.u32 %v1129, %v1146
        %v1163 = vand.u32 %v1130, %v1146
        %v1166 = vand.u32 %v1131, %v1146
        %1168 = vmatprep.subr.bf16.mxu0 %v1119
        %1169 = vmatpush1.bf16.msra.mxu0 %v1118
        %1170 = vmatprep.subr.bf16.mxu0 %v1151
        %1171 = vmatpush1.bf16.msra.mxu0 %v1148
        %1172 = vmatprep.subr.bf16.mxu0 0
        %1173 = vmatpush1.bf16.msra.mxu0 0
        %1174 = vmatprep.subr.bf16.mxu0 0
        %1175 = vmatpush1.bf16.msra.mxu0 0
        %1176 = vmatprep.subr.bf16.mxu0 0
        %1177 = vmatpush1.bf16.msra.mxu0 0
        %1178 = vmatprep.subr.bf16.mxu0 0
        %1179 = vmatpush1.bf16.msra.mxu0 0
        %1180 = vmatprep.subr.bf16.mxu0 0
        %1181 = vmatpush1.bf16.msra.mxu0 0
        %1182 = vmatprep.subr.bf16.mxu0 0
        %1183 = vmatpush1.bf16.msra.mxu0 0
        %1184 = vmatprep.subr.bf16.mxu0 0
        %1185 = vmatpush1.bf16.msra.mxu0 0
        %1186 = vmatprep.subr.bf16.mxu0 0
        %1187 = vmatpush1.bf16.msra.mxu0 0
        %1188 = vmatprep.subr.bf16.mxu0 0
        %1189 = vmatpush1.bf16.msra.mxu0 0
        %1190 = vmatprep.subr.bf16.mxu0 0
        %1191 = vmatpush1.bf16.msra.mxu0 0
        %1192 = vmatprep.subr.bf16.mxu0 0
        %1193 = vmatpush1.bf16.msra.mxu0 0
        %1194 = vmatprep.subr.bf16.mxu0 0
        %1195 = vmatpush1.bf16.msra.mxu0 0
        %1196 = vmatprep.subr.bf16.mxu0 0
        %1197 = vmatpush1.bf16.msra.mxu0 0
        %1198 = vmatprep.subr.bf16.mxu0 0
        %1199 = vmatpush1.bf16.msra.mxu0 0
        %1200 = vmatprep.mubr.bf16.mxu0 0
        %1201 = vmatmul.mubr.bf16.gmra.mrb[0].mxu0 %v1141
        %v1202 = vpop.f32.mrb[0].mxu0
        %v1203 = vadd.f32 0.0, %v1202
        %v1204 = vpop.f32.mrb[0].mxu0
        %v1205 = vadd.f32 0.0, %v1204
        %v1206 = vpop.f32.mrb[0].mxu0
        %v1207 = vadd.f32 0.0, %v1206
        %v1208 = vpop.f32.mrb[0].mxu0
        %v1209 = vadd.f32 0.0, %v1208
        %1210 = vdwg.mxu0
        %1211 = vmatprep.subr.bf16.mxu0 %v1121
        %1212 = vmatpush1.bf16.msra.mxu0 %v1120
        %1213 = vmatprep.subr.bf16.mxu0 %v1157
        %1214 = vmatpush1.bf16.msra.mxu0 %v1154
        %1215 = vmatprep.subr.bf16.mxu0 0
        %1216 = vmatpush1.bf16.msra.mxu0 0
        %1217 = vmatprep.subr.bf16.mxu0 0
        %1218 = vmatpush1.bf16.msra.mxu0 0
        %1219 = vmatprep.subr.bf16.mxu0 0
        %1220 = vmatpush1.bf16.msra.mxu0 0
        %1221 = vmatprep.subr.bf16.mxu0 0
        %1222 = vmatpush1.bf16.msra.mxu0 0
        %1223 = vmatprep.subr.bf16.mxu0 0
        %1224 = vmatpush1.bf16.msra.mxu0 0
        %1225 = vmatprep.subr.bf16.mxu0 0
        %1226 = vmatpush1.bf16.msra.mxu0 0
        %1227 = vmatprep.subr.bf16.mxu0 0
        %1228 = vmatpush1.bf16.msra.mxu0 0
        %1229 = vmatprep.subr.bf16.mxu0 0
        %1230 = vmatpush1.bf16.msra.mxu0 0
        %1231 = vmatprep.subr.bf16.mxu0 0
        %1232 = vmatpush1.bf16.msra.mxu0 0
        %1233 = vmatprep.subr.bf16.mxu0 0
        %1234 = vmatpush1.bf16.msra.mxu0 0
        %1235 = vmatprep.subr.bf16.mxu0 0
        %1236 = vmatpush1.bf16.msra.mxu0 0
        %1237 = vmatprep.subr.bf16.mxu0 0
        %1238 = vmatpush1.bf16.msra.mxu0 0
        %1239 = vmatprep.subr.bf16.mxu0 0
        %1240 = vmatpush1.bf16.msra.mxu0 0
        %1241 = vmatprep.subr.bf16.mxu0 0
        %1242 = vmatpush1.bf16.msra.mxu0 0
        %1243 = vmatprep.mubr.bf16.mxu0 0
        %1244 = vmatmul.mubr.bf16.gmra.mrb[0].mxu0 %v1141
        %v1245 = vpop.f32.mrb[0].mxu0
        %v1246 = vadd.f32 0.0, %v1245
        %v1247 = vpop.f32.mrb[0].mxu0
        %v1248 = vadd.f32 0.0, %v1247
        %v1249 = vpop.f32.mrb[0].mxu0
        %v1250 = vadd.f32 0.0, %v1249
        %v1251 = vpop.f32.mrb[0].mxu0
        %v1252 = vadd.f32 0.0, %v1251
        %1253 = vdwg.mxu0
        %1254 = vmatprep.subr.bf16.mxu0 %v1123
        %1255 = vmatpush1.bf16.msra.mxu0 %v1122
        %1256 = vmatprep.subr.bf16.mxu0 %v1163
        %1257 = vmatpush1.bf16.msra.mxu0 %v1160
        %1258 = vmatprep.subr.bf16.mxu0 0
        %1259 = vmatpush1.bf16.msra.mxu0 0
        %1260 = vmatprep.subr.bf16.mxu0 0
        %1261 = vmatpush1.bf16.msra.mxu0 0
        %1262 = vmatprep.subr.bf16.mxu0 0
        %1263 = vmatpush1.bf16.msra.mxu0 0
        %1264 = vmatprep.subr.bf16.mxu0 0
        %1265 = vmatpush1.bf16.msra.mxu0 0
        %1266 = vmatprep.subr.bf16.mxu0 0
        %1267 = vmatpush1.bf16.msra.mxu0 0
        %1268 = vmatprep.subr.bf16.mxu0 0
        %1269 = vmatpush1.bf16.msra.mxu0 0
        %1270 = vmatprep.subr.bf16.mxu0 0
        %1271 = vmatpush1.bf16.msra.mxu0 0
        %1272 = vmatprep.subr.bf16.mxu0 0
        %1273 = vmatpush1.bf16.msra.mxu0 0
        %1274 = vmatprep.subr.bf16.mxu0 0
        %1275 = vmatpush1.bf16.msra.mxu0 0
        %1276 = vmatprep.subr.bf16.mxu0 0
        %1277 = vmatpush1.bf16.msra.mxu0 0
        %1278 = vmatprep.subr.bf16.mxu0 0
        %1279 = vmatpush1.bf16.msra.mxu0 0
        %1280 = vmatprep.subr.bf16.mxu0 0
        %1281 = vmatpush1.bf16.msra.mxu0 0
        %1282 = vmatprep.subr.bf16.mxu0 0
        %1283 = vmatpush1.bf16.msra.mxu0 0
        %1284 = vmatprep.subr.bf16.mxu0 0
        %1285 = vmatpush1.bf16.msra.mxu0 0
        %1286 = vmatprep.mubr.bf16.mxu0 0
        %1287 = vmatmul.mubr.bf16.gmra.mrb[0].mxu0 %v1141
        %v1288 = vpop.f32.mrb[0].mxu0
        %v1289 = vadd.f32 0.0, %v1288
        %v1290 = vpop.f32.mrb[0].mxu0
        %v1291 = vadd.f32 0.0, %v1290
        %v1292 = vpop.f32.mrb[0].mxu0
        %v1293 = vadd.f32 0.0, %v1292
        %v1294 = vpop.f32.mrb[0].mxu0
        %v1295 = vadd.f32 0.0, %v1294
        %1296 = vdwg.mxu0
        %1297 = vmatprep.subr.bf16.mxu0 0
        %1298 = vmatpush1.bf16.msra.mxu0 %v1124
        %1299 = vmatprep.subr.bf16.mxu0 0
        %1300 = vmatpush1.bf16.msra.mxu0 %v1166
        %1301 = vmatprep.subr.bf16.mxu0 0
        %1302 = vmatpush1.bf16.msra.mxu0 0
        %1303 = vmatprep.subr.bf16.mxu0 0
        %1304 = vmatpush1.bf16.msra.mxu0 0
        %1305 = vmatprep.subr.bf16.mxu0 0
        %1306 = vmatpush1.bf16.msra.mxu0 0
        %1307 = vmatprep.subr.bf16.mxu0 0
        %1308 = vmatpush1.bf16.msra.mxu0 0
        %1309 = vmatprep.subr.bf16.mxu0 0
        %1310 = vmatpush1.bf16.msra.mxu0 0
        %1311 = vmatprep.subr.bf16.mxu0 0
        %1312 = vmatpush1.bf16.msra.mxu0 0
        %1313 = vmatprep.subr.bf16.mxu0 0
        %1314 = vmatpush1.bf16.msra.mxu0 0
        %1315 = vmatprep.subr.bf16.mxu0 0
        %1316 = vmatpush1.bf16.msra.mxu0 0
        %1317 = vmatprep.subr.bf16.mxu0 0
        %1318 = vmatpush1.bf16.msra.mxu0 0
        %1319 = vmatprep.subr.bf16.mxu0 0
        %1320 = vmatpush1.bf16.msra.mxu0 0
        %1321 = vmatprep.subr.bf16.mxu0 0
        %1322 = vmatpush1.bf16.msra.mxu0 0
        %1323 = vmatprep.subr.bf16.mxu0 0
        %1324 = vmatpush1.bf16.msra.mxu0 0
        %1325 = vmatprep.subr.bf16.mxu0 0
        %1326 = vmatpush1.bf16.msra.mxu0 0
        %1327 = vmatprep.subr.bf16.mxu0 0
        %1328 = vmatpush1.bf16.msra.mxu0 0
        %1329 = vmatprep.mubr.bf16.mxu0 0
        %1330 = vmatmul.mubr.bf16.gmra.mrb[0].mxu0 %v1141
        %v1331 = vpop.f32.mrb[0].mxu0
        %v1332 = vadd.f32 0.0, %v1331
        %v1333 = vpop.f32.mrb[0].mxu0
        %v1334 = vpop.f32.mrb[0].mxu0
        %v1335 = vadd.f32 0.0, %v1334
        %v1336 = vpop.f32.mrb[0].mxu0
        %1337 = vdwg.mxu0
        %s1338 = scalar_lea.vmem %s1015, 784 [#allocation2]
        %v1339 = vld [vmem:[%s1338] sm:$0xff]
        %v1340 = vld [vmem:[%s1338 + $0x8] sm:$0xff]
        %v1341 = vld [vmem:[%s1338 + $0x10] sm:$0xff]
        %v1342 = vld [vmem:[%s1338 + $0x18] sm:$0xf]
        %v1343 = vld [vmem:[%s1338 + $0xc4] sm:$0xff]
        %v1344 = vld [vmem:[%s1338 + $0xcc] sm:$0xff]
        %v1345 = vld [vmem:[%s1338 + $0xd4] sm:$0xff]
        %v1346 = vld [vmem:[%s1338 + $0xdc] sm:$0xf]
        %v1347 = vld [vmem:[%s1338 + $0x188] sm:$0xff]
        %v1348 = vld [vmem:[%s1338 + $0x190] sm:$0xff]
        %v1349 = vld [vmem:[%s1338 + $0x198] sm:$0xff]
        %v1350 = vld [vmem:[%s1338 + $0x1a0] sm:$0xf]
        %v1351 = vld [vmem:[%s1338 + $0x24c] sm:$0x33]
        %v1352 = vld [vmem:[%s1338 + $0x254] sm:$0x33]
        %v1353 = vld [vmem:[%s1338 + $0x25c] sm:$0x33]
        %v1354 = vld [vmem:[%s1338 + $0x264] sm:$0x3]
        %v1371 = vunpack.c.l.b16 %v1339
        %v1372 = vunpack.c.h.b16 %v1339
        %v1373 = vunpack.c.l.b16 %v1340
        %v1374 = vunpack.c.h.b16 %v1340
        %v1375 = vunpack.c.l.b16 %v1341
        %v1376 = vunpack.c.h.b16 %v1341
        %v1377 = vunpack.c.l.b16 %v1342
        %v1378 = vunpack.c.l.b16 %v1343
        %v1379 = vunpack.c.h.b16 %v1343
        %v1380 = vunpack.c.l.b16 %v1344
        %v1381 = vunpack.c.h.b16 %v1344
        %v1382 = vunpack.c.l.b16 %v1345
        %v1383 = vunpack.c.h.b16 %v1345
        %v1384 = vunpack.c.l.b16 %v1346
        %v1385 = vunpack.c.l.b16 %v1347
        %v1386 = vunpack.c.h.b16 %v1347
        %v1387 = vunpack.c.l.b16 %v1348
        %v1388 = vunpack.c.h.b16 %v1348
        %v1389 = vunpack.c.l.b16 %v1349
        %v1390 = vunpack.c.h.b16 %v1349
        %v1391 = vunpack.c.l.b16 %v1350
        %v1392 = vunpack.c.l.b16 %v1351
        %v1393 = vunpack.c.h.b16 %v1351
        %v1394 = vunpack.c.l.b16 %v1352
        %v1395 = vunpack.c.h.b16 %v1352
        %v1396 = vunpack.c.l.b16 %v1353
        %v1397 = vunpack.c.h.b16 %v1353
        %v1398 = vunpack.c.l.b16 %v1354
        %v1399 = vpack.c.b16 %v1378, %v1371
        %v1400 = vpack.c.b16 %v1379, %v1372
        %v1401 = vpack.c.b16 %v1380, %v1373
        %v1402 = vpack.c.b16 %v1381, %v1374
        %v1403 = vpack.c.b16 %v1382, %v1375
        %v1404 = vpack.c.b16 %v1383, %v1376
        %v1405 = vpack.c.b16 %v1384, %v1377
        %v1406 = vpack.c.b16 %v1392, %v1385
        %v1407 = vpack.c.b16 %v1393, %v1386
        %v1408 = vpack.c.b16 %v1394, %v1387
        %v1409 = vpack.c.b16 %v1395, %v1388
        %v1410 = vpack.c.b16 %v1396, %v1389
        %v1411 = vpack.c.b16 %v1397, %v1390
        %v1412 = vpack.c.b16 %v1398, %v1391
        %v1421 = vand.u32 %v1406, %v1146
        %v1424 = vand.u32 %v1407, %v1146
        %v1427 = vand.u32 %v1408, %v1146
        %v1430 = vand.u32 %v1409, %v1146
        %v1433 = vand.u32 %v1410, %v1146
        %v1436 = vand.u32 %v1411, %v1146
        %v1439 = vand.u32 %v1412, %v1146
        %1441 = vmatprep.subr.bf16.mxu0 %v1400
        %1442 = vmatpush1.bf16.msra.mxu0 %v1399
        %1443 = vmatprep.subr.bf16.mxu0 %v1424
        %1444 = vmatpush1.bf16.msra.mxu0 %v1421
        %1445 = vmatprep.subr.bf16.mxu0 0
        %1446 = vmatpush1.bf16.msra.mxu0 0
        %1447 = vmatprep.subr.bf16.mxu0 0
        %1448 = vmatpush1.bf16.msra.mxu0 0
        %1449 = vmatprep.subr.bf16.mxu0 0
        %1450 = vmatpush1.bf16.msra.mxu0 0
        %1451 = vmatprep.subr.bf16.mxu0 0
        %1452 = vmatpush1.bf16.msra.mxu0 0
        %1453 = vmatprep.subr.bf16.mxu0 0
        %1454 = vmatpush1.bf16.msra.mxu0 0
        %1455 = vmatprep.subr.bf16.mxu0 0
        %1456 = vmatpush1.bf16.msra.mxu0 0
        %1457 = vmatprep.subr.bf16.mxu0 0
        %1458 = vmatpush1.bf16.msra.mxu0 0
        %1459 = vmatprep.subr.bf16.mxu0 0
        %1460 = vmatpush1.bf16.msra.mxu0 0
        %1461 = vmatprep.subr.bf16.mxu0 0
        %1462 = vmatpush1.bf16.msra.mxu0 0
        %1463 = vmatprep.subr.bf16.mxu0 0
        %1464 = vmatpush1.bf16.msra.mxu0 0
        %1465 = vmatprep.subr.bf16.mxu0 0
        %1466 = vmatpush1.bf16.msra.mxu0 0
        %1467 = vmatprep.subr.bf16.mxu0 0
        %1468 = vmatpush1.bf16.msra.mxu0 0
        %1469 = vmatprep.subr.bf16.mxu0 0
        %1470 = vmatpush1.bf16.msra.mxu0 0
        %1471 = vmatprep.subr.bf16.mxu0 0
        %1472 = vmatpush1.bf16.msra.mxu0 0
        %1473 = vmatprep.mubr.bf16.mxu0 0
        %1474 = vmatmul.mubr.bf16.gmra.mrb[0].mxu0 %v1141
        %v1475 = vpop.f32.mrb[0].mxu0
        %v1476 = vadd.f32 0.0, %v1475
        %v1477 = vpop.f32.mrb[0].mxu0
        %v1478 = vadd.f32 0.0, %v1477
        %v1479 = vpop.f32.mrb[0].mxu0
        %v1480 = vadd.f32 0.0, %v1479
        %v1481 = vpop.f32.mrb[0].mxu0
        %v1482 = vadd.f32 0.0, %v1481
        %1483 = vdwg.mxu0
        %1484 = vmatprep.subr.bf16.mxu0 %v1402
        %1485 = vmatpush1.bf16.msra.mxu0 %v1401
        %1486 = vmatprep.subr.bf16.mxu0 %v1430
        %1487 = vmatpush1.bf16.msra.mxu0 %v1427
        %1488 = vmatprep.subr.bf16.mxu0 0
        %1489 = vmatpush1.bf16.msra.mxu0 0
        %1490 = vmatprep.subr.bf16.mxu0 0
        %1491 = vmatpush1.bf16.msra.mxu0 0
        %1492 = vmatprep.subr.bf16.mxu0 0
        %1493 = vmatpush1.bf16.msra.mxu0 0
        %1494 = vmatprep.subr.bf16.mxu0 0
        %1495 = vmatpush1.bf16.msra.mxu0 0
        %1496 = vmatprep.subr.bf16.mxu0 0
        %1497 = vmatpush1.bf16.msra.mxu0 0
        %1498 = vmatprep.subr.bf16.mxu0 0
        %1499 = vmatpush1.bf16.msra.mxu0 0
        %1500 = vmatprep.subr.bf16.mxu0 0
        %1501 = vmatpush1.bf16.msra.mxu0 0
        %1502 = vmatprep.subr.bf16.mxu0 0
        %1503 = vmatpush1.bf16.msra.mxu0 0
        %1504 = vmatprep.subr.bf16.mxu0 0
        %1505 = vmatpush1.bf16.msra.mxu0 0
        %1506 = vmatprep.subr.bf16.mxu0 0
        %1507 = vmatpush1.bf16.msra.mxu0 0
        %1508 = vmatprep.subr.bf16.mxu0 0
        %1509 = vmatpush1.bf16.msra.mxu0 0
        %1510 = vmatprep.subr.bf16.mxu0 0
        %1511 = vmatpush1.bf16.msra.mxu0 0
        %1512 = vmatprep.subr.bf16.mxu0 0
        %1513 = vmatpush1.bf16.msra.mxu0 0
        %1514 = vmatprep.subr.bf16.mxu0 0
        %1515 = vmatpush1.bf16.msra.mxu0 0
        %1516 = vmatprep.mubr.bf16.mxu0 0
        %1517 = vmatmul.mubr.bf16.gmra.mrb[0].mxu0 %v1141
        %v1518 = vpop.f32.mrb[0].mxu0
        %v1519 = vadd.f32 0.0, %v1518
        %v1520 = vpop.f32.mrb[0].mxu0
        %v1521 = vadd.f32 0.0, %v1520
        %v1522 = vpop.f32.mrb[0].mxu0
        %v1523 = vadd.f32 0.0, %v1522
        %v1524 = vpop.f32.mrb[0].mxu0
        %v1525 = vadd.f32 0.0, %v1524
        %1526 = vdwg.mxu0
        %1527 = vmatprep.subr.bf16.mxu0 %v1404
        %1528 = vmatpush1.bf16.msra.mxu0 %v1403
        %1529 = vmatprep.subr.bf16.mxu0 %v1436
        %1530 = vmatpush1.bf16.msra.mxu0 %v1433
        %1531 = vmatprep.subr.bf16.mxu0 0
        %1532 = vmatpush1.bf16.msra.mxu0 0
        %1533 = vmatprep.subr.bf16.mxu0 0
        %1534 = vmatpush1.bf16.msra.mxu0 0
        %1535 = vmatprep.subr.bf16.mxu0 0
        %1536 = vmatpush1.bf16.msra.mxu0 0
        %1537 = vmatprep.subr.bf16.mxu0 0
        %1538 = vmatpush1.bf16.msra.mxu0 0
        %1539 = vmatprep.subr.bf16.mxu0 0
        %1540 = vmatpush1.bf16.msra.mxu0 0
        %1541 = vmatprep.subr.bf16.mxu0 0
        %1542 = vmatpush1.bf16.msra.mxu0 0
        %1543 = vmatprep.subr.bf16.mxu0 0
        %1544 = vmatpush1.bf16.msra.mxu0 0
        %1545 = vmatprep.subr.bf16.mxu0 0
        %1546 = vmatpush1.bf16.msra.mxu0 0
        %1547 = vmatprep.subr.bf16.mxu0 0
        %1548 = vmatpush1.bf16.msra.mxu0 0
        %1549 = vmatprep.subr.bf16.mxu0 0
        %1550 = vmatpush1.bf16.msra.mxu0 0
        %1551 = vmatprep.subr.bf16.mxu0 0
        %1552 = vmatpush1.bf16.msra.mxu0 0
        %1553 = vmatprep.subr.bf16.mxu0 0
        %1554 = vmatpush1.bf16.msra.mxu0 0
        %1555 = vmatprep.subr.bf16.mxu0 0
        %1556 = vmatpush1.bf16.msra.mxu0 0
        %1557 = vmatprep.subr.bf16.mxu0 0
        %1558 = vmatpush1.bf16.msra.mxu0 0
        %1559 = vmatprep.mubr.bf16.mxu0 0
        %1560 = vmatmul.mubr.bf16.gmra.mrb[0].mxu0 %v1141
        %v1561 = vpop.f32.mrb[0].mxu0
        %v1562 = vadd.f32 0.0, %v1561
        %v1563 = vpop.f32.mrb[0].mxu0
        %v1564 = vadd.f32 0.0, %v1563
        %v1565 = vpop.f32.mrb[0].mxu0
        %v1566 = vadd.f32 0.0, %v1565
        %v1567 = vpop.f32.mrb[0].mxu0
        %v1568 = vadd.f32 0.0, %v1567
        %1569 = vdwg.mxu0
        %1570 = vmatprep.subr.bf16.mxu0 0
        %1571 = vmatpush1.bf16.msra.mxu0 %v1405
        %1572 = vmatprep.subr.bf16.mxu0 0
        %1573 = vmatpush1.bf16.msra.mxu0 %v1439
        %1574 = vmatprep.subr.bf16.mxu0 0
        %1575 = vmatpush1.bf16.msra.mxu0 0
        %1576 = vmatprep.subr.bf16.mxu0 0
        %1577 = vmatpush1.bf16.msra.mxu0 0
        %1578 = vmatprep.subr.bf16.mxu0 0
        %1579 = vmatpush1.bf16.msra.mxu0 0
        %1580 = vmatprep.subr.bf16.mxu0 0
        %1581 = vmatpush1.bf16.msra.mxu0 0
        %1582 = vmatprep.subr.bf16.mxu0 0
        %1583 = vmatpush1.bf16.msra.mxu0 0
        %1584 = vmatprep.subr.bf16.mxu0 0
        %1585 = vmatpush1.bf16.msra.mxu0 0
        %1586 = vmatprep.subr.bf16.mxu0 0
        %1587 = vmatpush1.bf16.msra.mxu0 0
        %1588 = vmatprep.subr.bf16.mxu0 0
        %1589 = vmatpush1.bf16.msra.mxu0 0
        %1590 = vmatprep.subr.bf16.mxu0 0
        %1591 = vmatpush1.bf16.msra.mxu0 0
        %1592 = vmatprep.subr.bf16.mxu0 0
        %1593 = vmatpush1.bf16.msra.mxu0 0
        %1594 = vmatprep.subr.bf16.mxu0 0
        %1595 = vmatpush1.bf16.msra.mxu0 0
        %1596 = vmatprep.subr.bf16.mxu0 0
        %1597 = vmatpush1.bf16.msra.mxu0 0
        %1598 = vmatprep.subr.bf16.mxu0 0
        %1599 = vmatpush1.bf16.msra.mxu0 0
        %1600 = vmatprep.subr.bf16.mxu0 0
        %1601 = vmatpush1.bf16.msra.mxu0 0
        %1602 = vmatprep.mubr.bf16.mxu0 0
        %1603 = vmatmul.mubr.bf16.gmra.mrb[0].mxu0 %v1141
        %v1604 = vpop.f32.mrb[0].mxu0
        %v1605 = vadd.f32 0.0, %v1604
        %v1606 = vpop.f32.mrb[0].mxu0
        %v1607 = vpop.f32.mrb[0].mxu0
        %v1608 = vadd.f32 0.0, %v1607
        %v1609 = vpop.f32.mrb[0].mxu0
        %1610 = vdwg.mxu0
        %s1611 = scalar_lea.vmem %s1015, 1568 [#allocation2]
        %v1612 = vld [vmem:[%s1611] sm:$0xff]
        %v1613 = vld [vmem:[%s1611 + $0x8] sm:$0xff]
        %v1614 = vld [vmem:[%s1611 + $0x10] sm:$0xff]
        %v1615 = vld [vmem:[%s1611 + $0x18] sm:$0xf]
        %v1616 = vld [vmem:[%s1611 + $0xc4] sm:$0xff]
        %v1617 = vld [vmem:[%s1611 + $0xcc] sm:$0xff]
        %v1618 = vld [vmem:[%s1611 + $0xd4] sm:$0xff]
        %v1619 = vld [vmem:[%s1611 + $0xdc] sm:$0xf]
        %v1620 = vld [vmem:[%s1611 + $0x188] sm:$0xff]
        %v1621 = vld [vmem:[%s1611 + $0x190] sm:$0xff]
        %v1622 = vld [vmem:[%s1611 + $0x198] sm:$0xff]
        %v1623 = vld [vmem:[%s1611 + $0x1a0] sm:$0xf]
        %v1624 = vld [vmem:[%s1611 + $0x24c] sm:$0x33]
        %v1625 = vld [vmem:[%s1611 + $0x254] sm:$0x33]
        %v1626 = vld [vmem:[%s1611 + $0x25c] sm:$0x33]
        %v1627 = vld [vmem:[%s1611 + $0x264] sm:$0x3]
        %v1644 = vunpack.c.l.b16 %v1612
        %v1645 = vunpack.c.h.b16 %v1612
        %v1646 = vunpack.c.l.b16 %v1613
        %v1647 = vunpack.c.h.b16 %v1613
        %v1648 = vunpack.c.l.b16 %v1614
        %v1649 = vunpack.c.h.b16 %v1614
        %v1650 = vunpack.c.l.b16 %v1615
        %v1651 = vunpack.c.l.b16 %v1616
        %v1652 = vunpack.c.h.b16 %v1616
        %v1653 = vunpack.c.l.b16 %v1617
        %v1654 = vunpack.c.h.b16 %v1617
        %v1655 = vunpack.c.l.b16 %v1618
        %v1656 = vunpack.c.h.b16 %v1618
        %v1657 = vunpack.c.l.b16 %v1619
        %v1658 = vunpack.c.l.b16 %v1620
        %v1659 = vunpack.c.h.b16 %v1620
        %v1660 = vunpack.c.l.b16 %v1621
        %v1661 = vunpack.c.h.b16 %v1621
        %v1662 = vunpack.c.l.b16 %v1622
        %v1663 = vunpack.c.h.b16 %v1622
        %v1664 = vunpack.c.l.b16 %v1623
        %v1665 = vunpack.c.l.b16 %v1624
        %v1666 = vunpack.c.h.b16 %v1624
        %v1667 = vunpack.c.l.b16 %v1625
        %v1668 = vunpack.c.h.b16 %v1625
        %v1669 = vunpack.c.l.b16 %v1626
        %v1670 = vunpack.c.h.b16 %v1626
        %v1671 = vunpack.c.l.b16 %v1627
        %v1672 = vpack.c.b16 %v1651, %v1644
        %v1673 = vpack.c.b16 %v1652, %v1645
        %v1674 = vpack.c.b16 %v1653, %v1646
        %v1675 = vpack.c.b16 %v1654, %v1647
        %v1676 = vpack.c.b16 %v1655, %v1648
        %v1677 = vpack.c.b16 %v1656, %v1649
        %v1678 = vpack.c.b16 %v1657, %v1650
        %v1679 = vpack.c.b16 %v1665, %v1658
        %v1680 = vpack.c.b16 %v1666, %v1659
        %v1681 = vpack.c.b16 %v1667, %v1660
        %v1682 = vpack.c.b16 %v1668, %v1661
        %v1683 = vpack.c.b16 %v1669, %v1662
        %v1684 = vpack.c.b16 %v1670, %v1663
        %v1685 = vpack.c.b16 %v1671, %v1664
        %v1694 = vand.u32 %v1679, %v1146
        %v1697 = vand.u32 %v1680, %v1146
        %v1700 = vand.u32 %v1681, %v1146
        %v1703 = vand.u32 %v1682, %v1146
        %v1706 = vand.u32 %v1683, %v1146
        %v1709 = vand.u32 %v1684, %v1146
        %v1712 = vand.u32 %v1685, %v1146
        %1714 = vmatprep.subr.bf16.mxu0 %v1673
        %1715 = vmatpush1.bf16.msra.mxu0 %v1672
        %1716 = vmatprep.subr.bf16.mxu0 %v1697
        %1717 = vmatpush1.bf16.msra.mxu0 %v1694
        %1718 = vmatprep.subr.bf16.mxu0 0
        %1719 = vmatpush1.bf16.msra.mxu0 0
        %1720 = vmatprep.subr.bf16.mxu0 0
        %1721 = vmatpush1.bf16.msra.mxu0 0
        %1722 = vmatprep.subr.bf16.mxu0 0
        %1723 = vmatpush1.bf16.msra.mxu0 0
        %1724 = vmatprep.subr.bf16.mxu0 0
        %1725 = vmatpush1.bf16.msra.mxu0 0
        %1726 = vmatprep.subr.bf16.mxu0 0
        %1727 = vmatpush1.bf16.msra.mxu0 0
        %1728 = vmatprep.subr.bf16.mxu0 0
        %1729 = vmatpush1.bf16.msra.mxu0 0
        %1730 = vmatprep.subr.bf16.mxu0 0
        %1731 = vmatpush1.bf16.msra.mxu0 0
        %1732 = vmatprep.subr.bf16.mxu0 0
        %1733 = vmatpush1.bf16.msra.mxu0 0
        %1734 = vmatprep.subr.bf16.mxu0 0
        %1735 = vmatpush1.bf16.msra.mxu0 0
        %1736 = vmatprep.subr.bf16.mxu0 0
        %1737 = vmatpush1.bf16.msra.mxu0 0
        %1738 = vmatprep.subr.bf16.mxu0 0
        %1739 = vmatpush1.bf16.msra.mxu0 0
        %1740 = vmatprep.subr.bf16.mxu0 0
        %1741 = vmatpush1.bf16.msra.mxu0 0
        %1742 = vmatprep.subr.bf16.mxu0 0
        %1743 = vmatpush1.bf16.msra.mxu0 0
        %1744 = vmatprep.subr.bf16.mxu0 0
        %1745 = vmatpush1.bf16.msra.mxu0 0
        %1746 = vmatprep.mubr.bf16.mxu0 0
        %1747 = vmatmul.mubr.bf16.gmra.mrb[0].mxu0 %v1141
        %v1748 = vpop.f32.mrb[0].mxu0
        %v1749 = vadd.f32 0.0, %v1748
        %v1750 = vpop.f32.mrb[0].mxu0
        %v1751 = vadd.f32 0.0, %v1750
        %v1752 = vpop.f32.mrb[0].mxu0
        %v1753 = vadd.f32 0.0, %v1752
        %v1754 = vpop.f32.mrb[0].mxu0
        %v1755 = vadd.f32 0.0, %v1754
        %1756 = vdwg.mxu0
        %1757 = vmatprep.subr.bf16.mxu0 %v1675
        %1758 = vmatpush1.bf16.msra.mxu0 %v1674
        %1759 = vmatprep.subr.bf16.mxu0 %v1703
        %1760 = vmatpush1.bf16.msra.mxu0 %v1700
        %1761 = vmatprep.subr.bf16.mxu0 0
        %1762 = vmatpush1.bf16.msra.mxu0 0
        %1763 = vmatprep.subr.bf16.mxu0 0
        %1764 = vmatpush1.bf16.msra.mxu0 0
        %1765 = vmatprep.subr.bf16.mxu0 0
        %1766 = vmatpush1.bf16.msra.mxu0 0
        %1767 = vmatprep.subr.bf16.mxu0 0
        %1768 = vmatpush1.bf16.msra.mxu0 0
        %1769 = vmatprep.subr.bf16.mxu0 0
        %1770 = vmatpush1.bf16.msra.mxu0 0
        %1771 = vmatprep.subr.bf16.mxu0 0
        %1772 = vmatpush1.bf16.msra.mxu0 0
        %1773 = vmatprep.subr.bf16.mxu0 0
        %1774 = vmatpush1.bf16.msra.mxu0 0
        %1775 = vmatprep.subr.bf16.mxu0 0
        %1776 = vmatpush1.bf16.msra.mxu0 0
        %1777 = vmatprep.subr.bf16.mxu0 0
        %1778 = vmatpush1.bf16.msra.mxu0 0
        %1779 = vmatprep.subr.bf16.mxu0 0
        %1780 = vmatpush1.bf16.msra.mxu0 0
        %1781 = vmatprep.subr.bf16.mxu0 0
        %1782 = vmatpush1.bf16.msra.mxu0 0
        %1783 = vmatprep.subr.bf16.mxu0 0
        %1784 = vmatpush1.bf16.msra.mxu0 0
        %1785 = vmatprep.subr.bf16.mxu0 0
        %1786 = vmatpush1.bf16.msra.mxu0 0
        %1787 = vmatprep.subr.bf16.mxu0 0
        %1788 = vmatpush1.bf16.msra.mxu0 0
        %1789 = vmatprep.mubr.bf16.mxu0 0
        %1790 = vmatmul.mubr.bf16.gmra.mrb[0].mxu0 %v1141
        %v1791 = vpop.f32.mrb[0].mxu0
        %v1792 = vadd.f32 0.0, %v1791
        %v1793 = vpop.f32.mrb[0].mxu0
        %v1794 = vadd.f32 0.0, %v1793
        %v1795 = vpop.f32.mrb[0].mxu0
        %v1796 = vadd.f32 0.0, %v1795
        %v1797 = vpop.f32.mrb[0].mxu0
        %v1798 = vadd.f32 0.0, %v1797
        %1799 = vdwg.mxu0
        %1800 = vmatprep.subr.bf16.mxu0 %v1677
        %1801 = vmatpush1.bf16.msra.mxu0 %v1676
        %1802 = vmatprep.subr.bf16.mxu0 %v1709
        %1803 = vmatpush1.bf16.msra.mxu0 %v1706
        %1804 = vmatprep.subr.bf16.mxu0 0
        %1805 = vmatpush1.bf16.msra.mxu0 0
        %1806 = vmatprep.subr.bf16.mxu0 0
        %1807 = vmatpush1.bf16.msra.mxu0 0
        %1808 = vmatprep.subr.bf16.mxu0 0
        %1809 = vmatpush1.bf16.msra.mxu0 0
        %1810 = vmatprep.subr.bf16.mxu0 0
        %1811 = vmatpush1.bf16.msra.mxu0 0
        %1812 = vmatprep.subr.bf16.mxu0 0
        %1813 = vmatpush1.bf16.msra.mxu0 0
        %1814 = vmatprep.subr.bf16.mxu0 0
        %1815 = vmatpush1.bf16.msra.mxu0 0
        %1816 = vmatprep.subr.bf16.mxu0 0
        %1817 = vmatpush1.bf16.msra.mxu0 0
        %1818 = vmatprep.subr.bf16.mxu0 0
        %1819 = vmatpush1.bf16.msra.mxu0 0
        %1820 = vmatprep.subr.bf16.mxu0 0
        %1821 = vmatpush1.bf16.msra.mxu0 0
        %1822 = vmatprep.subr.bf16.mxu0 0
        %1823 = vmatpush1.bf16.msra.mxu0 0
        %1824 = vmatprep.subr.bf16.mxu0 0
        %1825 = vmatpush1.bf16.msra.mxu0 0
        %1826 = vmatprep.subr.bf16.mxu0 0
        %1827 = vmatpush1.bf16.msra.mxu0 0
        %1828 = vmatprep.subr.bf16.mxu0 0
        %1829 = vmatpush1.bf16.msra.mxu0 0
        %1830 = vmatprep.subr.bf16.mxu0 0
        %1831 = vmatpush1.bf16.msra.mxu0 0
        %1832 = vmatprep.mubr.bf16.mxu0 0
        %1833 = vmatmul.mubr.bf16.gmra.mrb[0].mxu0 %v1141
        %v1834 = vpop.f32.mrb[0].mxu0
        %v1835 = vadd.f32 0.0, %v1834
        %v1836 = vpop.f32.mrb[0].mxu0
        %v1837 = vadd.f32 0.0, %v1836
        %v1838 = vpop.f32.mrb[0].mxu0
        %v1839 = vadd.f32 0.0, %v1838
        %v1840 = vpop.f32.mrb[0].mxu0
        %v1841 = vadd.f32 0.0, %v1840
        %1842 = vdwg.mxu0
        %1843 = vmatprep.subr.bf16.mxu0 0
        %1844 = vmatpush1.bf16.msra.mxu0 %v1678
        %1845 = vmatprep.subr.bf16.mxu0 0
        %1846 = vmatpush1.bf16.msra.mxu0 %v1712
        %1847 = vmatprep.subr.bf16.mxu0 0
        %1848 = vmatpush1.bf16.msra.mxu0 0
        %1849 = vmatprep.subr.bf16.mxu0 0
        %1850 = vmatpush1.bf16.msra.mxu0 0
        %1851 = vmatprep.subr.bf16.mxu0 0
        %1852 = vmatpush1.bf16.msra.mxu0 0
        %1853 = vmatprep.subr.bf16.mxu0 0
        %1854 = vmatpush1.bf16.msra.mxu0 0
        %1855 = vmatprep.subr.bf16.mxu0 0
        %1856 = vmatpush1.bf16.msra.mxu0 0
        %1857 = vmatprep.subr.bf16.mxu0 0
        %1858 = vmatpush1.bf16.msra.mxu0 0
        %1859 = vmatprep.subr.bf16.mxu0 0
        %1860 = vmatpush1.bf16.msra.mxu0 0
        %1861 = vmatprep.subr.bf16.mxu0 0
        %1862 = vmatpush1.bf16.msra.mxu0 0
        %1863 = vmatprep.subr.bf16.mxu0 0
        %1864 = vmatpush1.bf16.msra.mxu0 0
        %1865 = vmatprep.subr.bf16.mxu0 0
        %1866 = vmatpush1.bf16.msra.mxu0 0
        %1867 = vmatprep.subr.bf16.mxu0 0
        %1868 = vmatpush1.bf16.msra.mxu0 0
        %1869 = vmatprep.subr.bf16.mxu0 0
        %1870 = vmatpush1.bf16.msra.mxu0 0
        %1871 = vmatprep.subr.bf16.mxu0 0
        %1872 = vmatpush1.bf16.msra.mxu0 0
        %1873 = vmatprep.subr.bf16.mxu0 0
        %1874 = vmatpush1.bf16.msra.mxu0 0
        %1875 = vmatprep.mubr.bf16.mxu0 0
        %1876 = vmatmul.mubr.bf16.gmra.mrb[0].mxu0 %v1141
        %v1877 = vpop.f32.mrb[0].mxu0
        %v1878 = vadd.f32 0.0, %v1877
        %v1879 = vpop.f32.mrb[0].mxu0
        %v1880 = vpop.f32.mrb[0].mxu0
        %v1881 = vadd.f32 0.0, %v1880
        %v1882 = vpop.f32.mrb[0].mxu0
        %1883 = vdwg.mxu0
        %s1884 = scalar_lea.vmem %s1015, 2352 [#allocation2]
        %v1885 = vld [vmem:[%s1884] sm:$0xff]
        %v1886 = vld [vmem:[%s1884 + $0x8] sm:$0xff]
        %v1887 = vld [vmem:[%s1884 + $0x10] sm:$0xff]
        %v1888 = vld [vmem:[%s1884 + $0x18] sm:$0xf]
        %v1889 = vld [vmem:[%s1884 + $0xc4] sm:$0xff]
        %v1890 = vld [vmem:[%s1884 + $0xcc] sm:$0xff]
        %v1891 = vld [vmem:[%s1884 + $0xd4] sm:$0xff]
        %v1892 = vld [vmem:[%s1884 + $0xdc] sm:$0xf]
        %v1893 = vld [vmem:[%s1884 + $0x188] sm:$0xff]
        %v1894 = vld [vmem:[%s1884 + $0x190] sm:$0xff]
        %v1895 = vld [vmem:[%s1884 + $0x198] sm:$0xff]
        %v1896 = vld [vmem:[%s1884 + $0x1a0] sm:$0xf]
        %v1897 = vld [vmem:[%s1884 + $0x24c] sm:$0x33]
        %v1898 = vld [vmem:[%s1884 + $0x254] sm:$0x33]
        %v1899 = vld [vmem:[%s1884 + $0x25c] sm:$0x33]
        %v1900 = vld [vmem:[%s1884 + $0x264] sm:$0x3]
        %v1917 = vunpack.c.l.b16 %v1885
        %v1918 = vunpack.c.h.b16 %v1885
        %v1919 = vunpack.c.l.b16 %v1886
        %v1920 = vunpack.c.h.b16 %v1886
        %v1921 = vunpack.c.l.b16 %v1887
        %v1922 = vunpack.c.h.b16 %v1887
        %v1923 = vunpack.c.l.b16 %v1888
        %v1924 = vunpack.c.l.b16 %v1889
        %v1925 = vunpack.c.h.b16 %v1889
        %v1926 = vunpack.c.l.b16 %v1890
        %v1927 = vunpack.c.h.b16 %v1890
        %v1928 = vunpack.c.l.b16 %v1891
        %v1929 = vunpack.c.h.b16 %v1891
        %v1930 = vunpack.c.l.b16 %v1892
        %v1931 = vunpack.c.l.b16 %v1893
        %v1932 = vunpack.c.h.b16 %v1893
        %v1933 = vunpack.c.l.b16 %v1894
        %v1934 = vunpack.c.h.b16 %v1894
        %v1935 = vunpack.c.l.b16 %v1895
        %v1936 = vunpack.c.h.b16 %v1895
        %v1937 = vunpack.c.l.b16 %v1896
        %v1938 = vunpack.c.l.b16 %v1897
        %v1939 = vunpack.c.h.b16 %v1897
        %v1940 = vunpack.c.l.b16 %v1898
        %v1941 = vunpack.c.h.b16 %v1898
        %v1942 = vunpack.c.l.b16 %v1899
        %v1943 = vunpack.c.h.b16 %v1899
        %v1944 = vunpack.c.l.b16 %v1900
        %v1945 = vpack.c.b16 %v1924, %v1917
        %v1946 = vpack.c.b16 %v1925, %v1918
        %v1947 = vpack.c.b16 %v1926, %v1919
        %v1948 = vpack.c.b16 %v1927, %v1920
        %v1949 = vpack.c.b16 %v1928, %v1921
        %v1950 = vpack.c.b16 %v1929, %v1922
        %v1951 = vpack.c.b16 %v1930, %v1923
        %v1952 = vpack.c.b16 %v1938, %v1931
        %v1953 = vpack.c.b16 %v1939, %v1932
        %v1954 = vpack.c.b16 %v1940, %v1933
        %v1955 = vpack.c.b16 %v1941, %v1934
        %v1956 = vpack.c.b16 %v1942, %v1935
        %v1957 = vpack.c.b16 %v1943, %v1936
        %v1958 = vpack.c.b16 %v1944, %v1937
        %v1967 = vand.u32 %v1952, %v1146
        %v1970 = vand.u32 %v1953, %v1146
        %v1973 = vand.u32 %v1954, %v1146
        %v1976 = vand.u32 %v1955, %v1146
        %v1979 = vand.u32 %v1956, %v1146
        %v1982 = vand.u32 %v1957, %v1146
        %v1985 = vand.u32 %v1958, %v1146
        %1987 = vmatprep.subr.bf16.mxu0 %v1946
        %1988 = vmatpush1.bf16.msra.mxu0 %v1945
        %1989 = vmatprep.subr.bf16.mxu0 %v1970
        %1990 = vmatpush1.bf16.msra.mxu0 %v1967
        %1991 = vmatprep.subr.bf16.mxu0 0
        %1992 = vmatpush1.bf16.msra.mxu0 0
        %1993 = vmatprep.subr.bf16.mxu0 0
        %1994 = vmatpush1.bf16.msra.mxu0 0
        %1995 = vmatprep.subr.bf16.mxu0 0
        %1996 = vmatpush1.bf16.msra.mxu0 0
        %1997 = vmatprep.subr.bf16.mxu0 0
        %1998 = vmatpush1.bf16.msra.mxu0 0
        %1999 = vmatprep.subr.bf16.mxu0 0
        %2000 = vmatpush1.bf16.msra.mxu0 0
        %2001 = vmatprep.subr.bf16.mxu0 0
        %2002 = vmatpush1.bf16.msra.mxu0 0
        %2003 = vmatprep.subr.bf16.mxu0 0
        %2004 = vmatpush1.bf16.msra.mxu0 0
        %2005 = vmatprep.subr.bf16.mxu0 0
        %2006 = vmatpush1.bf16.msra.mxu0 0
        %2007 = vmatprep.subr.bf16.mxu0 0
        %2008 = vmatpush1.bf16.msra.mxu0 0
        %2009 = vmatprep.subr.bf16.mxu0 0
        %2010 = vmatpush1.bf16.msra.mxu0 0
        %2011 = vmatprep.subr.bf16.mxu0 0
        %2012 = vmatpush1.bf16.msra.mxu0 0
        %2013 = vmatprep.subr.bf16.mxu0 0
        %2014 = vmatpush1.bf16.msra.mxu0 0
        %2015 = vmatprep.subr.bf16.mxu0 0
        %2016 = vmatpush1.bf16.msra.mxu0 0
        %2017 = vmatprep.subr.bf16.mxu0 0
        %2018 = vmatpush1.bf16.msra.mxu0 0
        %2019 = vmatprep.mubr.bf16.mxu0 0
        %2020 = vmatmul.mubr.bf16.gmra.mrb[0].mxu0 %v1141
        %v2021 = vpop.f32.mrb[0].mxu0
        %v2022 = vadd.f32 0.0, %v2021
        %v2023 = vpop.f32.mrb[0].mxu0
        %v2024 = vadd.f32 0.0, %v2023
        %v2025 = vpop.f32.mrb[0].mxu0
        %v2026 = vadd.f32 0.0, %v2025
        %v2027 = vpop.f32.mrb[0].mxu0
        %v2028 = vadd.f32 0.0, %v2027
        %2029 = vdwg.mxu0
        %2030 = vmatprep.subr.bf16.mxu0 %v1948
        %2031 = vmatpush1.bf16.msra.mxu0 %v1947
        %2032 = vmatprep.subr.bf16.mxu0 %v1976
        %2033 = vmatpush1.bf16.msra.mxu0 %v1973
        %2034 = vmatprep.subr.bf16.mxu0 0
        %2035 = vmatpush1.bf16.msra.mxu0 0
        %2036 = vmatprep.subr.bf16.mxu0 0
        %2037 = vmatpush1.bf16.msra.mxu0 0
        %2038 = vmatprep.subr.bf16.mxu0 0
        %2039 = vmatpush1.bf16.msra.mxu0 0
        %2040 = vmatprep.subr.bf16.mxu0 0
        %2041 = vmatpush1.bf16.msra.mxu0 0
        %2042 = vmatprep.subr.bf16.mxu0 0
        %2043 = vmatpush1.bf16.msra.mxu0 0
        %2044 = vmatprep.subr.bf16.mxu0 0
        %2045 = vmatpush1.bf16.msra.mxu0 0
        %2046 = vmatprep.subr.bf16.mxu0 0
        %2047 = vmatpush1.bf16.msra.mxu0 0
        %2048 = vmatprep.subr.bf16.mxu0 0
        %2049 = vmatpush1.bf16.msra.mxu0 0
        %2050 = vmatprep.subr.bf16.mxu0 0
        %2051 = vmatpush1.bf16.msra.mxu0 0
        %2052 = vmatprep.subr.bf16.mxu0 0
        %2053 = vmatpush1.bf16.msra.mxu0 0
        %2054 = vmatprep.subr.bf16.mxu0 0
        %2055 = vmatpush1.bf16.msra.mxu0 0
        %2056 = vmatprep.subr.bf16.mxu0 0
        %2057 = vmatpush1.bf16.msra.mxu0 0
        %2058 = vmatprep.subr.bf16.mxu0 0
        %2059 = vmatpush1.bf16.msra.mxu0 0
        %2060 = vmatprep.subr.bf16.mxu0 0
        %2061 = vmatpush1.bf16.msra.mxu0 0
        %2062 = vmatprep.mubr.bf16.mxu0 0
        %2063 = vmatmul.mubr.bf16.gmra.mrb[0].mxu0 %v1141
        %v2064 = vpop.f32.mrb[0].mxu0
        %v2065 = vadd.f32 0.0, %v2064
        %v2066 = vpop.f32.mrb[0].mxu0
        %v2067 = vadd.f32 0.0, %v2066
        %v2068 = vpop.f32.mrb[0].mxu0
        %v2069 = vadd.f32 0.0, %v2068
        %v2070 = vpop.f32.mrb[0].mxu0
        %v2071 = vadd.f32 0.0, %v2070
        %2072 = vdwg.mxu0
        %2073 = vmatprep.subr.bf16.mxu0 %v1950
        %2074 = vmatpush1.bf16.msra.mxu0 %v1949
        %2075 = vmatprep.subr.bf16.mxu0 %v1982
        %2076 = vmatpush1.bf16.msra.mxu0 %v1979
        %2077 = vmatprep.subr.bf16.mxu0 0
        %2078 = vmatpush1.bf16.msra.mxu0 0
        %2079 = vmatprep.subr.bf16.mxu0 0
        %2080 = vmatpush1.bf16.msra.mxu0 0
        %2081 = vmatprep.subr.bf16.mxu0 0
        %2082 = vmatpush1.bf16.msra.mxu0 0
        %2083 = vmatprep.subr.bf16.mxu0 0
        %2084 = vmatpush1.bf16.msra.mxu0 0
        %2085 = vmatprep.subr.bf16.mxu0 0
        %2086 = vmatpush1.bf16.msra.mxu0 0
        %2087 = vmatprep.subr.bf16.mxu0 0
        %2088 = vmatpush1.bf16.msra.mxu0 0
        %2089 = vmatprep.subr.bf16.mxu0 0
        %2090 = vmatpush1.bf16.msra.mxu0 0
        %2091 = vmatprep.subr.bf16.mxu0 0
        %2092 = vmatpush1.bf16.msra.mxu0 0
        %2093 = vmatprep.subr.bf16.mxu0 0
        %2094 = vmatpush1.bf16.msra.mxu0 0
        %2095 = vmatprep.subr.bf16.mxu0 0
        %2096 = vmatpush1.bf16.msra.mxu0 0
        %2097 = vmatprep.subr.bf16.mxu0 0
        %2098 = vmatpush1.bf16.msra.mxu0 0
        %2099 = vmatprep.subr.bf16.mxu0 0
        %2100 = vmatpush1.bf16.msra.mxu0 0
        %2101 = vmatprep.subr.bf16.mxu0 0
        %2102 = vmatpush1.bf16.msra.mxu0 0
        %2103 = vmatprep.subr.bf16.mxu0 0
        %2104 = vmatpush1.bf16.msra.mxu0 0
        %2105 = vmatprep.mubr.bf16.mxu0 0
        %2106 = vmatmul.mubr.bf16.gmra.mrb[0].mxu0 %v1141
        %v2107 = vpop.f32.mrb[0].mxu0
        %v2108 = vadd.f32 0.0, %v2107
        %v2109 = vpop.f32.mrb[0].mxu0
        %v2110 = vadd.f32 0.0, %v2109
        %v2111 = vpop.f32.mrb[0].mxu0
        %v2112 = vadd.f32 0.0, %v2111
        %v2113 = vpop.f32.mrb[0].mxu0
        %v2114 = vadd.f32 0.0, %v2113
        %2115 = vdwg.mxu0
        %2116 = vmatprep.subr.bf16.mxu0 0
        %2117 = vmatpush1.bf16.msra.mxu0 %v1951
        %2118 = vmatprep.subr.bf16.mxu0 0
        %2119 = vmatpush1.bf16.msra.mxu0 %v1985
        %2120 = vmatprep.subr.bf16.mxu0 0
        %2121 = vmatpush1.bf16.msra.mxu0 0
        %2122 = vmatprep.subr.bf16.mxu0 0
        %2123 = vmatpush1.bf16.msra.mxu0 0
        %2124 = vmatprep.subr.bf16.mxu0 0
        %2125 = vmatpush1.bf16.msra.mxu0 0
        %2126 = vmatprep.subr.bf16.mxu0 0
        %2127 = vmatpush1.bf16.msra.mxu0 0
        %2128 = vmatprep.subr.bf16.mxu0 0
        %2129 = vmatpush1.bf16.msra.mxu0 0
        %2130 = vmatprep.subr.bf16.mxu0 0
        %2131 = vmatpush1.bf16.msra.mxu0 0
        %2132 = vmatprep.subr.bf16.mxu0 0
        %2133 = vmatpush1.bf16.msra.mxu0 0
        %2134 = vmatprep.subr.bf16.mxu0 0
        %2135 = vmatpush1.bf16.msra.mxu0 0
        %2136 = vmatprep.subr.bf16.mxu0 0
        %2137 = vmatpush1.bf16.msra.mxu0 0
        %2138 = vmatprep.subr.bf16.mxu0 0
        %2139 = vmatpush1.bf16.msra.mxu0 0
        %2140 = vmatprep.subr.bf16.mxu0 0
        %2141 = vmatpush1.bf16.msra.mxu0 0
        %2142 = vmatprep.subr.bf16.mxu0 0
        %2143 = vmatpush1.bf16.msra.mxu0 0
        %2144 = vmatprep.subr.bf16.mxu0 0
        %2145 = vmatpush1.bf16.msra.mxu0 0
        %2146 = vmatprep.subr.bf16.mxu0 0
        %2147 = vmatpush1.bf16.msra.mxu0 0
        %2148 = vmatprep.mubr.bf16.mxu0 0
        %2149 = vmatmul.mubr.bf16.gmra.mrb[0].mxu0 %v1141
        %v2150 = vpop.f32.mrb[0].mxu0
        %v2151 = vadd.f32 0.0, %v2150
        %v2152 = vpop.f32.mrb[0].mxu0
        %v2153 = vpop.f32.mrb[0].mxu0
        %v2154 = vadd.f32 0.0, %v2153
        %v2155 = vpop.f32.mrb[0].mxu0
        %2156 = vdwg.mxu0
        %v2157 = vmax.f32 %v1203, %v1476
        %v2158 = vmax.f32 %v1205, %v1478
        %v2159 = vmax.f32 %v1246, %v1519
        %v2160 = vmax.f32 %v1248, %v1521
        %v2161 = vmax.f32 %v1289, %v1562
        %v2162 = vmax.f32 %v1291, %v1564
        %v2163 = vmax.f32 %v1332, %v1605
        %v2164 = vmax.f32 %v1207, %v1480
        %v2165 = vmax.f32 %v1209, %v1482
        %v2166 = vmax.f32 %v1250, %v1523
        %v2167 = vmax.f32 %v1252, %v1525
        %v2168 = vmax.f32 %v1293, %v1566
        %v2169 = vmax.f32 %v1295, %v1568
        %v2170 = vmax.f32 %v1335, %v1608
        %v2171 = vmax.f32 %v1749, %v2022
        %v2172 = vmax.f32 %v1751, %v2024
        %v2173 = vmax.f32 %v1792, %v2065
        %v2174 = vmax.f32 %v1794, %v2067
        %v2175 = vmax.f32 %v1835, %v2108
        %v2176 = vmax.f32 %v1837, %v2110
        %v2177 = vmax.f32 %v1878, %v2151
        %v2178 = vmax.f32 %v1753, %v2026
        %v2179 = vmax.f32 %v1755, %v2028
        %v2180 = vmax.f32 %v1796, %v2069
        %v2181 = vmax.f32 %v1798, %v2071
        %v2182 = vmax.f32 %v1839, %v2112
        %v2183 = vmax.f32 %v1841, %v2114
        %v2184 = vmax.f32 %v1881, %v2154
        %v2185 = vmax.f32 %v2157, %v2171
        %v2186 = vmax.f32 %v2158, %v2172
        %v2187 = vmax.f32 %v2159, %v2173
        %v2188 = vmax.f32 %v2160, %v2174
        %v2189 = vmax.f32 %v2161, %v2175
        %v2190 = vmax.f32 %v2162, %v2176
        %v2191 = vmax.f32 %v2163, %v2177
        %v2192 = vmax.f32 %v2164, %v2178
        %v2193 = vmax.f32 %v2165, %v2179
        %v2194 = vmax.f32 %v2166, %v2180
        %v2195 = vmax.f32 %v2167, %v2181
        %v2196 = vmax.f32 %v2168, %v2182
        %v2197 = vmax.f32 %v2169, %v2183
        %v2198 = vmax.f32 %v2170, %v2184
        %2200 = vset.pattern.permute.xlu0 0
        %2201 = vperm.xlu0 %2200, %v1051
        %v2202 = vpop.permute.xlu0 %2201
        %2205 = vset.pattern.permute.xlu0 0
        %2206 = vperm.xlu0 %2205, %v1052
        %v2207 = vpop.permute.xlu0 %2206
        %v2209 = vadd.f32 %v2185, %v2202
        %v2210 = vadd.f32 %v2186, %v2202
        %v2211 = vadd.f32 %v2187, %v2202
        %v2212 = vadd.f32 %v2188, %v2202
        %v2213 = vadd.f32 %v2189, %v2202
        %v2214 = vadd.f32 %v2190, %v2202
        %v2215 = vadd.f32 %v2191, %v2202
        %v2216 = vadd.f32 %v2192, %v2207
        %v2217 = vadd.f32 %v2193, %v2207
        %v2218 = vadd.f32 %v2194, %v2207
        %v2219 = vadd.f32 %v2195, %v2207
        %v2220 = vadd.f32 %v2196, %v2207
        %v2221 = vadd.f32 %v2197, %v2207
        %v2222 = vadd.f32 %v2198, %v2207
        %v2223 = vmax.f32 %v2209, 0.0
        %v2224 = vmax.f32 %v2210, 0.0
        %v2225 = vmax.f32 %v2211, 0.0
        %v2226 = vmax.f32 %v2212, 0.0
        %v2227 = vmax.f32 %v2213, 0.0
        %v2228 = vmax.f32 %v2214, 0.0
        %v2229 = vmax.f32 %v2215, 0.0
        %v2230 = vmax.f32 %v2216, 0.0
        %v2231 = vmax.f32 %v2217, 0.0
        %v2232 = vmax.f32 %v2218, 0.0
        %v2233 = vmax.f32 %v2219, 0.0
        %v2234 = vmax.f32 %v2220, 0.0
        %v2235 = vmax.f32 %v2221, 0.0
        %v2236 = vmax.f32 %v2222, 0.0
        %s2237 = smul.u32 %s20, 196
        %s2238 = smul.addr %s2237, 4
        %s2239 = scalar_lea.vmem %s3, %s2238
        %v2240 = vld [vmem:[%s2239] sm:$0xff]
        %v2241 = vld [vmem:[%s2239 + $0x8] sm:$0xff]
        %v2242 = vld [vmem:[%s2239 + $0x10] sm:$0xff]
        %v2243 = vld [vmem:[%s2239 + $0x18] sm:$0xf]
        %v2244 = vld [vmem:[%s2239 + $0xc4] sm:$0xff]
        %v2245 = vld [vmem:[%s2239 + $0xcc] sm:$0xff]
        %v2246 = vld [vmem:[%s2239 + $0xd4] sm:$0xff]
        %v2247 = vld [vmem:[%s2239 + $0xdc] sm:$0xf]
        %v2248 = vunpack.c.l.bf16 %v2240
        %v2249 = vunpack.c.h.bf16 %v2240
        %v2250 = vunpack.c.l.bf16 %v2241
        %v2251 = vunpack.c.h.bf16 %v2241
        %v2252 = vunpack.c.l.bf16 %v2242
        %v2253 = vunpack.c.h.bf16 %v2242
        %v2254 = vunpack.c.l.bf16 %v2243
        %v2255 = vunpack.c.l.bf16 %v2244
        %v2256 = vunpack.c.h.bf16 %v2244
        %v2257 = vunpack.c.l.bf16 %v2245
        %v2258 = vunpack.c.h.bf16 %v2245
        %v2259 = vunpack.c.l.bf16 %v2246
        %v2260 = vunpack.c.h.bf16 %v2246
        %v2261 = vunpack.c.l.bf16 %v2247
        %s2262 = sadd.s32 98, %s2237
        %s2263 = smul.addr %s2262, 4
        %s2264 = scalar_lea.vmem %s3, %s2263
        %v2265 = vld [vmem:[%s2264] sm:$0xff]
        %v2266 = vld [vmem:[%s2264 + $0x8] sm:$0xff]
        %v2267 = vld [vmem:[%s2264 + $0x10] sm:$0xff]
        %v2268 = vld [vmem:[%s2264 + $0x18] sm:$0xf]
        %v2269 = vld [vmem:[%s2264 + $0xc4] sm:$0xff]
        %v2270 = vld [vmem:[%s2264 + $0xcc] sm:$0xff]
        %v2271 = vld [vmem:[%s2264 + $0xd4] sm:$0xff]
        %v2272 = vld [vmem:[%s2264 + $0xdc] sm:$0xf]
        %v2273 = vunpack.c.l.bf16 %v2265
        %v2274 = vunpack.c.h.bf16 %v2265
        %v2275 = vunpack.c.l.bf16 %v2266
        %v2276 = vunpack.c.h.bf16 %v2266
        %v2277 = vunpack.c.l.bf16 %v2267
        %v2278 = vunpack.c.h.bf16 %v2267
        %v2279 = vunpack.c.l.bf16 %v2268
        %v2280 = vunpack.c.l.bf16 %v2269
        %v2281 = vunpack.c.h.bf16 %v2269
        %v2282 = vunpack.c.l.bf16 %v2270
        %v2283 = vunpack.c.h.bf16 %v2270
        %v2284 = vunpack.c.l.bf16 %v2271
        %v2285 = vunpack.c.h.bf16 %v2271
        %v2286 = vunpack.c.l.bf16 %v2272
        %v2287 = vmul.f32 %v2223, %v2248
        %v2288 = vmul.f32 %v2224, %v2249
        %v2289 = vmul.f32 %v2225, %v2250
        %v2290 = vmul.f32 %v2226, %v2251
        %v2291 = vmul.f32 %v2227, %v2252
        %v2292 = vmul.f32 %v2228, %v2253
        %v2293 = vmul.f32 %v2229, %v2254
        %v2294 = vmul.f32 %v2230, %v2255
        %v2295 = vmul.f32 %v2231, %v2256
        %v2296 = vmul.f32 %v2232, %v2257
        %v2297 = vmul.f32 %v2233, %v2258
        %v2298 = vmul.f32 %v2234, %v2259
        %v2299 = vmul.f32 %v2235, %v2260
        %v2300 = vmul.f32 %v2236, %v2261
        %v2301 = vadd.f32 %v2287, %v2288
        %v2302 = vadd.f32 %v2301, %v2289
        %v2303 = vadd.f32 %v2302, %v2290
        %v2304 = vadd.f32 %v2303, %v2291
        %v2305 = vadd.f32 %v2304, %v2292
        %v2306 = vadd.f32 %v2305, %v2293
        %v2307 = vadd.f32 %v2306, %v2294
        %v2308 = vadd.f32 %v2307, %v2295
        %v2309 = vadd.f32 %v2308, %v2296
        %v2310 = vadd.f32 %v2309, %v2297
        %v2311 = vadd.f32 %v2310, %v2298
        %v2312 = vadd.f32 %v2311, %v2299
        %v2313 = vadd.f32 %v2312, %v2300
        %2314 = vadd.xlane.f32.xlu0 %v2313
        %v2315 = vpop.xlane.xlu0 %2314
        %v2316 = vrot.slane %v2315, 4
        %v2317 = vadd.f32 %v2315, %v2316
        %v2318 = vrot.slane %v2317, 2
        %v2319 = vadd.f32 %v2317, %v2318
        %v2320 = vrot.slane %v2319, 1
        %v2321 = vadd.f32 %v2319, %v2320
        %s2322 = vtos %v2321
        %s2323 = sadd.f32 %s2322, 0.0
        %v2324 = vmul.f32 %v2223, %v2273
        %v2325 = vmul.f32 %v2224, %v2274
        %v2326 = vmul.f32 %v2225, %v2275
        %v2327 = vmul.f32 %v2226, %v2276
        %v2328 = vmul.f32 %v2227, %v2277
        %v2329 = vmul.f32 %v2228, %v2278
        %v2330 = vmul.f32 %v2229, %v2279
        %v2331 = vmul.f32 %v2230, %v2280
        %v2332 = vmul.f32 %v2231, %v2281
        %v2333 = vmul.f32 %v2232, %v2282
        %v2334 = vmul.f32 %v2233, %v2283
        %v2335 = vmul.f32 %v2234, %v2284
        %v2336 = vmul.f32 %v2235, %v2285
        %v2337 = vmul.f32 %v2236, %v2286
        %v2338 = vadd.f32 %v2324, %v2325
        %v2339 = vadd.f32 %v2338, %v2326
        %v2340 = vadd.f32 %v2339, %v2327
        %v2341 = vadd.f32 %v2340, %v2328
        %v2342 = vadd.f32 %v2341, %v2329
        %v2343 = vadd.f32 %v2342, %v2330
        %v2344 = vadd.f32 %v2343, %v2331
        %v2345 = vadd.f32 %v2344, %v2332
        %v2346 = vadd.f32 %v2345, %v2333
        %v2347 = vadd.f32 %v2346, %v2334
        %v2348 = vadd.f32 %v2347, %v2335
        %v2349 = vadd.f32 %v2348, %v2336
        %v2350 = vadd.f32 %v2349, %v2337
        %2351 = vadd.xlane.f32.xlu0 %v2350
        %v2352 = vpop.xlane.xlu0 %2351
        %v2353 = vrot.slane %v2352, 4
        %v2354 = vadd.f32 %v2352, %v2353
        %v2355 = vrot.slane %v2354, 2
        %v2356 = vadd.f32 %v2354, %v2355
        %v2357 = vrot.slane %v2356, 1
        %v2358 = vadd.f32 %v2356, %v2357
        %s2359 = vtos %v2358
        %s2360 = sadd.f32 %s2359, 0.0
        %v2361 = vld [vmem:[%s1015 + $0x1c] sm:$0xff]
        %v2362 = vld [vmem:[%s1015 + $0x24] sm:$0xff]
        %v2363 = vld [vmem:[%s1015 + $0x2c] sm:$0xff]
        %v2364 = vld [vmem:[%s1015 + $0x34] sm:$0xf]
        %v2365 = vld [vmem:[%s1015 + $0xe0] sm:$0xff]
        %v2366 = vld [vmem:[%s1015 + $0xe8] sm:$0xff]
        %v2367 = vld [vmem:[%s1015 + $0xf0] sm:$0xff]
        %v2368 = vld [vmem:[%s1015 + $0xf8] sm:$0xf]
        %v2369 = vld [vmem:[%s1015 + $0x1a4] sm:$0xff]
        %v2370 = vld [vmem:[%s1015 + $0x1ac] sm:$0xff]
        %v2371 = vld [vmem:[%s1015 + $0x1b4] sm:$0xff]
        %v2372 = vld [vmem:[%s1015 + $0x1bc] sm:$0xf]
        %v2373 = vld [vmem:[%s1015 + $0x268] sm:$0x33]
        %v2374 = vld [vmem:[%s1015 + $0x270] sm:$0x33]
        %v2375 = vld [vmem:[%s1015 + $0x278] sm:$0x33]
        %v2376 = vld [vmem:[%s1015 + $0x280] sm:$0x3]
        %v2393 = vunpack.c.l.b16 %v2361
        %v2394 = vunpack.c.h.b16 %v2361
        %v2395 = vunpack.c.l.b16 %v2362
        %v2396 = vunpack.c.h.b16 %v2362
        %v2397 = vunpack.c.l.b16 %v2363
        %v2398 = vunpack.c.h.b16 %v2363
        %v2399 = vunpack.c.l.b16 %v2364
        %v2400 = vunpack.c.l.b16 %v2365
        %v2401 = vunpack.c.h.b16 %v2365
        %v2402 = vunpack.c.l.b16 %v2366
        %v2403 = vunpack.c.h.b16 %v2366
        %v2404 = vunpack.c.l.b16 %v2367
        %v2405 = vunpack.c.h.b16 %v2367
        %v2406 = vunpack.c.l.b16 %v2368
        %v2407 = vunpack.c.l.b16 %v2369
        %v2408 = vunpack.c.h.b16 %v2369
        %v2409 = vunpack.c.l.b16 %v2370
        %v2410 = vunpack.c.h.b16 %v2370
        %v2411 = vunpack.c.l.b16 %v2371
        %v2412 = vunpack.c.h.b16 %v2371
        %v2413 = vunpack.c.l.b16 %v2372
        %v2414 = vunpack.c.l.b16 %v2373
        %v2415 = vunpack.c.h.b16 %v2373
        %v2416 = vunpack.c.l.b16 %v2374
        %v2417 = vunpack.c.h.b16 %v2374
        %v2418 = vunpack.c.l.b16 %v2375
        %v2419 = vunpack.c.h.b16 %v2375
        %v2420 = vunpack.c.l.b16 %v2376
        %v2421 = vpack.c.b16 %v2400, %v2393
        %v2422 = vpack.c.b16 %v2401, %v2394
        %v2423 = vpack.c.b16 %v2402, %v2395
        %v2424 = vpack.c.b16 %v2403, %v2396
        %v2425 = vpack.c.b16 %v2404, %v2397
        %v2426 = vpack.c.b16 %v2405, %v2398
        %v2427 = vpack.c.b16 %v2406, %v2399
        %v2428 = vpack.c.b16 %v2414, %v2407
        %v2429 = vpack.c.b16 %v2415, %v2408
        %v2430 = vpack.c.b16 %v2416, %v2409
        %v2431 = vpack.c.b16 %v2417, %v2410
        %v2432 = vpack.c.b16 %v2418, %v2411
        %v2433 = vpack.c.b16 %v2419, %v2412
        %v2434 = vpack.c.b16 %v2420, %v2413
        %v2443 = vand.u32 %v2428, %v1146
        %v2446 = vand.u32 %v2429, %v1146
        %v2449 = vand.u32 %v2430, %v1146
        %v2452 = vand.u32 %v2431, %v1146
        %v2455 = vand.u32 %v2432, %v1146
        %v2458 = vand.u32 %v2433, %v1146
        %v2461 = vand.u32 %v2434, %v1146
        %2463 = vmatprep.subr.bf16.mxu0 %v2422
        %2464 = vmatpush1.bf16.msra.mxu0 %v2421
        %2465 = vmatprep.subr.bf16.mxu0 %v2446
        %2466 = vmatpush1.bf16.msra.mxu0 %v2443
        %2467 = vmatprep.subr.bf16.mxu0 0
        %2468 = vmatpush1.bf16.msra.mxu0 0
        %2469 = vmatprep.subr.bf16.mxu0 0
        %2470 = vmatpush1.bf16.msra.mxu0 0
        %2471 = vmatprep.subr.bf16.mxu0 0
        %2472 = vmatpush1.bf16.msra.mxu0 0
        %2473 = vmatprep.subr.bf16.mxu0 0
        %2474 = vmatpush1.bf16.msra.mxu0 0
        %2475 = vmatprep.subr.bf16.mxu0 0
        %2476 = vmatpush1.bf16.msra.mxu0 0
        %2477 = vmatprep.subr.bf16.mxu0 0
        %2478 = vmatpush1.bf16.msra.mxu0 0
        %2479 = vmatprep.subr.bf16.mxu0 0
        %2480 = vmatpush1.bf16.msra.mxu0 0
        %2481 = vmatprep.subr.bf16.mxu0 0
        %2482 = vmatpush1.bf16.msra.mxu0 0
        %2483 = vmatprep.subr.bf16.mxu0 0
        %2484 = vmatpush1.bf16.msra.mxu0 0
        %2485 = vmatprep.subr.bf16.mxu0 0
        %2486 = vmatpush1.bf16.msra.mxu0 0
        %2487 = vmatprep.subr.bf16.mxu0 0
        %2488 = vmatpush1.bf16.msra.mxu0 0
        %2489 = vmatprep.subr.bf16.mxu0 0
        %2490 = vmatpush1.bf16.msra.mxu0 0
        %2491 = vmatprep.subr.bf16.mxu0 0
        %2492 = vmatpush1.bf16.msra.mxu0 0
        %2493 = vmatprep.subr.bf16.mxu0 0
        %2494 = vmatpush1.bf16.msra.mxu0 0
        %2495 = vmatprep.mubr.bf16.mxu0 0
        %2496 = vmatmul.mubr.bf16.gmra.mrb[0].mxu0 %v1141
        %v2497 = vpop.f32.mrb[0].mxu0
        %v2498 = vadd.f32 0.0, %v2497
        %v2499 = vpop.f32.mrb[0].mxu0
        %v2500 = vadd.f32 0.0, %v2499
        %v2501 = vpop.f32.mrb[0].mxu0
        %v2502 = vadd.f32 0.0, %v2501
        %v2503 = vpop.f32.mrb[0].mxu0
        %v2504 = vadd.f32 0.0, %v2503
        %2505 = vdwg.mxu0
        %2506 = vmatprep.subr.bf16.mxu0 %v2424
        %2507 = vmatpush1.bf16.msra.mxu0 %v2423
        %2508 = vmatprep.subr.bf16.mxu0 %v2452
        %2509 = vmatpush1.bf16.msra.mxu0 %v2449
        %2510 = vmatprep.subr.bf16.mxu0 0
        %2511 = vmatpush1.bf16.msra.mxu0 0
        %2512 = vmatprep.subr.bf16.mxu0 0
        %2513 = vmatpush1.bf16.msra.mxu0 0
        %2514 = vmatprep.subr.bf16.mxu0 0
        %2515 = vmatpush1.bf16.msra.mxu0 0
        %2516 = vmatprep.subr.bf16.mxu0 0
        %2517 = vmatpush1.bf16.msra.mxu0 0
        %2518 = vmatprep.subr.bf16.mxu0 0
        %2519 = vmatpush1.bf16.msra.mxu0 0
        %2520 = vmatprep.subr.bf16.mxu0 0
        %2521 = vmatpush1.bf16.msra.mxu0 0
        %2522 = vmatprep.subr.bf16.mxu0 0
        %2523 = vmatpush1.bf16.msra.mxu0 0
        %2524 = vmatprep.subr.bf16.mxu0 0
        %2525 = vmatpush1.bf16.msra.mxu0 0
        %2526 = vmatprep.subr.bf16.mxu0 0
        %2527 = vmatpush1.bf16.msra.mxu0 0
        %2528 = vmatprep.subr.bf16.mxu0 0
        %2529 = vmatpush1.bf16.msra.mxu0 0
        %2530 = vmatprep.subr.bf16.mxu0 0
        %2531 = vmatpush1.bf16.msra.mxu0 0
        %2532 = vmatprep.subr.bf16.mxu0 0
        %2533 = vmatpush1.bf16.msra.mxu0 0
        %2534 = vmatprep.subr.bf16.mxu0 0
        %2535 = vmatpush1.bf16.msra.mxu0 0
        %2536 = vmatprep.subr.bf16.mxu0 0
        %2537 = vmatpush1.bf16.msra.mxu0 0
        %2538 = vmatprep.mubr.bf16.mxu0 0
        %2539 = vmatmul.mubr.bf16.gmra.mrb[0].mxu0 %v1141
        %v2540 = vpop.f32.mrb[0].mxu0
        %v2541 = vadd.f32 0.0, %v2540
        %v2542 = vpop.f32.mrb[0].mxu0
        %v2543 = vadd.f32 0.0, %v2542
        %v2544 = vpop.f32.mrb[0].mxu0
        %v2545 = vadd.f32 0.0, %v2544
        %v2546 = vpop.f32.mrb[0].mxu0
        %v2547 = vadd.f32 0.0, %v2546
        %2548 = vdwg.mxu0
        %2549 = vmatprep.subr.bf16.mxu0 %v2426
        %2550 = vmatpush1.bf16.msra.mxu0 %v2425
        %2551 = vmatprep.subr.bf16.mxu0 %v2458
        %2552 = vmatpush1.bf16.msra.mxu0 %v2455
        %2553 = vmatprep.subr.bf16.mxu0 0
        %2554 = vmatpush1.bf16.msra.mxu0 0
        %2555 = vmatprep.subr.bf16.mxu0 0
        %2556 = vmatpush1.bf16.msra.mxu0 0
        %2557 = vmatprep.subr.bf16.mxu0 0
        %2558 = vmatpush1.bf16.msra.mxu0 0
        %2559 = vmatprep.subr.bf16.mxu0 0
        %2560 = vmatpush1.bf16.msra.mxu0 0
        %2561 = vmatprep.subr.bf16.mxu0 0
        %2562 = vmatpush1.bf16.msra.mxu0 0
        %2563 = vmatprep.subr.bf16.mxu0 0
        %2564 = vmatpush1.bf16.msra.mxu0 0
        %2565 = vmatprep.subr.bf16.mxu0 0
        %2566 = vmatpush1.bf16.msra.mxu0 0
        %2567 = vmatprep.subr.bf16.mxu0 0
        %2568 = vmatpush1.bf16.msra.mxu0 0
        %2569 = vmatprep.subr.bf16.mxu0 0
        %2570 = vmatpush1.bf16.msra.mxu0 0
        %2571 = vmatprep.subr.bf16.mxu0 0
        %2572 = vmatpush1.bf16.msra.mxu0 0
        %2573 = vmatprep.subr.bf16.mxu0 0
        %2574 = vmatpush1.bf16.msra.mxu0 0
        %2575 = vmatprep.subr.bf16.mxu0 0
        %2576 = vmatpush1.bf16.msra.mxu0 0
        %2577 = vmatprep.subr.bf16.mxu0 0
        %2578 = vmatpush1.bf16.msra.mxu0 0
        %2579 = vmatprep.subr.bf16.mxu0 0
        %2580 = vmatpush1.bf16.msra.mxu0 0
        %2581 = vmatprep.mubr.bf16.mxu0 0
        %2582 = vmatmul.mubr.bf16.gmra.mrb[0].mxu0 %v1141
        %v2583 = vpop.f32.mrb[0].mxu0
        %v2584 = vadd.f32 0.0, %v2583
        %v2585 = vpop.f32.mrb[0].mxu0
        %v2586 = vadd.f32 0.0, %v2585
        %v2587 = vpop.f32.mrb[0].mxu0
        %v2588 = vadd.f32 0.0, %v2587
        %v2589 = vpop.f32.mrb[0].mxu0
        %v2590 = vadd.f32 0.0, %v2589
        %2591 = vdwg.mxu0
        %2592 = vmatprep.subr.bf16.mxu0 0
        %2593 = vmatpush1.bf16.msra.mxu0 %v2427
        %2594 = vmatprep.subr.bf16.mxu0 0
        %2595 = vmatpush1.bf16.msra.mxu0 %v2461
        %2596 = vmatprep.subr.bf16.mxu0 0
        %2597 = vmatpush1.bf16.msra.mxu0 0
        %2598 = vmatprep.subr.bf16.mxu0 0
        %2599 = vmatpush1.bf16.msra.mxu0 0
        %2600 = vmatprep.subr.bf16.mxu0 0
        %2601 = vmatpush1.bf16.msra.mxu0 0
        %2602 = vmatprep.subr.bf16.mxu0 0
        %2603 = vmatpush1.bf16.msra.mxu0 0
        %2604 = vmatprep.subr.bf16.mxu0 0
        %2605 = vmatpush1.bf16.msra.mxu0 0
        %2606 = vmatprep.subr.bf16.mxu0 0
        %2607 = vmatpush1.bf16.msra.mxu0 0
        %2608 = vmatprep.subr.bf16.mxu0 0
        %2609 = vmatpush1.bf16.msra.mxu0 0
        %2610 = vmatprep.subr.bf16.mxu0 0
        %2611 = vmatpush1.bf16.msra.mxu0 0
        %2612 = vmatprep.subr.bf16.mxu0 0
        %2613 = vmatpush1.bf16.msra.mxu0 0
        %2614 = vmatprep.subr.bf16.mxu0 0
        %2615 = vmatpush1.bf16.msra.mxu0 0
        %2616 = vmatprep.subr.bf16.mxu0 0
        %2617 = vmatpush1.bf16.msra.mxu0 0
        %2618 = vmatprep.subr.bf16.mxu0 0
        %2619 = vmatpush1.bf16.msra.mxu0 0
        %2620 = vmatprep.subr.bf16.mxu0 0
        %2621 = vmatpush1.bf16.msra.mxu0 0
        %2622 = vmatprep.subr.bf16.mxu0 0
        %2623 = vmatpush1.bf16.msra.mxu0 0
        %2624 = vmatprep.mubr.bf16.mxu0 0
        %2625 = vmatmul.mubr.bf16.gmra.mrb[0].mxu0 %v1141
        %v2626 = vpop.f32.mrb[0].mxu0
        %v2627 = vadd.f32 0.0, %v2626
        %v2628 = vpop.f32.mrb[0].mxu0
        %v2629 = vpop.f32.mrb[0].mxu0
        %v2630 = vadd.f32 0.0, %v2629
        %v2631 = vpop.f32.mrb[0].mxu0
        %2632 = vdwg.mxu0
        %v2633 = vld [vmem:[%s1338 + $0x1c] sm:$0xff]
        %v2634 = vld [vmem:[%s1338 + $0x24] sm:$0xff]
        %v2635 = vld [vmem:[%s1338 + $0x2c] sm:$0xff]
        %v2636 = vld [vmem:[%s1338 + $0x34] sm:$0xf]
        %v2637 = vld [vmem:[%s1338 + $0xe0] sm:$0xff]
        %v2638 = vld [vmem:[%s1338 + $0xe8] sm:$0xff]
        %v2639 = vld [vmem:[%s1338 + $0xf0] sm:$0xff]
        %v2640 = vld [vmem:[%s1338 + $0xf8] sm:$0xf]
        %v2641 = vld [vmem:[%s1338 + $0x1a4] sm:$0xff]
        %v2642 = vld [vmem:[%s1338 + $0x1ac] sm:$0xff]
        %v2643 = vld [vmem:[%s1338 + $0x1b4] sm:$0xff]
        %v2644 = vld [vmem:[%s1338 + $0x1bc] sm:$0xf]
        %v2645 = vld [vmem:[%s1338 + $0x268] sm:$0x33]
        %v2646 = vld [vmem:[%s1338 + $0x270] sm:$0x33]
        %v2647 = vld [vmem:[%s1338 + $0x278] sm:$0x33]
        %v2648 = vld [vmem:[%s1338 + $0x280] sm:$0x3]
        %v2665 = vunpack.c.l.b16 %v2633
        %v2666 = vunpack.c.h.b16 %v2633
        %v2667 = vunpack.c.l.b16 %v2634
        %v2668 = vunpack.c.h.b16 %v2634
        %v2669 = vunpack.c.l.b16 %v2635
        %v2670 = vunpack.c.h.b16 %v2635
        %v2671 = vunpack.c.l.b16 %v2636
        %v2672 = vunpack.c.l.b16 %v2637
        %v2673 = vunpack.c.h.b16 %v2637
        %v2674 = vunpack.c.l.b16 %v2638
        %v2675 = vunpack.c.h.b16 %v2638
        %v2676 = vunpack.c.l.b16 %v2639
        %v2677 = vunpack.c.h.b16 %v2639
        %v2678 = vunpack.c.l.b16 %v2640
        %v2679 = vunpack.c.l.b16 %v2641
        %v2680 = vunpack.c.h.b16 %v2641
        %v2681 = vunpack.c.l.b16 %v2642
        %v2682 = vunpack.c.h.b16 %v2642
        %v2683 = vunpack.c.l.b16 %v2643
        %v2684 = vunpack.c.h.b16 %v2643
        %v2685 = vunpack.c.l.b16 %v2644
        %v2686 = vunpack.c.l.b16 %v2645
        %v2687 = vunpack.c.h.b16 %v2645
        %v2688 = vunpack.c.l.b16 %v2646
        %v2689 = vunpack.c.h.b16 %v2646
        %v2690 = vunpack.c.l.b16 %v2647
        %v2691 = vunpack.c.h.b16 %v2647
        %v2692 = vunpack.c.l.b16 %v2648
        %v2693 = vpack.c.b16 %v2672, %v2665
        %v2694 = vpack.c.b16 %v2673, %v2666
        %v2695 = vpack.c.b16 %v2674, %v2667
        %v2696 = vpack.c.b16 %v2675, %v2668
        %v2697 = vpack.c.b16 %v2676, %v2669
        %v2698 = vpack.c.b16 %v2677, %v2670
        %v2699 = vpack.c.b16 %v2678, %v2671
        %v2700 = vpack.c.b16 %v2686, %v2679
        %v2701 = vpack.c.b16 %v2687, %v2680
        %v2702 = vpack.c.b16 %v2688, %v2681
        %v2703 = vpack.c.b16 %v2689, %v2682
        %v2704 = vpack.c.b16 %v2690, %v2683
        %v2705 = vpack.c.b16 %v2691, %v2684
        %v2706 = vpack.c.b16 %v2692, %v2685
        %v2715 = vand.u32 %v2700, %v1146
        %v2718 = vand.u32 %v2701, %v1146
        %v2721 = vand.u32 %v2702, %v1146
        %v2724 = vand.u32 %v2703, %v1146
        %v2727 = vand.u32 %v2704, %v1146
        %v2730 = vand.u32 %v2705, %v1146
        %v2733 = vand.u32 %v2706, %v1146
        %2735 = vmatprep.subr.bf16.mxu0 %v2694
        %2736 = vmatpush1.bf16.msra.mxu0 %v2693
        %2737 = vmatprep.subr.bf16.mxu0 %v2718
        %2738 = vmatpush1.bf16.msra.mxu0 %v2715
        %2739 = vmatprep.subr.bf16.mxu0 0
        %2740 = vmatpush1.bf16.msra.mxu0 0
        %2741 = vmatprep.subr.bf16.mxu0 0
        %2742 = vmatpush1.bf16.msra.mxu0 0
        %2743 = vmatprep.subr.bf16.mxu0 0
        %2744 = vmatpush1.bf16.msra.mxu0 0
        %2745 = vmatprep.subr.bf16.mxu0 0
        %2746 = vmatpush1.bf16.msra.mxu0 0
        %2747 = vmatprep.subr.bf16.mxu0 0
        %2748 = vmatpush1.bf16.msra.mxu0 0
        %2749 = vmatprep.subr.bf16.mxu0 0
        %2750 = vmatpush1.bf16.msra.mxu0 0
        %2751 = vmatprep.subr.bf16.mxu0 0
        %2752 = vmatpush1.bf16.msra.mxu0 0
        %2753 = vmatprep.subr.bf16.mxu0 0
        %2754 = vmatpush1.bf16.msra.mxu0 0
        %2755 = vmatprep.subr.bf16.mxu0 0
        %2756 = vmatpush1.bf16.msra.mxu0 0
        %2757 = vmatprep.subr.bf16.mxu0 0
        %2758 = vmatpush1.bf16.msra.mxu0 0
        %2759 = vmatprep.subr.bf16.mxu0 0
        %2760 = vmatpush1.bf16.msra.mxu0 0
        %2761 = vmatprep.subr.bf16.mxu0 0
        %2762 = vmatpush1.bf16.msra.mxu0 0
        %2763 = vmatprep.subr.bf16.mxu0 0
        %2764 = vmatpush1.bf16.msra.mxu0 0
        %2765 = vmatprep.subr.bf16.mxu0 0
        %2766 = vmatpush1.bf16.msra.mxu0 0
        %2767 = vmatprep.mubr.bf16.mxu0 0
        %2768 = vmatmul.mubr.bf16.gmra.mrb[0].mxu0 %v1141
        %v2769 = vpop.f32.mrb[0].mxu0
        %v2770 = vadd.f32 0.0, %v2769
        %v2771 = vpop.f32.mrb[0].mxu0
        %v2772 = vadd.f32 0.0, %v2771
        %v2773 = vpop.f32.mrb[0].mxu0
        %v2774 = vadd.f32 0.0, %v2773
        %v2775 = vpop.f32.mrb[0].mxu0
        %v2776 = vadd.f32 0.0, %v2775
        %2777 = vdwg.mxu0
        %2778 = vmatprep.subr.bf16.mxu0 %v2696
        %2779 = vmatpush1.bf16.msra.mxu0 %v2695
        %2780 = vmatprep.subr.bf16.mxu0 %v2724
        %2781 = vmatpush1.bf16.msra.mxu0 %v2721
        %2782 = vmatprep.subr.bf16.mxu0 0
        %2783 = vmatpush1.bf16.msra.mxu0 0
        %2784 = vmatprep.subr.bf16.mxu0 0
        %2785 = vmatpush1.bf16.msra.mxu0 0
        %2786 = vmatprep.subr.bf16.mxu0 0
        %2787 = vmatpush1.bf16.msra.mxu0 0
        %2788 = vmatprep.subr.bf16.mxu0 0
        %2789 = vmatpush1.bf16.msra.mxu0 0
        %2790 = vmatprep.subr.bf16.mxu0 0
        %2791 = vmatpush1.bf16.msra.mxu0 0
        %2792 = vmatprep.subr.bf16.mxu0 0
        %2793 = vmatpush1.bf16.msra.mxu0 0
        %2794 = vmatprep.subr.bf16.mxu0 0
        %2795 = vmatpush1.bf16.msra.mxu0 0
        %2796 = vmatprep.subr.bf16.mxu0 0
        %2797 = vmatpush1.bf16.msra.mxu0 0
        %2798 = vmatprep.subr.bf16.mxu0 0
        %2799 = vmatpush1.bf16.msra.mxu0 0
        %2800 = vmatprep.subr.bf16.mxu0 0
        %2801 = vmatpush1.bf16.msra.mxu0 0
        %2802 = vmatprep.subr.bf16.mxu0 0
        %2803 = vmatpush1.bf16.msra.mxu0 0
        %2804 = vmatprep.subr.bf16.mxu0 0
        %2805 = vmatpush1.bf16.msra.mxu0 0
        %2806 = vmatprep.subr.bf16.mxu0 0
        %2807 = vmatpush1.bf16.msra.mxu0 0
        %2808 = vmatprep.subr.bf16.mxu0 0
        %2809 = vmatpush1.bf16.msra.mxu0 0
        %2810 = vmatprep.mubr.bf16.mxu0 0
        %2811 = vmatmul.mubr.bf16.gmra.mrb[0].mxu0 %v1141
        %v2812 = vpop.f32.mrb[0].mxu0
        %v2813 = vadd.f32 0.0, %v2812
        %v2814 = vpop.f32.mrb[0].mxu0
        %v2815 = vadd.f32 0.0, %v2814
        %v2816 = vpop.f32.mrb[0].mxu0
        %v2817 = vadd.f32 0.0, %v2816
        %v2818 = vpop.f32.mrb[0].mxu0
        %v2819 = vadd.f32 0.0, %v2818
        %2820 = vdwg.mxu0
        %2821 = vmatprep.subr.bf16.mxu0 %v2698
        %2822 = vmatpush1.bf16.msra.mxu0 %v2697
        %2823 = vmatprep.subr.bf16.mxu0 %v2730
        %2824 = vmatpush1.bf16.msra.mxu0 %v2727
        %2825 = vmatprep.subr.bf16.mxu0 0
        %2826 = vmatpush1.bf16.msra.mxu0 0
        %2827 = vmatprep.subr.bf16.mxu0 0
        %2828 = vmatpush1.bf16.msra.mxu0 0
        %2829 = vmatprep.subr.bf16.mxu0 0
        %2830 = vmatpush1.bf16.msra.mxu0 0
        %2831 = vmatprep.subr.bf16.mxu0 0
        %2832 = vmatpush1.bf16.msra.mxu0 0
        %2833 = vmatprep.subr.bf16.mxu0 0
        %2834 = vmatpush1.bf16.msra.mxu0 0
        %2835 = vmatprep.subr.bf16.mxu0 0
        %2836 = vmatpush1.bf16.msra.mxu0 0
        %2837 = vmatprep.subr.bf16.mxu0 0
        %2838 = vmatpush1.bf16.msra.mxu0 0
        %2839 = vmatprep.subr.bf16.mxu0 0
        %2840 = vmatpush1.bf16.msra.mxu0 0
        %2841 = vmatprep.subr.bf16.mxu0 0
        %2842 = vmatpush1.bf16.msra.mxu0 0
        %2843 = vmatprep.subr.bf16.mxu0 0
        %2844 = vmatpush1.bf16.msra.mxu0 0
        %2845 = vmatprep.subr.bf16.mxu0 0
        %2846 = vmatpush1.bf16.msra.mxu0 0
        %2847 = vmatprep.subr.bf16.mxu0 0
        %2848 = vmatpush1.bf16.msra.mxu0 0
        %2849 = vmatprep.subr.bf16.mxu0 0
        %2850 = vmatpush1.bf16.msra.mxu0 0
        %2851 = vmatprep.subr.bf16.mxu0 0
        %2852 = vmatpush1.bf16.msra.mxu0 0
        %2853 = vmatprep.mubr.bf16.mxu0 0
        %2854 = vmatmul.mubr.bf16.gmra.mrb[0].mxu0 %v1141
        %v2855 = vpop.f32.mrb[0].mxu0
        %v2856 = vadd.f32 0.0, %v2855
        %v2857 = vpop.f32.mrb[0].mxu0
        %v2858 = vadd.f32 0.0, %v2857
        %v2859 = vpop.f32.mrb[0].mxu0
        %v2860 = vadd.f32 0.0, %v2859
        %v2861 = vpop.f32.mrb[0].mxu0
        %v2862 = vadd.f32 0.0, %v2861
        %2863 = vdwg.mxu0
        %2864 = vmatprep.subr.bf16.mxu0 0
        %2865 = vmatpush1.bf16.msra.mxu0 %v2699
        %2866 = vmatprep.subr.bf16.mxu0 0
        %2867 = vmatpush1.bf16.msra.mxu0 %v2733
        %2868 = vmatprep.subr.bf16.mxu0 0
        %2869 = vmatpush1.bf16.msra.mxu0 0
        %2870 = vmatprep.subr.bf16.mxu0 0
        %2871 = vmatpush1.bf16.msra.mxu0 0
        %2872 = vmatprep.subr.bf16.mxu0 0
        %2873 = vmatpush1.bf16.msra.mxu0 0
        %2874 = vmatprep.subr.bf16.mxu0 0
        %2875 = vmatpush1.bf16.msra.mxu0 0
        %2876 = vmatprep.subr.bf16.mxu0 0
        %2877 = vmatpush1.bf16.msra.mxu0 0
        %2878 = vmatprep.subr.bf16.mxu0 0
        %2879 = vmatpush1.bf16.msra.mxu0 0
        %2880 = vmatprep.subr.bf16.mxu0 0
        %2881 = vmatpush1.bf16.msra.mxu0 0
        %2882 = vmatprep.subr.bf16.mxu0 0
        %2883 = vmatpush1.bf16.msra.mxu0 0
        %2884 = vmatprep.subr.bf16.mxu0 0
        %2885 = vmatpush1.bf16.msra.mxu0 0
        %2886 = vmatprep.subr.bf16.mxu0 0
        %2887 = vmatpush1.bf16.msra.mxu0 0
        %2888 = vmatprep.subr.bf16.mxu0 0
        %2889 = vmatpush1.bf16.msra.mxu0 0
        %2890 = vmatprep.subr.bf16.mxu0 0
        %2891 = vmatpush1.bf16.msra.mxu0 0
        %2892 = vmatprep.subr.bf16.mxu0 0
        %2893 = vmatpush1.bf16.msra.mxu0 0
        %2894 = vmatprep.subr.bf16.mxu0 0
        %2895 = vmatpush1.bf16.msra.mxu0 0
        %2896 = vmatprep.mubr.bf16.mxu0 0
        %2897 = vmatmul.mubr.bf16.gmra.mrb[0].mxu0 %v1141
        %v2898 = vpop.f32.mrb[0].mxu0
        %v2899 = vadd.f32 0.0, %v2898
        %v2900 = vpop.f32.mrb[0].mxu0
        %v2901 = vpop.f32.mrb[0].mxu0
        %v2902 = vadd.f32 0.0, %v2901
        %v2903 = vpop.f32.mrb[0].mxu0
        %2904 = vdwg.mxu0
        %v2905 = vld [vmem:[%s1611 + $0x1c] sm:$0xff]
        %v2906 = vld [vmem:[%s1611 + $0x24] sm:$0xff]
        %v2907 = vld [vmem:[%s1611 + $0x2c] sm:$0xff]
        %v2908 = vld [vmem:[%s1611 + $0x34] sm:$0xf]
        %v2909 = vld [vmem:[%s1611 + $0xe0] sm:$0xff]
        %v2910 = vld [vmem:[%s1611 + $0xe8] sm:$0xff]
        %v2911 = vld [vmem:[%s1611 + $0xf0] sm:$0xff]
        %v2912 = vld [vmem:[%s1611 + $0xf8] sm:$0xf]
        %v2913 = vld [vmem:[%s1611 + $0x1a4] sm:$0xff]
        %v2914 = vld [vmem:[%s1611 + $0x1ac] sm:$0xff]
        %v2915 = vld [vmem:[%s1611 + $0x1b4] sm:$0xff]
        %v2916 = vld [vmem:[%s1611 + $0x1bc] sm:$0xf]
        %v2917 = vld [vmem:[%s1611 + $0x268] sm:$0x33]
        %v2918 = vld [vmem:[%s1611 + $0x270] sm:$0x33]
        %v2919 = vld [vmem:[%s1611 + $0x278] sm:$0x33]
        %v2920 = vld [vmem:[%s1611 + $0x280] sm:$0x3]
        %v2937 = vunpack.c.l.b16 %v2905
        %v2938 = vunpack.c.h.b16 %v2905
        %v2939 = vunpack.c.l.b16 %v2906
        %v2940 = vunpack.c.h.b16 %v2906
        %v2941 = vunpack.c.l.b16 %v2907
        %v2942 = vunpack.c.h.b16 %v2907
        %v2943 = vunpack.c.l.b16 %v2908
        %v2944 = vunpack.c.l.b16 %v2909
        %v2945 = vunpack.c.h.b16 %v2909
        %v2946 = vunpack.c.l.b16 %v2910
        %v2947 = vunpack.c.h.b16 %v2910
        %v2948 = vunpack.c.l.b16 %v2911
        %v2949 = vunpack.c.h.b16 %v2911
        %v2950 = vunpack.c.l.b16 %v2912
        %v2951 = vunpack.c.l.b16 %v2913
        %v2952 = vunpack.c.h.b16 %v2913
        %v2953 = vunpack.c.l.b16 %v2914
        %v2954 = vunpack.c.h.b16 %v2914
        %v2955 = vunpack.c.l.b16 %v2915
        %v2956 = vunpack.c.h.b16 %v2915
        %v2957 = vunpack.c.l.b16 %v2916
        %v2958 = vunpack.c.l.b16 %v2917
        %v2959 = vunpack.c.h.b16 %v2917
        %v2960 = vunpack.c.l.b16 %v2918
        %v2961 = vunpack.c.h.b16 %v2918
        %v2962 = vunpack.c.l.b16 %v2919
        %v2963 = vunpack.c.h.b16 %v2919
        %v2964 = vunpack.c.l.b16 %v2920
        %v2965 = vpack.c.b16 %v2944, %v2937
        %v2966 = vpack.c.b16 %v2945, %v2938
        %v2967 = vpack.c.b16 %v2946, %v2939
        %v2968 = vpack.c.b16 %v2947, %v2940
        %v2969 = vpack.c.b16 %v2948, %v2941
        %v2970 = vpack.c.b16 %v2949, %v2942
        %v2971 = vpack.c.b16 %v2950, %v2943
        %v2972 = vpack.c.b16 %v2958, %v2951
        %v2973 = vpack.c.b16 %v2959, %v2952
        %v2974 = vpack.c.b16 %v2960, %v2953
        %v2975 = vpack.c.b16 %v2961, %v2954
        %v2976 = vpack.c.b16 %v2962, %v2955
        %v2977 = vpack.c.b16 %v2963, %v2956
        %v2978 = vpack.c.b16 %v2964, %v2957
        %v2987 = vand.u32 %v2972, %v1146
        %v2990 = vand.u32 %v2973, %v1146
        %v2993 = vand.u32 %v2974, %v1146
        %v2996 = vand.u32 %v2975, %v1146
        %v2999 = vand.u32 %v2976, %v1146
        %v3002 = vand.u32 %v2977, %v1146
        %v3005 = vand.u32 %v2978, %v1146
        %3007 = vmatprep.subr.bf16.mxu0 %v2966
        %3008 = vmatpush1.bf16.msra.mxu0 %v2965
        %3009 = vmatprep.subr.bf16.mxu0 %v2990
        %3010 = vmatpush1.bf16.msra.mxu0 %v2987
        %3011 = vmatprep.subr.bf16.mxu0 0
        %3012 = vmatpush1.bf16.msra.mxu0 0
        %3013 = vmatprep.subr.bf16.mxu0 0
        %3014 = vmatpush1.bf16.msra.mxu0 0
        %3015 = vmatprep.subr.bf16.mxu0 0
        %3016 = vmatpush1.bf16.msra.mxu0 0
        %3017 = vmatprep.subr.bf16.mxu0 0
        %3018 = vmatpush1.bf16.msra.mxu0 0
        %3019 = vmatprep.subr.bf16.mxu0 0
        %3020 = vmatpush1.bf16.msra.mxu0 0
        %3021 = vmatprep.subr.bf16.mxu0 0
        %3022 = vmatpush1.bf16.msra.mxu0 0
        %3023 = vmatprep.subr.bf16.mxu0 0
        %3024 = vmatpush1.bf16.msra.mxu0 0
        %3025 = vmatprep.subr.bf16.mxu0 0
        %3026 = vmatpush1.bf16.msra.mxu0 0
        %3027 = vmatprep.subr.bf16.mxu0 0
        %3028 = vmatpush1.bf16.msra.mxu0 0
        %3029 = vmatprep.subr.bf16.mxu0 0
        %3030 = vmatpush1.bf16.msra.mxu0 0
        %3031 = vmatprep.subr.bf16.mxu0 0
        %3032 = vmatpush1.bf16.msra.mxu0 0
        %3033 = vmatprep.subr.bf16.mxu0 0
        %3034 = vmatpush1.bf16.msra.mxu0 0
        %3035 = vmatprep.subr.bf16.mxu0 0
        %3036 = vmatpush1.bf16.msra.mxu0 0
        %3037 = vmatprep.subr.bf16.mxu0 0
        %3038 = vmatpush1.bf16.msra.mxu0 0
        %3039 = vmatprep.mubr.bf16.mxu0 0
        %3040 = vmatmul.mubr.bf16.gmra.mrb[0].mxu0 %v1141
        %v3041 = vpop.f32.mrb[0].mxu0
        %v3042 = vadd.f32 0.0, %v3041
        %v3043 = vpop.f32.mrb[0].mxu0
        %v3044 = vadd.f32 0.0, %v3043
        %v3045 = vpop.f32.mrb[0].mxu0
        %v3046 = vadd.f32 0.0, %v3045
        %v3047 = vpop.f32.mrb[0].mxu0
        %v3048 = vadd.f32 0.0, %v3047
        %3049 = vdwg.mxu0
        %3050 = vmatprep.subr.bf16.mxu0 %v2968
        %3051 = vmatpush1.bf16.msra.mxu0 %v2967
        %3052 = vmatprep.subr.bf16.mxu0 %v2996
        %3053 = vmatpush1.bf16.msra.mxu0 %v2993
        %3054 = vmatprep.subr.bf16.mxu0 0
        %3055 = vmatpush1.bf16.msra.mxu0 0
        %3056 = vmatprep.subr.bf16.mxu0 0
        %3057 = vmatpush1.bf16.msra.mxu0 0
        %3058 = vmatprep.subr.bf16.mxu0 0
        %3059 = vmatpush1.bf16.msra.mxu0 0
        %3060 = vmatprep.subr.bf16.mxu0 0
        %3061 = vmatpush1.bf16.msra.mxu0 0
        %3062 = vmatprep.subr.bf16.mxu0 0
        %3063 = vmatpush1.bf16.msra.mxu0 0
        %3064 = vmatprep.subr.bf16.mxu0 0
        %3065 = vmatpush1.bf16.msra.mxu0 0
        %3066 = vmatprep.subr.bf16.mxu0 0
        %3067 = vmatpush1.bf16.msra.mxu0 0
        %3068 = vmatprep.subr.bf16.mxu0 0
        %3069 = vmatpush1.bf16.msra.mxu0 0
        %3070 = vmatprep.subr.bf16.mxu0 0
        %3071 = vmatpush1.bf16.msra.mxu0 0
        %3072 = vmatprep.subr.bf16.mxu0 0
        %3073 = vmatpush1.bf16.msra.mxu0 0
        %3074 = vmatprep.subr.bf16.mxu0 0
        %3075 = vmatpush1.bf16.msra.mxu0 0
        %3076 = vmatprep.subr.bf16.mxu0 0
        %3077 = vmatpush1.bf16.msra.mxu0 0
        %3078 = vmatprep.subr.bf16.mxu0 0
        %3079 = vmatpush1.bf16.msra.mxu0 0
        %3080 = vmatprep.subr.bf16.mxu0 0
        %3081 = vmatpush1.bf16.msra.mxu0 0
        %3082 = vmatprep.mubr.bf16.mxu0 0
        %3083 = vmatmul.mubr.bf16.gmra.mrb[0].mxu0 %v1141
        %v3084 = vpop.f32.mrb[0].mxu0
        %v3085 = vadd.f32 0.0, %v3084
        %v3086 = vpop.f32.mrb[0].mxu0
        %v3087 = vadd.f32 0.0, %v3086
        %v3088 = vpop.f32.mrb[0].mxu0
        %v3089 = vadd.f32 0.0, %v3088
        %v3090 = vpop.f32.mrb[0].mxu0
        %v3091 = vadd.f32 0.0, %v3090
        %3092 = vdwg.mxu0
        %3093 = vmatprep.subr.bf16.mxu0 %v2970
        %3094 = vmatpush1.bf16.msra.mxu0 %v2969
        %3095 = vmatprep.subr.bf16.mxu0 %v3002
        %3096 = vmatpush1.bf16.msra.mxu0 %v2999
        %3097 = vmatprep.subr.bf16.mxu0 0
        %3098 = vmatpush1.bf16.msra.mxu0 0
        %3099 = vmatprep.subr.bf16.mxu0 0
        %3100 = vmatpush1.bf16.msra.mxu0 0
        %3101 = vmatprep.subr.bf16.mxu0 0
        %3102 = vmatpush1.bf16.msra.mxu0 0
        %3103 = vmatprep.subr.bf16.mxu0 0
        %3104 = vmatpush1.bf16.msra.mxu0 0
        %3105 = vmatprep.subr.bf16.mxu0 0
        %3106 = vmatpush1.bf16.msra.mxu0 0
        %3107 = vmatprep.subr.bf16.mxu0 0
        %3108 = vmatpush1.bf16.msra.mxu0 0
        %3109 = vmatprep.subr.bf16.mxu0 0
        %3110 = vmatpush1.bf16.msra.mxu0 0
        %3111 = vmatprep.subr.bf16.mxu0 0
        %3112 = vmatpush1.bf16.msra.mxu0 0
        %3113 = vmatprep.subr.bf16.mxu0 0
        %3114 = vmatpush1.bf16.msra.mxu0 0
        %3115 = vmatprep.subr.bf16.mxu0 0
        %3116 = vmatpush1.bf16.msra.mxu0 0
        %3117 = vmatprep.subr.bf16.mxu0 0
        %3118 = vmatpush1.bf16.msra.mxu0 0
        %3119 = vmatprep.subr.bf16.mxu0 0
        %3120 = vmatpush1.bf16.msra.mxu0 0
        %3121 = vmatprep.subr.bf16.mxu0 0
        %3122 = vmatpush1.bf16.msra.mxu0 0
        %3123 = vmatprep.subr.bf16.mxu0 0
        %3124 = vmatpush1.bf16.msra.mxu0 0
        %3125 = vmatprep.mubr.bf16.mxu0 0
        %3126 = vmatmul.mubr.bf16.gmra.mrb[0].mxu0 %v1141
        %v3127 = vpop.f32.mrb[0].mxu0
        %v3128 = vadd.f32 0.0, %v3127
        %v3129 = vpop.f32.mrb[0].mxu0
        %v3130 = vadd.f32 0.0, %v3129
        %v3131 = vpop.f32.mrb[0].mxu0
        %v3132 = vadd.f32 0.0, %v3131
        %v3133 = vpop.f32.mrb[0].mxu0
        %v3134 = vadd.f32 0.0, %v3133
        %3135 = vdwg.mxu0
        %3136 = vmatprep.subr.bf16.mxu0 0
        %3137 = vmatpush1.bf16.msra.mxu0 %v2971
        %3138 = vmatprep.subr.bf16.mxu0 0
        %3139 = vmatpush1.bf16.msra.mxu0 %v3005
        %3140 = vmatprep.subr.bf16.mxu0 0
        %3141 = vmatpush1.bf16.msra.mxu0 0
        %3142 = vmatprep.subr.bf16.mxu0 0
        %3143 = vmatpush1.bf16.msra.mxu0 0
        %3144 = vmatprep.subr.bf16.mxu0 0
        %3145 = vmatpush1.bf16.msra.mxu0 0
        %3146 = vmatprep.subr.bf16.mxu0 0
        %3147 = vmatpush1.bf16.msra.mxu0 0
        %3148 = vmatprep.subr.bf16.mxu0 0
        %3149 = vmatpush1.bf16.msra.mxu0 0
        %3150 = vmatprep.subr.bf16.mxu0 0
        %3151 = vmatpush1.bf16.msra.mxu0 0
        %3152 = vmatprep.subr.bf16.mxu0 0
        %3153 = vmatpush1.bf16.msra.mxu0 0
        %3154 = vmatprep.subr.bf16.mxu0 0
        %3155 = vmatpush1.bf16.msra.mxu0 0
        %3156 = vmatprep.subr.bf16.mxu0 0
        %3157 = vmatpush1.bf16.msra.mxu0 0
        %3158 = vmatprep.subr.bf16.mxu0 0
        %3159 = vmatpush1.bf16.msra.mxu0 0
        %3160 = vmatprep.subr.bf16.mxu0 0
        %3161 = vmatpush1.bf16.msra.mxu0 0
        %3162 = vmatprep.subr.bf16.mxu0 0
        %3163 = vmatpush1.bf16.msra.mxu0 0
        %3164 = vmatprep.subr.bf16.mxu0 0
        %3165 = vmatpush1.bf16.msra.mxu0 0
        %3166 = vmatprep.subr.bf16.mxu0 0
        %3167 = vmatpush1.bf16.msra.mxu0 0
        %3168 = vmatprep.mubr.bf16.mxu0 0
        %3169 = vmatmul.mubr.bf16.gmra.mrb[0].mxu0 %v1141
        %v3170 = vpop.f32.mrb[0].mxu0
        %v3171 = vadd.f32 0.0, %v3170
        %v3172 = vpop.f32.mrb[0].mxu0
        %v3173 = vpop.f32.mrb[0].mxu0
        %v3174 = vadd.f32 0.0, %v3173
        %v3175 = vpop.f32.mrb[0].mxu0
        %3176 = vdwg.mxu0
        %v3177 = vld [vmem:[%s1884 + $0x1c] sm:$0xff]
        %v3178 = vld [vmem:[%s1884 + $0x24] sm:$0xff]
        %v3179 = vld [vmem:[%s1884 + $0x2c] sm:$0xff]
        %v3180 = vld [vmem:[%s1884 + $0x34] sm:$0xf]
        %v3181 = vld [vmem:[%s1884 + $0xe0] sm:$0xff]
        %v3182 = vld [vmem:[%s1884 + $0xe8] sm:$0xff]
        %v3183 = vld [vmem:[%s1884 + $0xf0] sm:$0xff]
        %v3184 = vld [vmem:[%s1884 + $0xf8] sm:$0xf]
        %v3185 = vld [vmem:[%s1884 + $0x1a4] sm:$0xff]
        %v3186 = vld [vmem:[%s1884 + $0x1ac] sm:$0xff]
        %v3187 = vld [vmem:[%s1884 + $0x1b4] sm:$0xff]
        %v3188 = vld [vmem:[%s1884 + $0x1bc] sm:$0xf]
        %v3189 = vld [vmem:[%s1884 + $0x268] sm:$0x33]
        %v3190 = vld [vmem:[%s1884 + $0x270] sm:$0x33]
        %v3191 = vld [vmem:[%s1884 + $0x278] sm:$0x33]
        %v3192 = vld [vmem:[%s1884 + $0x280] sm:$0x3]
        %v3209 = vunpack.c.l.b16 %v3177
        %v3210 = vunpack.c.h.b16 %v3177
        %v3211 = vunpack.c.l.b16 %v3178
        %v3212 = vunpack.c.h.b16 %v3178
        %v3213 = vunpack.c.l.b16 %v3179
        %v3214 = vunpack.c.h.b16 %v3179
        %v3215 = vunpack.c.l.b16 %v3180
        %v3216 = vunpack.c.l.b16 %v3181
        %v3217 = vunpack.c.h.b16 %v3181
        %v3218 = vunpack.c.l.b16 %v3182
        %v3219 = vunpack.c.h.b16 %v3182
        %v3220 = vunpack.c.l.b16 %v3183
        %v3221 = vunpack.c.h.b16 %v3183
        %v3222 = vunpack.c.l.b16 %v3184
        %v3223 = vunpack.c.l.b16 %v3185
        %v3224 = vunpack.c.h.b16 %v3185
        %v3225 = vunpack.c.l.b16 %v3186
        %v3226 = vunpack.c.h.b16 %v3186
        %v3227 = vunpack.c.l.b16 %v3187
        %v3228 = vunpack.c.h.b16 %v3187
        %v3229 = vunpack.c.l.b16 %v3188
        %v3230 = vunpack.c.l.b16 %v3189
        %v3231 = vunpack.c.h.b16 %v3189
        %v3232 = vunpack.c.l.b16 %v3190
        %v3233 = vunpack.c.h.b16 %v3190
        %v3234 = vunpack.c.l.b16 %v3191
        %v3235 = vunpack.c.h.b16 %v3191
        %v3236 = vunpack.c.l.b16 %v3192
        %v3237 = vpack.c.b16 %v3216, %v3209
        %v3238 = vpack.c.b16 %v3217, %v3210
        %v3239 = vpack.c.b16 %v3218, %v3211
        %v3240 = vpack.c.b16 %v3219, %v3212
        %v3241 = vpack.c.b16 %v3220, %v3213
        %v3242 = vpack.c.b16 %v3221, %v3214
        %v3243 = vpack.c.b16 %v3222, %v3215
        %v3244 = vpack.c.b16 %v3230, %v3223
        %v3245 = vpack.c.b16 %v3231, %v3224
        %v3246 = vpack.c.b16 %v3232, %v3225
        %v3247 = vpack.c.b16 %v3233, %v3226
        %v3248 = vpack.c.b16 %v3234, %v3227
        %v3249 = vpack.c.b16 %v3235, %v3228
        %v3250 = vpack.c.b16 %v3236, %v3229
        %v3259 = vand.u32 %v3244, %v1146
        %v3262 = vand.u32 %v3245, %v1146
        %v3265 = vand.u32 %v3246, %v1146
        %v3268 = vand.u32 %v3247, %v1146
        %v3271 = vand.u32 %v3248, %v1146
        %v3274 = vand.u32 %v3249, %v1146
        %v3277 = vand.u32 %v3250, %v1146
        %3279 = vmatprep.subr.bf16.mxu0 %v3238
        %3280 = vmatpush1.bf16.msra.mxu0 %v3237
        %3281 = vmatprep.subr.bf16.mxu0 %v3262
        %3282 = vmatpush1.bf16.msra.mxu0 %v3259
        %3283 = vmatprep.subr.bf16.mxu0 0
        %3284 = vmatpush1.bf16.msra.mxu0 0
        %3285 = vmatprep.subr.bf16.mxu0 0
        %3286 = vmatpush1.bf16.msra.mxu0 0
        %3287 = vmatprep.subr.bf16.mxu0 0
        %3288 = vmatpush1.bf16.msra.mxu0 0
        %3289 = vmatprep.subr.bf16.mxu0 0
        %3290 = vmatpush1.bf16.msra.mxu0 0
        %3291 = vmatprep.subr.bf16.mxu0 0
        %3292 = vmatpush1.bf16.msra.mxu0 0
        %3293 = vmatprep.subr.bf16.mxu0 0
        %3294 = vmatpush1.bf16.msra.mxu0 0
        %3295 = vmatprep.subr.bf16.mxu0 0
        %3296 = vmatpush1.bf16.msra.mxu0 0
        %3297 = vmatprep.subr.bf16.mxu0 0
        %3298 = vmatpush1.bf16.msra.mxu0 0
        %3299 = vmatprep.subr.bf16.mxu0 0
        %3300 = vmatpush1.bf16.msra.mxu0 0
        %3301 = vmatprep.subr.bf16.mxu0 0
        %3302 = vmatpush1.bf16.msra.mxu0 0
        %3303 = vmatprep.subr.bf16.mxu0 0
        %3304 = vmatpush1.bf16.msra.mxu0 0
        %3305 = vmatprep.subr.bf16.mxu0 0
        %3306 = vmatpush1.bf16.msra.mxu0 0
        %3307 = vmatprep.subr.bf16.mxu0 0
        %3308 = vmatpush1.bf16.msra.mxu0 0
        %3309 = vmatprep.subr.bf16.mxu0 0
        %3310 = vmatpush1.bf16.msra.mxu0 0
        %3311 = vmatprep.mubr.bf16.mxu0 0
        %3312 = vmatmul.mubr.bf16.gmra.mrb[0].mxu0 %v1141
        %v3313 = vpop.f32.mrb[0].mxu0
        %v3314 = vadd.f32 0.0, %v3313
        %v3315 = vpop.f32.mrb[0].mxu0
        %v3316 = vadd.f32 0.0, %v3315
        %v3317 = vpop.f32.mrb[0].mxu0
        %v3318 = vadd.f32 0.0, %v3317
        %v3319 = vpop.f32.mrb[0].mxu0
        %v3320 = vadd.f32 0.0, %v3319
        %3321 = vdwg.mxu0
        %3322 = vmatprep.subr.bf16.mxu0 %v3240
        %3323 = vmatpush1.bf16.msra.mxu0 %v3239
        %3324 = vmatprep.subr.bf16.mxu0 %v3268
        %3325 = vmatpush1.bf16.msra.mxu0 %v3265
        %3326 = vmatprep.subr.bf16.mxu0 0
        %3327 = vmatpush1.bf16.msra.mxu0 0
        %3328 = vmatprep.subr.bf16.mxu0 0
        %3329 = vmatpush1.bf16.msra.mxu0 0
        %3330 = vmatprep.subr.bf16.mxu0 0
        %3331 = vmatpush1.bf16.msra.mxu0 0
        %3332 = vmatprep.subr.bf16.mxu0 0
        %3333 = vmatpush1.bf16.msra.mxu0 0
        %3334 = vmatprep.subr.bf16.mxu0 0
        %3335 = vmatpush1.bf16.msra.mxu0 0
        %3336 = vmatprep.subr.bf16.mxu0 0
        %3337 = vmatpush1.bf16.msra.mxu0 0
        %3338 = vmatprep.subr.bf16.mxu0 0
        %3339 = vmatpush1.bf16.msra.mxu0 0
        %3340 = vmatprep.subr.bf16.mxu0 0
        %3341 = vmatpush1.bf16.msra.mxu0 0
        %3342 = vmatprep.subr.bf16.mxu0 0
        %3343 = vmatpush1.bf16.msra.mxu0 0
        %3344 = vmatprep.subr.bf16.mxu0 0
        %3345 = vmatpush1.bf16.msra.mxu0 0
        %3346 = vmatprep.subr.bf16.mxu0 0
        %3347 = vmatpush1.bf16.msra.mxu0 0
        %3348 = vmatprep.subr.bf16.mxu0 0
        %3349 = vmatpush1.bf16.msra.mxu0 0
        %3350 = vmatprep.subr.bf16.mxu0 0
        %3351 = vmatpush1.bf16.msra.mxu0 0
        %3352 = vmatprep.subr.bf16.mxu0 0
        %3353 = vmatpush1.bf16.msra.mxu0 0
        %3354 = vmatprep.mubr.bf16.mxu0 0
        %3355 = vmatmul.mubr.bf16.gmra.mrb[0].mxu0 %v1141
        %v3356 = vpop.f32.mrb[0].mxu0
        %v3357 = vadd.f32 0.0, %v3356
        %v3358 = vpop.f32.mrb[0].mxu0
        %v3359 = vadd.f32 0.0, %v3358
        %v3360 = vpop.f32.mrb[0].mxu0
        %v3361 = vadd.f32 0.0, %v3360
        %v3362 = vpop.f32.mrb[0].mxu0
        %v3363 = vadd.f32 0.0, %v3362
        %3364 = vdwg.mxu0
        %3365 = vmatprep.subr.bf16.mxu0 %v3242
        %3366 = vmatpush1.bf16.msra.mxu0 %v3241
        %3367 = vmatprep.subr.bf16.mxu0 %v3274
        %3368 = vmatpush1.bf16.msra.mxu0 %v3271
        %3369 = vmatprep.subr.bf16.mxu0 0
        %3370 = vmatpush1.bf16.msra.mxu0 0
        %3371 = vmatprep.subr.bf16.mxu0 0
        %3372 = vmatpush1.bf16.msra.mxu0 0
        %3373 = vmatprep.subr.bf16.mxu0 0
        %3374 = vmatpush1.bf16.msra.mxu0 0
        %3375 = vmatprep.subr.bf16.mxu0 0
        %3376 = vmatpush1.bf16.msra.mxu0 0
        %3377 = vmatprep.subr.bf16.mxu0 0
        %3378 = vmatpush1.bf16.msra.mxu0 0
        %3379 = vmatprep.subr.bf16.mxu0 0
        %3380 = vmatpush1.bf16.msra.mxu0 0
        %3381 = vmatprep.subr.bf16.mxu0 0
        %3382 = vmatpush1.bf16.msra.mxu0 0
        %3383 = vmatprep.subr.bf16.mxu0 0
        %3384 = vmatpush1.bf16.msra.mxu0 0
        %3385 = vmatprep.subr.bf16.mxu0 0
        %3386 = vmatpush1.bf16.msra.mxu0 0
        %3387 = vmatprep.subr.bf16.mxu0 0
        %3388 = vmatpush1.bf16.msra.mxu0 0
        %3389 = vmatprep.subr.bf16.mxu0 0
        %3390 = vmatpush1.bf16.msra.mxu0 0
        %3391 = vmatprep.subr.bf16.mxu0 0
        %3392 = vmatpush1.bf16.msra.mxu0 0
        %3393 = vmatprep.subr.bf16.mxu0 0
        %3394 = vmatpush1.bf16.msra.mxu0 0
        %3395 = vmatprep.subr.bf16.mxu0 0
        %3396 = vmatpush1.bf16.msra.mxu0 0
        %3397 = vmatprep.mubr.bf16.mxu0 0
        %3398 = vmatmul.mubr.bf16.gmra.mrb[0].mxu0 %v1141
        %v3399 = vpop.f32.mrb[0].mxu0
        %v3400 = vadd.f32 0.0, %v3399
        %v3401 = vpop.f32.mrb[0].mxu0
        %v3402 = vadd.f32 0.0, %v3401
        %v3403 = vpop.f32.mrb[0].mxu0
        %v3404 = vadd.f32 0.0, %v3403
        %v3405 = vpop.f32.mrb[0].mxu0
        %v3406 = vadd.f32 0.0, %v3405
        %3407 = vdwg.mxu0
        %3408 = vmatprep.subr.bf16.mxu0 0
        %3409 = vmatpush1.bf16.msra.mxu0 %v3243
        %3410 = vmatprep.subr.bf16.mxu0 0
        %3411 = vmatpush1.bf16.msra.mxu0 %v3277
        %3412 = vmatprep.subr.bf16.mxu0 0
        %3413 = vmatpush1.bf16.msra.mxu0 0
        %3414 = vmatprep.subr.bf16.mxu0 0
        %3415 = vmatpush1.bf16.msra.mxu0 0
        %3416 = vmatprep.subr.bf16.mxu0 0
        %3417 = vmatpush1.bf16.msra.mxu0 0
        %3418 = vmatprep.subr.bf16.mxu0 0
        %3419 = vmatpush1.bf16.msra.mxu0 0
        %3420 = vmatprep.subr.bf16.mxu0 0
        %3421 = vmatpush1.bf16.msra.mxu0 0
        %3422 = vmatprep.subr.bf16.mxu0 0
        %3423 = vmatpush1.bf16.msra.mxu0 0
        %3424 = vmatprep.subr.bf16.mxu0 0
        %3425 = vmatpush1.bf16.msra.mxu0 0
        %3426 = vmatprep.subr.bf16.mxu0 0
        %3427 = vmatpush1.bf16.msra.mxu0 0
        %3428 = vmatprep.subr.bf16.mxu0 0
        %3429 = vmatpush1.bf16.msra.mxu0 0
        %3430 = vmatprep.subr.bf16.mxu0 0
        %3431 = vmatpush1.bf16.msra.mxu0 0
        %3432 = vmatprep.subr.bf16.mxu0 0
        %3433 = vmatpush1.bf16.msra.mxu0 0
        %3434 = vmatprep.subr.bf16.mxu0 0
        %3435 = vmatpush1.bf16.msra.mxu0 0
        %3436 = vmatprep.subr.bf16.mxu0 0
        %3437 = vmatpush1.bf16.msra.mxu0 0
        %3438 = vmatprep.subr.bf16.mxu0 0
        %3439 = vmatpush1.bf16.msra.mxu0 0
        %3440 = vmatprep.mubr.bf16.mxu0 0
        %3441 = vmatmul.mubr.bf16.gmra.mrb[0].mxu0 %v1141
        %v3442 = vpop.f32.mrb[0].mxu0
        %v3443 = vadd.f32 0.0, %v3442
        %v3444 = vpop.f32.mrb[0].mxu0
        %v3445 = vpop.f32.mrb[0].mxu0
        %v3446 = vadd.f32 0.0, %v3445
        %v3447 = vpop.f32.mrb[0].mxu0
        %3448 = vdwg.mxu0
        %v3449 = vmax.f32 %v2498, %v2770
        %v3450 = vmax.f32 %v2500, %v2772
        %v3451 = vmax.f32 %v2541, %v2813
        %v3452 = vmax.f32 %v2543, %v2815
        %v3453 = vmax.f32 %v2584, %v2856
        %v3454 = vmax.f32 %v2586, %v2858
        %v3455 = vmax.f32 %v2627, %v2899
        %v3456 = vmax.f32 %v2502, %v2774
        %v3457 = vmax.f32 %v2504, %v2776
        %v3458 = vmax.f32 %v2545, %v2817
        %v3459 = vmax.f32 %v2547, %v2819
        %v3460 = vmax.f32 %v2588, %v2860
        %v3461 = vmax.f32 %v2590, %v2862
        %v3462 = vmax.f32 %v2630, %v2902
        %v3463 = vmax.f32 %v3042, %v3314
        %v3464 = vmax.f32 %v3044, %v3316
        %v3465 = vmax.f32 %v3085, %v3357
        %v3466 = vmax.f32 %v3087, %v3359
        %v3467 = vmax.f32 %v3128, %v3400
        %v3468 = vmax.f32 %v3130, %v3402
        %v3469 = vmax.f32 %v3171, %v3443
        %v3470 = vmax.f32 %v3046, %v3318
        %v3471 = vmax.f32 %v3048, %v3320
        %v3472 = vmax.f32 %v3089, %v3361
        %v3473 = vmax.f32 %v3091, %v3363
        %v3474 = vmax.f32 %v3132, %v3404
        %v3475 = vmax.f32 %v3134, %v3406
        %v3476 = vmax.f32 %v3174, %v3446
        %v3477 = vmax.f32 %v3449, %v3463
        %v3478 = vmax.f32 %v3450, %v3464
        %v3479 = vmax.f32 %v3451, %v3465
        %v3480 = vmax.f32 %v3452, %v3466
        %v3481 = vmax.f32 %v3453, %v3467
        %v3482 = vmax.f32 %v3454, %v3468
        %v3483 = vmax.f32 %v3455, %v3469
        %v3484 = vmax.f32 %v3456, %v3470
        %v3485 = vmax.f32 %v3457, %v3471
        %v3486 = vmax.f32 %v3458, %v3472
        %v3487 = vmax.f32 %v3459, %v3473
        %v3488 = vmax.f32 %v3460, %v3474
        %v3489 = vmax.f32 %v3461, %v3475
        %v3490 = vmax.f32 %v3462, %v3476
        %v3491 = vadd.f32 %v3477, %v2202
        %v3492 = vadd.f32 %v3478, %v2202
        %v3493 = vadd.f32 %v3479, %v2202
        %v3494 = vadd.f32 %v3480, %v2202
        %v3495 = vadd.f32 %v3481, %v2202
        %v3496 = vadd.f32 %v3482, %v2202
        %v3497 = vadd.f32 %v3483, %v2202
        %v3498 = vadd.f32 %v3484, %v2207
        %v3499 = vadd.f32 %v3485, %v2207
        %v3500 = vadd.f32 %v3486, %v2207
        %v3501 = vadd.f32 %v3487, %v2207
        %v3502 = vadd.f32 %v3488, %v2207
        %v3503 = vadd.f32 %v3489, %v2207
        %v3504 = vadd.f32 %v3490, %v2207
        %v3505 = vmax.f32 %v3491, 0.0
        %v3506 = vmax.f32 %v3492, 0.0
        %v3507 = vmax.f32 %v3493, 0.0
        %v3508 = vmax.f32 %v3494, 0.0
        %v3509 = vmax.f32 %v3495, 0.0
        %v3510 = vmax.f32 %v3496, 0.0
        %v3511 = vmax.f32 %v3497, 0.0
        %v3512 = vmax.f32 %v3498, 0.0
        %v3513 = vmax.f32 %v3499, 0.0
        %v3514 = vmax.f32 %v3500, 0.0
        %v3515 = vmax.f32 %v3501, 0.0
        %v3516 = vmax.f32 %v3502, 0.0
        %v3517 = vmax.f32 %v3503, 0.0
        %v3518 = vmax.f32 %v3504, 0.0
        %v3519 = vld [vmem:[%s2239 + $0x1c] sm:$0xff]
        %v3520 = vld [vmem:[%s2239 + $0x24] sm:$0xff]
        %v3521 = vld [vmem:[%s2239 + $0x2c] sm:$0xff]
        %v3522 = vld [vmem:[%s2239 + $0x34] sm:$0xf]
        %v3523 = vld [vmem:[%s2239 + $0xe0] sm:$0xff]
        %v3524 = vld [vmem:[%s2239 + $0xe8] sm:$0xff]
        %v3525 = vld [vmem:[%s2239 + $0xf0] sm:$0xff]
        %v3526 = vld [vmem:[%s2239 + $0xf8] sm:$0xf]
        %v3527 = vunpack.c.l.bf16 %v3519
        %v3528 = vunpack.c.h.bf16 %v3519
        %v3529 = vunpack.c.l.bf16 %v3520
        %v3530 = vunpack.c.h.bf16 %v3520
        %v3531 = vunpack.c.l.bf16 %v3521
        %v3532 = vunpack.c.h.bf16 %v3521
        %v3533 = vunpack.c.l.bf16 %v3522
        %v3534 = vunpack.c.l.bf16 %v3523
        %v3535 = vunpack.c.h.bf16 %v3523
        %v3536 = vunpack.c.l.bf16 %v3524
        %v3537 = vunpack.c.h.bf16 %v3524
        %v3538 = vunpack.c.l.bf16 %v3525
        %v3539 = vunpack.c.h.bf16 %v3525
        %v3540 = vunpack.c.l.bf16 %v3526
        %v3541 = vld [vmem:[%s2264 + $0x1c] sm:$0xff]
        %v3542 = vld [vmem:[%s2264 + $0x24] sm:$0xff]
        %v3543 = vld [vmem:[%s2264 + $0x2c] sm:$0xff]
        %v3544 = vld [vmem:[%s2264 + $0x34] sm:$0xf]
        %v3545 = vld [vmem:[%s2264 + $0xe0] sm:$0xff]
        %v3546 = vld [vmem:[%s2264 + $0xe8] sm:$0xff]
        %v3547 = vld [vmem:[%s2264 + $0xf0] sm:$0xff]
        %v3548 = vld [vmem:[%s2264 + $0xf8] sm:$0xf]
        %v3549 = vunpack.c.l.bf16 %v3541
        %v3550 = vunpack.c.h.bf16 %v3541
        %v3551 = vunpack.c.l.bf16 %v3542
        %v3552 = vunpack.c.h.bf16 %v3542
        %v3553 = vunpack.c.l.bf16 %v3543
        %v3554 = vunpack.c.h.bf16 %v3543
        %v3555 = vunpack.c.l.bf16 %v3544
        %v3556 = vunpack.c.l.bf16 %v3545
        %v3557 = vunpack.c.h.bf16 %v3545
        %v3558 = vunpack.c.l.bf16 %v3546
        %v3559 = vunpack.c.h.bf16 %v3546
        %v3560 = vunpack.c.l.bf16 %v3547
        %v3561 = vunpack.c.h.bf16 %v3547
        %v3562 = vunpack.c.l.bf16 %v3548
        %v3563 = vmul.f32 %v3505, %v3527
        %v3564 = vmul.f32 %v3506, %v3528
        %v3565 = vmul.f32 %v3507, %v3529
        %v3566 = vmul.f32 %v3508, %v3530
        %v3567 = vmul.f32 %v3509, %v3531
        %v3568 = vmul.f32 %v3510, %v3532
        %v3569 = vmul.f32 %v3511, %v3533
        %v3570 = vmul.f32 %v3512, %v3534
        %v3571 = vmul.f32 %v3513, %v3535
        %v3572 = vmul.f32 %v3514, %v3536
        %v3573 = vmul.f32 %v3515, %v3537
        %v3574 = vmul.f32 %v3516, %v3538
        %v3575 = vmul.f32 %v3517, %v3539
        %v3576 = vmul.f32 %v3518, %v3540
        %v3577 = vadd.f32 %v3563, %v3564
        %v3578 = vadd.f32 %v3577, %v3565
        %v3579 = vadd.f32 %v3578, %v3566
        %v3580 = vadd.f32 %v3579, %v3567
        %v3581 = vadd.f32 %v3580, %v3568
        %v3582 = vadd.f32 %v3581, %v3569
        %v3583 = vadd.f32 %v3582, %v3570
        %v3584 = vadd.f32 %v3583, %v3571
        %v3585 = vadd.f32 %v3584, %v3572
        %v3586 = vadd.f32 %v3585, %v3573
        %v3587 = vadd.f32 %v3586, %v3574
        %v3588 = vadd.f32 %v3587, %v3575
        %v3589 = vadd.f32 %v3588, %v3576
        %3590 = vadd.xlane.f32.xlu0 %v3589
        %v3591 = vpop.xlane.xlu0 %3590
        %v3592 = vrot.slane %v3591, 4
        %v3593 = vadd.f32 %v3591, %v3592
        %v3594 = vrot.slane %v3593, 2
        %v3595 = vadd.f32 %v3593, %v3594
        %v3596 = vrot.slane %v3595, 1
        %v3597 = vadd.f32 %v3595, %v3596
        %s3598 = vtos %v3597
        %s3599 = sadd.f32 %s2323, %s3598
        %v3600 = vmul.f32 %v3505, %v3549
        %v3601 = vmul.f32 %v3506, %v3550
        %v3602 = vmul.f32 %v3507, %v3551
        %v3603 = vmul.f32 %v3508, %v3552
        %v3604 = vmul.f32 %v3509, %v3553
        %v3605 = vmul.f32 %v3510, %v3554
        %v3606 = vmul.f32 %v3511, %v3555
        %v3607 = vmul.f32 %v3512, %v3556
        %v3608 = vmul.f32 %v3513, %v3557
        %v3609 = vmul.f32 %v3514, %v3558
        %v3610 = vmul.f32 %v3515, %v3559
        %v3611 = vmul.f32 %v3516, %v3560
        %v3612 = vmul.f32 %v3517, %v3561
        %v3613 = vmul.f32 %v3518, %v3562
        %v3614 = vadd.f32 %v3600, %v3601
        %v3615 = vadd.f32 %v3614, %v3602
        %v3616 = vadd.f32 %v3615, %v3603
        %v3617 = vadd.f32 %v3616, %v3604
        %v3618 = vadd.f32 %v3617, %v3605
        %v3619 = vadd.f32 %v3618, %v3606
        %v3620 = vadd.f32 %v3619, %v3607
        %v3621 = vadd.f32 %v3620, %v3608
        %v3622 = vadd.f32 %v3621, %v3609
        %v3623 = vadd.f32 %v3622, %v3610
        %v3624 = vadd.f32 %v3623, %v3611
        %v3625 = vadd.f32 %v3624, %v3612
        %v3626 = vadd.f32 %v3625, %v3613
        %3627 = vadd.xlane.f32.xlu0 %v3626
        %v3628 = vpop.xlane.xlu0 %3627
        %v3629 = vrot.slane %v3628, 4
        %v3630 = vadd.f32 %v3628, %v3629
        %v3631 = vrot.slane %v3630, 2
        %v3632 = vadd.f32 %v3630, %v3631
        %v3633 = vrot.slane %v3632, 1
        %v3634 = vadd.f32 %v3632, %v3633
        %s3635 = vtos %v3634
        %s3636 = sadd.f32 %s2360, %s3635
        %v3637 = vld [vmem:[%s1015 + $0x38] sm:$0xff]
        %v3638 = vld [vmem:[%s1015 + $0x40] sm:$0xff]
        %v3639 = vld [vmem:[%s1015 + $0x48] sm:$0xff]
        %v3640 = vld [vmem:[%s1015 + $0x50] sm:$0xf]
        %v3641 = vld [vmem:[%s1015 + $0xfc] sm:$0xff]
        %v3642 = vld [vmem:[%s1015 + $0x104] sm:$0xff]
        %v3643 = vld [vmem:[%s1015 + $0x10c] sm:$0xff]
        %v3644 = vld [vmem:[%s1015 + $0x114] sm:$0xf]
        %v3645 = vld [vmem:[%s1015 + $0x1c0] sm:$0xff]
        %v3646 = vld [vmem:[%s1015 + $0x1c8] sm:$0xff]
        %v3647 = vld [vmem:[%s1015 + $0x1d0] sm:$0xff]
        %v3648 = vld [vmem:[%s1015 + $0x1d8] sm:$0xf]
        %v3649 = vld [vmem:[%s1015 + $0x284] sm:$0x33]
        %v3650 = vld [vmem:[%s1015 + $0x28c] sm:$0x33]
        %v3651 = vld [vmem:[%s1015 + $0x294] sm:$0x33]
        %v3652 = vld [vmem:[%s1015 + $0x29c] sm:$0x3]
        %v3669 = vunpack.c.l.b16 %v3637
        %v3670 = vunpack.c.h.b16 %v3637
        %v3671 = vunpack.c.l.b16 %v3638
        %v3672 = vunpack.c.h.b16 %v3638
        %v3673 = vunpack.c.l.b16 %v3639
        %v3674 = vunpack.c.h.b16 %v3639
        %v3675 = vunpack.c.l.b16 %v3640
        %v3676 = vunpack.c.l.b16 %v3641
        %v3677 = vunpack.c.h.b16 %v3641
        %v3678 = vunpack.c.l.b16 %v3642
        %v3679 = vunpack.c.h.b16 %v3642
        %v3680 = vunpack.c.l.b16 %v3643
        %v3681 = vunpack.c.h.b16 %v3643
        %v3682 = vunpack.c.l.b16 %v3644
        %v3683 = vunpack.c.l.b16 %v3645
        %v3684 = vunpack.c.h.b16 %v3645
        %v3685 = vunpack.c.l.b16 %v3646
        %v3686 = vunpack.c.h.b16 %v3646
        %v3687 = vunpack.c.l.b16 %v3647
        %v3688 = vunpack.c.h.b16 %v3647
        %v3689 = vunpack.c.l.b16 %v3648
        %v3690 = vunpack.c.l.b16 %v3649
        %v3691 = vunpack.c.h.b16 %v3649
        %v3692 = vunpack.c.l.b16 %v3650
        %v3693 = vunpack.c.h.b16 %v3650
        %v3694 = vunpack.c.l.b16 %v3651
        %v3695 = vunpack.c.h.b16 %v3651
        %v3696 = vunpack.c.l.b16 %v3652
        %v3697 = vpack.c.b16 %v3676, %v3669
        %v3698 = vpack.c.b16 %v3677, %v3670
        %v3699 = vpack.c.b16 %v3678, %v3671
        %v3700 = vpack.c.b16 %v3679, %v3672
        %v3701 = vpack.c.b16 %v3680, %v3673
        %v3702 = vpack.c.b16 %v3681, %v3674
        %v3703 = vpack.c.b16 %v3682, %v3675
        %v3704 = vpack.c.b16 %v3690, %v3683
        %v3705 = vpack.c.b16 %v3691, %v3684
        %v3706 = vpack.c.b16 %v3692, %v3685
        %v3707 = vpack.c.b16 %v3693, %v3686
        %v3708 = vpack.c.b16 %v3694, %v3687
        %v3709 = vpack.c.b16 %v3695, %v3688
        %v3710 = vpack.c.b16 %v3696, %v3689
        %v3719 = vand.u32 %v3704, %v1146
        %v3722 = vand.u32 %v3705, %v1146
        %v3725 = vand.u32 %v3706, %v1146
        %v3728 = vand.u32 %v3707, %v1146
        %v3731 = vand.u32 %v3708, %v1146
        %v3734 = vand.u32 %v3709, %v1146
        %v3737 = vand.u32 %v3710, %v1146
        %3739 = vmatprep.subr.bf16.mxu0 %v3698
        %3740 = vmatpush1.bf16.msra.mxu0 %v3697
        %3741 = vmatprep.subr.bf16.mxu0 %v3722
        %3742 = vmatpush1.bf16.msra.mxu0 %v3719
        %3743 = vmatprep.subr.bf16.mxu0 0
        %3744 = vmatpush1.bf16.msra.mxu0 0
        %3745 = vmatprep.subr.bf16.mxu0 0
        %3746 = vmatpush1.bf16.msra.mxu0 0
        %3747 = vmatprep.subr.bf16.mxu0 0
        %3748 = vmatpush1.bf16.msra.mxu0 0
        %3749 = vmatprep.subr.bf16.mxu0 0
        %3750 = vmatpush1.bf16.msra.mxu0 0
        %3751 = vmatprep.subr.bf16.mxu0 0
        %3752 = vmatpush1.bf16.msra.mxu0 0
        %3753 = vmatprep.subr.bf16.mxu0 0
        %3754 = vmatpush1.bf16.msra.mxu0 0
        %3755 = vmatprep.subr.bf16.mxu0 0
        %3756 = vmatpush1.bf16.msra.mxu0 0
        %3757 = vmatprep.subr.bf16.mxu0 0
        %3758 = vmatpush1.bf16.msra.mxu0 0
        %3759 = vmatprep.subr.bf16.mxu0 0
        %3760 = vmatpush1.bf16.msra.mxu0 0
        %3761 = vmatprep.subr.bf16.mxu0 0
        %3762 = vmatpush1.bf16.msra.mxu0 0
        %3763 = vmatprep.subr.bf16.mxu0 0
        %3764 = vmatpush1.bf16.msra.mxu0 0
        %3765 = vmatprep.subr.bf16.mxu0 0
        %3766 = vmatpush1.bf16.msra.mxu0 0
        %3767 = vmatprep.subr.bf16.mxu0 0
        %3768 = vmatpush1.bf16.msra.mxu0 0
        %3769 = vmatprep.subr.bf16.mxu0 0
        %3770 = vmatpush1.bf16.msra.mxu0 0
        %3771 = vmatprep.mubr.bf16.mxu0 0
        %3772 = vmatmul.mubr.bf16.gmra.mrb[0].mxu0 %v1141
        %v3773 = vpop.f32.mrb[0].mxu0
        %v3774 = vadd.f32 0.0, %v3773
        %v3775 = vpop.f32.mrb[0].mxu0
        %v3776 = vadd.f32 0.0, %v3775
        %v3777 = vpop.f32.mrb[0].mxu0
        %v3778 = vadd.f32 0.0, %v3777
        %v3779 = vpop.f32.mrb[0].mxu0
        %v3780 = vadd.f32 0.0, %v3779
        %3781 = vdwg.mxu0
        %3782 = vmatprep.subr.bf16.mxu0 %v3700
        %3783 = vmatpush1.bf16.msra.mxu0 %v3699
        %3784 = vmatprep.subr.bf16.mxu0 %v3728
        %3785 = vmatpush1.bf16.msra.mxu0 %v3725
        %3786 = vmatprep.subr.bf16.mxu0 0
        %3787 = vmatpush1.bf16.msra.mxu0 0
        %3788 = vmatprep.subr.bf16.mxu0 0
        %3789 = vmatpush1.bf16.msra.mxu0 0
        %3790 = vmatprep.subr.bf16.mxu0 0
        %3791 = vmatpush1.bf16.msra.mxu0 0
        %3792 = vmatprep.subr.bf16.mxu0 0
        %3793 = vmatpush1.bf16.msra.mxu0 0
        %3794 = vmatprep.subr.bf16.mxu0 0
        %3795 = vmatpush1.bf16.msra.mxu0 0
        %3796 = vmatprep.subr.bf16.mxu0 0
        %3797 = vmatpush1.bf16.msra.mxu0 0
        %3798 = vmatprep.subr.bf16.mxu0 0
        %3799 = vmatpush1.bf16.msra.mxu0 0
        %3800 = vmatprep.subr.bf16.mxu0 0
        %3801 = vmatpush1.bf16.msra.mxu0 0
        %3802 = vmatprep.subr.bf16.mxu0 0
        %3803 = vmatpush1.bf16.msra.mxu0 0
        %3804 = vmatprep.subr.bf16.mxu0 0
        %3805 = vmatpush1.bf16.msra.mxu0 0
        %3806 = vmatprep.subr.bf16.mxu0 0
        %3807 = vmatpush1.bf16.msra.mxu0 0
        %3808 = vmatprep.subr.bf16.mxu0 0
        %3809 = vmatpush1.bf16.msra.mxu0 0
        %3810 = vmatprep.subr.bf16.mxu0 0
        %3811 = vmatpush1.bf16.msra.mxu0 0
        %3812 = vmatprep.subr.bf16.mxu0 0
        %3813 = vmatpush1.bf16.msra.mxu0 0
        %3814 = vmatprep.mubr.bf16.mxu0 0
        %3815 = vmatmul.mubr.bf16.gmra.mrb[0].mxu0 %v1141
        %v3816 = vpop.f32.mrb[0].mxu0
        %v3817 = vadd.f32 0.0, %v3816
        %v3818 = vpop.f32.mrb[0].mxu0
        %v3819 = vadd.f32 0.0, %v3818
        %v3820 = vpop.f32.mrb[0].mxu0
        %v3821 = vadd.f32 0.0, %v3820
        %v3822 = vpop.f32.mrb[0].mxu0
        %v3823 = vadd.f32 0.0, %v3822
        %3824 = vdwg.mxu0
        %3825 = vmatprep.subr.bf16.mxu0 %v3702
        %3826 = vmatpush1.bf16.msra.mxu0 %v3701
        %3827 = vmatprep.subr.bf16.mxu0 %v3734
        %3828 = vmatpush1.bf16.msra.mxu0 %v3731
        %3829 = vmatprep.subr.bf16.mxu0 0
        %3830 = vmatpush1.bf16.msra.mxu0 0
        %3831 = vmatprep.subr.bf16.mxu0 0
        %3832 = vmatpush1.bf16.msra.mxu0 0
        %3833 = vmatprep.subr.bf16.mxu0 0
        %3834 = vmatpush1.bf16.msra.mxu0 0
        %3835 = vmatprep.subr.bf16.mxu0 0
        %3836 = vmatpush1.bf16.msra.mxu0 0
        %3837 = vmatprep.subr.bf16.mxu0 0
        %3838 = vmatpush1.bf16.msra.mxu0 0
        %3839 = vmatprep.subr.bf16.mxu0 0
        %3840 = vmatpush1.bf16.msra.mxu0 0
        %3841 = vmatprep.subr.bf16.mxu0 0
        %3842 = vmatpush1.bf16.msra.mxu0 0
        %3843 = vmatprep.subr.bf16.mxu0 0
        %3844 = vmatpush1.bf16.msra.mxu0 0
        %3845 = vmatprep.subr.bf16.mxu0 0
        %3846 = vmatpush1.bf16.msra.mxu0 0
        %3847 = vmatprep.subr.bf16.mxu0 0
        %3848 = vmatpush1.bf16.msra.mxu0 0
        %3849 = vmatprep.subr.bf16.mxu0 0
        %3850 = vmatpush1.bf16.msra.mxu0 0
        %3851 = vmatprep.subr.bf16.mxu0 0
        %3852 = vmatpush1.bf16.msra.mxu0 0
        %3853 = vmatprep.subr.bf16.mxu0 0
        %3854 = vmatpush1.bf16.msra.mxu0 0
        %3855 = vmatprep.subr.bf16.mxu0 0
        %3856 = vmatpush1.bf16.msra.mxu0 0
        %3857 = vmatprep.mubr.bf16.mxu0 0
        %3858 = vmatmul.mubr.bf16.gmra.mrb[0].mxu0 %v1141
        %v3859 = vpop.f32.mrb[0].mxu0
        %v3860 = vadd.f32 0.0, %v3859
        %v3861 = vpop.f32.mrb[0].mxu0
        %v3862 = vadd.f32 0.0, %v3861
        %v3863 = vpop.f32.mrb[0].mxu0
        %v3864 = vadd.f32 0.0, %v3863
        %v3865 = vpop.f32.mrb[0].mxu0
        %v3866 = vadd.f32 0.0, %v3865
        %3867 = vdwg.mxu0
        %3868 = vmatprep.subr.bf16.mxu0 0
        %3869 = vmatpush1.bf16.msra.mxu0 %v3703
        %3870 = vmatprep.subr.bf16.mxu0 0
        %3871 = vmatpush1.bf16.msra.mxu0 %v3737
        %3872 = vmatprep.subr.bf16.mxu0 0
        %3873 = vmatpush1.bf16.msra.mxu0 0
        %3874 = vmatprep.subr.bf16.mxu0 0
        %3875 = vmatpush1.bf16.msra.mxu0 0
        %3876 = vmatprep.subr.bf16.mxu0 0
        %3877 = vmatpush1.bf16.msra.mxu0 0
        %3878 = vmatprep.subr.bf16.mxu0 0
        %3879 = vmatpush1.bf16.msra.mxu0 0
        %3880 = vmatprep.subr.bf16.mxu0 0
        %3881 = vmatpush1.bf16.msra.mxu0 0
        %3882 = vmatprep.subr.bf16.mxu0 0
        %3883 = vmatpush1.bf16.msra.mxu0 0
        %3884 = vmatprep.subr.bf16.mxu0 0
        %3885 = vmatpush1.bf16.msra.mxu0 0
        %3886 = vmatprep.subr.bf16.mxu0 0
        %3887 = vmatpush1.bf16.msra.mxu0 0
        %3888 = vmatprep.subr.bf16.mxu0 0
        %3889 = vmatpush1.bf16.msra.mxu0 0
        %3890 = vmatprep.subr.bf16.mxu0 0
        %3891 = vmatpush1.bf16.msra.mxu0 0
        %3892 = vmatprep.subr.bf16.mxu0 0
        %3893 = vmatpush1.bf16.msra.mxu0 0
        %3894 = vmatprep.subr.bf16.mxu0 0
        %3895 = vmatpush1.bf16.msra.mxu0 0
        %3896 = vmatprep.subr.bf16.mxu0 0
        %3897 = vmatpush1.bf16.msra.mxu0 0
        %3898 = vmatprep.subr.bf16.mxu0 0
        %3899 = vmatpush1.bf16.msra.mxu0 0
        %3900 = vmatprep.mubr.bf16.mxu0 0
        %3901 = vmatmul.mubr.bf16.gmra.mrb[0].mxu0 %v1141
        %v3902 = vpop.f32.mrb[0].mxu0
        %v3903 = vadd.f32 0.0, %v3902
        %v3904 = vpop.f32.mrb[0].mxu0
        %v3905 = vpop.f32.mrb[0].mxu0
        %v3906 = vadd.f32 0.0, %v3905
        %v3907 = vpop.f32.mrb[0].mxu0
        %3908 = vdwg.mxu0
        %v3909 = vld [vmem:[%s1338 + $0x38] sm:$0xff]
        %v3910 = vld [vmem:[%s1338 + $0x40] sm:$0xff]
        %v3911 = vld [vmem:[%s1338 + $0x48] sm:$0xff]
        %v3912 = vld [vmem:[%s1338 + $0x50] sm:$0xf]
        %v3913 = vld [vmem:[%s1338 + $0xfc] sm:$0xff]
        %v3914 = vld [vmem:[%s1338 + $0x104] sm:$0xff]
        %v3915 = vld [vmem:[%s1338 + $0x10c] sm:$0xff]
        %v3916 = vld [vmem:[%s1338 + $0x114] sm:$0xf]
        %v3917 = vld [vmem:[%s1338 + $0x1c0] sm:$0xff]
        %v3918 = vld [vmem:[%s1338 + $0x1c8] sm:$0xff]
        %v3919 = vld [vmem:[%s1338 + $0x1d0] sm:$0xff]
        %v3920 = vld [vmem:[%s1338 + $0x1d8] sm:$0xf]
        %v3921 = vld [vmem:[%s1338 + $0x284] sm:$0x33]
        %v3922 = vld [vmem:[%s1338 + $0x28c] sm:$0x33]
        %v3923 = vld [vmem:[%s1338 + $0x294] sm:$0x33]
        %v3924 = vld [vmem:[%s1338 + $0x29c] sm:$0x3]
        %v3941 = vunpack.c.l.b16 %v3909
        %v3942 = vunpack.c.h.b16 %v3909
        %v3943 = vunpack.c.l.b16 %v3910
        %v3944 = vunpack.c.h.b16 %v3910
        %v3945 = vunpack.c.l.b16 %v3911
        %v3946 = vunpack.c.h.b16 %v3911
        %v3947 = vunpack.c.l.b16 %v3912
        %v3948 = vunpack.c.l.b16 %v3913
        %v3949 = vunpack.c.h.b16 %v3913
        %v3950 = vunpack.c.l.b16 %v3914
        %v3951 = vunpack.c.h.b16 %v3914
        %v3952 = vunpack.c.l.b16 %v3915
        %v3953 = vunpack.c.h.b16 %v3915
        %v3954 = vunpack.c.l.b16 %v3916
        %v3955 = vunpack.c.l.b16 %v3917
        %v3956 = vunpack.c.h.b16 %v3917
        %v3957 = vunpack.c.l.b16 %v3918
        %v3958 = vunpack.c.h.b16 %v3918
        %v3959 = vunpack.c.l.b16 %v3919
        %v3960 = vunpack.c.h.b16 %v3919
        %v3961 = vunpack.c.l.b16 %v3920
        %v3962 = vunpack.c.l.b16 %v3921
        %v3963 = vunpack.c.h.b16 %v3921
        %v3964 = vunpack.c.l.b16 %v3922
        %v3965 = vunpack.c.h.b16 %v3922
        %v3966 = vunpack.c.l.b16 %v3923
        %v3967 = vunpack.c.h.b16 %v3923
        %v3968 = vunpack.c.l.b16 %v3924
        %v3969 = vpack.c.b16 %v3948, %v3941
        %v3970 = vpack.c.b16 %v3949, %v3942
        %v3971 = vpack.c.b16 %v3950, %v3943
        %v3972 = vpack.c.b16 %v3951, %v3944
        %v3973 = vpack.c.b16 %v3952, %v3945
        %v3974 = vpack.c.b16 %v3953, %v3946
        %v3975 = vpack.c.b16 %v3954, %v3947
        %v3976 = vpack.c.b16 %v3962, %v3955
        %v3977 = vpack.c.b16 %v3963, %v3956
        %v3978 = vpack.c.b16 %v3964, %v3957
        %v3979 = vpack.c.b16 %v3965, %v3958
        %v3980 = vpack.c.b16 %v3966, %v3959
        %v3981 = vpack.c.b16 %v3967, %v3960
        %v3982 = vpack.c.b16 %v3968, %v3961
        %v3991 = vand.u32 %v3976, %v1146
        %v3994 = vand.u32 %v3977, %v1146
        %v3997 = vand.u32 %v3978, %v1146
        %v4000 = vand.u32 %v3979, %v1146
        %v4003 = vand.u32 %v3980, %v1146
        %v4006 = vand.u32 %v3981, %v1146
        %v4009 = vand.u32 %v3982, %v1146
        %4011 = vmatprep.subr.bf16.mxu0 %v3970
        %4012 = vmatpush1.bf16.msra.mxu0 %v3969
        %4013 = vmatprep.subr.bf16.mxu0 %v3994
        %4014 = vmatpush1.bf16.msra.mxu0 %v3991
        %4015 = vmatprep.subr.bf16.mxu0 0
        %4016 = vmatpush1.bf16.msra.mxu0 0
        %4017 = vmatprep.subr.bf16.mxu0 0
        %4018 = vmatpush1.bf16.msra.mxu0 0
        %4019 = vmatprep.subr.bf16.mxu0 0
        %4020 = vmatpush1.bf16.msra.mxu0 0
        %4021 = vmatprep.subr.bf16.mxu0 0
        %4022 = vmatpush1.bf16.msra.mxu0 0
        %4023 = vmatprep.subr.bf16.mxu0 0
        %4024 = vmatpush1.bf16.msra.mxu0 0
        %4025 = vmatprep.subr.bf16.mxu0 0
        %4026 = vmatpush1.bf16.msra.mxu0 0
        %4027 = vmatprep.subr.bf16.mxu0 0
        %4028 = vmatpush1.bf16.msra.mxu0 0
        %4029 = vmatprep.subr.bf16.mxu0 0
        %4030 = vmatpush1.bf16.msra.mxu0 0
        %4031 = vmatprep.subr.bf16.mxu0 0
        %4032 = vmatpush1.bf16.msra.mxu0 0
        %4033 = vmatprep.subr.bf16.mxu0 0
        %4034 = vmatpush1.bf16.msra.mxu0 0
        %4035 = vmatprep.subr.bf16.mxu0 0
        %4036 = vmatpush1.bf16.msra.mxu0 0
        %4037 = vmatprep.subr.bf16.mxu0 0
        %4038 = vmatpush1.bf16.msra.mxu0 0
        %4039 = vmatprep.subr.bf16.mxu0 0
        %4040 = vmatpush1.bf16.msra.mxu0 0
        %4041 = vmatprep.subr.bf16.mxu0 0
        %4042 = vmatpush1.bf16.msra.mxu0 0
        %4043 = vmatprep.mubr.bf16.mxu0 0
        %4044 = vmatmul.mubr.bf16.gmra.mrb[0].mxu0 %v1141
        %v4045 = vpop.f32.mrb[0].mxu0
        %v4046 = vadd.f32 0.0, %v4045
        %v4047 = vpop.f32.mrb[0].mxu0
        %v4048 = vadd.f32 0.0, %v4047
        %v4049 = vpop.f32.mrb[0].mxu0
        %v4050 = vadd.f32 0.0, %v4049
        %v4051 = vpop.f32.mrb[0].mxu0
        %v4052 = vadd.f32 0.0, %v4051
        %4053 = vdwg.mxu0
        %4054 = vmatprep.subr.bf16.mxu0 %v3972
        %4055 = vmatpush1.bf16.msra.mxu0 %v3971
        %4056 = vmatprep.subr.bf16.mxu0 %v4000
        %4057 = vmatpush1.bf16.msra.mxu0 %v3997
        %4058 = vmatprep.subr.bf16.mxu0 0
        %4059 = vmatpush1.bf16.msra.mxu0 0
        %4060 = vmatprep.subr.bf16.mxu0 0
        %4061 = vmatpush1.bf16.msra.mxu0 0
        %4062 = vmatprep.subr.bf16.mxu0 0
        %4063 = vmatpush1.bf16.msra.mxu0 0
        %4064 = vmatprep.subr.bf16.mxu0 0
        %4065 = vmatpush1.bf16.msra.mxu0 0
        %4066 = vmatprep.subr.bf16.mxu0 0
        %4067 = vmatpush1.bf16.msra.mxu0 0
        %4068 = vmatprep.subr.bf16.mxu0 0
        %4069 = vmatpush1.bf16.msra.mxu0 0
        %4070 = vmatprep.subr.bf16.mxu0 0
        %4071 = vmatpush1.bf16.msra.mxu0 0
        %4072 = vmatprep.subr.bf16.mxu0 0
        %4073 = vmatpush1.bf16.msra.mxu0 0
        %4074 = vmatprep.subr.bf16.mxu0 0
        %4075 = vmatpush1.bf16.msra.mxu0 0
        %4076 = vmatprep.subr.bf16.mxu0 0
        %4077 = vmatpush1.bf16.msra.mxu0 0
        %4078 = vmatprep.subr.bf16.mxu0 0
        %4079 = vmatpush1.bf16.msra.mxu0 0
        %4080 = vmatprep.subr.bf16.mxu0 0
        %4081 = vmatpush1.bf16.msra.mxu0 0
        %4082 = vmatprep.subr.bf16.mxu0 0
        %4083 = vmatpush1.bf16.msra.mxu0 0
        %4084 = vmatprep.subr.bf16.mxu0 0
        %4085 = vmatpush1.bf16.msra.mxu0 0
        %4086 = vmatprep.mubr.bf16.mxu0 0
        %4087 = vmatmul.mubr.bf16.gmra.mrb[0].mxu0 %v1141
        %v4088 = vpop.f32.mrb[0].mxu0
        %v4089 = vadd.f32 0.0, %v4088
        %v4090 = vpop.f32.mrb[0].mxu0
        %v4091 = vadd.f32 0.0, %v4090
        %v4092 = vpop.f32.mrb[0].mxu0
        %v4093 = vadd.f32 0.0, %v4092
        %v4094 = vpop.f32.mrb[0].mxu0
        %v4095 = vadd.f32 0.0, %v4094
        %4096 = vdwg.mxu0
        %4097 = vmatprep.subr.bf16.mxu0 %v3974
        %4098 = vmatpush1.bf16.msra.mxu0 %v3973
        %4099 = vmatprep.subr.bf16.mxu0 %v4006
        %4100 = vmatpush1.bf16.msra.mxu0 %v4003
        %4101 = vmatprep.subr.bf16.mxu0 0
        %4102 = vmatpush1.bf16.msra.mxu0 0
        %4103 = vmatprep.subr.bf16.mxu0 0
        %4104 = vmatpush1.bf16.msra.mxu0 0
        %4105 = vmatprep.subr.bf16.mxu0 0
        %4106 = vmatpush1.bf16.msra.mxu0 0
        %4107 = vmatprep.subr.bf16.mxu0 0
        %4108 = vmatpush1.bf16.msra.mxu0 0
        %4109 = vmatprep.subr.bf16.mxu0 0
        %4110 = vmatpush1.bf16.msra.mxu0 0
        %4111 = vmatprep.subr.bf16.mxu0 0
        %4112 = vmatpush1.bf16.msra.mxu0 0
        %4113 = vmatprep.subr.bf16.mxu0 0
        %4114 = vmatpush1.bf16.msra.mxu0 0
        %4115 = vmatprep.subr.bf16.mxu0 0
        %4116 = vmatpush1.bf16.msra.mxu0 0
        %4117 = vmatprep.subr.bf16.mxu0 0
        %4118 = vmatpush1.bf16.msra.mxu0 0
        %4119 = vmatprep.subr.bf16.mxu0 0
        %4120 = vmatpush1.bf16.msra.mxu0 0
        %4121 = vmatprep.subr.bf16.mxu0 0
        %4122 = vmatpush1.bf16.msra.mxu0 0
        %4123 = vmatprep.subr.bf16.mxu0 0
        %4124 = vmatpush1.bf16.msra.mxu0 0
        %4125 = vmatprep.subr.bf16.mxu0 0
        %4126 = vmatpush1.bf16.msra.mxu0 0
        %4127 = vmatprep.subr.bf16.mxu0 0
        %4128 = vmatpush1.bf16.msra.mxu0 0
        %4129 = vmatprep.mubr.bf16.mxu0 0
        %4130 = vmatmul.mubr.bf16.gmra.mrb[0].mxu0 %v1141
        %v4131 = vpop.f32.mrb[0].mxu0
        %v4132 = vadd.f32 0.0, %v4131
        %v4133 = vpop.f32.mrb[0].mxu0
        %v4134 = vadd.f32 0.0, %v4133
        %v4135 = vpop.f32.mrb[0].mxu0
        %v4136 = vadd.f32 0.0, %v4135
        %v4137 = vpop.f32.mrb[0].mxu0
        %v4138 = vadd.f32 0.0, %v4137
        %4139 = vdwg.mxu0
        %4140 = vmatprep.subr.bf16.mxu0 0
        %4141 = vmatpush1.bf16.msra.mxu0 %v3975
        %4142 = vmatprep.subr.bf16.mxu0 0
        %4143 = vmatpush1.bf16.msra.mxu0 %v4009
        %4144 = vmatprep.subr.bf16.mxu0 0
        %4145 = vmatpush1.bf16.msra.mxu0 0
        %4146 = vmatprep.subr.bf16.mxu0 0
        %4147 = vmatpush1.bf16.msra.mxu0 0
        %4148 = vmatprep.subr.bf16.mxu0 0
        %4149 = vmatpush1.bf16.msra.mxu0 0
        %4150 = vmatprep.subr.bf16.mxu0 0
        %4151 = vmatpush1.bf16.msra.mxu0 0
        %4152 = vmatprep.subr.bf16.mxu0 0
        %4153 = vmatpush1.bf16.msra.mxu0 0
        %4154 = vmatprep.subr.bf16.mxu0 0
        %4155 = vmatpush1.bf16.msra.mxu0 0
        %4156 = vmatprep.subr.bf16.mxu0 0
        %4157 = vmatpush1.bf16.msra.mxu0 0
        %4158 = vmatprep.subr.bf16.mxu0 0
        %4159 = vmatpush1.bf16.msra.mxu0 0
        %4160 = vmatprep.subr.bf16.mxu0 0
        %4161 = vmatpush1.bf16.msra.mxu0 0
        %4162 = vmatprep.subr.bf16.mxu0 0
        %4163 = vmatpush1.bf16.msra.mxu0 0
        %4164 = vmatprep.subr.bf16.mxu0 0
        %4165 = vmatpush1.bf16.msra.mxu0 0
        %4166 = vmatprep.subr.bf16.mxu0 0
        %4167 = vmatpush1.bf16.msra.mxu0 0
        %4168 = vmatprep.subr.bf16.mxu0 0
        %4169 = vmatpush1.bf16.msra.mxu0 0
        %4170 = vmatprep.subr.bf16.mxu0 0
        %4171 = vmatpush1.bf16.msra.mxu0 0
        %4172 = vmatprep.mubr.bf16.mxu0 0
        %4173 = vmatmul.mubr.bf16.gmra.mrb[0].mxu0 %v1141
        %v4174 = vpop.f32.mrb[0].mxu0
        %v4175 = vadd.f32 0.0, %v4174
        %v4176 = vpop.f32.mrb[0].mxu0
        %v4177 = vpop.f32.mrb[0].mxu0
        %v4178 = vadd.f32 0.0, %v4177
        %v4179 = vpop.f32.mrb[0].mxu0
        %4180 = vdwg.mxu0
        %v4181 = vld [vmem:[%s1611 + $0x38] sm:$0xff]
        %v4182 = vld [vmem:[%s1611 + $0x40] sm:$0xff]
        %v4183 = vld [vmem:[%s1611 + $0x48] sm:$0xff]
        %v4184 = vld [vmem:[%s1611 + $0x50] sm:$0xf]
        %v4185 = vld [vmem:[%s1611 + $0xfc] sm:$0xff]
        %v4186 = vld [vmem:[%s1611 + $0x104] sm:$0xff]
        %v4187 = vld [vmem:[%s1611 + $0x10c] sm:$0xff]
        %v4188 = vld [vmem:[%s1611 + $0x114] sm:$0xf]
        %v4189 = vld [vmem:[%s1611 + $0x1c0] sm:$0xff]
        %v4190 = vld [vmem:[%s1611 + $0x1c8] sm:$0xff]
        %v4191 = vld [vmem:[%s1611 + $0x1d0] sm:$0xff]
        %v4192 = vld [vmem:[%s1611 + $0x1d8] sm:$0xf]
        %v4193 = vld [vmem:[%s1611 + $0x284] sm:$0x33]
        %v4194 = vld [vmem:[%s1611 + $0x28c] sm:$0x33]
        %v4195 = vld [vmem:[%s1611 + $0x294] sm:$0x33]
        %v4196 = vld [vmem:[%s1611 + $0x29c] sm:$0x3]
        %v4213 = vunpack.c.l.b16 %v4181
        %v4214 = vunpack.c.h.b16 %v4181
        %v4215 = vunpack.c.l.b16 %v4182
        %v4216 = vunpack.c.h.b16 %v4182
        %v4217 = vunpack.c.l.b16 %v4183
        %v4218 = vunpack.c.h.b16 %v4183
        %v4219 = vunpack.c.l.b16 %v4184
        %v4220 = vunpack.c.l.b16 %v4185
        %v4221 = vunpack.c.h.b16 %v4185
        %v4222 = vunpack.c.l.b16 %v4186
        %v4223 = vunpack.c.h.b16 %v4186
        %v4224 = vunpack.c.l.b16 %v4187
        %v4225 = vunpack.c.h.b16 %v4187
        %v4226 = vunpack.c.l.b16 %v4188
        %v4227 = vunpack.c.l.b16 %v4189
        %v4228 = vunpack.c.h.b16 %v4189
        %v4229 = vunpack.c.l.b16 %v4190
        %v4230 = vunpack.c.h.b16 %v4190
        %v4231 = vunpack.c.l.b16 %v4191
        %v4232 = vunpack.c.h.b16 %v4191
        %v4233 = vunpack.c.l.b16 %v4192
        %v4234 = vunpack.c.l.b16 %v4193
        %v4235 = vunpack.c.h.b16 %v4193
        %v4236 = vunpack.c.l.b16 %v4194
        %v4237 = vunpack.c.h.b16 %v4194
        %v4238 = vunpack.c.l.b16 %v4195
        %v4239 = vunpack.c.h.b16 %v4195
        %v4240 = vunpack.c.l.b16 %v4196
        %v4241 = vpack.c.b16 %v4220, %v4213
        %v4242 = vpack.c.b16 %v4221, %v4214
        %v4243 = vpack.c.b16 %v4222, %v4215
        %v4244 = vpack.c.b16 %v4223, %v4216
        %v4245 = vpack.c.b16 %v4224, %v4217
        %v4246 = vpack.c.b16 %v4225, %v4218
        %v4247 = vpack.c.b16 %v4226, %v4219
        %v4248 = vpack.c.b16 %v4234, %v4227
        %v4249 = vpack.c.b16 %v4235, %v4228
        %v4250 = vpack.c.b16 %v4236, %v4229
        %v4251 = vpack.c.b16 %v4237, %v4230
        %v4252 = vpack.c.b16 %v4238, %v4231
        %v4253 = vpack.c.b16 %v4239, %v4232
        %v4254 = vpack.c.b16 %v4240, %v4233
        %v4263 = vand.u32 %v4248, %v1146
        %v4266 = vand.u32 %v4249, %v1146
        %v4269 = vand.u32 %v4250, %v1146
        %v4272 = vand.u32 %v4251, %v1146
        %v4275 = vand.u32 %v4252, %v1146
        %v4278 = vand.u32 %v4253, %v1146
        %v4281 = vand.u32 %v4254, %v1146
        %4283 = vmatprep.subr.bf16.mxu0 %v4242
        %4284 = vmatpush1.bf16.msra.mxu0 %v4241
        %4285 = vmatprep.subr.bf16.mxu0 %v4266
        %4286 = vmatpush1.bf16.msra.mxu0 %v4263
        %4287 = vmatprep.subr.bf16.mxu0 0
        %4288 = vmatpush1.bf16.msra.mxu0 0
        %4289 = vmatprep.subr.bf16.mxu0 0
        %4290 = vmatpush1.bf16.msra.mxu0 0
        %4291 = vmatprep.subr.bf16.mxu0 0
        %4292 = vmatpush1.bf16.msra.mxu0 0
        %4293 = vmatprep.subr.bf16.mxu0 0
        %4294 = vmatpush1.bf16.msra.mxu0 0
        %4295 = vmatprep.subr.bf16.mxu0 0
        %4296 = vmatpush1.bf16.msra.mxu0 0
        %4297 = vmatprep.subr.bf16.mxu0 0
        %4298 = vmatpush1.bf16.msra.mxu0 0
        %4299 = vmatprep.subr.bf16.mxu0 0
        %4300 = vmatpush1.bf16.msra.mxu0 0
        %4301 = vmatprep.subr.bf16.mxu0 0
        %4302 = vmatpush1.bf16.msra.mxu0 0
        %4303 = vmatprep.subr.bf16.mxu0 0
        %4304 = vmatpush1.bf16.msra.mxu0 0
        %4305 = vmatprep.subr.bf16.mxu0 0
        %4306 = vmatpush1.bf16.msra.mxu0 0
        %4307 = vmatprep.subr.bf16.mxu0 0
        %4308 = vmatpush1.bf16.msra.mxu0 0
        %4309 = vmatprep.subr.bf16.mxu0 0
        %4310 = vmatpush1.bf16.msra.mxu0 0
        %4311 = vmatprep.subr.bf16.mxu0 0
        %4312 = vmatpush1.bf16.msra.mxu0 0
        %4313 = vmatprep.subr.bf16.mxu0 0
        %4314 = vmatpush1.bf16.msra.mxu0 0
        %4315 = vmatprep.mubr.bf16.mxu0 0
        %4316 = vmatmul.mubr.bf16.gmra.mrb[0].mxu0 %v1141
        %v4317 = vpop.f32.mrb[0].mxu0
        %v4318 = vadd.f32 0.0, %v4317
        %v4319 = vpop.f32.mrb[0].mxu0
        %v4320 = vadd.f32 0.0, %v4319
        %v4321 = vpop.f32.mrb[0].mxu0
        %v4322 = vadd.f32 0.0, %v4321
        %v4323 = vpop.f32.mrb[0].mxu0
        %v4324 = vadd.f32 0.0, %v4323
        %4325 = vdwg.mxu0
        %4326 = vmatprep.subr.bf16.mxu0 %v4244
        %4327 = vmatpush1.bf16.msra.mxu0 %v4243
        %4328 = vmatprep.subr.bf16.mxu0 %v4272
        %4329 = vmatpush1.bf16.msra.mxu0 %v4269
        %4330 = vmatprep.subr.bf16.mxu0 0
        %4331 = vmatpush1.bf16.msra.mxu0 0
        %4332 = vmatprep.subr.bf16.mxu0 0
        %4333 = vmatpush1.bf16.msra.mxu0 0
        %4334 = vmatprep.subr.bf16.mxu0 0
        %4335 = vmatpush1.bf16.msra.mxu0 0
        %4336 = vmatprep.subr.bf16.mxu0 0
        %4337 = vmatpush1.bf16.msra.mxu0 0
        %4338 = vmatprep.subr.bf16.mxu0 0
        %4339 = vmatpush1.bf16.msra.mxu0 0
        %4340 = vmatprep.subr.bf16.mxu0 0
        %4341 = vmatpush1.bf16.msra.mxu0 0
        %4342 = vmatprep.subr.bf16.mxu0 0
        %4343 = vmatpush1.bf16.msra.mxu0 0
        %4344 = vmatprep.subr.bf16.mxu0 0
        %4345 = vmatpush1.bf16.msra.mxu0 0
        %4346 = vmatprep.subr.bf16.mxu0 0
        %4347 = vmatpush1.bf16.msra.mxu0 0
        %4348 = vmatprep.subr.bf16.mxu0 0
        %4349 = vmatpush1.bf16.msra.mxu0 0
        %4350 = vmatprep.subr.bf16.mxu0 0
        %4351 = vmatpush1.bf16.msra.mxu0 0
        %4352 = vmatprep.subr.bf16.mxu0 0
        %4353 = vmatpush1.bf16.msra.mxu0 0
        %4354 = vmatprep.subr.bf16.mxu0 0
        %4355 = vmatpush1.bf16.msra.mxu0 0
        %4356 = vmatprep.subr.bf16.mxu0 0
        %4357 = vmatpush1.bf16.msra.mxu0 0
        %4358 = vmatprep.mubr.bf16.mxu0 0
        %4359 = vmatmul.mubr.bf16.gmra.mrb[0].mxu0 %v1141
        %v4360 = vpop.f32.mrb[0].mxu0
        %v4361 = vadd.f32 0.0, %v4360
        %v4362 = vpop.f32.mrb[0].mxu0
        %v4363 = vadd.f32 0.0, %v4362
        %v4364 = vpop.f32.mrb[0].mxu0
        %v4365 = vadd.f32 0.0, %v4364
        %v4366 = vpop.f32.mrb[0].mxu0
        %v4367 = vadd.f32 0.0, %v4366
        %4368 = vdwg.mxu0
        %4369 = vmatprep.subr.bf16.mxu0 %v4246
        %4370 = vmatpush1.bf16.msra.mxu0 %v4245
        %4371 = vmatprep.subr.bf16.mxu0 %v4278
        %4372 = vmatpush1.bf16.msra.mxu0 %v4275
        %4373 = vmatprep.subr.bf16.mxu0 0
        %4374 = vmatpush1.bf16.msra.mxu0 0
        %4375 = vmatprep.subr.bf16.mxu0 0
        %4376 = vmatpush1.bf16.msra.mxu0 0
        %4377 = vmatprep.subr.bf16.mxu0 0
        %4378 = vmatpush1.bf16.msra.mxu0 0
        %4379 = vmatprep.subr.bf16.mxu0 0
        %4380 = vmatpush1.bf16.msra.mxu0 0
        %4381 = vmatprep.subr.bf16.mxu0 0
        %4382 = vmatpush1.bf16.msra.mxu0 0
        %4383 = vmatprep.subr.bf16.mxu0 0
        %4384 = vmatpush1.bf16.msra.mxu0 0
        %4385 = vmatprep.subr.bf16.mxu0 0
        %4386 = vmatpush1.bf16.msra.mxu0 0
        %4387 = vmatprep.subr.bf16.mxu0 0
        %4388 = vmatpush1.bf16.msra.mxu0 0
        %4389 = vmatprep.subr.bf16.mxu0 0
        %4390 = vmatpush1.bf16.msra.mxu0 0
        %4391 = vmatprep.subr.bf16.mxu0 0
        %4392 = vmatpush1.bf16.msra.mxu0 0
        %4393 = vmatprep.subr.bf16.mxu0 0
        %4394 = vmatpush1.bf16.msra.mxu0 0
        %4395 = vmatprep.subr.bf16.mxu0 0
        %4396 = vmatpush1.bf16.msra.mxu0 0
        %4397 = vmatprep.subr.bf16.mxu0 0
        %4398 = vmatpush1.bf16.msra.mxu0 0
        %4399 = vmatprep.subr.bf16.mxu0 0
        %4400 = vmatpush1.bf16.msra.mxu0 0
        %4401 = vmatprep.mubr.bf16.mxu0 0
        %4402 = vmatmul.mubr.bf16.gmra.mrb[0].mxu0 %v1141
        %v4403 = vpop.f32.mrb[0].mxu0
        %v4404 = vadd.f32 0.0, %v4403
        %v4405 = vpop.f32.mrb[0].mxu0
        %v4406 = vadd.f32 0.0, %v4405
        %v4407 = vpop.f32.mrb[0].mxu0
        %v4408 = vadd.f32 0.0, %v4407
        %v4409 = vpop.f32.mrb[0].mxu0
        %v4410 = vadd.f32 0.0, %v4409
        %4411 = vdwg.mxu0
        %4412 = vmatprep.subr.bf16.mxu0 0
        %4413 = vmatpush1.bf16.msra.mxu0 %v4247
        %4414 = vmatprep.subr.bf16.mxu0 0
        %4415 = vmatpush1.bf16.msra.mxu0 %v4281
        %4416 = vmatprep.subr.bf16.mxu0 0
        %4417 = vmatpush1.bf16.msra.mxu0 0
        %4418 = vmatprep.subr.bf16.mxu0 0
        %4419 = vmatpush1.bf16.msra.mxu0 0
        %4420 = vmatprep.subr.bf16.mxu0 0
        %4421 = vmatpush1.bf16.msra.mxu0 0
        %4422 = vmatprep.subr.bf16.mxu0 0
        %4423 = vmatpush1.bf16.msra.mxu0 0
        %4424 = vmatprep.subr.bf16.mxu0 0
        %4425 = vmatpush1.bf16.msra.mxu0 0
        %4426 = vmatprep.subr.bf16.mxu0 0
        %4427 = vmatpush1.bf16.msra.mxu0 0
        %4428 = vmatprep.subr.bf16.mxu0 0
        %4429 = vmatpush1.bf16.msra.mxu0 0
        %4430 = vmatprep.subr.bf16.mxu0 0
        %4431 = vmatpush1.bf16.msra.mxu0 0
        %4432 = vmatprep.subr.bf16.mxu0 0
        %4433 = vmatpush1.bf16.msra.mxu0 0
        %4434 = vmatprep.subr.bf16.mxu0 0
        %4435 = vmatpush1.bf16.msra.mxu0 0
        %4436 = vmatprep.subr.bf16.mxu0 0
        %4437 = vmatpush1.bf16.msra.mxu0 0
        %4438 = vmatprep.subr.bf16.mxu0 0
        %4439 = vmatpush1.bf16.msra.mxu0 0
        %4440 = vmatprep.subr.bf16.mxu0 0
        %4441 = vmatpush1.bf16.msra.mxu0 0
        %4442 = vmatprep.subr.bf16.mxu0 0
        %4443 = vmatpush1.bf16.msra.mxu0 0
        %4444 = vmatprep.mubr.bf16.mxu0 0
        %4445 = vmatmul.mubr.bf16.gmra.mrb[0].mxu0 %v1141
        %v4446 = vpop.f32.mrb[0].mxu0
        %v4447 = vadd.f32 0.0, %v4446
        %v4448 = vpop.f32.mrb[0].mxu0
        %v4449 = vpop.f32.mrb[0].mxu0
        %v4450 = vadd.f32 0.0, %v4449
        %v4451 = vpop.f32.mrb[0].mxu0
        %4452 = vdwg.mxu0
        %v4453 = vld [vmem:[%s1884 + $0x38] sm:$0xff]
        %v4454 = vld [vmem:[%s1884 + $0x40] sm:$0xff]
        %v4455 = vld [vmem:[%s1884 + $0x48] sm:$0xff]
        %v4456 = vld [vmem:[%s1884 + $0x50] sm:$0xf]
        %v4457 = vld [vmem:[%s1884 + $0xfc] sm:$0xff]
        %v4458 = vld [vmem:[%s1884 + $0x104] sm:$0xff]
        %v4459 = vld [vmem:[%s1884 + $0x10c] sm:$0xff]
        %v4460 = vld [vmem:[%s1884 + $0x114] sm:$0xf]
        %v4461 = vld [vmem:[%s1884 + $0x1c0] sm:$0xff]
        %v4462 = vld [vmem:[%s1884 + $0x1c8] sm:$0xff]
        %v4463 = vld [vmem:[%s1884 + $0x1d0] sm:$0xff]
        %v4464 = vld [vmem:[%s1884 + $0x1d8] sm:$0xf]
        %v4465 = vld [vmem:[%s1884 + $0x284] sm:$0x33]
        %v4466 = vld [vmem:[%s1884 + $0x28c] sm:$0x33]
        %v4467 = vld [vmem:[%s1884 + $0x294] sm:$0x33]
        %v4468 = vld [vmem:[%s1884 + $0x29c] sm:$0x3]
        %v4485 = vunpack.c.l.b16 %v4453
        %v4486 = vunpack.c.h.b16 %v4453
        %v4487 = vunpack.c.l.b16 %v4454
        %v4488 = vunpack.c.h.b16 %v4454
        %v4489 = vunpack.c.l.b16 %v4455
        %v4490 = vunpack.c.h.b16 %v4455
        %v4491 = vunpack.c.l.b16 %v4456
        %v4492 = vunpack.c.l.b16 %v4457
        %v4493 = vunpack.c.h.b16 %v4457
        %v4494 = vunpack.c.l.b16 %v4458
        %v4495 = vunpack.c.h.b16 %v4458
        %v4496 = vunpack.c.l.b16 %v4459
        %v4497 = vunpack.c.h.b16 %v4459
        %v4498 = vunpack.c.l.b16 %v4460
        %v4499 = vunpack.c.l.b16 %v4461
        %v4500 = vunpack.c.h.b16 %v4461
        %v4501 = vunpack.c.l.b16 %v4462
        %v4502 = vunpack.c.h.b16 %v4462
        %v4503 = vunpack.c.l.b16 %v4463
        %v4504 = vunpack.c.h.b16 %v4463
        %v4505 = vunpack.c.l.b16 %v4464
        %v4506 = vunpack.c.l.b16 %v4465
        %v4507 = vunpack.c.h.b16 %v4465
        %v4508 = vunpack.c.l.b16 %v4466
        %v4509 = vunpack.c.h.b16 %v4466
        %v4510 = vunpack.c.l.b16 %v4467
        %v4511 = vunpack.c.h.b16 %v4467
        %v4512 = vunpack.c.l.b16 %v4468
        %v4513 = vpack.c.b16 %v4492, %v4485
        %v4514 = vpack.c.b16 %v4493, %v4486
        %v4515 = vpack.c.b16 %v4494, %v4487
        %v4516 = vpack.c.b16 %v4495, %v4488
        %v4517 = vpack.c.b16 %v4496, %v4489
        %v4518 = vpack.c.b16 %v4497, %v4490
        %v4519 = vpack.c.b16 %v4498, %v4491
        %v4520 = vpack.c.b16 %v4506, %v4499
        %v4521 = vpack.c.b16 %v4507, %v4500
        %v4522 = vpack.c.b16 %v4508, %v4501
        %v4523 = vpack.c.b16 %v4509, %v4502
        %v4524 = vpack.c.b16 %v4510, %v4503
        %v4525 = vpack.c.b16 %v4511, %v4504
        %v4526 = vpack.c.b16 %v4512, %v4505
        %v4535 = vand.u32 %v4520, %v1146
        %v4538 = vand.u32 %v4521, %v1146
        %v4541 = vand.u32 %v4522, %v1146
        %v4544 = vand.u32 %v4523, %v1146
        %v4547 = vand.u32 %v4524, %v1146
        %v4550 = vand.u32 %v4525, %v1146
        %v4553 = vand.u32 %v4526, %v1146
        %4555 = vmatprep.subr.bf16.mxu0 %v4514
        %4556 = vmatpush1.bf16.msra.mxu0 %v4513
        %4557 = vmatprep.subr.bf16.mxu0 %v4538
        %4558 = vmatpush1.bf16.msra.mxu0 %v4535
        %4559 = vmatprep.subr.bf16.mxu0 0
        %4560 = vmatpush1.bf16.msra.mxu0 0
        %4561 = vmatprep.subr.bf16.mxu0 0
        %4562 = vmatpush1.bf16.msra.mxu0 0
        %4563 = vmatprep.subr.bf16.mxu0 0
        %4564 = vmatpush1.bf16.msra.mxu0 0
        %4565 = vmatprep.subr.bf16.mxu0 0
        %4566 = vmatpush1.bf16.msra.mxu0 0
        %4567 = vmatprep.subr.bf16.mxu0 0
        %4568 = vmatpush1.bf16.msra.mxu0 0
        %4569 = vmatprep.subr.bf16.mxu0 0
        %4570 = vmatpush1.bf16.msra.mxu0 0
        %4571 = vmatprep.subr.bf16.mxu0 0
        %4572 = vmatpush1.bf16.msra.mxu0 0
        %4573 = vmatprep.subr.bf16.mxu0 0
        %4574 = vmatpush1.bf16.msra.mxu0 0
        %4575 = vmatprep.subr.bf16.mxu0 0
        %4576 = vmatpush1.bf16.msra.mxu0 0
        %4577 = vmatprep.subr.bf16.mxu0 0
        %4578 = vmatpush1.bf16.msra.mxu0 0
        %4579 = vmatprep.subr.bf16.mxu0 0
        %4580 = vmatpush1.bf16.msra.mxu0 0
        %4581 = vmatprep.subr.bf16.mxu0 0
        %4582 = vmatpush1.bf16.msra.mxu0 0
        %4583 = vmatprep.subr.bf16.mxu0 0
        %4584 = vmatpush1.bf16.msra.mxu0 0
        %4585 = vmatprep.subr.bf16.mxu0 0
        %4586 = vmatpush1.bf16.msra.mxu0 0
        %4587 = vmatprep.mubr.bf16.mxu0 0
        %4588 = vmatmul.mubr.bf16.gmra.mrb[0].mxu0 %v1141
        %v4589 = vpop.f32.mrb[0].mxu0
        %v4590 = vadd.f32 0.0, %v4589
        %v4591 = vpop.f32.mrb[0].mxu0
        %v4592 = vadd.f32 0.0, %v4591
        %v4593 = vpop.f32.mrb[0].mxu0
        %v4594 = vadd.f32 0.0, %v4593
        %v4595 = vpop.f32.mrb[0].mxu0
        %v4596 = vadd.f32 0.0, %v4595
        %4597 = vdwg.mxu0
        %4598 = vmatprep.subr.bf16.mxu0 %v4516
        %4599 = vmatpush1.bf16.msra.mxu0 %v4515
        %4600 = vmatprep.subr.bf16.mxu0 %v4544
        %4601 = vmatpush1.bf16.msra.mxu0 %v4541
        %4602 = vmatprep.subr.bf16.mxu0 0
        %4603 = vmatpush1.bf16.msra.mxu0 0
        %4604 = vmatprep.subr.bf16.mxu0 0
        %4605 = vmatpush1.bf16.msra.mxu0 0
        %4606 = vmatprep.subr.bf16.mxu0 0
        %4607 = vmatpush1.bf16.msra.mxu0 0
        %4608 = vmatprep.subr.bf16.mxu0 0
        %4609 = vmatpush1.bf16.msra.mxu0 0
        %4610 = vmatprep.subr.bf16.mxu0 0
        %4611 = vmatpush1.bf16.msra.mxu0 0
        %4612 = vmatprep.subr.bf16.mxu0 0
        %4613 = vmatpush1.bf16.msra.mxu0 0
        %4614 = vmatprep.subr.bf16.mxu0 0
        %4615 = vmatpush1.bf16.msra.mxu0 0
        %4616 = vmatprep.subr.bf16.mxu0 0
        %4617 = vmatpush1.bf16.msra.mxu0 0
        %4618 = vmatprep.subr.bf16.mxu0 0
        %4619 = vmatpush1.bf16.msra.mxu0 0
        %4620 = vmatprep.subr.bf16.mxu0 0
        %4621 = vmatpush1.bf16.msra.mxu0 0
        %4622 = vmatprep.subr.bf16.mxu0 0
        %4623 = vmatpush1.bf16.msra.mxu0 0
        %4624 = vmatprep.subr.bf16.mxu0 0
        %4625 = vmatpush1.bf16.msra.mxu0 0
        %4626 = vmatprep.subr.bf16.mxu0 0
        %4627 = vmatpush1.bf16.msra.mxu0 0
        %4628 = vmatprep.subr.bf16.mxu0 0
        %4629 = vmatpush1.bf16.msra.mxu0 0
        %4630 = vmatprep.mubr.bf16.mxu0 0
        %4631 = vmatmul.mubr.bf16.gmra.mrb[0].mxu0 %v1141
        %v4632 = vpop.f32.mrb[0].mxu0
        %v4633 = vadd.f32 0.0, %v4632
        %v4634 = vpop.f32.mrb[0].mxu0
        %v4635 = vadd.f32 0.0, %v4634
        %v4636 = vpop.f32.mrb[0].mxu0
        %v4637 = vadd.f32 0.0, %v4636
        %v4638 = vpop.f32.mrb[0].mxu0
        %v4639 = vadd.f32 0.0, %v4638
        %4640 = vdwg.mxu0
        %4641 = vmatprep.subr.bf16.mxu0 %v4518
        %4642 = vmatpush1.bf16.msra.mxu0 %v4517
        %4643 = vmatprep.subr.bf16.mxu0 %v4550
        %4644 = vmatpush1.bf16.msra.mxu0 %v4547
        %4645 = vmatprep.subr.bf16.mxu0 0
        %4646 = vmatpush1.bf16.msra.mxu0 0
        %4647 = vmatprep.subr.bf16.mxu0 0
        %4648 = vmatpush1.bf16.msra.mxu0 0
        %4649 = vmatprep.subr.bf16.mxu0 0
        %4650 = vmatpush1.bf16.msra.mxu0 0
        %4651 = vmatprep.subr.bf16.mxu0 0
        %4652 = vmatpush1.bf16.msra.mxu0 0
        %4653 = vmatprep.subr.bf16.mxu0 0
        %4654 = vmatpush1.bf16.msra.mxu0 0
        %4655 = vmatprep.subr.bf16.mxu0 0
        %4656 = vmatpush1.bf16.msra.mxu0 0
        %4657 = vmatprep.subr.bf16.mxu0 0
        %4658 = vmatpush1.bf16.msra.mxu0 0
        %4659 = vmatprep.subr.bf16.mxu0 0
        %4660 = vmatpush1.bf16.msra.mxu0 0
        %4661 = vmatprep.subr.bf16.mxu0 0
        %4662 = vmatpush1.bf16.msra.mxu0 0
        %4663 = vmatprep.subr.bf16.mxu0 0
        %4664 = vmatpush1.bf16.msra.mxu0 0
        %4665 = vmatprep.subr.bf16.mxu0 0
        %4666 = vmatpush1.bf16.msra.mxu0 0
        %4667 = vmatprep.subr.bf16.mxu0 0
        %4668 = vmatpush1.bf16.msra.mxu0 0
        %4669 = vmatprep.subr.bf16.mxu0 0
        %4670 = vmatpush1.bf16.msra.mxu0 0
        %4671 = vmatprep.subr.bf16.mxu0 0
        %4672 = vmatpush1.bf16.msra.mxu0 0
        %4673 = vmatprep.mubr.bf16.mxu0 0
        %4674 = vmatmul.mubr.bf16.gmra.mrb[0].mxu0 %v1141
        %v4675 = vpop.f32.mrb[0].mxu0
        %v4676 = vadd.f32 0.0, %v4675
        %v4677 = vpop.f32.mrb[0].mxu0
        %v4678 = vadd.f32 0.0, %v4677
        %v4679 = vpop.f32.mrb[0].mxu0
        %v4680 = vadd.f32 0.0, %v4679
        %v4681 = vpop.f32.mrb[0].mxu0
        %v4682 = vadd.f32 0.0, %v4681
        %4683 = vdwg.mxu0
        %4684 = vmatprep.subr.bf16.mxu0 0
        %4685 = vmatpush1.bf16.msra.mxu0 %v4519
        %4686 = vmatprep.subr.bf16.mxu0 0
        %4687 = vmatpush1.bf16.msra.mxu0 %v4553
        %4688 = vmatprep.subr.bf16.mxu0 0
        %4689 = vmatpush1.bf16.msra.mxu0 0
        %4690 = vmatprep.subr.bf16.mxu0 0
        %4691 = vmatpush1.bf16.msra.mxu0 0
        %4692 = vmatprep.subr.bf16.mxu0 0
        %4693 = vmatpush1.bf16.msra.mxu0 0
        %4694 = vmatprep.subr.bf16.mxu0 0
        %4695 = vmatpush1.bf16.msra.mxu0 0
        %4696 = vmatprep.subr.bf16.mxu0 0
        %4697 = vmatpush1.bf16.msra.mxu0 0
        %4698 = vmatprep.subr.bf16.mxu0 0
        %4699 = vmatpush1.bf16.msra.mxu0 0
        %4700 = vmatprep.subr.bf16.mxu0 0
        %4701 = vmatpush1.bf16.msra.mxu0 0
        %4702 = vmatprep.subr.bf16.mxu0 0
        %4703 = vmatpush1.bf16.msra.mxu0 0
        %4704 = vmatprep.subr.bf16.mxu0 0
        %4705 = vmatpush1.bf16.msra.mxu0 0
        %4706 = vmatprep.subr.bf16.mxu0 0
        %4707 = vmatpush1.bf16.msra.mxu0 0
        %4708 = vmatprep.subr.bf16.mxu0 0
        %4709 = vmatpush1.bf16.msra.mxu0 0
        %4710 = vmatprep.subr.bf16.mxu0 0
        %4711 = vmatpush1.bf16.msra.mxu0 0
        %4712 = vmatprep.subr.bf16.mxu0 0
        %4713 = vmatpush1.bf16.msra.mxu0 0
        %4714 = vmatprep.subr.bf16.mxu0 0
        %4715 = vmatpush1.bf16.msra.mxu0 0
        %4716 = vmatprep.mubr.bf16.mxu0 0
        %4717 = vmatmul.mubr.bf16.gmra.mrb[0].mxu0 %v1141
        %v4718 = vpop.f32.mrb[0].mxu0
        %v4719 = vadd.f32 0.0, %v4718
        %v4720 = vpop.f32.mrb[0].mxu0
        %v4721 = vpop.f32.mrb[0].mxu0
        %v4722 = vadd.f32 0.0, %v4721
        %v4723 = vpop.f32.mrb[0].mxu0
        %4724 = vdwg.mxu0
        %v4725 = vmax.f32 %v3774, %v4046
        %v4726 = vmax.f32 %v3776, %v4048
        %v4727 = vmax.f32 %v3817, %v4089
        %v4728 = vmax.f32 %v3819, %v4091
        %v4729 = vmax.f32 %v3860, %v4132
        %v4730 = vmax.f32 %v3862, %v4134
        %v4731 = vmax.f32 %v3903, %v4175
        %v4732 = vmax.f32 %v3778, %v4050
        %v4733 = vmax.f32 %v3780, %v4052
        %v4734 = vmax.f32 %v3821, %v4093
        %v4735 = vmax.f32 %v3823, %v4095
        %v4736 = vmax.f32 %v3864, %v4136
        %v4737 = vmax.f32 %v3866, %v4138
        %v4738 = vmax.f32 %v3906, %v4178
        %v4739 = vmax.f32 %v4318, %v4590
        %v4740 = vmax.f32 %v4320, %v4592
        %v4741 = vmax.f32 %v4361, %v4633
        %v4742 = vmax.f32 %v4363, %v4635
        %v4743 = vmax.f32 %v4404, %v4676
        %v4744 = vmax.f32 %v4406, %v4678
        %v4745 = vmax.f32 %v4447, %v4719
        %v4746 = vmax.f32 %v4322, %v4594
        %v4747 = vmax.f32 %v4324, %v4596
        %v4748 = vmax.f32 %v4365, %v4637
        %v4749 = vmax.f32 %v4367, %v4639
        %v4750 = vmax.f32 %v4408, %v4680
        %v4751 = vmax.f32 %v4410, %v4682
        %v4752 = vmax.f32 %v4450, %v4722
        %v4753 = vmax.f32 %v4725, %v4739
        %v4754 = vmax.f32 %v4726, %v4740
        %v4755 = vmax.f32 %v4727, %v4741
        %v4756 = vmax.f32 %v4728, %v4742
        %v4757 = vmax.f32 %v4729, %v4743
        %v4758 = vmax.f32 %v4730, %v4744
        %v4759 = vmax.f32 %v4731, %v4745
        %v4760 = vmax.f32 %v4732, %v4746
        %v4761 = vmax.f32 %v4733, %v4747
        %v4762 = vmax.f32 %v4734, %v4748
        %v4763 = vmax.f32 %v4735, %v4749
        %v4764 = vmax.f32 %v4736, %v4750
        %v4765 = vmax.f32 %v4737, %v4751
        %v4766 = vmax.f32 %v4738, %v4752
        %v4767 = vadd.f32 %v4753, %v2202
        %v4768 = vadd.f32 %v4754, %v2202
        %v4769 = vadd.f32 %v4755, %v2202
        %v4770 = vadd.f32 %v4756, %v2202
        %v4771 = vadd.f32 %v4757, %v2202
        %v4772 = vadd.f32 %v4758, %v2202
        %v4773 = vadd.f32 %v4759, %v2202
        %v4774 = vadd.f32 %v4760, %v2207
        %v4775 = vadd.f32 %v4761, %v2207
        %v4776 = vadd.f32 %v4762, %v2207
        %v4777 = vadd.f32 %v4763, %v2207
        %v4778 = vadd.f32 %v4764, %v2207
        %v4779 = vadd.f32 %v4765, %v2207
        %v4780 = vadd.f32 %v4766, %v2207
        %v4781 = vmax.f32 %v4767, 0.0
        %v4782 = vmax.f32 %v4768, 0.0
        %v4783 = vmax.f32 %v4769, 0.0
        %v4784 = vmax.f32 %v4770, 0.0
        %v4785 = vmax.f32 %v4771, 0.0
        %v4786 = vmax.f32 %v4772, 0.0
        %v4787 = vmax.f32 %v4773, 0.0
        %v4788 = vmax.f32 %v4774, 0.0
        %v4789 = vmax.f32 %v4775, 0.0
        %v4790 = vmax.f32 %v4776, 0.0
        %v4791 = vmax.f32 %v4777, 0.0
        %v4792 = vmax.f32 %v4778, 0.0
        %v4793 = vmax.f32 %v4779, 0.0
        %v4794 = vmax.f32 %v4780, 0.0
        %v4795 = vld [vmem:[%s2239 + $0x38] sm:$0xff]
        %v4796 = vld [vmem:[%s2239 + $0x40] sm:$0xff]
        %v4797 = vld [vmem:[%s2239 + $0x48] sm:$0xff]
        %v4798 = vld [vmem:[%s2239 + $0x50] sm:$0xf]
        %v4799 = vld [vmem:[%s2239 + $0xfc] sm:$0xff]
        %v4800 = vld [vmem:[%s2239 + $0x104] sm:$0xff]
        %v4801 = vld [vmem:[%s2239 + $0x10c] sm:$0xff]
        %v4802 = vld [vmem:[%s2239 + $0x114] sm:$0xf]
        %v4803 = vunpack.c.l.bf16 %v4795
        %v4804 = vunpack.c.h.bf16 %v4795
        %v4805 = vunpack.c.l.bf16 %v4796
        %v4806 = vunpack.c.h.bf16 %v4796
        %v4807 = vunpack.c.l.bf16 %v4797
        %v4808 = vunpack.c.h.bf16 %v4797
        %v4809 = vunpack.c.l.bf16 %v4798
        %v4810 = vunpack.c.l.bf16 %v4799
        %v4811 = vunpack.c.h.bf16 %v4799
        %v4812 = vunpack.c.l.bf16 %v4800
        %v4813 = vunpack.c.h.bf16 %v4800
        %v4814 = vunpack.c.l.bf16 %v4801
        %v4815 = vunpack.c.h.bf16 %v4801
        %v4816 = vunpack.c.l.bf16 %v4802
        %v4817 = vld [vmem:[%s2264 + $0x38] sm:$0xff]
        %v4818 = vld [vmem:[%s2264 + $0x40] sm:$0xff]
        %v4819 = vld [vmem:[%s2264 + $0x48] sm:$0xff]
        %v4820 = vld [vmem:[%s2264 + $0x50] sm:$0xf]
        %v4821 = vld [vmem:[%s2264 + $0xfc] sm:$0xff]
        %v4822 = vld [vmem:[%s2264 + $0x104] sm:$0xff]
        %v4823 = vld [vmem:[%s2264 + $0x10c] sm:$0xff]
        %v4824 = vld [vmem:[%s2264 + $0x114] sm:$0xf]
        %v4825 = vunpack.c.l.bf16 %v4817
        %v4826 = vunpack.c.h.bf16 %v4817
        %v4827 = vunpack.c.l.bf16 %v4818
        %v4828 = vunpack.c.h.bf16 %v4818
        %v4829 = vunpack.c.l.bf16 %v4819
        %v4830 = vunpack.c.h.bf16 %v4819
        %v4831 = vunpack.c.l.bf16 %v4820
        %v4832 = vunpack.c.l.bf16 %v4821
        %v4833 = vunpack.c.h.bf16 %v4821
        %v4834 = vunpack.c.l.bf16 %v4822
        %v4835 = vunpack.c.h.bf16 %v4822
        %v4836 = vunpack.c.l.bf16 %v4823
        %v4837 = vunpack.c.h.bf16 %v4823
        %v4838 = vunpack.c.l.bf16 %v4824
        %v4839 = vmul.f32 %v4781, %v4803
        %v4840 = vmul.f32 %v4782, %v4804
        %v4841 = vmul.f32 %v4783, %v4805
        %v4842 = vmul.f32 %v4784, %v4806
        %v4843 = vmul.f32 %v4785, %v4807
        %v4844 = vmul.f32 %v4786, %v4808
        %v4845 = vmul.f32 %v4787, %v4809
        %v4846 = vmul.f32 %v4788, %v4810
        %v4847 = vmul.f32 %v4789, %v4811
        %v4848 = vmul.f32 %v4790, %v4812
        %v4849 = vmul.f32 %v4791, %v4813
        %v4850 = vmul.f32 %v4792, %v4814
        %v4851 = vmul.f32 %v4793, %v4815
        %v4852 = vmul.f32 %v4794, %v4816
        %v4853 = vadd.f32 %v4839, %v4840
        %v4854 = vadd.f32 %v4853, %v4841
        %v4855 = vadd.f32 %v4854, %v4842
        %v4856 = vadd.f32 %v4855, %v4843
        %v4857 = vadd.f32 %v4856, %v4844
        %v4858 = vadd.f32 %v4857, %v4845
        %v4859 = vadd.f32 %v4858, %v4846
        %v4860 = vadd.f32 %v4859, %v4847
        %v4861 = vadd.f32 %v4860, %v4848
        %v4862 = vadd.f32 %v4861, %v4849
        %v4863 = vadd.f32 %v4862, %v4850
        %v4864 = vadd.f32 %v4863, %v4851
        %v4865 = vadd.f32 %v4864, %v4852
        %4866 = vadd.xlane.f32.xlu0 %v4865
        %v4867 = vpop.xlane.xlu0 %4866
        %v4868 = vrot.slane %v4867, 4
        %v4869 = vadd.f32 %v4867, %v4868
        %v4870 = vrot.slane %v4869, 2
        %v4871 = vadd.f32 %v4869, %v4870
        %v4872 = vrot.slane %v4871, 1
        %v4873 = vadd.f32 %v4871, %v4872
        %s4874 = vtos %v4873
        %s4875 = sadd.f32 %s3599, %s4874
        %v4876 = vmul.f32 %v4781, %v4825
        %v4877 = vmul.f32 %v4782, %v4826
        %v4878 = vmul.f32 %v4783, %v4827
        %v4879 = vmul.f32 %v4784, %v4828
        %v4880 = vmul.f32 %v4785, %v4829
        %v4881 = vmul.f32 %v4786, %v4830
        %v4882 = vmul.f32 %v4787, %v4831
        %v4883 = vmul.f32 %v4788, %v4832
        %v4884 = vmul.f32 %v4789, %v4833
        %v4885 = vmul.f32 %v4790, %v4834
        %v4886 = vmul.f32 %v4791, %v4835
        %v4887 = vmul.f32 %v4792, %v4836
        %v4888 = vmul.f32 %v4793, %v4837
        %v4889 = vmul.f32 %v4794, %v4838
        %v4890 = vadd.f32 %v4876, %v4877
        %v4891 = vadd.f32 %v4890, %v4878
        %v4892 = vadd.f32 %v4891, %v4879
        %v4893 = vadd.f32 %v4892, %v4880
        %v4894 = vadd.f32 %v4893, %v4881
        %v4895 = vadd.f32 %v4894, %v4882
        %v4896 = vadd.f32 %v4895, %v4883
        %v4897 = vadd.f32 %v4896, %v4884
        %v4898 = vadd.f32 %v4897, %v4885
        %v4899 = vadd.f32 %v4898, %v4886
        %v4900 = vadd.f32 %v4899, %v4887
        %v4901 = vadd.f32 %v4900, %v4888
        %v4902 = vadd.f32 %v4901, %v4889
        %4903 = vadd.xlane.f32.xlu0 %v4902
        %v4904 = vpop.xlane.xlu0 %4903
        %v4905 = vrot.slane %v4904, 4
        %v4906 = vadd.f32 %v4904, %v4905
        %v4907 = vrot.slane %v4906, 2
        %v4908 = vadd.f32 %v4906, %v4907
        %v4909 = vrot.slane %v4908, 1
        %v4910 = vadd.f32 %v4908, %v4909
        %s4911 = vtos %v4910
        %s4912 = sadd.f32 %s3636, %s4911
        %v4913 = vld [vmem:[%s1015 + $0x54] sm:$0xff]
        %v4914 = vld [vmem:[%s1015 + $0x5c] sm:$0xff]
        %v4915 = vld [vmem:[%s1015 + $0x64] sm:$0xff]
        %v4916 = vld [vmem:[%s1015 + $0x6c] sm:$0xf]
        %v4917 = vld [vmem:[%s1015 + $0x118] sm:$0xff]
        %v4918 = vld [vmem:[%s1015 + $0x120] sm:$0xff]
        %v4919 = vld [vmem:[%s1015 + $0x128] sm:$0xff]
        %v4920 = vld [vmem:[%s1015 + $0x130] sm:$0xf]
        %v4921 = vld [vmem:[%s1015 + $0x1dc] sm:$0xff]
        %v4922 = vld [vmem:[%s1015 + $0x1e4] sm:$0xff]
        %v4923 = vld [vmem:[%s1015 + $0x1ec] sm:$0xff]
        %v4924 = vld [vmem:[%s1015 + $0x1f4] sm:$0xf]
        %v4925 = vld [vmem:[%s1015 + $0x2a0] sm:$0x33]
        %v4926 = vld [vmem:[%s1015 + $0x2a8] sm:$0x33]
        %v4927 = vld [vmem:[%s1015 + $0x2b0] sm:$0x33]
        %v4928 = vld [vmem:[%s1015 + $0x2b8] sm:$0x3]
        %v4945 = vunpack.c.l.b16 %v4913
        %v4946 = vunpack.c.h.b16 %v4913
        %v4947 = vunpack.c.l.b16 %v4914
        %v4948 = vunpack.c.h.b16 %v4914
        %v4949 = vunpack.c.l.b16 %v4915
        %v4950 = vunpack.c.h.b16 %v4915
        %v4951 = vunpack.c.l.b16 %v4916
        %v4952 = vunpack.c.l.b16 %v4917
        %v4953 = vunpack.c.h.b16 %v4917
        %v4954 = vunpack.c.l.b16 %v4918
        %v4955 = vunpack.c.h.b16 %v4918
        %v4956 = vunpack.c.l.b16 %v4919
        %v4957 = vunpack.c.h.b16 %v4919
        %v4958 = vunpack.c.l.b16 %v4920
        %v4959 = vunpack.c.l.b16 %v4921
        %v4960 = vunpack.c.h.b16 %v4921
        %v4961 = vunpack.c.l.b16 %v4922
        %v4962 = vunpack.c.h.b16 %v4922
        %v4963 = vunpack.c.l.b16 %v4923
        %v4964 = vunpack.c.h.b16 %v4923
        %v4965 = vunpack.c.l.b16 %v4924
        %v4966 = vunpack.c.l.b16 %v4925
        %v4967 = vunpack.c.h.b16 %v4925
        %v4968 = vunpack.c.l.b16 %v4926
        %v4969 = vunpack.c.h.b16 %v4926
        %v4970 = vunpack.c.l.b16 %v4927
        %v4971 = vunpack.c.h.b16 %v4927
        %v4972 = vunpack.c.l.b16 %v4928
        %v4973 = vpack.c.b16 %v4952, %v4945
        %v4974 = vpack.c.b16 %v4953, %v4946
        %v4975 = vpack.c.b16 %v4954, %v4947
        %v4976 = vpack.c.b16 %v4955, %v4948
        %v4977 = vpack.c.b16 %v4956, %v4949
        %v4978 = vpack.c.b16 %v4957, %v4950
        %v4979 = vpack.c.b16 %v4958, %v4951
        %v4980 = vpack.c.b16 %v4966, %v4959
        %v4981 = vpack.c.b16 %v4967, %v4960
        %v4982 = vpack.c.b16 %v4968, %v4961
        %v4983 = vpack.c.b16 %v4969, %v4962
        %v4984 = vpack.c.b16 %v4970, %v4963
        %v4985 = vpack.c.b16 %v4971, %v4964
        %v4986 = vpack.c.b16 %v4972, %v4965
        %v4995 = vand.u32 %v4980, %v1146
        %v4998 = vand.u32 %v4981, %v1146
        %v5001 = vand.u32 %v4982, %v1146
        %v5004 = vand.u32 %v4983, %v1146
        %v5007 = vand.u32 %v4984, %v1146
        %v5010 = vand.u32 %v4985, %v1146
        %v5013 = vand.u32 %v4986, %v1146
        %5015 = vmatprep.subr.bf16.mxu0 %v4974
        %5016 = vmatpush1.bf16.msra.mxu0 %v4973
        %5017 = vmatprep.subr.bf16.mxu0 %v4998
        %5018 = vmatpush1.bf16.msra.mxu0 %v4995
        %5019 = vmatprep.subr.bf16.mxu0 0
        %5020 = vmatpush1.bf16.msra.mxu0 0
        %5021 = vmatprep.subr.bf16.mxu0 0
        %5022 = vmatpush1.bf16.msra.mxu0 0
        %5023 = vmatprep.subr.bf16.mxu0 0
        %5024 = vmatpush1.bf16.msra.mxu0 0
        %5025 = vmatprep.subr.bf16.mxu0 0
        %5026 = vmatpush1.bf16.msra.mxu0 0
        %5027 = vmatprep.subr.bf16.mxu0 0
        %5028 = vmatpush1.bf16.msra.mxu0 0
        %5029 = vmatprep.subr.bf16.mxu0 0
        %5030 = vmatpush1.bf16.msra.mxu0 0
        %5031 = vmatprep.subr.bf16.mxu0 0
        %5032 = vmatpush1.bf16.msra.mxu0 0
        %5033 = vmatprep.subr.bf16.mxu0 0
        %5034 = vmatpush1.bf16.msra.mxu0 0
        %5035 = vmatprep.subr.bf16.mxu0 0
        %5036 = vmatpush1.bf16.msra.mxu0 0
        %5037 = vmatprep.subr.bf16.mxu0 0
        %5038 = vmatpush1.bf16.msra.mxu0 0
        %5039 = vmatprep.subr.bf16.mxu0 0
        %5040 = vmatpush1.bf16.msra.mxu0 0
        %5041 = vmatprep.subr.bf16.mxu0 0
        %5042 = vmatpush1.bf16.msra.mxu0 0
        %5043 = vmatprep.subr.bf16.mxu0 0
        %5044 = vmatpush1.bf16.msra.mxu0 0
        %5045 = vmatprep.subr.bf16.mxu0 0
        %5046 = vmatpush1.bf16.msra.mxu0 0
        %5047 = vmatprep.mubr.bf16.mxu0 0
        %5048 = vmatmul.mubr.bf16.gmra.mrb[0].mxu0 %v1141
        %v5049 = vpop.f32.mrb[0].mxu0
        %v5050 = vadd.f32 0.0, %v5049
        %v5051 = vpop.f32.mrb[0].mxu0
        %v5052 = vadd.f32 0.0, %v5051
        %v5053 = vpop.f32.mrb[0].mxu0
        %v5054 = vadd.f32 0.0, %v5053
        %v5055 = vpop.f32.mrb[0].mxu0
        %v5056 = vadd.f32 0.0, %v5055
        %5057 = vdwg.mxu0
        %5058 = vmatprep.subr.bf16.mxu0 %v4976
        %5059 = vmatpush1.bf16.msra.mxu0 %v4975
        %5060 = vmatprep.subr.bf16.mxu0 %v5004
        %5061 = vmatpush1.bf16.msra.mxu0 %v5001
        %5062 = vmatprep.subr.bf16.mxu0 0
        %5063 = vmatpush1.bf16.msra.mxu0 0
        %5064 = vmatprep.subr.bf16.mxu0 0
        %5065 = vmatpush1.bf16.msra.mxu0 0
        %5066 = vmatprep.subr.bf16.mxu0 0
        %5067 = vmatpush1.bf16.msra.mxu0 0
        %5068 = vmatprep.subr.bf16.mxu0 0
        %5069 = vmatpush1.bf16.msra.mxu0 0
        %5070 = vmatprep.subr.bf16.mxu0 0
        %5071 = vmatpush1.bf16.msra.mxu0 0
        %5072 = vmatprep.subr.bf16.mxu0 0
        %5073 = vmatpush1.bf16.msra.mxu0 0
        %5074 = vmatprep.subr.bf16.mxu0 0
        %5075 = vmatpush1.bf16.msra.mxu0 0
        %5076 = vmatprep.subr.bf16.mxu0 0
        %5077 = vmatpush1.bf16.msra.mxu0 0
        %5078 = vmatprep.subr.bf16.mxu0 0
        %5079 = vmatpush1.bf16.msra.mxu0 0
        %5080 = vmatprep.subr.bf16.mxu0 0
        %5081 = vmatpush1.bf16.msra.mxu0 0
        %5082 = vmatprep.subr.bf16.mxu0 0
        %5083 = vmatpush1.bf16.msra.mxu0 0
        %5084 = vmatprep.subr.bf16.mxu0 0
        %5085 = vmatpush1.bf16.msra.mxu0 0
        %5086 = vmatprep.subr.bf16.mxu0 0
        %5087 = vmatpush1.bf16.msra.mxu0 0
        %5088 = vmatprep.subr.bf16.mxu0 0
        %5089 = vmatpush1.bf16.msra.mxu0 0
        %5090 = vmatprep.mubr.bf16.mxu0 0
        %5091 = vmatmul.mubr.bf16.gmra.mrb[0].mxu0 %v1141
        %v5092 = vpop.f32.mrb[0].mxu0
        %v5093 = vadd.f32 0.0, %v5092
        %v5094 = vpop.f32.mrb[0].mxu0
        %v5095 = vadd.f32 0.0, %v5094
        %v5096 = vpop.f32.mrb[0].mxu0
        %v5097 = vadd.f32 0.0, %v5096
        %v5098 = vpop.f32.mrb[0].mxu0
        %v5099 = vadd.f32 0.0, %v5098
        %5100 = vdwg.mxu0
        %5101 = vmatprep.subr.bf16.mxu0 %v4978
        %5102 = vmatpush1.bf16.msra.mxu0 %v4977
        %5103 = vmatprep.subr.bf16.mxu0 %v5010
        %5104 = vmatpush1.bf16.msra.mxu0 %v5007
        %5105 = vmatprep.subr.bf16.mxu0 0
        %5106 = vmatpush1.bf16.msra.mxu0 0
        %5107 = vmatprep.subr.bf16.mxu0 0
        %5108 = vmatpush1.bf16.msra.mxu0 0
        %5109 = vmatprep.subr.bf16.mxu0 0
        %5110 = vmatpush1.bf16.msra.mxu0 0
        %5111 = vmatprep.subr.bf16.mxu0 0
        %5112 = vmatpush1.bf16.msra.mxu0 0
        %5113 = vmatprep.subr.bf16.mxu0 0
        %5114 = vmatpush1.bf16.msra.mxu0 0
        %5115 = vmatprep.subr.bf16.mxu0 0
        %5116 = vmatpush1.bf16.msra.mxu0 0
        %5117 = vmatprep.subr.bf16.mxu0 0
        %5118 = vmatpush1.bf16.msra.mxu0 0
        %5119 = vmatprep.subr.bf16.mxu0 0
        %5120 = vmatpush1.bf16.msra.mxu0 0
        %5121 = vmatprep.subr.bf16.mxu0 0
        %5122 = vmatpush1.bf16.msra.mxu0 0
        %5123 = vmatprep.subr.bf16.mxu0 0
        %5124 = vmatpush1.bf16.msra.mxu0 0
        %5125 = vmatprep.subr.bf16.mxu0 0
        %5126 = vmatpush1.bf16.msra.mxu0 0
        %5127 = vmatprep.subr.bf16.mxu0 0
        %5128 = vmatpush1.bf16.msra.mxu0 0
        %5129 = vmatprep.subr.bf16.mxu0 0
        %5130 = vmatpush1.bf16.msra.mxu0 0
        %5131 = vmatprep.subr.bf16.mxu0 0
        %5132 = vmatpush1.bf16.msra.mxu0 0
        %5133 = vmatprep.mubr.bf16.mxu0 0
        %5134 = vmatmul.mubr.bf16.gmra.mrb[0].mxu0 %v1141
        %v5135 = vpop.f32.mrb[0].mxu0
        %v5136 = vadd.f32 0.0, %v5135
        %v5137 = vpop.f32.mrb[0].mxu0
        %v5138 = vadd.f32 0.0, %v5137
        %v5139 = vpop.f32.mrb[0].mxu0
        %v5140 = vadd.f32 0.0, %v5139
        %v5141 = vpop.f32.mrb[0].mxu0
        %v5142 = vadd.f32 0.0, %v5141
        %5143 = vdwg.mxu0
        %5144 = vmatprep.subr.bf16.mxu0 0
        %5145 = vmatpush1.bf16.msra.mxu0 %v4979
        %5146 = vmatprep.subr.bf16.mxu0 0
        %5147 = vmatpush1.bf16.msra.mxu0 %v5013
        %5148 = vmatprep.subr.bf16.mxu0 0
        %5149 = vmatpush1.bf16.msra.mxu0 0
        %5150 = vmatprep.subr.bf16.mxu0 0
        %5151 = vmatpush1.bf16.msra.mxu0 0
        %5152 = vmatprep.subr.bf16.mxu0 0
        %5153 = vmatpush1.bf16.msra.mxu0 0
        %5154 = vmatprep.subr.bf16.mxu0 0
        %5155 = vmatpush1.bf16.msra.mxu0 0
        %5156 = vmatprep.subr.bf16.mxu0 0
        %5157 = vmatpush1.bf16.msra.mxu0 0
        %5158 = vmatprep.subr.bf16.mxu0 0
        %5159 = vmatpush1.bf16.msra.mxu0 0
        %5160 = vmatprep.subr.bf16.mxu0 0
        %5161 = vmatpush1.bf16.msra.mxu0 0
        %5162 = vmatprep.subr.bf16.mxu0 0
        %5163 = vmatpush1.bf16.msra.mxu0 0
        %5164 = vmatprep.subr.bf16.mxu0 0
        %5165 = vmatpush1.bf16.msra.mxu0 0
        %5166 = vmatprep.subr.bf16.mxu0 0
        %5167 = vmatpush1.bf16.msra.mxu0 0
        %5168 = vmatprep.subr.bf16.mxu0 0
        %5169 = vmatpush1.bf16.msra.mxu0 0
        %5170 = vmatprep.subr.bf16.mxu0 0
        %5171 = vmatpush1.bf16.msra.mxu0 0
        %5172 = vmatprep.subr.bf16.mxu0 0
        %5173 = vmatpush1.bf16.msra.mxu0 0
        %5174 = vmatprep.subr.bf16.mxu0 0
        %5175 = vmatpush1.bf16.msra.mxu0 0
        %5176 = vmatprep.mubr.bf16.mxu0 0
        %5177 = vmatmul.mubr.bf16.gmra.mrb[0].mxu0 %v1141
        %v5178 = vpop.f32.mrb[0].mxu0
        %v5179 = vadd.f32 0.0, %v5178
        %v5180 = vpop.f32.mrb[0].mxu0
        %v5181 = vpop.f32.mrb[0].mxu0
        %v5182 = vadd.f32 0.0, %v5181
        %v5183 = vpop.f32.mrb[0].mxu0
        %5184 = vdwg.mxu0
        %v5185 = vld [vmem:[%s1338 + $0x54] sm:$0xff]
        %v5186 = vld [vmem:[%s1338 + $0x5c] sm:$0xff]
        %v5187 = vld [vmem:[%s1338 + $0x64] sm:$0xff]
        %v5188 = vld [vmem:[%s1338 + $0x6c] sm:$0xf]
        %v5189 = vld [vmem:[%s1338 + $0x118] sm:$0xff]
        %v5190 = vld [vmem:[%s1338 + $0x120] sm:$0xff]
        %v5191 = vld [vmem:[%s1338 + $0x128] sm:$0xff]
        %v5192 = vld [vmem:[%s1338 + $0x130] sm:$0xf]
        %v5193 = vld [vmem:[%s1338 + $0x1dc] sm:$0xff]
        %v5194 = vld [vmem:[%s1338 + $0x1e4] sm:$0xff]
        %v5195 = vld [vmem:[%s1338 + $0x1ec] sm:$0xff]
        %v5196 = vld [vmem:[%s1338 + $0x1f4] sm:$0xf]
        %v5197 = vld [vmem:[%s1338 + $0x2a0] sm:$0x33]
        %v5198 = vld [vmem:[%s1338 + $0x2a8] sm:$0x33]
        %v5199 = vld [vmem:[%s1338 + $0x2b0] sm:$0x33]
        %v5200 = vld [vmem:[%s1338 + $0x2b8] sm:$0x3]
        %v5217 = vunpack.c.l.b16 %v5185
        %v5218 = vunpack.c.h.b16 %v5185
        %v5219 = vunpack.c.l.b16 %v5186
        %v5220 = vunpack.c.h.b16 %v5186
        %v5221 = vunpack.c.l.b16 %v5187
        %v5222 = vunpack.c.h.b16 %v5187
        %v5223 = vunpack.c.l.b16 %v5188
        %v5224 = vunpack.c.l.b16 %v5189
        %v5225 = vunpack.c.h.b16 %v5189
        %v5226 = vunpack.c.l.b16 %v5190
        %v5227 = vunpack.c.h.b16 %v5190
        %v5228 = vunpack.c.l.b16 %v5191
        %v5229 = vunpack.c.h.b16 %v5191
        %v5230 = vunpack.c.l.b16 %v5192
        %v5231 = vunpack.c.l.b16 %v5193
        %v5232 = vunpack.c.h.b16 %v5193
        %v5233 = vunpack.c.l.b16 %v5194
        %v5234 = vunpack.c.h.b16 %v5194
        %v5235 = vunpack.c.l.b16 %v5195
        %v5236 = vunpack.c.h.b16 %v5195
        %v5237 = vunpack.c.l.b16 %v5196
        %v5238 = vunpack.c.l.b16 %v5197
        %v5239 = vunpack.c.h.b16 %v5197
        %v5240 = vunpack.c.l.b16 %v5198
        %v5241 = vunpack.c.h.b16 %v5198
        %v5242 = vunpack.c.l.b16 %v5199
        %v5243 = vunpack.c.h.b16 %v5199
        %v5244 = vunpack.c.l.b16 %v5200
        %v5245 = vpack.c.b16 %v5224, %v5217
        %v5246 = vpack.c.b16 %v5225, %v5218
        %v5247 = vpack.c.b16 %v5226, %v5219
        %v5248 = vpack.c.b16 %v5227, %v5220
        %v5249 = vpack.c.b16 %v5228, %v5221
        %v5250 = vpack.c.b16 %v5229, %v5222
        %v5251 = vpack.c.b16 %v5230, %v5223
        %v5252 = vpack.c.b16 %v5238, %v5231
        %v5253 = vpack.c.b16 %v5239, %v5232
        %v5254 = vpack.c.b16 %v5240, %v5233
        %v5255 = vpack.c.b16 %v5241, %v5234
        %v5256 = vpack.c.b16 %v5242, %v5235
        %v5257 = vpack.c.b16 %v5243, %v5236
        %v5258 = vpack.c.b16 %v5244, %v5237
        %v5267 = vand.u32 %v5252, %v1146
        %v5270 = vand.u32 %v5253, %v1146
        %v5273 = vand.u32 %v5254, %v1146
        %v5276 = vand.u32 %v5255, %v1146
        %v5279 = vand.u32 %v5256, %v1146
        %v5282 = vand.u32 %v5257, %v1146
        %v5285 = vand.u32 %v5258, %v1146
        %5287 = vmatprep.subr.bf16.mxu0 %v5246
        %5288 = vmatpush1.bf16.msra.mxu0 %v5245
        %5289 = vmatprep.subr.bf16.mxu0 %v5270
        %5290 = vmatpush1.bf16.msra.mxu0 %v5267
        %5291 = vmatprep.subr.bf16.mxu0 0
        %5292 = vmatpush1.bf16.msra.mxu0 0
        %5293 = vmatprep.subr.bf16.mxu0 0
        %5294 = vmatpush1.bf16.msra.mxu0 0
        %5295 = vmatprep.subr.bf16.mxu0 0
        %5296 = vmatpush1.bf16.msra.mxu0 0
        %5297 = vmatprep.subr.bf16.mxu0 0
        %5298 = vmatpush1.bf16.msra.mxu0 0
        %5299 = vmatprep.subr.bf16.mxu0 0
        %5300 = vmatpush1.bf16.msra.mxu0 0
        %5301 = vmatprep.subr.bf16.mxu0 0
        %5302 = vmatpush1.bf16.msra.mxu0 0
        %5303 = vmatprep.subr.bf16.mxu0 0
        %5304 = vmatpush1.bf16.msra.mxu0 0
        %5305 = vmatprep.subr.bf16.mxu0 0
        %5306 = vmatpush1.bf16.msra.mxu0 0
        %5307 = vmatprep.subr.bf16.mxu0 0
        %5308 = vmatpush1.bf16.msra.mxu0 0
        %5309 = vmatprep.subr.bf16.mxu0 0
        %5310 = vmatpush1.bf16.msra.mxu0 0
        %5311 = vmatprep.subr.bf16.mxu0 0
        %5312 = vmatpush1.bf16.msra.mxu0 0
        %5313 = vmatprep.subr.bf16.mxu0 0
        %5314 = vmatpush1.bf16.msra.mxu0 0
        %5315 = vmatprep.subr.bf16.mxu0 0
        %5316 = vmatpush1.bf16.msra.mxu0 0
        %5317 = vmatprep.subr.bf16.mxu0 0
        %5318 = vmatpush1.bf16.msra.mxu0 0
        %5319 = vmatprep.mubr.bf16.mxu0 0
        %5320 = vmatmul.mubr.bf16.gmra.mrb[0].mxu0 %v1141
        %v5321 = vpop.f32.mrb[0].mxu0
        %v5322 = vadd.f32 0.0, %v5321
        %v5323 = vpop.f32.mrb[0].mxu0
        %v5324 = vadd.f32 0.0, %v5323
        %v5325 = vpop.f32.mrb[0].mxu0
        %v5326 = vadd.f32 0.0, %v5325
        %v5327 = vpop.f32.mrb[0].mxu0
        %v5328 = vadd.f32 0.0, %v5327
        %5329 = vdwg.mxu0
        %5330 = vmatprep.subr.bf16.mxu0 %v5248
        %5331 = vmatpush1.bf16.msra.mxu0 %v5247
        %5332 = vmatprep.subr.bf16.mxu0 %v5276
        %5333 = vmatpush1.bf16.msra.mxu0 %v5273
        %5334 = vmatprep.subr.bf16.mxu0 0
        %5335 = vmatpush1.bf16.msra.mxu0 0
        %5336 = vmatprep.subr.bf16.mxu0 0
        %5337 = vmatpush1.bf16.msra.mxu0 0
        %5338 = vmatprep.subr.bf16.mxu0 0
        %5339 = vmatpush1.bf16.msra.mxu0 0
        %5340 = vmatprep.subr.bf16.mxu0 0
        %5341 = vmatpush1.bf16.msra.mxu0 0
        %5342 = vmatprep.subr.bf16.mxu0 0
        %5343 = vmatpush1.bf16.msra.mxu0 0
        %5344 = vmatprep.subr.bf16.mxu0 0
        %5345 = vmatpush1.bf16.msra.mxu0 0
        %5346 = vmatprep.subr.bf16.mxu0 0
        %5347 = vmatpush1.bf16.msra.mxu0 0
        %5348 = vmatprep.subr.bf16.mxu0 0
        %5349 = vmatpush1.bf16.msra.mxu0 0
        %5350 = vmatprep.subr.bf16.mxu0 0
        %5351 = vmatpush1.bf16.msra.mxu0 0
        %5352 = vmatprep.subr.bf16.mxu0 0
        %5353 = vmatpush1.bf16.msra.mxu0 0
        %5354 = vmatprep.subr.bf16.mxu0 0
        %5355 = vmatpush1.bf16.msra.mxu0 0
        %5356 = vmatprep.subr.bf16.mxu0 0
        %5357 = vmatpush1.bf16.msra.mxu0 0
        %5358 = vmatprep.subr.bf16.mxu0 0
        %5359 = vmatpush1.bf16.msra.mxu0 0
        %5360 = vmatprep.subr.bf16.mxu0 0
        %5361 = vmatpush1.bf16.msra.mxu0 0
        %5362 = vmatprep.mubr.bf16.mxu0 0
        %5363 = vmatmul.mubr.bf16.gmra.mrb[0].mxu0 %v1141
        %v5364 = vpop.f32.mrb[0].mxu0
        %v5365 = vadd.f32 0.0, %v5364
        %v5366 = vpop.f32.mrb[0].mxu0
        %v5367 = vadd.f32 0.0, %v5366
        %v5368 = vpop.f32.mrb[0].mxu0
        %v5369 = vadd.f32 0.0, %v5368
        %v5370 = vpop.f32.mrb[0].mxu0
        %v5371 = vadd.f32 0.0, %v5370
        %5372 = vdwg.mxu0
        %5373 = vmatprep.subr.bf16.mxu0 %v5250
        %5374 = vmatpush1.bf16.msra.mxu0 %v5249
        %5375 = vmatprep.subr.bf16.mxu0 %v5282
        %5376 = vmatpush1.bf16.msra.mxu0 %v5279
        %5377 = vmatprep.subr.bf16.mxu0 0
        %5378 = vmatpush1.bf16.msra.mxu0 0
        %5379 = vmatprep.subr.bf16.mxu0 0
        %5380 = vmatpush1.bf16.msra.mxu0 0
        %5381 = vmatprep.subr.bf16.mxu0 0
        %5382 = vmatpush1.bf16.msra.mxu0 0
        %5383 = vmatprep.subr.bf16.mxu0 0
        %5384 = vmatpush1.bf16.msra.mxu0 0
        %5385 = vmatprep.subr.bf16.mxu0 0
        %5386 = vmatpush1.bf16.msra.mxu0 0
        %5387 = vmatprep.subr.bf16.mxu0 0
        %5388 = vmatpush1.bf16.msra.mxu0 0
        %5389 = vmatprep.subr.bf16.mxu0 0
        %5390 = vmatpush1.bf16.msra.mxu0 0
        %5391 = vmatprep.subr.bf16.mxu0 0
        %5392 = vmatpush1.bf16.msra.mxu0 0
        %5393 = vmatprep.subr.bf16.mxu0 0
        %5394 = vmatpush1.bf16.msra.mxu0 0
        %5395 = vmatprep.subr.bf16.mxu0 0
        %5396 = vmatpush1.bf16.msra.mxu0 0
        %5397 = vmatprep.subr.bf16.mxu0 0
        %5398 = vmatpush1.bf16.msra.mxu0 0
        %5399 = vmatprep.subr.bf16.mxu0 0
        %5400 = vmatpush1.bf16.msra.mxu0 0
        %5401 = vmatprep.subr.bf16.mxu0 0
        %5402 = vmatpush1.bf16.msra.mxu0 0
        %5403 = vmatprep.subr.bf16.mxu0 0
        %5404 = vmatpush1.bf16.msra.mxu0 0
        %5405 = vmatprep.mubr.bf16.mxu0 0
        %5406 = vmatmul.mubr.bf16.gmra.mrb[0].mxu0 %v1141
        %v5407 = vpop.f32.mrb[0].mxu0
        %v5408 = vadd.f32 0.0, %v5407
        %v5409 = vpop.f32.mrb[0].mxu0
        %v5410 = vadd.f32 0.0, %v5409
        %v5411 = vpop.f32.mrb[0].mxu0
        %v5412 = vadd.f32 0.0, %v5411
        %v5413 = vpop.f32.mrb[0].mxu0
        %v5414 = vadd.f32 0.0, %v5413
        %5415 = vdwg.mxu0
        %5416 = vmatprep.subr.bf16.mxu0 0
        %5417 = vmatpush1.bf16.msra.mxu0 %v5251
        %5418 = vmatprep.subr.bf16.mxu0 0
        %5419 = vmatpush1.bf16.msra.mxu0 %v5285
        %5420 = vmatprep.subr.bf16.mxu0 0
        %5421 = vmatpush1.bf16.msra.mxu0 0
        %5422 = vmatprep.subr.bf16.mxu0 0
        %5423 = vmatpush1.bf16.msra.mxu0 0
        %5424 = vmatprep.subr.bf16.mxu0 0
        %5425 = vmatpush1.bf16.msra.mxu0 0
        %5426 = vmatprep.subr.bf16.mxu0 0
        %5427 = vmatpush1.bf16.msra.mxu0 0
        %5428 = vmatprep.subr.bf16.mxu0 0
        %5429 = vmatpush1.bf16.msra.mxu0 0
        %5430 = vmatprep.subr.bf16.mxu0 0
        %5431 = vmatpush1.bf16.msra.mxu0 0
        %5432 = vmatprep.subr.bf16.mxu0 0
        %5433 = vmatpush1.bf16.msra.mxu0 0
        %5434 = vmatprep.subr.bf16.mxu0 0
        %5435 = vmatpush1.bf16.msra.mxu0 0
        %5436 = vmatprep.subr.bf16.mxu0 0
        %5437 = vmatpush1.bf16.msra.mxu0 0
        %5438 = vmatprep.subr.bf16.mxu0 0
        %5439 = vmatpush1.bf16.msra.mxu0 0
        %5440 = vmatprep.subr.bf16.mxu0 0
        %5441 = vmatpush1.bf16.msra.mxu0 0
        %5442 = vmatprep.subr.bf16.mxu0 0
        %5443 = vmatpush1.bf16.msra.mxu0 0
        %5444 = vmatprep.subr.bf16.mxu0 0
        %5445 = vmatpush1.bf16.msra.mxu0 0
        %5446 = vmatprep.subr.bf16.mxu0 0
        %5447 = vmatpush1.bf16.msra.mxu0 0
        %5448 = vmatprep.mubr.bf16.mxu0 0
        %5449 = vmatmul.mubr.bf16.gmra.mrb[0].mxu0 %v1141
        %v5450 = vpop.f32.mrb[0].mxu0
        %v5451 = vadd.f32 0.0, %v5450
        %v5452 = vpop.f32.mrb[0].mxu0
        %v5453 = vpop.f32.mrb[0].mxu0
        %v5454 = vadd.f32 0.0, %v5453
        %v5455 = vpop.f32.mrb[0].mxu0
        %5456 = vdwg.mxu0
        %v5457 = vld [vmem:[%s1611 + $0x54] sm:$0xff]
        %v5458 = vld [vmem:[%s1611 + $0x5c] sm:$0xff]
        %v5459 = vld [vmem:[%s1611 + $0x64] sm:$0xff]
        %v5460 = vld [vmem:[%s1611 + $0x6c] sm:$0xf]
        %v5461 = vld [vmem:[%s1611 + $0x118] sm:$0xff]
        %v5462 = vld [vmem:[%s1611 + $0x120] sm:$0xff]
        %v5463 = vld [vmem:[%s1611 + $0x128] sm:$0xff]
        %v5464 = vld [vmem:[%s1611 + $0x130] sm:$0xf]
        %v5465 = vld [vmem:[%s1611 + $0x1dc] sm:$0xff]
        %v5466 = vld [vmem:[%s1611 + $0x1e4] sm:$0xff]
        %v5467 = vld [vmem:[%s1611 + $0x1ec] sm:$0xff]
        %v5468 = vld [vmem:[%s1611 + $0x1f4] sm:$0xf]
        %v5469 = vld [vmem:[%s1611 + $0x2a0] sm:$0x33]
        %v5470 = vld [vmem:[%s1611 + $0x2a8] sm:$0x33]
        %v5471 = vld [vmem:[%s1611 + $0x2b0] sm:$0x33]
        %v5472 = vld [vmem:[%s1611 + $0x2b8] sm:$0x3]
        %v5489 = vunpack.c.l.b16 %v5457
        %v5490 = vunpack.c.h.b16 %v5457
        %v5491 = vunpack.c.l.b16 %v5458
        %v5492 = vunpack.c.h.b16 %v5458
        %v5493 = vunpack.c.l.b16 %v5459
        %v5494 = vunpack.c.h.b16 %v5459
        %v5495 = vunpack.c.l.b16 %v5460
        %v5496 = vunpack.c.l.b16 %v5461
        %v5497 = vunpack.c.h.b16 %v5461
        %v5498 = vunpack.c.l.b16 %v5462
        %v5499 = vunpack.c.h.b16 %v5462
        %v5500 = vunpack.c.l.b16 %v5463
        %v5501 = vunpack.c.h.b16 %v5463
        %v5502 = vunpack.c.l.b16 %v5464
        %v5503 = vunpack.c.l.b16 %v5465
        %v5504 = vunpack.c.h.b16 %v5465
        %v5505 = vunpack.c.l.b16 %v5466
        %v5506 = vunpack.c.h.b16 %v5466
        %v5507 = vunpack.c.l.b16 %v5467
        %v5508 = vunpack.c.h.b16 %v5467
        %v5509 = vunpack.c.l.b16 %v5468
        %v5510 = vunpack.c.l.b16 %v5469
        %v5511 = vunpack.c.h.b16 %v5469
        %v5512 = vunpack.c.l.b16 %v5470
        %v5513 = vunpack.c.h.b16 %v5470
        %v5514 = vunpack.c.l.b16 %v5471
        %v5515 = vunpack.c.h.b16 %v5471
        %v5516 = vunpack.c.l.b16 %v5472
        %v5517 = vpack.c.b16 %v5496, %v5489
        %v5518 = vpack.c.b16 %v5497, %v5490
        %v5519 = vpack.c.b16 %v5498, %v5491
        %v5520 = vpack.c.b16 %v5499, %v5492
        %v5521 = vpack.c.b16 %v5500, %v5493
        %v5522 = vpack.c.b16 %v5501, %v5494
        %v5523 = vpack.c.b16 %v5502, %v5495
        %v5524 = vpack.c.b16 %v5510, %v5503
        %v5525 = vpack.c.b16 %v5511, %v5504
        %v5526 = vpack.c.b16 %v5512, %v5505
        %v5527 = vpack.c.b16 %v5513, %v5506
        %v5528 = vpack.c.b16 %v5514, %v5507
        %v5529 = vpack.c.b16 %v5515, %v5508
        %v5530 = vpack.c.b16 %v5516, %v5509
        %v5539 = vand.u32 %v5524, %v1146
        %v5542 = vand.u32 %v5525, %v1146
        %v5545 = vand.u32 %v5526, %v1146
        %v5548 = vand.u32 %v5527, %v1146
        %v5551 = vand.u32 %v5528, %v1146
        %v5554 = vand.u32 %v5529, %v1146
        %v5557 = vand.u32 %v5530, %v1146
        %5559 = vmatprep.subr.bf16.mxu0 %v5518
        %5560 = vmatpush1.bf16.msra.mxu0 %v5517
        %5561 = vmatprep.subr.bf16.mxu0 %v5542
        %5562 = vmatpush1.bf16.msra.mxu0 %v5539
        %5563 = vmatprep.subr.bf16.mxu0 0
        %5564 = vmatpush1.bf16.msra.mxu0 0
        %5565 = vmatprep.subr.bf16.mxu0 0
        %5566 = vmatpush1.bf16.msra.mxu0 0
        %5567 = vmatprep.subr.bf16.mxu0 0
        %5568 = vmatpush1.bf16.msra.mxu0 0
        %5569 = vmatprep.subr.bf16.mxu0 0
        %5570 = vmatpush1.bf16.msra.mxu0 0
        %5571 = vmatprep.subr.bf16.mxu0 0
        %5572 = vmatpush1.bf16.msra.mxu0 0
        %5573 = vmatprep.subr.bf16.mxu0 0
        %5574 = vmatpush1.bf16.msra.mxu0 0
        %5575 = vmatprep.subr.bf16.mxu0 0
        %5576 = vmatpush1.bf16.msra.mxu0 0
        %5577 = vmatprep.subr.bf16.mxu0 0
        %5578 = vmatpush1.bf16.msra.mxu0 0
        %5579 = vmatprep.subr.bf16.mxu0 0
        %5580 = vmatpush1.bf16.msra.mxu0 0
        %5581 = vmatprep.subr.bf16.mxu0 0
        %5582 = vmatpush1.bf16.msra.mxu0 0
        %5583 = vmatprep.subr.bf16.mxu0 0
        %5584 = vmatpush1.bf16.msra.mxu0 0
        %5585 = vmatprep.subr.bf16.mxu0 0
        %5586 = vmatpush1.bf16.msra.mxu0 0
        %5587 = vmatprep.subr.bf16.mxu0 0
        %5588 = vmatpush1.bf16.msra.mxu0 0
        %5589 = vmatprep.subr.bf16.mxu0 0
        %5590 = vmatpush1.bf16.msra.mxu0 0
        %5591 = vmatprep.mubr.bf16.mxu0 0
        %5592 = vmatmul.mubr.bf16.gmra.mrb[0].mxu0 %v1141
        %v5593 = vpop.f32.mrb[0].mxu0
        %v5594 = vadd.f32 0.0, %v5593
        %v5595 = vpop.f32.mrb[0].mxu0
        %v5596 = vadd.f32 0.0, %v5595
        %v5597 = vpop.f32.mrb[0].mxu0
        %v5598 = vadd.f32 0.0, %v5597
        %v5599 = vpop.f32.mrb[0].mxu0
        %v5600 = vadd.f32 0.0, %v5599
        %5601 = vdwg.mxu0
        %5602 = vmatprep.subr.bf16.mxu0 %v5520
        %5603 = vmatpush1.bf16.msra.mxu0 %v5519
        %5604 = vmatprep.subr.bf16.mxu0 %v5548
        %5605 = vmatpush1.bf16.msra.mxu0 %v5545
        %5606 = vmatprep.subr.bf16.mxu0 0
        %5607 = vmatpush1.bf16.msra.mxu0 0
        %5608 = vmatprep.subr.bf16.mxu0 0
        %5609 = vmatpush1.bf16.msra.mxu0 0
        %5610 = vmatprep.subr.bf16.mxu0 0
        %5611 = vmatpush1.bf16.msra.mxu0 0
        %5612 = vmatprep.subr.bf16.mxu0 0
        %5613 = vmatpush1.bf16.msra.mxu0 0
        %5614 = vmatprep.subr.bf16.mxu0 0
        %5615 = vmatpush1.bf16.msra.mxu0 0
        %5616 = vmatprep.subr.bf16.mxu0 0
        %5617 = vmatpush1.bf16.msra.mxu0 0
        %5618 = vmatprep.subr.bf16.mxu0 0
        %5619 = vmatpush1.bf16.msra.mxu0 0
        %5620 = vmatprep.subr.bf16.mxu0 0
        %5621 = vmatpush1.bf16.msra.mxu0 0
        %5622 = vmatprep.subr.bf16.mxu0 0
        %5623 = vmatpush1.bf16.msra.mxu0 0
        %5624 = vmatprep.subr.bf16.mxu0 0
        %5625 = vmatpush1.bf16.msra.mxu0 0
        %5626 = vmatprep.subr.bf16.mxu0 0
        %5627 = vmatpush1.bf16.msra.mxu0 0
        %5628 = vmatprep.subr.bf16.mxu0 0
        %5629 = vmatpush1.bf16.msra.mxu0 0
        %5630 = vmatprep.subr.bf16.mxu0 0
        %5631 = vmatpush1.bf16.msra.mxu0 0
        %5632 = vmatprep.subr.bf16.mxu0 0
        %5633 = vmatpush1.bf16.msra.mxu0 0
        %5634 = vmatprep.mubr.bf16.mxu0 0
        %5635 = vmatmul.mubr.bf16.gmra.mrb[0].mxu0 %v1141
        %v5636 = vpop.f32.mrb[0].mxu0
        %v5637 = vadd.f32 0.0, %v5636
        %v5638 = vpop.f32.mrb[0].mxu0
        %v5639 = vadd.f32 0.0, %v5638
        %v5640 = vpop.f32.mrb[0].mxu0
        %v5641 = vadd.f32 0.0, %v5640
        %v5642 = vpop.f32.mrb[0].mxu0
        %v5643 = vadd.f32 0.0, %v5642
        %5644 = vdwg.mxu0
        %5645 = vmatprep.subr.bf16.mxu0 %v5522
        %5646 = vmatpush1.bf16.msra.mxu0 %v5521
        %5647 = vmatprep.subr.bf16.mxu0 %v5554
        %5648 = vmatpush1.bf16.msra.mxu0 %v5551
        %5649 = vmatprep.subr.bf16.mxu0 0
        %5650 = vmatpush1.bf16.msra.mxu0 0
        %5651 = vmatprep.subr.bf16.mxu0 0
        %5652 = vmatpush1.bf16.msra.mxu0 0
        %5653 = vmatprep.subr.bf16.mxu0 0
        %5654 = vmatpush1.bf16.msra.mxu0 0
        %5655 = vmatprep.subr.bf16.mxu0 0
        %5656 = vmatpush1.bf16.msra.mxu0 0
        %5657 = vmatprep.subr.bf16.mxu0 0
        %5658 = vmatpush1.bf16.msra.mxu0 0
        %5659 = vmatprep.subr.bf16.mxu0 0
        %5660 = vmatpush1.bf16.msra.mxu0 0
        %5661 = vmatprep.subr.bf16.mxu0 0
        %5662 = vmatpush1.bf16.msra.mxu0 0
        %5663 = vmatprep.subr.bf16.mxu0 0
        %5664 = vmatpush1.bf16.msra.mxu0 0
        %5665 = vmatprep.subr.bf16.mxu0 0
        %5666 = vmatpush1.bf16.msra.mxu0 0
        %5667 = vmatprep.subr.bf16.mxu0 0
        %5668 = vmatpush1.bf16.msra.mxu0 0
        %5669 = vmatprep.subr.bf16.mxu0 0
        %5670 = vmatpush1.bf16.msra.mxu0 0
        %5671 = vmatprep.subr.bf16.mxu0 0
        %5672 = vmatpush1.bf16.msra.mxu0 0
        %5673 = vmatprep.subr.bf16.mxu0 0
        %5674 = vmatpush1.bf16.msra.mxu0 0
        %5675 = vmatprep.subr.bf16.mxu0 0
        %5676 = vmatpush1.bf16.msra.mxu0 0
        %5677 = vmatprep.mubr.bf16.mxu0 0
        %5678 = vmatmul.mubr.bf16.gmra.mrb[0].mxu0 %v1141
        %v5679 = vpop.f32.mrb[0].mxu0
        %v5680 = vadd.f32 0.0, %v5679
        %v5681 = vpop.f32.mrb[0].mxu0
        %v5682 = vadd.f32 0.0, %v5681
        %v5683 = vpop.f32.mrb[0].mxu0
        %v5684 = vadd.f32 0.0, %v5683
        %v5685 = vpop.f32.mrb[0].mxu0
        %v5686 = vadd.f32 0.0, %v5685
        %5687 = vdwg.mxu0
        %5688 = vmatprep.subr.bf16.mxu0 0
        %5689 = vmatpush1.bf16.msra.mxu0 %v5523
        %5690 = vmatprep.subr.bf16.mxu0 0
        %5691 = vmatpush1.bf16.msra.mxu0 %v5557
        %5692 = vmatprep.subr.bf16.mxu0 0
        %5693 = vmatpush1.bf16.msra.mxu0 0
        %5694 = vmatprep.subr.bf16.mxu0 0
        %5695 = vmatpush1.bf16.msra.mxu0 0
        %5696 = vmatprep.subr.bf16.mxu0 0
        %5697 = vmatpush1.bf16.msra.mxu0 0
        %5698 = vmatprep.subr.bf16.mxu0 0
        %5699 = vmatpush1.bf16.msra.mxu0 0
        %5700 = vmatprep.subr.bf16.mxu0 0
        %5701 = vmatpush1.bf16.msra.mxu0 0
        %5702 = vmatprep.subr.bf16.mxu0 0
        %5703 = vmatpush1.bf16.msra.mxu0 0
        %5704 = vmatprep.subr.bf16.mxu0 0
        %5705 = vmatpush1.bf16.msra.mxu0 0
        %5706 = vmatprep.subr.bf16.mxu0 0
        %5707 = vmatpush1.bf16.msra.mxu0 0
        %5708 = vmatprep.subr.bf16.mxu0 0
        %5709 = vmatpush1.bf16.msra.mxu0 0
        %5710 = vmatprep.subr.bf16.mxu0 0
        %5711 = vmatpush1.bf16.msra.mxu0 0
        %5712 = vmatprep.subr.bf16.mxu0 0
        %5713 = vmatpush1.bf16.msra.mxu0 0
        %5714 = vmatprep.subr.bf16.mxu0 0
        %5715 = vmatpush1.bf16.msra.mxu0 0
        %5716 = vmatprep.subr.bf16.mxu0 0
        %5717 = vmatpush1.bf16.msra.mxu0 0
        %5718 = vmatprep.subr.bf16.mxu0 0
        %5719 = vmatpush1.bf16.msra.mxu0 0
        %5720 = vmatprep.mubr.bf16.mxu0 0
        %5721 = vmatmul.mubr.bf16.gmra.mrb[0].mxu0 %v1141
        %v5722 = vpop.f32.mrb[0].mxu0
        %v5723 = vadd.f32 0.0, %v5722
        %v5724 = vpop.f32.mrb[0].mxu0
        %v5725 = vpop.f32.mrb[0].mxu0
        %v5726 = vadd.f32 0.0, %v5725
        %v5727 = vpop.f32.mrb[0].mxu0
        %5728 = vdwg.mxu0
        %v5729 = vld [vmem:[%s1884 + $0x54] sm:$0xff]
        %v5730 = vld [vmem:[%s1884 + $0x5c] sm:$0xff]
        %v5731 = vld [vmem:[%s1884 + $0x64] sm:$0xff]
        %v5732 = vld [vmem:[%s1884 + $0x6c] sm:$0xf]
        %v5733 = vld [vmem:[%s1884 + $0x118] sm:$0xff]
        %v5734 = vld [vmem:[%s1884 + $0x120] sm:$0xff]
        %v5735 = vld [vmem:[%s1884 + $0x128] sm:$0xff]
        %v5736 = vld [vmem:[%s1884 + $0x130] sm:$0xf]
        %v5737 = vld [vmem:[%s1884 + $0x1dc] sm:$0xff]
        %v5738 = vld [vmem:[%s1884 + $0x1e4] sm:$0xff]
        %v5739 = vld [vmem:[%s1884 + $0x1ec] sm:$0xff]
        %v5740 = vld [vmem:[%s1884 + $0x1f4] sm:$0xf]
        %v5741 = vld [vmem:[%s1884 + $0x2a0] sm:$0x33]
        %v5742 = vld [vmem:[%s1884 + $0x2a8] sm:$0x33]
        %v5743 = vld [vmem:[%s1884 + $0x2b0] sm:$0x33]
        %v5744 = vld [vmem:[%s1884 + $0x2b8] sm:$0x3]
        %v5761 = vunpack.c.l.b16 %v5729
        %v5762 = vunpack.c.h.b16 %v5729
        %v5763 = vunpack.c.l.b16 %v5730
        %v5764 = vunpack.c.h.b16 %v5730
        %v5765 = vunpack.c.l.b16 %v5731
        %v5766 = vunpack.c.h.b16 %v5731
        %v5767 = vunpack.c.l.b16 %v5732
        %v5768 = vunpack.c.l.b16 %v5733
        %v5769 = vunpack.c.h.b16 %v5733
        %v5770 = vunpack.c.l.b16 %v5734
        %v5771 = vunpack.c.h.b16 %v5734
        %v5772 = vunpack.c.l.b16 %v5735
        %v5773 = vunpack.c.h.b16 %v5735
        %v5774 = vunpack.c.l.b16 %v5736
        %v5775 = vunpack.c.l.b16 %v5737
        %v5776 = vunpack.c.h.b16 %v5737
        %v5777 = vunpack.c.l.b16 %v5738
        %v5778 = vunpack.c.h.b16 %v5738
        %v5779 = vunpack.c.l.b16 %v5739
        %v5780 = vunpack.c.h.b16 %v5739
        %v5781 = vunpack.c.l.b16 %v5740
        %v5782 = vunpack.c.l.b16 %v5741
        %v5783 = vunpack.c.h.b16 %v5741
        %v5784 = vunpack.c.l.b16 %v5742
        %v5785 = vunpack.c.h.b16 %v5742
        %v5786 = vunpack.c.l.b16 %v5743
        %v5787 = vunpack.c.h.b16 %v5743
        %v5788 = vunpack.c.l.b16 %v5744
        %v5789 = vpack.c.b16 %v5768, %v5761
        %v5790 = vpack.c.b16 %v5769, %v5762
        %v5791 = vpack.c.b16 %v5770, %v5763
        %v5792 = vpack.c.b16 %v5771, %v5764
        %v5793 = vpack.c.b16 %v5772, %v5765
        %v5794 = vpack.c.b16 %v5773, %v5766
        %v5795 = vpack.c.b16 %v5774, %v5767
        %v5796 = vpack.c.b16 %v5782, %v5775
        %v5797 = vpack.c.b16 %v5783, %v5776
        %v5798 = vpack.c.b16 %v5784, %v5777
        %v5799 = vpack.c.b16 %v5785, %v5778
        %v5800 = vpack.c.b16 %v5786, %v5779
        %v5801 = vpack.c.b16 %v5787, %v5780
        %v5802 = vpack.c.b16 %v5788, %v5781
        %v5811 = vand.u32 %v5796, %v1146
        %v5814 = vand.u32 %v5797, %v1146
        %v5817 = vand.u32 %v5798, %v1146
        %v5820 = vand.u32 %v5799, %v1146
        %v5823 = vand.u32 %v5800, %v1146
        %v5826 = vand.u32 %v5801, %v1146
        %v5829 = vand.u32 %v5802, %v1146
        %5831 = vmatprep.subr.bf16.mxu0 %v5790
        %5832 = vmatpush1.bf16.msra.mxu0 %v5789
        %5833 = vmatprep.subr.bf16.mxu0 %v5814
        %5834 = vmatpush1.bf16.msra.mxu0 %v5811
        %5835 = vmatprep.subr.bf16.mxu0 0
        %5836 = vmatpush1.bf16.msra.mxu0 0
        %5837 = vmatprep.subr.bf16.mxu0 0
        %5838 = vmatpush1.bf16.msra.mxu0 0
        %5839 = vmatprep.subr.bf16.mxu0 0
        %5840 = vmatpush1.bf16.msra.mxu0 0
        %5841 = vmatprep.subr.bf16.mxu0 0
        %5842 = vmatpush1.bf16.msra.mxu0 0
        %5843 = vmatprep.subr.bf16.mxu0 0
        %5844 = vmatpush1.bf16.msra.mxu0 0
        %5845 = vmatprep.subr.bf16.mxu0 0
        %5846 = vmatpush1.bf16.msra.mxu0 0
        %5847 = vmatprep.subr.bf16.mxu0 0
        %5848 = vmatpush1.bf16.msra.mxu0 0
        %5849 = vmatprep.subr.bf16.mxu0 0
        %5850 = vmatpush1.bf16.msra.mxu0 0
        %5851 = vmatprep.subr.bf16.mxu0 0
        %5852 = vmatpush1.bf16.msra.mxu0 0
        %5853 = vmatprep.subr.bf16.mxu0 0
        %5854 = vmatpush1.bf16.msra.mxu0 0
        %5855 = vmatprep.subr.bf16.mxu0 0
        %5856 = vmatpush1.bf16.msra.mxu0 0
        %5857 = vmatprep.subr.bf16.mxu0 0
        %5858 = vmatpush1.bf16.msra.mxu0 0
        %5859 = vmatprep.subr.bf16.mxu0 0
        %5860 = vmatpush1.bf16.msra.mxu0 0
        %5861 = vmatprep.subr.bf16.mxu0 0
        %5862 = vmatpush1.bf16.msra.mxu0 0
        %5863 = vmatprep.mubr.bf16.mxu0 0
        %5864 = vmatmul.mubr.bf16.gmra.mrb[0].mxu0 %v1141
        %v5865 = vpop.f32.mrb[0].mxu0
        %v5866 = vadd.f32 0.0, %v5865
        %v5867 = vpop.f32.mrb[0].mxu0
        %v5868 = vadd.f32 0.0, %v5867
        %v5869 = vpop.f32.mrb[0].mxu0
        %v5870 = vadd.f32 0.0, %v5869
        %v5871 = vpop.f32.mrb[0].mxu0
        %v5872 = vadd.f32 0.0, %v5871
        %5873 = vdwg.mxu0
        %5874 = vmatprep.subr.bf16.mxu0 %v5792
        %5875 = vmatpush1.bf16.msra.mxu0 %v5791
        %5876 = vmatprep.subr.bf16.mxu0 %v5820
        %5877 = vmatpush1.bf16.msra.mxu0 %v5817
        %5878 = vmatprep.subr.bf16.mxu0 0
        %5879 = vmatpush1.bf16.msra.mxu0 0
        %5880 = vmatprep.subr.bf16.mxu0 0
        %5881 = vmatpush1.bf16.msra.mxu0 0
        %5882 = vmatprep.subr.bf16.mxu0 0
        %5883 = vmatpush1.bf16.msra.mxu0 0
        %5884 = vmatprep.subr.bf16.mxu0 0
        %5885 = vmatpush1.bf16.msra.mxu0 0
        %5886 = vmatprep.subr.bf16.mxu0 0
        %5887 = vmatpush1.bf16.msra.mxu0 0
        %5888 = vmatprep.subr.bf16.mxu0 0
        %5889 = vmatpush1.bf16.msra.mxu0 0
        %5890 = vmatprep.subr.bf16.mxu0 0
        %5891 = vmatpush1.bf16.msra.mxu0 0
        %5892 = vmatprep.subr.bf16.mxu0 0
        %5893 = vmatpush1.bf16.msra.mxu0 0
        %5894 = vmatprep.subr.bf16.mxu0 0
        %5895 = vmatpush1.bf16.msra.mxu0 0
        %5896 = vmatprep.subr.bf16.mxu0 0
        %5897 = vmatpush1.bf16.msra.mxu0 0
        %5898 = vmatprep.subr.bf16.mxu0 0
        %5899 = vmatpush1.bf16.msra.mxu0 0
        %5900 = vmatprep.subr.bf16.mxu0 0
        %5901 = vmatpush1.bf16.msra.mxu0 0
        %5902 = vmatprep.subr.bf16.mxu0 0
        %5903 = vmatpush1.bf16.msra.mxu0 0
        %5904 = vmatprep.subr.bf16.mxu0 0
        %5905 = vmatpush1.bf16.msra.mxu0 0
        %5906 = vmatprep.mubr.bf16.mxu0 0
        %5907 = vmatmul.mubr.bf16.gmra.mrb[0].mxu0 %v1141
        %v5908 = vpop.f32.mrb[0].mxu0
        %v5909 = vadd.f32 0.0, %v5908
        %v5910 = vpop.f32.mrb[0].mxu0
        %v5911 = vadd.f32 0.0, %v5910
        %v5912 = vpop.f32.mrb[0].mxu0
        %v5913 = vadd.f32 0.0, %v5912
        %v5914 = vpop.f32.mrb[0].mxu0
        %v5915 = vadd.f32 0.0, %v5914
        %5916 = vdwg.mxu0
        %5917 = vmatprep.subr.bf16.mxu0 %v5794
        %5918 = vmatpush1.bf16.msra.mxu0 %v5793
        %5919 = vmatprep.subr.bf16.mxu0 %v5826
        %5920 = vmatpush1.bf16.msra.mxu0 %v5823
        %5921 = vmatprep.subr.bf16.mxu0 0
        %5922 = vmatpush1.bf16.msra.mxu0 0
        %5923 = vmatprep.subr.bf16.mxu0 0
        %5924 = vmatpush1.bf16.msra.mxu0 0
        %5925 = vmatprep.subr.bf16.mxu0 0
        %5926 = vmatpush1.bf16.msra.mxu0 0
        %5927 = vmatprep.subr.bf16.mxu0 0
        %5928 = vmatpush1.bf16.msra.mxu0 0
        %5929 = vmatprep.subr.bf16.mxu0 0
        %5930 = vmatpush1.bf16.msra.mxu0 0
        %5931 = vmatprep.subr.bf16.mxu0 0
        %5932 = vmatpush1.bf16.msra.mxu0 0
        %5933 = vmatprep.subr.bf16.mxu0 0
        %5934 = vmatpush1.bf16.msra.mxu0 0
        %5935 = vmatprep.subr.bf16.mxu0 0
        %5936 = vmatpush1.bf16.msra.mxu0 0
        %5937 = vmatprep.subr.bf16.mxu0 0
        %5938 = vmatpush1.bf16.msra.mxu0 0
        %5939 = vmatprep.subr.bf16.mxu0 0
        %5940 = vmatpush1.bf16.msra.mxu0 0
        %5941 = vmatprep.subr.bf16.mxu0 0
        %5942 = vmatpush1.bf16.msra.mxu0 0
        %5943 = vmatprep.subr.bf16.mxu0 0
        %5944 = vmatpush1.bf16.msra.mxu0 0
        %5945 = vmatprep.subr.bf16.mxu0 0
        %5946 = vmatpush1.bf16.msra.mxu0 0
        %5947 = vmatprep.subr.bf16.mxu0 0
        %5948 = vmatpush1.bf16.msra.mxu0 0
        %5949 = vmatprep.mubr.bf16.mxu0 0
        %5950 = vmatmul.mubr.bf16.gmra.mrb[0].mxu0 %v1141
        %v5951 = vpop.f32.mrb[0].mxu0
        %v5952 = vadd.f32 0.0, %v5951
        %v5953 = vpop.f32.mrb[0].mxu0
        %v5954 = vadd.f32 0.0, %v5953
        %v5955 = vpop.f32.mrb[0].mxu0
        %v5956 = vadd.f32 0.0, %v5955
        %v5957 = vpop.f32.mrb[0].mxu0
        %v5958 = vadd.f32 0.0, %v5957
        %5959 = vdwg.mxu0
        %5960 = vmatprep.subr.bf16.mxu0 0
        %5961 = vmatpush1.bf16.msra.mxu0 %v5795
        %5962 = vmatprep.subr.bf16.mxu0 0
        %5963 = vmatpush1.bf16.msra.mxu0 %v5829
        %5964 = vmatprep.subr.bf16.mxu0 0
        %5965 = vmatpush1.bf16.msra.mxu0 0
        %5966 = vmatprep.subr.bf16.mxu0 0
        %5967 = vmatpush1.bf16.msra.mxu0 0
        %5968 = vmatprep.subr.bf16.mxu0 0
        %5969 = vmatpush1.bf16.msra.mxu0 0
        %5970 = vmatprep.subr.bf16.mxu0 0
        %5971 = vmatpush1.bf16.msra.mxu0 0
        %5972 = vmatprep.subr.bf16.mxu0 0
        %5973 = vmatpush1.bf16.msra.mxu0 0
        %5974 = vmatprep.subr.bf16.mxu0 0
        %5975 = vmatpush1.bf16.msra.mxu0 0
        %5976 = vmatprep.subr.bf16.mxu0 0
        %5977 = vmatpush1.bf16.msra.mxu0 0
        %5978 = vmatprep.subr.bf16.mxu0 0
        %5979 = vmatpush1.bf16.msra.mxu0 0
        %5980 = vmatprep.subr.bf16.mxu0 0
        %5981 = vmatpush1.bf16.msra.mxu0 0
        %5982 = vmatprep.subr.bf16.mxu0 0
        %5983 = vmatpush1.bf16.msra.mxu0 0
        %5984 = vmatprep.subr.bf16.mxu0 0
        %5985 = vmatpush1.bf16.msra.mxu0 0
        %5986 = vmatprep.subr.bf16.mxu0 0
        %5987 = vmatpush1.bf16.msra.mxu0 0
        %5988 = vmatprep.subr.bf16.mxu0 0
        %5989 = vmatpush1.bf16.msra.mxu0 0
        %5990 = vmatprep.subr.bf16.mxu0 0
        %5991 = vmatpush1.bf16.msra.mxu0 0
        %5992 = vmatprep.mubr.bf16.mxu0 0
        %5993 = vmatmul.mubr.bf16.gmra.mrb[0].mxu0 %v1141
        %v5994 = vpop.f32.mrb[0].mxu0
        %v5995 = vadd.f32 0.0, %v5994
        %v5996 = vpop.f32.mrb[0].mxu0
        %v5997 = vpop.f32.mrb[0].mxu0
        %v5998 = vadd.f32 0.0, %v5997
        %v5999 = vpop.f32.mrb[0].mxu0
        %6000 = vdwg.mxu0
        %v6001 = vmax.f32 %v5050, %v5322
        %v6002 = vmax.f32 %v5052, %v5324
        %v6003 = vmax.f32 %v5093, %v5365
        %v6004 = vmax.f32 %v5095, %v5367
        %v6005 = vmax.f32 %v5136, %v5408
        %v6006 = vmax.f32 %v5138, %v5410
        %v6007 = vmax.f32 %v5179, %v5451
        %v6008 = vmax.f32 %v5054, %v5326
        %v6009 = vmax.f32 %v5056, %v5328
        %v6010 = vmax.f32 %v5097, %v5369
        %v6011 = vmax.f32 %v5099, %v5371
        %v6012 = vmax.f32 %v5140, %v5412
        %v6013 = vmax.f32 %v5142, %v5414
        %v6014 = vmax.f32 %v5182, %v5454
        %v6015 = vmax.f32 %v5594, %v5866
        %v6016 = vmax.f32 %v5596, %v5868
        %v6017 = vmax.f32 %v5637, %v5909
        %v6018 = vmax.f32 %v5639, %v5911
        %v6019 = vmax.f32 %v5680, %v5952
        %v6020 = vmax.f32 %v5682, %v5954
        %v6021 = vmax.f32 %v5723, %v5995
        %v6022 = vmax.f32 %v5598, %v5870
        %v6023 = vmax.f32 %v5600, %v5872
        %v6024 = vmax.f32 %v5641, %v5913
        %v6025 = vmax.f32 %v5643, %v5915
        %v6026 = vmax.f32 %v5684, %v5956
        %v6027 = vmax.f32 %v5686, %v5958
        %v6028 = vmax.f32 %v5726, %v5998
        %v6029 = vmax.f32 %v6001, %v6015
        %v6030 = vmax.f32 %v6002, %v6016
        %v6031 = vmax.f32 %v6003, %v6017
        %v6032 = vmax.f32 %v6004, %v6018
        %v6033 = vmax.f32 %v6005, %v6019
        %v6034 = vmax.f32 %v6006, %v6020
        %v6035 = vmax.f32 %v6007, %v6021
        %v6036 = vmax.f32 %v6008, %v6022
        %v6037 = vmax.f32 %v6009, %v6023
        %v6038 = vmax.f32 %v6010, %v6024
        %v6039 = vmax.f32 %v6011, %v6025
        %v6040 = vmax.f32 %v6012, %v6026
        %v6041 = vmax.f32 %v6013, %v6027
        %v6042 = vmax.f32 %v6014, %v6028
        %v6043 = vadd.f32 %v6029, %v2202
        %v6044 = vadd.f32 %v6030, %v2202
        %v6045 = vadd.f32 %v6031, %v2202
        %v6046 = vadd.f32 %v6032, %v2202
        %v6047 = vadd.f32 %v6033, %v2202
        %v6048 = vadd.f32 %v6034, %v2202
        %v6049 = vadd.f32 %v6035, %v2202
        %v6050 = vadd.f32 %v6036, %v2207
        %v6051 = vadd.f32 %v6037, %v2207
        %v6052 = vadd.f32 %v6038, %v2207
        %v6053 = vadd.f32 %v6039, %v2207
        %v6054 = vadd.f32 %v6040, %v2207
        %v6055 = vadd.f32 %v6041, %v2207
        %v6056 = vadd.f32 %v6042, %v2207
        %v6057 = vmax.f32 %v6043, 0.0
        %v6058 = vmax.f32 %v6044, 0.0
        %v6059 = vmax.f32 %v6045, 0.0
        %v6060 = vmax.f32 %v6046, 0.0
        %v6061 = vmax.f32 %v6047, 0.0
        %v6062 = vmax.f32 %v6048, 0.0
        %v6063 = vmax.f32 %v6049, 0.0
        %v6064 = vmax.f32 %v6050, 0.0
        %v6065 = vmax.f32 %v6051, 0.0
        %v6066 = vmax.f32 %v6052, 0.0
        %v6067 = vmax.f32 %v6053, 0.0
        %v6068 = vmax.f32 %v6054, 0.0
        %v6069 = vmax.f32 %v6055, 0.0
        %v6070 = vmax.f32 %v6056, 0.0
        %v6071 = vld [vmem:[%s2239 + $0x54] sm:$0xff]
        %v6072 = vld [vmem:[%s2239 + $0x5c] sm:$0xff]
        %v6073 = vld [vmem:[%s2239 + $0x64] sm:$0xff]
        %v6074 = vld [vmem:[%s2239 + $0x6c] sm:$0xf]
        %v6075 = vld [vmem:[%s2239 + $0x118] sm:$0xff]
        %v6076 = vld [vmem:[%s2239 + $0x120] sm:$0xff]
        %v6077 = vld [vmem:[%s2239 + $0x128] sm:$0xff]
        %v6078 = vld [vmem:[%s2239 + $0x130] sm:$0xf]
        %v6079 = vunpack.c.l.bf16 %v6071
        %v6080 = vunpack.c.h.bf16 %v6071
        %v6081 = vunpack.c.l.bf16 %v6072
        %v6082 = vunpack.c.h.bf16 %v6072
        %v6083 = vunpack.c.l.bf16 %v6073
        %v6084 = vunpack.c.h.bf16 %v6073
        %v6085 = vunpack.c.l.bf16 %v6074
        %v6086 = vunpack.c.l.bf16 %v6075
        %v6087 = vunpack.c.h.bf16 %v6075
        %v6088 = vunpack.c.l.bf16 %v6076
        %v6089 = vunpack.c.h.bf16 %v6076
        %v6090 = vunpack.c.l.bf16 %v6077
        %v6091 = vunpack.c.h.bf16 %v6077
        %v6092 = vunpack.c.l.bf16 %v6078
        %v6093 = vld [vmem:[%s2264 + $0x54] sm:$0xff]
        %v6094 = vld [vmem:[%s2264 + $0x5c] sm:$0xff]
        %v6095 = vld [vmem:[%s2264 + $0x64] sm:$0xff]
        %v6096 = vld [vmem:[%s2264 + $0x6c] sm:$0xf]
        %v6097 = vld [vmem:[%s2264 + $0x118] sm:$0xff]
        %v6098 = vld [vmem:[%s2264 + $0x120] sm:$0xff]
        %v6099 = vld [vmem:[%s2264 + $0x128] sm:$0xff]
        %v6100 = vld [vmem:[%s2264 + $0x130] sm:$0xf]
        %v6101 = vunpack.c.l.bf16 %v6093
        %v6102 = vunpack.c.h.bf16 %v6093
        %v6103 = vunpack.c.l.bf16 %v6094
        %v6104 = vunpack.c.h.bf16 %v6094
        %v6105 = vunpack.c.l.bf16 %v6095
        %v6106 = vunpack.c.h.bf16 %v6095
        %v6107 = vunpack.c.l.bf16 %v6096
        %v6108 = vunpack.c.l.bf16 %v6097
        %v6109 = vunpack.c.h.bf16 %v6097
        %v6110 = vunpack.c.l.bf16 %v6098
        %v6111 = vunpack.c.h.bf16 %v6098
        %v6112 = vunpack.c.l.bf16 %v6099
        %v6113 = vunpack.c.h.bf16 %v6099
        %v6114 = vunpack.c.l.bf16 %v6100
        %v6115 = vmul.f32 %v6057, %v6079
        %v6116 = vmul.f32 %v6058, %v6080
        %v6117 = vmul.f32 %v6059, %v6081
        %v6118 = vmul.f32 %v6060, %v6082
        %v6119 = vmul.f32 %v6061, %v6083
        %v6120 = vmul.f32 %v6062, %v6084
        %v6121 = vmul.f32 %v6063, %v6085
        %v6122 = vmul.f32 %v6064, %v6086
        %v6123 = vmul.f32 %v6065, %v6087
        %v6124 = vmul.f32 %v6066, %v6088
        %v6125 = vmul.f32 %v6067, %v6089
        %v6126 = vmul.f32 %v6068, %v6090
        %v6127 = vmul.f32 %v6069, %v6091
        %v6128 = vmul.f32 %v6070, %v6092
        %v6129 = vadd.f32 %v6115, %v6116
        %v6130 = vadd.f32 %v6129, %v6117
        %v6131 = vadd.f32 %v6130, %v6118
        %v6132 = vadd.f32 %v6131, %v6119
        %v6133 = vadd.f32 %v6132, %v6120
        %v6134 = vadd.f32 %v6133, %v6121
        %v6135 = vadd.f32 %v6134, %v6122
        %v6136 = vadd.f32 %v6135, %v6123
        %v6137 = vadd.f32 %v6136, %v6124
        %v6138 = vadd.f32 %v6137, %v6125
        %v6139 = vadd.f32 %v6138, %v6126
        %v6140 = vadd.f32 %v6139, %v6127
        %v6141 = vadd.f32 %v6140, %v6128
        %6142 = vadd.xlane.f32.xlu0 %v6141
        %v6143 = vpop.xlane.xlu0 %6142
        %v6144 = vrot.slane %v6143, 4
        %v6145 = vadd.f32 %v6143, %v6144
        %v6146 = vrot.slane %v6145, 2
        %v6147 = vadd.f32 %v6145, %v6146
        %v6148 = vrot.slane %v6147, 1
        %v6149 = vadd.f32 %v6147, %v6148
        %s6150 = vtos %v6149
        %s6151 = sadd.f32 %s4875, %s6150
        %v6152 = vmul.f32 %v6057, %v6101
        %v6153 = vmul.f32 %v6058, %v6102
        %v6154 = vmul.f32 %v6059, %v6103
        %v6155 = vmul.f32 %v6060, %v6104
        %v6156 = vmul.f32 %v6061, %v6105
        %v6157 = vmul.f32 %v6062, %v6106
        %v6158 = vmul.f32 %v6063, %v6107
        %v6159 = vmul.f32 %v6064, %v6108
        %v6160 = vmul.f32 %v6065, %v6109
        %v6161 = vmul.f32 %v6066, %v6110
        %v6162 = vmul.f32 %v6067, %v6111
        %v6163 = vmul.f32 %v6068, %v6112
        %v6164 = vmul.f32 %v6069, %v6113
        %v6165 = vmul.f32 %v6070, %v6114
        %v6166 = vadd.f32 %v6152, %v6153
        %v6167 = vadd.f32 %v6166, %v6154
        %v6168 = vadd.f32 %v6167, %v6155
        %v6169 = vadd.f32 %v6168, %v6156
        %v6170 = vadd.f32 %v6169, %v6157
        %v6171 = vadd.f32 %v6170, %v6158
        %v6172 = vadd.f32 %v6171, %v6159
        %v6173 = vadd.f32 %v6172, %v6160
        %v6174 = vadd.f32 %v6173, %v6161
        %v6175 = vadd.f32 %v6174, %v6162
        %v6176 = vadd.f32 %v6175, %v6163
        %v6177 = vadd.f32 %v6176, %v6164
        %v6178 = vadd.f32 %v6177, %v6165
        %6179 = vadd.xlane.f32.xlu0 %v6178
        %v6180 = vpop.xlane.xlu0 %6179
        %v6181 = vrot.slane %v6180, 4
        %v6182 = vadd.f32 %v6180, %v6181
        %v6183 = vrot.slane %v6182, 2
        %v6184 = vadd.f32 %v6182, %v6183
        %v6185 = vrot.slane %v6184, 1
        %v6186 = vadd.f32 %v6184, %v6185
        %s6187 = vtos %v6186
        %s6188 = sadd.f32 %s4912, %s6187
        %v6189 = vld [vmem:[%s1015 + $0x70] sm:$0xff]
        %v6190 = vld [vmem:[%s1015 + $0x78] sm:$0xff]
        %v6191 = vld [vmem:[%s1015 + $0x80] sm:$0xff]
        %v6192 = vld [vmem:[%s1015 + $0x88] sm:$0xf]
        %v6193 = vld [vmem:[%s1015 + $0x134] sm:$0xff]
        %v6194 = vld [vmem:[%s1015 + $0x13c] sm:$0xff]
        %v6195 = vld [vmem:[%s1015 + $0x144] sm:$0xff]
        %v6196 = vld [vmem:[%s1015 + $0x14c] sm:$0xf]
        %v6197 = vld [vmem:[%s1015 + $0x1f8] sm:$0xff]
        %v6198 = vld [vmem:[%s1015 + $0x200] sm:$0xff]
        %v6199 = vld [vmem:[%s1015 + $0x208] sm:$0xff]
        %v6200 = vld [vmem:[%s1015 + $0x210] sm:$0xf]
        %v6201 = vld [vmem:[%s1015 + $0x2bc] sm:$0x33]
        %v6202 = vld [vmem:[%s1015 + $0x2c4] sm:$0x33]
        %v6203 = vld [vmem:[%s1015 + $0x2cc] sm:$0x33]
        %v6204 = vld [vmem:[%s1015 + $0x2d4] sm:$0x3]
        %v6221 = vunpack.c.l.b16 %v6189
        %v6222 = vunpack.c.h.b16 %v6189
        %v6223 = vunpack.c.l.b16 %v6190
        %v6224 = vunpack.c.h.b16 %v6190
        %v6225 = vunpack.c.l.b16 %v6191
        %v6226 = vunpack.c.h.b16 %v6191
        %v6227 = vunpack.c.l.b16 %v6192
        %v6228 = vunpack.c.l.b16 %v6193
        %v6229 = vunpack.c.h.b16 %v6193
        %v6230 = vunpack.c.l.b16 %v6194
        %v6231 = vunpack.c.h.b16 %v6194
        %v6232 = vunpack.c.l.b16 %v6195
        %v6233 = vunpack.c.h.b16 %v6195
        %v6234 = vunpack.c.l.b16 %v6196
        %v6235 = vunpack.c.l.b16 %v6197
        %v6236 = vunpack.c.h.b16 %v6197
        %v6237 = vunpack.c.l.b16 %v6198
        %v6238 = vunpack.c.h.b16 %v6198
        %v6239 = vunpack.c.l.b16 %v6199
        %v6240 = vunpack.c.h.b16 %v6199
        %v6241 = vunpack.c.l.b16 %v6200
        %v6242 = vunpack.c.l.b16 %v6201
        %v6243 = vunpack.c.h.b16 %v6201
        %v6244 = vunpack.c.l.b16 %v6202
        %v6245 = vunpack.c.h.b16 %v6202
        %v6246 = vunpack.c.l.b16 %v6203
        %v6247 = vunpack.c.h.b16 %v6203
        %v6248 = vunpack.c.l.b16 %v6204
        %v6249 = vpack.c.b16 %v6228, %v6221
        %v6250 = vpack.c.b16 %v6229, %v6222
        %v6251 = vpack.c.b16 %v6230, %v6223
        %v6252 = vpack.c.b16 %v6231, %v6224
        %v6253 = vpack.c.b16 %v6232, %v6225
        %v6254 = vpack.c.b16 %v6233, %v6226
        %v6255 = vpack.c.b16 %v6234, %v6227
        %v6256 = vpack.c.b16 %v6242, %v6235
        %v6257 = vpack.c.b16 %v6243, %v6236
        %v6258 = vpack.c.b16 %v6244, %v6237
        %v6259 = vpack.c.b16 %v6245, %v6238
        %v6260 = vpack.c.b16 %v6246, %v6239
        %v6261 = vpack.c.b16 %v6247, %v6240
        %v6262 = vpack.c.b16 %v6248, %v6241
        %v6271 = vand.u32 %v6256, %v1146
        %v6274 = vand.u32 %v6257, %v1146
        %v6277 = vand.u32 %v6258, %v1146
        %v6280 = vand.u32 %v6259, %v1146
        %v6283 = vand.u32 %v6260, %v1146
        %v6286 = vand.u32 %v6261, %v1146
        %v6289 = vand.u32 %v6262, %v1146
        %6291 = vmatprep.subr.bf16.mxu0 %v6250
        %6292 = vmatpush1.bf16.msra.mxu0 %v6249
        %6293 = vmatprep.subr.bf16.mxu0 %v6274
        %6294 = vmatpush1.bf16.msra.mxu0 %v6271
        %6295 = vmatprep.subr.bf16.mxu0 0
        %6296 = vmatpush1.bf16.msra.mxu0 0
        %6297 = vmatprep.subr.bf16.mxu0 0
        %6298 = vmatpush1.bf16.msra.mxu0 0
        %6299 = vmatprep.subr.bf16.mxu0 0
        %6300 = vmatpush1.bf16.msra.mxu0 0
        %6301 = vmatprep.subr.bf16.mxu0 0
        %6302 = vmatpush1.bf16.msra.mxu0 0
        %6303 = vmatprep.subr.bf16.mxu0 0
        %6304 = vmatpush1.bf16.msra.mxu0 0
        %6305 = vmatprep.subr.bf16.mxu0 0
        %6306 = vmatpush1.bf16.msra.mxu0 0
        %6307 = vmatprep.subr.bf16.mxu0 0
        %6308 = vmatpush1.bf16.msra.mxu0 0
        %6309 = vmatprep.subr.bf16.mxu0 0
        %6310 = vmatpush1.bf16.msra.mxu0 0
        %6311 = vmatprep.subr.bf16.mxu0 0
        %6312 = vmatpush1.bf16.msra.mxu0 0
        %6313 = vmatprep.subr.bf16.mxu0 0
        %6314 = vmatpush1.bf16.msra.mxu0 0
        %6315 = vmatprep.subr.bf16.mxu0 0
        %6316 = vmatpush1.bf16.msra.mxu0 0
        %6317 = vmatprep.subr.bf16.mxu0 0
        %6318 = vmatpush1.bf16.msra.mxu0 0
        %6319 = vmatprep.subr.bf16.mxu0 0
        %6320 = vmatpush1.bf16.msra.mxu0 0
        %6321 = vmatprep.subr.bf16.mxu0 0
        %6322 = vmatpush1.bf16.msra.mxu0 0
        %6323 = vmatprep.mubr.bf16.mxu0 0
        %6324 = vmatmul.mubr.bf16.gmra.mrb[0].mxu0 %v1141
        %v6325 = vpop.f32.mrb[0].mxu0
        %v6326 = vadd.f32 0.0, %v6325
        %v6327 = vpop.f32.mrb[0].mxu0
        %v6328 = vadd.f32 0.0, %v6327
        %v6329 = vpop.f32.mrb[0].mxu0
        %v6330 = vadd.f32 0.0, %v6329
        %v6331 = vpop.f32.mrb[0].mxu0
        %v6332 = vadd.f32 0.0, %v6331
        %6333 = vdwg.mxu0
        %6334 = vmatprep.subr.bf16.mxu0 %v6252
        %6335 = vmatpush1.bf16.msra.mxu0 %v6251
        %6336 = vmatprep.subr.bf16.mxu0 %v6280
        %6337 = vmatpush1.bf16.msra.mxu0 %v6277
        %6338 = vmatprep.subr.bf16.mxu0 0
        %6339 = vmatpush1.bf16.msra.mxu0 0
        %6340 = vmatprep.subr.bf16.mxu0 0
        %6341 = vmatpush1.bf16.msra.mxu0 0
        %6342 = vmatprep.subr.bf16.mxu0 0
        %6343 = vmatpush1.bf16.msra.mxu0 0
        %6344 = vmatprep.subr.bf16.mxu0 0
        %6345 = vmatpush1.bf16.msra.mxu0 0
        %6346 = vmatprep.subr.bf16.mxu0 0
        %6347 = vmatpush1.bf16.msra.mxu0 0
        %6348 = vmatprep.subr.bf16.mxu0 0
        %6349 = vmatpush1.bf16.msra.mxu0 0
        %6350 = vmatprep.subr.bf16.mxu0 0
        %6351 = vmatpush1.bf16.msra.mxu0 0
        %6352 = vmatprep.subr.bf16.mxu0 0
        %6353 = vmatpush1.bf16.msra.mxu0 0
        %6354 = vmatprep.subr.bf16.mxu0 0
        %6355 = vmatpush1.bf16.msra.mxu0 0
        %6356 = vmatprep.subr.bf16.mxu0 0
        %6357 = vmatpush1.bf16.msra.mxu0 0
        %6358 = vmatprep.subr.bf16.mxu0 0
        %6359 = vmatpush1.bf16.msra.mxu0 0
        %6360 = vmatprep.subr.bf16.mxu0 0
        %6361 = vmatpush1.bf16.msra.mxu0 0
        %6362 = vmatprep.subr.bf16.mxu0 0
        %6363 = vmatpush1.bf16.msra.mxu0 0
        %6364 = vmatprep.subr.bf16.mxu0 0
        %6365 = vmatpush1.bf16.msra.mxu0 0
        %6366 = vmatprep.mubr.bf16.mxu0 0
        %6367 = vmatmul.mubr.bf16.gmra.mrb[0].mxu0 %v1141
        %v6368 = vpop.f32.mrb[0].mxu0
        %v6369 = vadd.f32 0.0, %v6368
        %v6370 = vpop.f32.mrb[0].mxu0
        %v6371 = vadd.f32 0.0, %v6370
        %v6372 = vpop.f32.mrb[0].mxu0
        %v6373 = vadd.f32 0.0, %v6372
        %v6374 = vpop.f32.mrb[0].mxu0
        %v6375 = vadd.f32 0.0, %v6374
        %6376 = vdwg.mxu0
        %6377 = vmatprep.subr.bf16.mxu0 %v6254
        %6378 = vmatpush1.bf16.msra.mxu0 %v6253
        %6379 = vmatprep.subr.bf16.mxu0 %v6286
        %6380 = vmatpush1.bf16.msra.mxu0 %v6283
        %6381 = vmatprep.subr.bf16.mxu0 0
        %6382 = vmatpush1.bf16.msra.mxu0 0
        %6383 = vmatprep.subr.bf16.mxu0 0
        %6384 = vmatpush1.bf16.msra.mxu0 0
        %6385 = vmatprep.subr.bf16.mxu0 0
        %6386 = vmatpush1.bf16.msra.mxu0 0
        %6387 = vmatprep.subr.bf16.mxu0 0
        %6388 = vmatpush1.bf16.msra.mxu0 0
        %6389 = vmatprep.subr.bf16.mxu0 0
        %6390 = vmatpush1.bf16.msra.mxu0 0
        %6391 = vmatprep.subr.bf16.mxu0 0
        %6392 = vmatpush1.bf16.msra.mxu0 0
        %6393 = vmatprep.subr.bf16.mxu0 0
        %6394 = vmatpush1.bf16.msra.mxu0 0
        %6395 = vmatprep.subr.bf16.mxu0 0
        %6396 = vmatpush1.bf16.msra.mxu0 0
        %6397 = vmatprep.subr.bf16.mxu0 0
        %6398 = vmatpush1.bf16.msra.mxu0 0
        %6399 = vmatprep.subr.bf16.mxu0 0
        %6400 = vmatpush1.bf16.msra.mxu0 0
        %6401 = vmatprep.subr.bf16.mxu0 0
        %6402 = vmatpush1.bf16.msra.mxu0 0
        %6403 = vmatprep.subr.bf16.mxu0 0
        %6404 = vmatpush1.bf16.msra.mxu0 0
        %6405 = vmatprep.subr.bf16.mxu0 0
        %6406 = vmatpush1.bf16.msra.mxu0 0
        %6407 = vmatprep.subr.bf16.mxu0 0
        %6408 = vmatpush1.bf16.msra.mxu0 0
        %6409 = vmatprep.mubr.bf16.mxu0 0
        %6410 = vmatmul.mubr.bf16.gmra.mrb[0].mxu0 %v1141
        %v6411 = vpop.f32.mrb[0].mxu0
        %v6412 = vadd.f32 0.0, %v6411
        %v6413 = vpop.f32.mrb[0].mxu0
        %v6414 = vadd.f32 0.0, %v6413
        %v6415 = vpop.f32.mrb[0].mxu0
        %v6416 = vadd.f32 0.0, %v6415
        %v6417 = vpop.f32.mrb[0].mxu0
        %v6418 = vadd.f32 0.0, %v6417
        %6419 = vdwg.mxu0
        %6420 = vmatprep.subr.bf16.mxu0 0
        %6421 = vmatpush1.bf16.msra.mxu0 %v6255
        %6422 = vmatprep.subr.bf16.mxu0 0
        %6423 = vmatpush1.bf16.msra.mxu0 %v6289
        %6424 = vmatprep.subr.bf16.mxu0 0
        %6425 = vmatpush1.bf16.msra.mxu0 0
        %6426 = vmatprep.subr.bf16.mxu0 0
        %6427 = vmatpush1.bf16.msra.mxu0 0
        %6428 = vmatprep.subr.bf16.mxu0 0
        %6429 = vmatpush1.bf16.msra.mxu0 0
        %6430 = vmatprep.subr.bf16.mxu0 0
        %6431 = vmatpush1.bf16.msra.mxu0 0
        %6432 = vmatprep.subr.bf16.mxu0 0
        %6433 = vmatpush1.bf16.msra.mxu0 0
        %6434 = vmatprep.subr.bf16.mxu0 0
        %6435 = vmatpush1.bf16.msra.mxu0 0
        %6436 = vmatprep.subr.bf16.mxu0 0
        %6437 = vmatpush1.bf16.msra.mxu0 0
        %6438 = vmatprep.subr.bf16.mxu0 0
        %6439 = vmatpush1.bf16.msra.mxu0 0
        %6440 = vmatprep.subr.bf16.mxu0 0
        %6441 = vmatpush1.bf16.msra.mxu0 0
        %6442 = vmatprep.subr.bf16.mxu0 0
        %6443 = vmatpush1.bf16.msra.mxu0 0
        %6444 = vmatprep.subr.bf16.mxu0 0
        %6445 = vmatpush1.bf16.msra.mxu0 0
        %6446 = vmatprep.subr.bf16.mxu0 0
        %6447 = vmatpush1.bf16.msra.mxu0 0
        %6448 = vmatprep.subr.bf16.mxu0 0
        %6449 = vmatpush1.bf16.msra.mxu0 0
        %6450 = vmatprep.subr.bf16.mxu0 0
        %6451 = vmatpush1.bf16.msra.mxu0 0
        %6452 = vmatprep.mubr.bf16.mxu0 0
        %6453 = vmatmul.mubr.bf16.gmra.mrb[0].mxu0 %v1141
        %v6454 = vpop.f32.mrb[0].mxu0
        %v6455 = vadd.f32 0.0, %v6454
        %v6456 = vpop.f32.mrb[0].mxu0
        %v6457 = vpop.f32.mrb[0].mxu0
        %v6458 = vadd.f32 0.0, %v6457
        %v6459 = vpop.f32.mrb[0].mxu0
        %6460 = vdwg.mxu0
        %v6461 = vld [vmem:[%s1338 + $0x70] sm:$0xff]
        %v6462 = vld [vmem:[%s1338 + $0x78] sm:$0xff]
        %v6463 = vld [vmem:[%s1338 + $0x80] sm:$0xff]
        %v6464 = vld [vmem:[%s1338 + $0x88] sm:$0xf]
        %v6465 = vld [vmem:[%s1338 + $0x134] sm:$0xff]
        %v6466 = vld [vmem:[%s1338 + $0x13c] sm:$0xff]
        %v6467 = vld [vmem:[%s1338 + $0x144] sm:$0xff]
        %v6468 = vld [vmem:[%s1338 + $0x14c] sm:$0xf]
        %v6469 = vld [vmem:[%s1338 + $0x1f8] sm:$0xff]
        %v6470 = vld [vmem:[%s1338 + $0x200] sm:$0xff]
        %v6471 = vld [vmem:[%s1338 + $0x208] sm:$0xff]
        %v6472 = vld [vmem:[%s1338 + $0x210] sm:$0xf]
        %v6473 = vld [vmem:[%s1338 + $0x2bc] sm:$0x33]
        %v6474 = vld [vmem:[%s1338 + $0x2c4] sm:$0x33]
        %v6475 = vld [vmem:[%s1338 + $0x2cc] sm:$0x33]
        %v6476 = vld [vmem:[%s1338 + $0x2d4] sm:$0x3]
        %v6493 = vunpack.c.l.b16 %v6461
        %v6494 = vunpack.c.h.b16 %v6461
        %v6495 = vunpack.c.l.b16 %v6462
        %v6496 = vunpack.c.h.b16 %v6462
        %v6497 = vunpack.c.l.b16 %v6463
        %v6498 = vunpack.c.h.b16 %v6463
        %v6499 = vunpack.c.l.b16 %v6464
        %v6500 = vunpack.c.l.b16 %v6465
        %v6501 = vunpack.c.h.b16 %v6465
        %v6502 = vunpack.c.l.b16 %v6466
        %v6503 = vunpack.c.h.b16 %v6466
        %v6504 = vunpack.c.l.b16 %v6467
        %v6505 = vunpack.c.h.b16 %v6467
        %v6506 = vunpack.c.l.b16 %v6468
        %v6507 = vunpack.c.l.b16 %v6469
        %v6508 = vunpack.c.h.b16 %v6469
        %v6509 = vunpack.c.l.b16 %v6470
        %v6510 = vunpack.c.h.b16 %v6470
        %v6511 = vunpack.c.l.b16 %v6471
        %v6512 = vunpack.c.h.b16 %v6471
        %v6513 = vunpack.c.l.b16 %v6472
        %v6514 = vunpack.c.l.b16 %v6473
        %v6515 = vunpack.c.h.b16 %v6473
        %v6516 = vunpack.c.l.b16 %v6474
        %v6517 = vunpack.c.h.b16 %v6474
        %v6518 = vunpack.c.l.b16 %v6475
        %v6519 = vunpack.c.h.b16 %v6475
        %v6520 = vunpack.c.l.b16 %v6476
        %v6521 = vpack.c.b16 %v6500, %v6493
        %v6522 = vpack.c.b16 %v6501, %v6494
        %v6523 = vpack.c.b16 %v6502, %v6495
        %v6524 = vpack.c.b16 %v6503, %v6496
        %v6525 = vpack.c.b16 %v6504, %v6497
        %v6526 = vpack.c.b16 %v6505, %v6498
        %v6527 = vpack.c.b16 %v6506, %v6499
        %v6528 = vpack.c.b16 %v6514, %v6507
        %v6529 = vpack.c.b16 %v6515, %v6508
        %v6530 = vpack.c.b16 %v6516, %v6509
        %v6531 = vpack.c.b16 %v6517, %v6510
        %v6532 = vpack.c.b16 %v6518, %v6511
        %v6533 = vpack.c.b16 %v6519, %v6512
        %v6534 = vpack.c.b16 %v6520, %v6513
        %v6543 = vand.u32 %v6528, %v1146
        %v6546 = vand.u32 %v6529, %v1146
        %v6549 = vand.u32 %v6530, %v1146
        %v6552 = vand.u32 %v6531, %v1146
        %v6555 = vand.u32 %v6532, %v1146
        %v6558 = vand.u32 %v6533, %v1146
        %v6561 = vand.u32 %v6534, %v1146
        %6563 = vmatprep.subr.bf16.mxu0 %v6522
        %6564 = vmatpush1.bf16.msra.mxu0 %v6521
        %6565 = vmatprep.subr.bf16.mxu0 %v6546
        %6566 = vmatpush1.bf16.msra.mxu0 %v6543
        %6567 = vmatprep.subr.bf16.mxu0 0
        %6568 = vmatpush1.bf16.msra.mxu0 0
        %6569 = vmatprep.subr.bf16.mxu0 0
        %6570 = vmatpush1.bf16.msra.mxu0 0
        %6571 = vmatprep.subr.bf16.mxu0 0
        %6572 = vmatpush1.bf16.msra.mxu0 0
        %6573 = vmatprep.subr.bf16.mxu0 0
        %6574 = vmatpush1.bf16.msra.mxu0 0
        %6575 = vmatprep.subr.bf16.mxu0 0
        %6576 = vmatpush1.bf16.msra.mxu0 0
        %6577 = vmatprep.subr.bf16.mxu0 0
        %6578 = vmatpush1.bf16.msra.mxu0 0
        %6579 = vmatprep.subr.bf16.mxu0 0
        %6580 = vmatpush1.bf16.msra.mxu0 0
        %6581 = vmatprep.subr.bf16.mxu0 0
        %6582 = vmatpush1.bf16.msra.mxu0 0
        %6583 = vmatprep.subr.bf16.mxu0 0
        %6584 = vmatpush1.bf16.msra.mxu0 0
        %6585 = vmatprep.subr.bf16.mxu0 0
        %6586 = vmatpush1.bf16.msra.mxu0 0
        %6587 = vmatprep.subr.bf16.mxu0 0
        %6588 = vmatpush1.bf16.msra.mxu0 0
        %6589 = vmatprep.subr.bf16.mxu0 0
        %6590 = vmatpush1.bf16.msra.mxu0 0
        %6591 = vmatprep.subr.bf16.mxu0 0
        %6592 = vmatpush1.bf16.msra.mxu0 0
        %6593 = vmatprep.subr.bf16.mxu0 0
        %6594 = vmatpush1.bf16.msra.mxu0 0
        %6595 = vmatprep.mubr.bf16.mxu0 0
        %6596 = vmatmul.mubr.bf16.gmra.mrb[0].mxu0 %v1141
        %v6597 = vpop.f32.mrb[0].mxu0
        %v6598 = vadd.f32 0.0, %v6597
        %v6599 = vpop.f32.mrb[0].mxu0
        %v6600 = vadd.f32 0.0, %v6599
        %v6601 = vpop.f32.mrb[0].mxu0
        %v6602 = vadd.f32 0.0, %v6601
        %v6603 = vpop.f32.mrb[0].mxu0
        %v6604 = vadd.f32 0.0, %v6603
        %6605 = vdwg.mxu0
        %6606 = vmatprep.subr.bf16.mxu0 %v6524
        %6607 = vmatpush1.bf16.msra.mxu0 %v6523
        %6608 = vmatprep.subr.bf16.mxu0 %v6552
        %6609 = vmatpush1.bf16.msra.mxu0 %v6549
        %6610 = vmatprep.subr.bf16.mxu0 0
        %6611 = vmatpush1.bf16.msra.mxu0 0
        %6612 = vmatprep.subr.bf16.mxu0 0
        %6613 = vmatpush1.bf16.msra.mxu0 0
        %6614 = vmatprep.subr.bf16.mxu0 0
        %6615 = vmatpush1.bf16.msra.mxu0 0
        %6616 = vmatprep.subr.bf16.mxu0 0
        %6617 = vmatpush1.bf16.msra.mxu0 0
        %6618 = vmatprep.subr.bf16.mxu0 0
        %6619 = vmatpush1.bf16.msra.mxu0 0
        %6620 = vmatprep.subr.bf16.mxu0 0
        %6621 = vmatpush1.bf16.msra.mxu0 0
        %6622 = vmatprep.subr.bf16.mxu0 0
        %6623 = vmatpush1.bf16.msra.mxu0 0
        %6624 = vmatprep.subr.bf16.mxu0 0
        %6625 = vmatpush1.bf16.msra.mxu0 0
        %6626 = vmatprep.subr.bf16.mxu0 0
        %6627 = vmatpush1.bf16.msra.mxu0 0
        %6628 = vmatprep.subr.bf16.mxu0 0
        %6629 = vmatpush1.bf16.msra.mxu0 0
        %6630 = vmatprep.subr.bf16.mxu0 0
        %6631 = vmatpush1.bf16.msra.mxu0 0
        %6632 = vmatprep.subr.bf16.mxu0 0
        %6633 = vmatpush1.bf16.msra.mxu0 0
        %6634 = vmatprep.subr.bf16.mxu0 0
        %6635 = vmatpush1.bf16.msra.mxu0 0
        %6636 = vmatprep.subr.bf16.mxu0 0
        %6637 = vmatpush1.bf16.msra.mxu0 0
        %6638 = vmatprep.mubr.bf16.mxu0 0
        %6639 = vmatmul.mubr.bf16.gmra.mrb[0].mxu0 %v1141
        %v6640 = vpop.f32.mrb[0].mxu0
        %v6641 = vadd.f32 0.0, %v6640
        %v6642 = vpop.f32.mrb[0].mxu0
        %v6643 = vadd.f32 0.0, %v6642
        %v6644 = vpop.f32.mrb[0].mxu0
        %v6645 = vadd.f32 0.0, %v6644
        %v6646 = vpop.f32.mrb[0].mxu0
        %v6647 = vadd.f32 0.0, %v6646
        %6648 = vdwg.mxu0
        %6649 = vmatprep.subr.bf16.mxu0 %v6526
        %6650 = vmatpush1.bf16.msra.mxu0 %v6525
        %6651 = vmatprep.subr.bf16.mxu0 %v6558
        %6652 = vmatpush1.bf16.msra.mxu0 %v6555
        %6653 = vmatprep.subr.bf16.mxu0 0
        %6654 = vmatpush1.bf16.msra.mxu0 0
        %6655 = vmatprep.subr.bf16.mxu0 0
        %6656 = vmatpush1.bf16.msra.mxu0 0
        %6657 = vmatprep.subr.bf16.mxu0 0
        %6658 = vmatpush1.bf16.msra.mxu0 0
        %6659 = vmatprep.subr.bf16.mxu0 0
        %6660 = vmatpush1.bf16.msra.mxu0 0
        %6661 = vmatprep.subr.bf16.mxu0 0
        %6662 = vmatpush1.bf16.msra.mxu0 0
        %6663 = vmatprep.subr.bf16.mxu0 0
        %6664 = vmatpush1.bf16.msra.mxu0 0
        %6665 = vmatprep.subr.bf16.mxu0 0
        %6666 = vmatpush1.bf16.msra.mxu0 0
        %6667 = vmatprep.subr.bf16.mxu0 0
        %6668 = vmatpush1.bf16.msra.mxu0 0
        %6669 = vmatprep.subr.bf16.mxu0 0
        %6670 = vmatpush1.bf16.msra.mxu0 0
        %6671 = vmatprep.subr.bf16.mxu0 0
        %6672 = vmatpush1.bf16.msra.mxu0 0
        %6673 = vmatprep.subr.bf16.mxu0 0
        %6674 = vmatpush1.bf16.msra.mxu0 0
        %6675 = vmatprep.subr.bf16.mxu0 0
        %6676 = vmatpush1.bf16.msra.mxu0 0
        %6677 = vmatprep.subr.bf16.mxu0 0
        %6678 = vmatpush1.bf16.msra.mxu0 0
        %6679 = vmatprep.subr.bf16.mxu0 0
        %6680 = vmatpush1.bf16.msra.mxu0 0
        %6681 = vmatprep.mubr.bf16.mxu0 0
        %6682 = vmatmul.mubr.bf16.gmra.mrb[0].mxu0 %v1141
        %v6683 = vpop.f32.mrb[0].mxu0
        %v6684 = vadd.f32 0.0, %v6683
        %v6685 = vpop.f32.mrb[0].mxu0
        %v6686 = vadd.f32 0.0, %v6685
        %v6687 = vpop.f32.mrb[0].mxu0
        %v6688 = vadd.f32 0.0, %v6687
        %v6689 = vpop.f32.mrb[0].mxu0
        %v6690 = vadd.f32 0.0, %v6689
        %6691 = vdwg.mxu0
        %6692 = vmatprep.subr.bf16.mxu0 0
        %6693 = vmatpush1.bf16.msra.mxu0 %v6527
        %6694 = vmatprep.subr.bf16.mxu0 0
        %6695 = vmatpush1.bf16.msra.mxu0 %v6561
        %6696 = vmatprep.subr.bf16.mxu0 0
        %6697 = vmatpush1.bf16.msra.mxu0 0
        %6698 = vmatprep.subr.bf16.mxu0 0
        %6699 = vmatpush1.bf16.msra.mxu0 0
        %6700 = vmatprep.subr.bf16.mxu0 0
        %6701 = vmatpush1.bf16.msra.mxu0 0
        %6702 = vmatprep.subr.bf16.mxu0 0
        %6703 = vmatpush1.bf16.msra.mxu0 0
        %6704 = vmatprep.subr.bf16.mxu0 0
        %6705 = vmatpush1.bf16.msra.mxu0 0
        %6706 = vmatprep.subr.bf16.mxu0 0
        %6707 = vmatpush1.bf16.msra.mxu0 0
        %6708 = vmatprep.subr.bf16.mxu0 0
        %6709 = vmatpush1.bf16.msra.mxu0 0
        %6710 = vmatprep.subr.bf16.mxu0 0
        %6711 = vmatpush1.bf16.msra.mxu0 0
        %6712 = vmatprep.subr.bf16.mxu0 0
        %6713 = vmatpush1.bf16.msra.mxu0 0
        %6714 = vmatprep.subr.bf16.mxu0 0
        %6715 = vmatpush1.bf16.msra.mxu0 0
        %6716 = vmatprep.subr.bf16.mxu0 0
        %6717 = vmatpush1.bf16.msra.mxu0 0
        %6718 = vmatprep.subr.bf16.mxu0 0
        %6719 = vmatpush1.bf16.msra.mxu0 0
        %6720 = vmatprep.subr.bf16.mxu0 0
        %6721 = vmatpush1.bf16.msra.mxu0 0
        %6722 = vmatprep.subr.bf16.mxu0 0
        %6723 = vmatpush1.bf16.msra.mxu0 0
        %6724 = vmatprep.mubr.bf16.mxu0 0
        %6725 = vmatmul.mubr.bf16.gmra.mrb[0].mxu0 %v1141
        %v6726 = vpop.f32.mrb[0].mxu0
        %v6727 = vadd.f32 0.0, %v6726
        %v6728 = vpop.f32.mrb[0].mxu0
        %v6729 = vpop.f32.mrb[0].mxu0
        %v6730 = vadd.f32 0.0, %v6729
        %v6731 = vpop.f32.mrb[0].mxu0
        %6732 = vdwg.mxu0
        %v6733 = vld [vmem:[%s1611 + $0x70] sm:$0xff]
        %v6734 = vld [vmem:[%s1611 + $0x78] sm:$0xff]
        %v6735 = vld [vmem:[%s1611 + $0x80] sm:$0xff]
        %v6736 = vld [vmem:[%s1611 + $0x88] sm:$0xf]
        %v6737 = vld [vmem:[%s1611 + $0x134] sm:$0xff]
        %v6738 = vld [vmem:[%s1611 + $0x13c] sm:$0xff]
        %v6739 = vld [vmem:[%s1611 + $0x144] sm:$0xff]
        %v6740 = vld [vmem:[%s1611 + $0x14c] sm:$0xf]
        %v6741 = vld [vmem:[%s1611 + $0x1f8] sm:$0xff]
        %v6742 = vld [vmem:[%s1611 + $0x200] sm:$0xff]
        %v6743 = vld [vmem:[%s1611 + $0x208] sm:$0xff]
        %v6744 = vld [vmem:[%s1611 + $0x210] sm:$0xf]
        %v6745 = vld [vmem:[%s1611 + $0x2bc] sm:$0x33]
        %v6746 = vld [vmem:[%s1611 + $0x2c4] sm:$0x33]
        %v6747 = vld [vmem:[%s1611 + $0x2cc] sm:$0x33]
        %v6748 = vld [vmem:[%s1611 + $0x2d4] sm:$0x3]
        %v6765 = vunpack.c.l.b16 %v6733
        %v6766 = vunpack.c.h.b16 %v6733
        %v6767 = vunpack.c.l.b16 %v6734
        %v6768 = vunpack.c.h.b16 %v6734
        %v6769 = vunpack.c.l.b16 %v6735
        %v6770 = vunpack.c.h.b16 %v6735
        %v6771 = vunpack.c.l.b16 %v6736
        %v6772 = vunpack.c.l.b16 %v6737
        %v6773 = vunpack.c.h.b16 %v6737
        %v6774 = vunpack.c.l.b16 %v6738
        %v6775 = vunpack.c.h.b16 %v6738
        %v6776 = vunpack.c.l.b16 %v6739
        %v6777 = vunpack.c.h.b16 %v6739
        %v6778 = vunpack.c.l.b16 %v6740
        %v6779 = vunpack.c.l.b16 %v6741
        %v6780 = vunpack.c.h.b16 %v6741
        %v6781 = vunpack.c.l.b16 %v6742
        %v6782 = vunpack.c.h.b16 %v6742
        %v6783 = vunpack.c.l.b16 %v6743
        %v6784 = vunpack.c.h.b16 %v6743
        %v6785 = vunpack.c.l.b16 %v6744
        %v6786 = vunpack.c.l.b16 %v6745
        %v6787 = vunpack.c.h.b16 %v6745
        %v6788 = vunpack.c.l.b16 %v6746
        %v6789 = vunpack.c.h.b16 %v6746
        %v6790 = vunpack.c.l.b16 %v6747
        %v6791 = vunpack.c.h.b16 %v6747
        %v6792 = vunpack.c.l.b16 %v6748
        %v6793 = vpack.c.b16 %v6772, %v6765
        %v6794 = vpack.c.b16 %v6773, %v6766
        %v6795 = vpack.c.b16 %v6774, %v6767
        %v6796 = vpack.c.b16 %v6775, %v6768
        %v6797 = vpack.c.b16 %v6776, %v6769
        %v6798 = vpack.c.b16 %v6777, %v6770
        %v6799 = vpack.c.b16 %v6778, %v6771
        %v6800 = vpack.c.b16 %v6786, %v6779
        %v6801 = vpack.c.b16 %v6787, %v6780
        %v6802 = vpack.c.b16 %v6788, %v6781
        %v6803 = vpack.c.b16 %v6789, %v6782
        %v6804 = vpack.c.b16 %v6790, %v6783
        %v6805 = vpack.c.b16 %v6791, %v6784
        %v6806 = vpack.c.b16 %v6792, %v6785
        %v6815 = vand.u32 %v6800, %v1146
        %v6818 = vand.u32 %v6801, %v1146
        %v6821 = vand.u32 %v6802, %v1146
        %v6824 = vand.u32 %v6803, %v1146
        %v6827 = vand.u32 %v6804, %v1146
        %v6830 = vand.u32 %v6805, %v1146
        %v6833 = vand.u32 %v6806, %v1146
        %6835 = vmatprep.subr.bf16.mxu0 %v6794
        %6836 = vmatpush1.bf16.msra.mxu0 %v6793
        %6837 = vmatprep.subr.bf16.mxu0 %v6818
        %6838 = vmatpush1.bf16.msra.mxu0 %v6815
        %6839 = vmatprep.subr.bf16.mxu0 0
        %6840 = vmatpush1.bf16.msra.mxu0 0
        %6841 = vmatprep.subr.bf16.mxu0 0
        %6842 = vmatpush1.bf16.msra.mxu0 0
        %6843 = vmatprep.subr.bf16.mxu0 0
        %6844 = vmatpush1.bf16.msra.mxu0 0
        %6845 = vmatprep.subr.bf16.mxu0 0
        %6846 = vmatpush1.bf16.msra.mxu0 0
        %6847 = vmatprep.subr.bf16.mxu0 0
        %6848 = vmatpush1.bf16.msra.mxu0 0
        %6849 = vmatprep.subr.bf16.mxu0 0
        %6850 = vmatpush1.bf16.msra.mxu0 0
        %6851 = vmatprep.subr.bf16.mxu0 0
        %6852 = vmatpush1.bf16.msra.mxu0 0
        %6853 = vmatprep.subr.bf16.mxu0 0
        %6854 = vmatpush1.bf16.msra.mxu0 0
        %6855 = vmatprep.subr.bf16.mxu0 0
        %6856 = vmatpush1.bf16.msra.mxu0 0
        %6857 = vmatprep.subr.bf16.mxu0 0
        %6858 = vmatpush1.bf16.msra.mxu0 0
        %6859 = vmatprep.subr.bf16.mxu0 0
        %6860 = vmatpush1.bf16.msra.mxu0 0
        %6861 = vmatprep.subr.bf16.mxu0 0
        %6862 = vmatpush1.bf16.msra.mxu0 0
        %6863 = vmatprep.subr.bf16.mxu0 0
        %6864 = vmatpush1.bf16.msra.mxu0 0
        %6865 = vmatprep.subr.bf16.mxu0 0
        %6866 = vmatpush1.bf16.msra.mxu0 0
        %6867 = vmatprep.mubr.bf16.mxu0 0
        %6868 = vmatmul.mubr.bf16.gmra.mrb[0].mxu0 %v1141
        %v6869 = vpop.f32.mrb[0].mxu0
        %v6870 = vadd.f32 0.0, %v6869
        %v6871 = vpop.f32.mrb[0].mxu0
        %v6872 = vadd.f32 0.0, %v6871
        %v6873 = vpop.f32.mrb[0].mxu0
        %v6874 = vadd.f32 0.0, %v6873
        %v6875 = vpop.f32.mrb[0].mxu0
        %v6876 = vadd.f32 0.0, %v6875
        %6877 = vdwg.mxu0
        %6878 = vmatprep.subr.bf16.mxu0 %v6796
        %6879 = vmatpush1.bf16.msra.mxu0 %v6795
        %6880 = vmatprep.subr.bf16.mxu0 %v6824
        %6881 = vmatpush1.bf16.msra.mxu0 %v6821
        %6882 = vmatprep.subr.bf16.mxu0 0
        %6883 = vmatpush1.bf16.msra.mxu0 0
        %6884 = vmatprep.subr.bf16.mxu0 0
        %6885 = vmatpush1.bf16.msra.mxu0 0
        %6886 = vmatprep.subr.bf16.mxu0 0
        %6887 = vmatpush1.bf16.msra.mxu0 0
        %6888 = vmatprep.subr.bf16.mxu0 0
        %6889 = vmatpush1.bf16.msra.mxu0 0
        %6890 = vmatprep.subr.bf16.mxu0 0
        %6891 = vmatpush1.bf16.msra.mxu0 0
        %6892 = vmatprep.subr.bf16.mxu0 0
        %6893 = vmatpush1.bf16.msra.mxu0 0
        %6894 = vmatprep.subr.bf16.mxu0 0
        %6895 = vmatpush1.bf16.msra.mxu0 0
        %6896 = vmatprep.subr.bf16.mxu0 0
        %6897 = vmatpush1.bf16.msra.mxu0 0
        %6898 = vmatprep.subr.bf16.mxu0 0
        %6899 = vmatpush1.bf16.msra.mxu0 0
        %6900 = vmatprep.subr.bf16.mxu0 0
        %6901 = vmatpush1.bf16.msra.mxu0 0
        %6902 = vmatprep.subr.bf16.mxu0 0
        %6903 = vmatpush1.bf16.msra.mxu0 0
        %6904 = vmatprep.subr.bf16.mxu0 0
        %6905 = vmatpush1.bf16.msra.mxu0 0
        %6906 = vmatprep.subr.bf16.mxu0 0
        %6907 = vmatpush1.bf16.msra.mxu0 0
        %6908 = vmatprep.subr.bf16.mxu0 0
        %6909 = vmatpush1.bf16.msra.mxu0 0
        %6910 = vmatprep.mubr.bf16.mxu0 0
        %6911 = vmatmul.mubr.bf16.gmra.mrb[0].mxu0 %v1141
        %v6912 = vpop.f32.mrb[0].mxu0
        %v6913 = vadd.f32 0.0, %v6912
        %v6914 = vpop.f32.mrb[0].mxu0
        %v6915 = vadd.f32 0.0, %v6914
        %v6916 = vpop.f32.mrb[0].mxu0
        %v6917 = vadd.f32 0.0, %v6916
        %v6918 = vpop.f32.mrb[0].mxu0
        %v6919 = vadd.f32 0.0, %v6918
        %6920 = vdwg.mxu0
        %6921 = vmatprep.subr.bf16.mxu0 %v6798
        %6922 = vmatpush1.bf16.msra.mxu0 %v6797
        %6923 = vmatprep.subr.bf16.mxu0 %v6830
        %6924 = vmatpush1.bf16.msra.mxu0 %v6827
        %6925 = vmatprep.subr.bf16.mxu0 0
        %6926 = vmatpush1.bf16.msra.mxu0 0
        %6927 = vmatprep.subr.bf16.mxu0 0
        %6928 = vmatpush1.bf16.msra.mxu0 0
        %6929 = vmatprep.subr.bf16.mxu0 0
        %6930 = vmatpush1.bf16.msra.mxu0 0
        %6931 = vmatprep.subr.bf16.mxu0 0
        %6932 = vmatpush1.bf16.msra.mxu0 0
        %6933 = vmatprep.subr.bf16.mxu0 0
        %6934 = vmatpush1.bf16.msra.mxu0 0
        %6935 = vmatprep.subr.bf16.mxu0 0
        %6936 = vmatpush1.bf16.msra.mxu0 0
        %6937 = vmatprep.subr.bf16.mxu0 0
        %6938 = vmatpush1.bf16.msra.mxu0 0
        %6939 = vmatprep.subr.bf16.mxu0 0
        %6940 = vmatpush1.bf16.msra.mxu0 0
        %6941 = vmatprep.subr.bf16.mxu0 0
        %6942 = vmatpush1.bf16.msra.mxu0 0
        %6943 = vmatprep.subr.bf16.mxu0 0
        %6944 = vmatpush1.bf16.msra.mxu0 0
        %6945 = vmatprep.subr.bf16.mxu0 0
        %6946 = vmatpush1.bf16.msra.mxu0 0
        %6947 = vmatprep.subr.bf16.mxu0 0
        %6948 = vmatpush1.bf16.msra.mxu0 0
        %6949 = vmatprep.subr.bf16.mxu0 0
        %6950 = vmatpush1.bf16.msra.mxu0 0
        %6951 = vmatprep.subr.bf16.mxu0 0
        %6952 = vmatpush1.bf16.msra.mxu0 0
        %6953 = vmatprep.mubr.bf16.mxu0 0
        %6954 = vmatmul.mubr.bf16.gmra.mrb[0].mxu0 %v1141
        %v6955 = vpop.f32.mrb[0].mxu0
        %v6956 = vadd.f32 0.0, %v6955
        %v6957 = vpop.f32.mrb[0].mxu0
        %v6958 = vadd.f32 0.0, %v6957
        %v6959 = vpop.f32.mrb[0].mxu0
        %v6960 = vadd.f32 0.0, %v6959
        %v6961 = vpop.f32.mrb[0].mxu0
        %v6962 = vadd.f32 0.0, %v6961
        %6963 = vdwg.mxu0
        %6964 = vmatprep.subr.bf16.mxu0 0
        %6965 = vmatpush1.bf16.msra.mxu0 %v6799
        %6966 = vmatprep.subr.bf16.mxu0 0
        %6967 = vmatpush1.bf16.msra.mxu0 %v6833
        %6968 = vmatprep.subr.bf16.mxu0 0
        %6969 = vmatpush1.bf16.msra.mxu0 0
        %6970 = vmatprep.subr.bf16.mxu0 0
        %6971 = vmatpush1.bf16.msra.mxu0 0
        %6972 = vmatprep.subr.bf16.mxu0 0
        %6973 = vmatpush1.bf16.msra.mxu0 0
        %6974 = vmatprep.subr.bf16.mxu0 0
        %6975 = vmatpush1.bf16.msra.mxu0 0
        %6976 = vmatprep.subr.bf16.mxu0 0
        %6977 = vmatpush1.bf16.msra.mxu0 0
        %6978 = vmatprep.subr.bf16.mxu0 0
        %6979 = vmatpush1.bf16.msra.mxu0 0
        %6980 = vmatprep.subr.bf16.mxu0 0
        %6981 = vmatpush1.bf16.msra.mxu0 0
        %6982 = vmatprep.subr.bf16.mxu0 0
        %6983 = vmatpush1.bf16.msra.mxu0 0
        %6984 = vmatprep.subr.bf16.mxu0 0
        %6985 = vmatpush1.bf16.msra.mxu0 0
        %6986 = vmatprep.subr.bf16.mxu0 0
        %6987 = vmatpush1.bf16.msra.mxu0 0
        %6988 = vmatprep.subr.bf16.mxu0 0
        %6989 = vmatpush1.bf16.msra.mxu0 0
        %6990 = vmatprep.subr.bf16.mxu0 0
        %6991 = vmatpush1.bf16.msra.mxu0 0
        %6992 = vmatprep.subr.bf16.mxu0 0
        %6993 = vmatpush1.bf16.msra.mxu0 0
        %6994 = vmatprep.subr.bf16.mxu0 0
        %6995 = vmatpush1.bf16.msra.mxu0 0
        %6996 = vmatprep.mubr.bf16.mxu0 0
        %6997 = vmatmul.mubr.bf16.gmra.mrb[0].mxu0 %v1141
        %v6998 = vpop.f32.mrb[0].mxu0
        %v6999 = vadd.f32 0.0, %v6998
        %v7000 = vpop.f32.mrb[0].mxu0
        %v7001 = vpop.f32.mrb[0].mxu0
        %v7002 = vadd.f32 0.0, %v7001
        %v7003 = vpop.f32.mrb[0].mxu0
        %7004 = vdwg.mxu0
        %v7005 = vld [vmem:[%s1884 + $0x70] sm:$0xff]
        %v7006 = vld [vmem:[%s1884 + $0x78] sm:$0xff]
        %v7007 = vld [vmem:[%s1884 + $0x80] sm:$0xff]
        %v7008 = vld [vmem:[%s1884 + $0x88] sm:$0xf]
        %v7009 = vld [vmem:[%s1884 + $0x134] sm:$0xff]
        %v7010 = vld [vmem:[%s1884 + $0x13c] sm:$0xff]
        %v7011 = vld [vmem:[%s1884 + $0x144] sm:$0xff]
        %v7012 = vld [vmem:[%s1884 + $0x14c] sm:$0xf]
        %v7013 = vld [vmem:[%s1884 + $0x1f8] sm:$0xff]
        %v7014 = vld [vmem:[%s1884 + $0x200] sm:$0xff]
        %v7015 = vld [vmem:[%s1884 + $0x208] sm:$0xff]
        %v7016 = vld [vmem:[%s1884 + $0x210] sm:$0xf]
        %v7017 = vld [vmem:[%s1884 + $0x2bc] sm:$0x33]
        %v7018 = vld [vmem:[%s1884 + $0x2c4] sm:$0x33]
        %v7019 = vld [vmem:[%s1884 + $0x2cc] sm:$0x33]
        %v7020 = vld [vmem:[%s1884 + $0x2d4] sm:$0x3]
        %v7037 = vunpack.c.l.b16 %v7005
        %v7038 = vunpack.c.h.b16 %v7005
        %v7039 = vunpack.c.l.b16 %v7006
        %v7040 = vunpack.c.h.b16 %v7006
        %v7041 = vunpack.c.l.b16 %v7007
        %v7042 = vunpack.c.h.b16 %v7007
        %v7043 = vunpack.c.l.b16 %v7008
        %v7044 = vunpack.c.l.b16 %v7009
        %v7045 = vunpack.c.h.b16 %v7009
        %v7046 = vunpack.c.l.b16 %v7010
        %v7047 = vunpack.c.h.b16 %v7010
        %v7048 = vunpack.c.l.b16 %v7011
        %v7049 = vunpack.c.h.b16 %v7011
        %v7050 = vunpack.c.l.b16 %v7012
        %v7051 = vunpack.c.l.b16 %v7013
        %v7052 = vunpack.c.h.b16 %v7013
        %v7053 = vunpack.c.l.b16 %v7014
        %v7054 = vunpack.c.h.b16 %v7014
        %v7055 = vunpack.c.l.b16 %v7015
        %v7056 = vunpack.c.h.b16 %v7015
        %v7057 = vunpack.c.l.b16 %v7016
        %v7058 = vunpack.c.l.b16 %v7017
        %v7059 = vunpack.c.h.b16 %v7017
        %v7060 = vunpack.c.l.b16 %v7018
        %v7061 = vunpack.c.h.b16 %v7018
        %v7062 = vunpack.c.l.b16 %v7019
        %v7063 = vunpack.c.h.b16 %v7019
        %v7064 = vunpack.c.l.b16 %v7020
        %v7065 = vpack.c.b16 %v7044, %v7037
        %v7066 = vpack.c.b16 %v7045, %v7038
        %v7067 = vpack.c.b16 %v7046, %v7039
        %v7068 = vpack.c.b16 %v7047, %v7040
        %v7069 = vpack.c.b16 %v7048, %v7041
        %v7070 = vpack.c.b16 %v7049, %v7042
        %v7071 = vpack.c.b16 %v7050, %v7043
        %v7072 = vpack.c.b16 %v7058, %v7051
        %v7073 = vpack.c.b16 %v7059, %v7052
        %v7074 = vpack.c.b16 %v7060, %v7053
        %v7075 = vpack.c.b16 %v7061, %v7054
        %v7076 = vpack.c.b16 %v7062, %v7055
        %v7077 = vpack.c.b16 %v7063, %v7056
        %v7078 = vpack.c.b16 %v7064, %v7057
        %v7087 = vand.u32 %v7072, %v1146
        %v7090 = vand.u32 %v7073, %v1146
        %v7093 = vand.u32 %v7074, %v1146
        %v7096 = vand.u32 %v7075, %v1146
        %v7099 = vand.u32 %v7076, %v1146
        %v7102 = vand.u32 %v7077, %v1146
        %v7105 = vand.u32 %v7078, %v1146
        %7107 = vmatprep.subr.bf16.mxu0 %v7066
        %7108 = vmatpush1.bf16.msra.mxu0 %v7065
        %7109 = vmatprep.subr.bf16.mxu0 %v7090
        %7110 = vmatpush1.bf16.msra.mxu0 %v7087
        %7111 = vmatprep.subr.bf16.mxu0 0
        %7112 = vmatpush1.bf16.msra.mxu0 0
        %7113 = vmatprep.subr.bf16.mxu0 0
        %7114 = vmatpush1.bf16.msra.mxu0 0
        %7115 = vmatprep.subr.bf16.mxu0 0
        %7116 = vmatpush1.bf16.msra.mxu0 0
        %7117 = vmatprep.subr.bf16.mxu0 0
        %7118 = vmatpush1.bf16.msra.mxu0 0
        %7119 = vmatprep.subr.bf16.mxu0 0
        %7120 = vmatpush1.bf16.msra.mxu0 0
        %7121 = vmatprep.subr.bf16.mxu0 0
        %7122 = vmatpush1.bf16.msra.mxu0 0
        %7123 = vmatprep.subr.bf16.mxu0 0
        %7124 = vmatpush1.bf16.msra.mxu0 0
        %7125 = vmatprep.subr.bf16.mxu0 0
        %7126 = vmatpush1.bf16.msra.mxu0 0
        %7127 = vmatprep.subr.bf16.mxu0 0
        %7128 = vmatpush1.bf16.msra.mxu0 0
        %7129 = vmatprep.subr.bf16.mxu0 0
        %7130 = vmatpush1.bf16.msra.mxu0 0
        %7131 = vmatprep.subr.bf16.mxu0 0
        %7132 = vmatpush1.bf16.msra.mxu0 0
        %7133 = vmatprep.subr.bf16.mxu0 0
        %7134 = vmatpush1.bf16.msra.mxu0 0
        %7135 = vmatprep.subr.bf16.mxu0 0
        %7136 = vmatpush1.bf16.msra.mxu0 0
        %7137 = vmatprep.subr.bf16.mxu0 0
        %7138 = vmatpush1.bf16.msra.mxu0 0
        %7139 = vmatprep.mubr.bf16.mxu0 0
        %7140 = vmatmul.mubr.bf16.gmra.mrb[0].mxu0 %v1141
        %v7141 = vpop.f32.mrb[0].mxu0
        %v7142 = vadd.f32 0.0, %v7141
        %v7143 = vpop.f32.mrb[0].mxu0
        %v7144 = vadd.f32 0.0, %v7143
        %v7145 = vpop.f32.mrb[0].mxu0
        %v7146 = vadd.f32 0.0, %v7145
        %v7147 = vpop.f32.mrb[0].mxu0
        %v7148 = vadd.f32 0.0, %v7147
        %7149 = vdwg.mxu0
        %7150 = vmatprep.subr.bf16.mxu0 %v7068
        %7151 = vmatpush1.bf16.msra.mxu0 %v7067
        %7152 = vmatprep.subr.bf16.mxu0 %v7096
        %7153 = vmatpush1.bf16.msra.mxu0 %v7093
        %7154 = vmatprep.subr.bf16.mxu0 0
        %7155 = vmatpush1.bf16.msra.mxu0 0
        %7156 = vmatprep.subr.bf16.mxu0 0
        %7157 = vmatpush1.bf16.msra.mxu0 0
        %7158 = vmatprep.subr.bf16.mxu0 0
        %7159 = vmatpush1.bf16.msra.mxu0 0
        %7160 = vmatprep.subr.bf16.mxu0 0
        %7161 = vmatpush1.bf16.msra.mxu0 0
        %7162 = vmatprep.subr.bf16.mxu0 0
        %7163 = vmatpush1.bf16.msra.mxu0 0
        %7164 = vmatprep.subr.bf16.mxu0 0
        %7165 = vmatpush1.bf16.msra.mxu0 0
        %7166 = vmatprep.subr.bf16.mxu0 0
        %7167 = vmatpush1.bf16.msra.mxu0 0
        %7168 = vmatprep.subr.bf16.mxu0 0
        %7169 = vmatpush1.bf16.msra.mxu0 0
        %7170 = vmatprep.subr.bf16.mxu0 0
        %7171 = vmatpush1.bf16.msra.mxu0 0
        %7172 = vmatprep.subr.bf16.mxu0 0
        %7173 = vmatpush1.bf16.msra.mxu0 0
        %7174 = vmatprep.subr.bf16.mxu0 0
        %7175 = vmatpush1.bf16.msra.mxu0 0
        %7176 = vmatprep.subr.bf16.mxu0 0
        %7177 = vmatpush1.bf16.msra.mxu0 0
        %7178 = vmatprep.subr.bf16.mxu0 0
        %7179 = vmatpush1.bf16.msra.mxu0 0
        %7180 = vmatprep.subr.bf16.mxu0 0
        %7181 = vmatpush1.bf16.msra.mxu0 0
        %7182 = vmatprep.mubr.bf16.mxu0 0
        %7183 = vmatmul.mubr.bf16.gmra.mrb[0].mxu0 %v1141
        %v7184 = vpop.f32.mrb[0].mxu0
        %v7185 = vadd.f32 0.0, %v7184
        %v7186 = vpop.f32.mrb[0].mxu0
        %v7187 = vadd.f32 0.0, %v7186
        %v7188 = vpop.f32.mrb[0].mxu0
        %v7189 = vadd.f32 0.0, %v7188
        %v7190 = vpop.f32.mrb[0].mxu0
        %v7191 = vadd.f32 0.0, %v7190
        %7192 = vdwg.mxu0
        %7193 = vmatprep.subr.bf16.mxu0 %v7070
        %7194 = vmatpush1.bf16.msra.mxu0 %v7069
        %7195 = vmatprep.subr.bf16.mxu0 %v7102
        %7196 = vmatpush1.bf16.msra.mxu0 %v7099
        %7197 = vmatprep.subr.bf16.mxu0 0
        %7198 = vmatpush1.bf16.msra.mxu0 0
        %7199 = vmatprep.subr.bf16.mxu0 0
        %7200 = vmatpush1.bf16.msra.mxu0 0
        %7201 = vmatprep.subr.bf16.mxu0 0
        %7202 = vmatpush1.bf16.msra.mxu0 0
        %7203 = vmatprep.subr.bf16.mxu0 0
        %7204 = vmatpush1.bf16.msra.mxu0 0
        %7205 = vmatprep.subr.bf16.mxu0 0
        %7206 = vmatpush1.bf16.msra.mxu0 0
        %7207 = vmatprep.subr.bf16.mxu0 0
        %7208 = vmatpush1.bf16.msra.mxu0 0
        %7209 = vmatprep.subr.bf16.mxu0 0
        %7210 = vmatpush1.bf16.msra.mxu0 0
        %7211 = vmatprep.subr.bf16.mxu0 0
        %7212 = vmatpush1.bf16.msra.mxu0 0
        %7213 = vmatprep.subr.bf16.mxu0 0
        %7214 = vmatpush1.bf16.msra.mxu0 0
        %7215 = vmatprep.subr.bf16.mxu0 0
        %7216 = vmatpush1.bf16.msra.mxu0 0
        %7217 = vmatprep.subr.bf16.mxu0 0
        %7218 = vmatpush1.bf16.msra.mxu0 0
        %7219 = vmatprep.subr.bf16.mxu0 0
        %7220 = vmatpush1.bf16.msra.mxu0 0
        %7221 = vmatprep.subr.bf16.mxu0 0
        %7222 = vmatpush1.bf16.msra.mxu0 0
        %7223 = vmatprep.subr.bf16.mxu0 0
        %7224 = vmatpush1.bf16.msra.mxu0 0
        %7225 = vmatprep.mubr.bf16.mxu0 0
        %7226 = vmatmul.mubr.bf16.gmra.mrb[0].mxu0 %v1141
        %v7227 = vpop.f32.mrb[0].mxu0
        %v7228 = vadd.f32 0.0, %v7227
        %v7229 = vpop.f32.mrb[0].mxu0
        %v7230 = vadd.f32 0.0, %v7229
        %v7231 = vpop.f32.mrb[0].mxu0
        %v7232 = vadd.f32 0.0, %v7231
        %v7233 = vpop.f32.mrb[0].mxu0
        %v7234 = vadd.f32 0.0, %v7233
        %7235 = vdwg.mxu0
        %7236 = vmatprep.subr.bf16.mxu0 0
        %7237 = vmatpush1.bf16.msra.mxu0 %v7071
        %7238 = vmatprep.subr.bf16.mxu0 0
        %7239 = vmatpush1.bf16.msra.mxu0 %v7105
        %7240 = vmatprep.subr.bf16.mxu0 0
        %7241 = vmatpush1.bf16.msra.mxu0 0
        %7242 = vmatprep.subr.bf16.mxu0 0
        %7243 = vmatpush1.bf16.msra.mxu0 0
        %7244 = vmatprep.subr.bf16.mxu0 0
        %7245 = vmatpush1.bf16.msra.mxu0 0
        %7246 = vmatprep.subr.bf16.mxu0 0
        %7247 = vmatpush1.bf16.msra.mxu0 0
        %7248 = vmatprep.subr.bf16.mxu0 0
        %7249 = vmatpush1.bf16.msra.mxu0 0
        %7250 = vmatprep.subr.bf16.mxu0 0
        %7251 = vmatpush1.bf16.msra.mxu0 0
        %7252 = vmatprep.subr.bf16.mxu0 0
        %7253 = vmatpush1.bf16.msra.mxu0 0
        %7254 = vmatprep.subr.bf16.mxu0 0
        %7255 = vmatpush1.bf16.msra.mxu0 0
        %7256 = vmatprep.subr.bf16.mxu0 0
        %7257 = vmatpush1.bf16.msra.mxu0 0
        %7258 = vmatprep.subr.bf16.mxu0 0
        %7259 = vmatpush1.bf16.msra.mxu0 0
        %7260 = vmatprep.subr.bf16.mxu0 0
        %7261 = vmatpush1.bf16.msra.mxu0 0
        %7262 = vmatprep.subr.bf16.mxu0 0
        %7263 = vmatpush1.bf16.msra.mxu0 0
        %7264 = vmatprep.subr.bf16.mxu0 0
        %7265 = vmatpush1.bf16.msra.mxu0 0
        %7266 = vmatprep.subr.bf16.mxu0 0
        %7267 = vmatpush1.bf16.msra.mxu0 0
        %7268 = vmatprep.mubr.bf16.mxu0 0
        %7269 = vmatmul.mubr.bf16.gmra.mrb[0].mxu0 %v1141
        %v7270 = vpop.f32.mrb[0].mxu0
        %v7271 = vadd.f32 0.0, %v7270
        %v7272 = vpop.f32.mrb[0].mxu0
        %v7273 = vpop.f32.mrb[0].mxu0
        %v7274 = vadd.f32 0.0, %v7273
        %v7275 = vpop.f32.mrb[0].mxu0
        %7276 = vdwg.mxu0
        %v7277 = vmax.f32 %v6326, %v6598
        %v7278 = vmax.f32 %v6328, %v6600
        %v7279 = vmax.f32 %v6369, %v6641
        %v7280 = vmax.f32 %v6371, %v6643
        %v7281 = vmax.f32 %v6412, %v6684
        %v7282 = vmax.f32 %v6414, %v6686
        %v7283 = vmax.f32 %v6455, %v6727
        %v7284 = vmax.f32 %v6330, %v6602
        %v7285 = vmax.f32 %v6332, %v6604
        %v7286 = vmax.f32 %v6373, %v6645
        %v7287 = vmax.f32 %v6375, %v6647
        %v7288 = vmax.f32 %v6416, %v6688
        %v7289 = vmax.f32 %v6418, %v6690
        %v7290 = vmax.f32 %v6458, %v6730
        %v7291 = vmax.f32 %v6870, %v7142
        %v7292 = vmax.f32 %v6872, %v7144
        %v7293 = vmax.f32 %v6913, %v7185
        %v7294 = vmax.f32 %v6915, %v7187
        %v7295 = vmax.f32 %v6956, %v7228
        %v7296 = vmax.f32 %v6958, %v7230
        %v7297 = vmax.f32 %v6999, %v7271
        %v7298 = vmax.f32 %v6874, %v7146
        %v7299 = vmax.f32 %v6876, %v7148
        %v7300 = vmax.f32 %v6917, %v7189
        %v7301 = vmax.f32 %v6919, %v7191
        %v7302 = vmax.f32 %v6960, %v7232
        %v7303 = vmax.f32 %v6962, %v7234
        %v7304 = vmax.f32 %v7002, %v7274
        %v7305 = vmax.f32 %v7277, %v7291
        %v7306 = vmax.f32 %v7278, %v7292
        %v7307 = vmax.f32 %v7279, %v7293
        %v7308 = vmax.f32 %v7280, %v7294
        %v7309 = vmax.f32 %v7281, %v7295
        %v7310 = vmax.f32 %v7282, %v7296
        %v7311 = vmax.f32 %v7283, %v7297
        %v7312 = vmax.f32 %v7284, %v7298
        %v7313 = vmax.f32 %v7285, %v7299
        %v7314 = vmax.f32 %v7286, %v7300
        %v7315 = vmax.f32 %v7287, %v7301
        %v7316 = vmax.f32 %v7288, %v7302
        %v7317 = vmax.f32 %v7289, %v7303
        %v7318 = vmax.f32 %v7290, %v7304
        %v7319 = vadd.f32 %v7305, %v2202
        %v7320 = vadd.f32 %v7306, %v2202
        %v7321 = vadd.f32 %v7307, %v2202
        %v7322 = vadd.f32 %v7308, %v2202
        %v7323 = vadd.f32 %v7309, %v2202
        %v7324 = vadd.f32 %v7310, %v2202
        %v7325 = vadd.f32 %v7311, %v2202
        %v7326 = vadd.f32 %v7312, %v2207
        %v7327 = vadd.f32 %v7313, %v2207
        %v7328 = vadd.f32 %v7314, %v2207
        %v7329 = vadd.f32 %v7315, %v2207
        %v7330 = vadd.f32 %v7316, %v2207
        %v7331 = vadd.f32 %v7317, %v2207
        %v7332 = vadd.f32 %v7318, %v2207
        %v7333 = vmax.f32 %v7319, 0.0
        %v7334 = vmax.f32 %v7320, 0.0
        %v7335 = vmax.f32 %v7321, 0.0
        %v7336 = vmax.f32 %v7322, 0.0
        %v7337 = vmax.f32 %v7323, 0.0
        %v7338 = vmax.f32 %v7324, 0.0
        %v7339 = vmax.f32 %v7325, 0.0
        %v7340 = vmax.f32 %v7326, 0.0
        %v7341 = vmax.f32 %v7327, 0.0
        %v7342 = vmax.f32 %v7328, 0.0
        %v7343 = vmax.f32 %v7329, 0.0
        %v7344 = vmax.f32 %v7330, 0.0
        %v7345 = vmax.f32 %v7331, 0.0
        %v7346 = vmax.f32 %v7332, 0.0
        %v7347 = vld [vmem:[%s2239 + $0x70] sm:$0xff]
        %v7348 = vld [vmem:[%s2239 + $0x78] sm:$0xff]
        %v7349 = vld [vmem:[%s2239 + $0x80] sm:$0xff]
        %v7350 = vld [vmem:[%s2239 + $0x88] sm:$0xf]
        %v7351 = vld [vmem:[%s2239 + $0x134] sm:$0xff]
        %v7352 = vld [vmem:[%s2239 + $0x13c] sm:$0xff]
        %v7353 = vld [vmem:[%s2239 + $0x144] sm:$0xff]
        %v7354 = vld [vmem:[%s2239 + $0x14c] sm:$0xf]
        %v7355 = vunpack.c.l.bf16 %v7347
        %v7356 = vunpack.c.h.bf16 %v7347
        %v7357 = vunpack.c.l.bf16 %v7348
        %v7358 = vunpack.c.h.bf16 %v7348
        %v7359 = vunpack.c.l.bf16 %v7349
        %v7360 = vunpack.c.h.bf16 %v7349
        %v7361 = vunpack.c.l.bf16 %v7350
        %v7362 = vunpack.c.l.bf16 %v7351
        %v7363 = vunpack.c.h.bf16 %v7351
        %v7364 = vunpack.c.l.bf16 %v7352
        %v7365 = vunpack.c.h.bf16 %v7352
        %v7366 = vunpack.c.l.bf16 %v7353
        %v7367 = vunpack.c.h.bf16 %v7353
        %v7368 = vunpack.c.l.bf16 %v7354
        %v7369 = vld [vmem:[%s2264 + $0x70] sm:$0xff]
        %v7370 = vld [vmem:[%s2264 + $0x78] sm:$0xff]
        %v7371 = vld [vmem:[%s2264 + $0x80] sm:$0xff]
        %v7372 = vld [vmem:[%s2264 + $0x88] sm:$0xf]
        %v7373 = vld [vmem:[%s2264 + $0x134] sm:$0xff]
        %v7374 = vld [vmem:[%s2264 + $0x13c] sm:$0xff]
        %v7375 = vld [vmem:[%s2264 + $0x144] sm:$0xff]
        %v7376 = vld [vmem:[%s2264 + $0x14c] sm:$0xf]
        %v7377 = vunpack.c.l.bf16 %v7369
        %v7378 = vunpack.c.h.bf16 %v7369
        %v7379 = vunpack.c.l.bf16 %v7370
        %v7380 = vunpack.c.h.bf16 %v7370
        %v7381 = vunpack.c.l.bf16 %v7371
        %v7382 = vunpack.c.h.bf16 %v7371
        %v7383 = vunpack.c.l.bf16 %v7372
        %v7384 = vunpack.c.l.bf16 %v7373
        %v7385 = vunpack.c.h.bf16 %v7373
        %v7386 = vunpack.c.l.bf16 %v7374
        %v7387 = vunpack.c.h.bf16 %v7374
        %v7388 = vunpack.c.l.bf16 %v7375
        %v7389 = vunpack.c.h.bf16 %v7375
        %v7390 = vunpack.c.l.bf16 %v7376
        %v7391 = vmul.f32 %v7333, %v7355
        %v7392 = vmul.f32 %v7334, %v7356
        %v7393 = vmul.f32 %v7335, %v7357
        %v7394 = vmul.f32 %v7336, %v7358
        %v7395 = vmul.f32 %v7337, %v7359
        %v7396 = vmul.f32 %v7338, %v7360
        %v7397 = vmul.f32 %v7339, %v7361
        %v7398 = vmul.f32 %v7340, %v7362
        %v7399 = vmul.f32 %v7341, %v7363
        %v7400 = vmul.f32 %v7342, %v7364
        %v7401 = vmul.f32 %v7343, %v7365
        %v7402 = vmul.f32 %v7344, %v7366
        %v7403 = vmul.f32 %v7345, %v7367
        %v7404 = vmul.f32 %v7346, %v7368
        %v7405 = vadd.f32 %v7391, %v7392
        %v7406 = vadd.f32 %v7405, %v7393
        %v7407 = vadd.f32 %v7406, %v7394
        %v7408 = vadd.f32 %v7407, %v7395
        %v7409 = vadd.f32 %v7408, %v7396
        %v7410 = vadd.f32 %v7409, %v7397
        %v7411 = vadd.f32 %v7410, %v7398
        %v7412 = vadd.f32 %v7411, %v7399
        %v7413 = vadd.f32 %v7412, %v7400
        %v7414 = vadd.f32 %v7413, %v7401
        %v7415 = vadd.f32 %v7414, %v7402
        %v7416 = vadd.f32 %v7415, %v7403
        %v7417 = vadd.f32 %v7416, %v7404
        %7418 = vadd.xlane.f32.xlu0 %v7417
        %v7419 = vpop.xlane.xlu0 %7418
        %v7420 = vrot.slane %v7419, 4
        %v7421 = vadd.f32 %v7419, %v7420
        %v7422 = vrot.slane %v7421, 2
        %v7423 = vadd.f32 %v7421, %v7422
        %v7424 = vrot.slane %v7423, 1
        %v7425 = vadd.f32 %v7423, %v7424
        %s7426 = vtos %v7425
        %s7427 = sadd.f32 %s6151, %s7426
        %v7428 = vmul.f32 %v7333, %v7377
        %v7429 = vmul.f32 %v7334, %v7378
        %v7430 = vmul.f32 %v7335, %v7379
        %v7431 = vmul.f32 %v7336, %v7380
        %v7432 = vmul.f32 %v7337, %v7381
        %v7433 = vmul.f32 %v7338, %v7382
        %v7434 = vmul.f32 %v7339, %v7383
        %v7435 = vmul.f32 %v7340, %v7384
        %v7436 = vmul.f32 %v7341, %v7385
        %v7437 = vmul.f32 %v7342, %v7386
        %v7438 = vmul.f32 %v7343, %v7387
        %v7439 = vmul.f32 %v7344, %v7388
        %v7440 = vmul.f32 %v7345, %v7389
        %v7441 = vmul.f32 %v7346, %v7390
        %v7442 = vadd.f32 %v7428, %v7429
        %v7443 = vadd.f32 %v7442, %v7430
        %v7444 = vadd.f32 %v7443, %v7431
        %v7445 = vadd.f32 %v7444, %v7432
        %v7446 = vadd.f32 %v7445, %v7433
        %v7447 = vadd.f32 %v7446, %v7434
        %v7448 = vadd.f32 %v7447, %v7435
        %v7449 = vadd.f32 %v7448, %v7436
        %v7450 = vadd.f32 %v7449, %v7437
        %v7451 = vadd.f32 %v7450, %v7438
        %v7452 = vadd.f32 %v7451, %v7439
        %v7453 = vadd.f32 %v7452, %v7440
        %v7454 = vadd.f32 %v7453, %v7441
        %7455 = vadd.xlane.f32.xlu0 %v7454
        %v7456 = vpop.xlane.xlu0 %7455
        %v7457 = vrot.slane %v7456, 4
        %v7458 = vadd.f32 %v7456, %v7457
        %v7459 = vrot.slane %v7458, 2
        %v7460 = vadd.f32 %v7458, %v7459
        %v7461 = vrot.slane %v7460, 1
        %v7462 = vadd.f32 %v7460, %v7461
        %s7463 = vtos %v7462
        %s7464 = sadd.f32 %s6188, %s7463
        %v7465 = vld [vmem:[%s1015 + $0x8c] sm:$0xff]
        %v7466 = vld [vmem:[%s1015 + $0x94] sm:$0xff]
        %v7467 = vld [vmem:[%s1015 + $0x9c] sm:$0xff]
        %v7468 = vld [vmem:[%s1015 + $0xa4] sm:$0xf]
        %v7469 = vld [vmem:[%s1015 + $0x150] sm:$0xff]
        %v7470 = vld [vmem:[%s1015 + $0x158] sm:$0xff]
        %v7471 = vld [vmem:[%s1015 + $0x160] sm:$0xff]
        %v7472 = vld [vmem:[%s1015 + $0x168] sm:$0xf]
        %v7473 = vld [vmem:[%s1015 + $0x214] sm:$0xff]
        %v7474 = vld [vmem:[%s1015 + $0x21c] sm:$0xff]
        %v7475 = vld [vmem:[%s1015 + $0x224] sm:$0xff]
        %v7476 = vld [vmem:[%s1015 + $0x22c] sm:$0xf]
        %v7477 = vld [vmem:[%s1015 + $0x2d8] sm:$0x33]
        %v7478 = vld [vmem:[%s1015 + $0x2e0] sm:$0x33]
        %v7479 = vld [vmem:[%s1015 + $0x2e8] sm:$0x33]
        %v7480 = vld [vmem:[%s1015 + $0x2f0] sm:$0x3]
        %v7497 = vunpack.c.l.b16 %v7465
        %v7498 = vunpack.c.h.b16 %v7465
        %v7499 = vunpack.c.l.b16 %v7466
        %v7500 = vunpack.c.h.b16 %v7466
        %v7501 = vunpack.c.l.b16 %v7467
        %v7502 = vunpack.c.h.b16 %v7467
        %v7503 = vunpack.c.l.b16 %v7468
        %v7504 = vunpack.c.l.b16 %v7469
        %v7505 = vunpack.c.h.b16 %v7469
        %v7506 = vunpack.c.l.b16 %v7470
        %v7507 = vunpack.c.h.b16 %v7470
        %v7508 = vunpack.c.l.b16 %v7471
        %v7509 = vunpack.c.h.b16 %v7471
        %v7510 = vunpack.c.l.b16 %v7472
        %v7511 = vunpack.c.l.b16 %v7473
        %v7512 = vunpack.c.h.b16 %v7473
        %v7513 = vunpack.c.l.b16 %v7474
        %v7514 = vunpack.c.h.b16 %v7474
        %v7515 = vunpack.c.l.b16 %v7475
        %v7516 = vunpack.c.h.b16 %v7475
        %v7517 = vunpack.c.l.b16 %v7476
        %v7518 = vunpack.c.l.b16 %v7477
        %v7519 = vunpack.c.h.b16 %v7477
        %v7520 = vunpack.c.l.b16 %v7478
        %v7521 = vunpack.c.h.b16 %v7478
        %v7522 = vunpack.c.l.b16 %v7479
        %v7523 = vunpack.c.h.b16 %v7479
        %v7524 = vunpack.c.l.b16 %v7480
        %v7525 = vpack.c.b16 %v7504, %v7497
        %v7526 = vpack.c.b16 %v7505, %v7498
        %v7527 = vpack.c.b16 %v7506, %v7499
        %v7528 = vpack.c.b16 %v7507, %v7500
        %v7529 = vpack.c.b16 %v7508, %v7501
        %v7530 = vpack.c.b16 %v7509, %v7502
        %v7531 = vpack.c.b16 %v7510, %v7503
        %v7532 = vpack.c.b16 %v7518, %v7511
        %v7533 = vpack.c.b16 %v7519, %v7512
        %v7534 = vpack.c.b16 %v7520, %v7513
        %v7535 = vpack.c.b16 %v7521, %v7514
        %v7536 = vpack.c.b16 %v7522, %v7515
        %v7537 = vpack.c.b16 %v7523, %v7516
        %v7538 = vpack.c.b16 %v7524, %v7517
        %v7547 = vand.u32 %v7532, %v1146
        %v7550 = vand.u32 %v7533, %v1146
        %v7553 = vand.u32 %v7534, %v1146
        %v7556 = vand.u32 %v7535, %v1146
        %v7559 = vand.u32 %v7536, %v1146
        %v7562 = vand.u32 %v7537, %v1146
        %v7565 = vand.u32 %v7538, %v1146
        %7567 = vmatprep.subr.bf16.mxu0 %v7526
        %7568 = vmatpush1.bf16.msra.mxu0 %v7525
        %7569 = vmatprep.subr.bf16.mxu0 %v7550
        %7570 = vmatpush1.bf16.msra.mxu0 %v7547
        %7571 = vmatprep.subr.bf16.mxu0 0
        %7572 = vmatpush1.bf16.msra.mxu0 0
        %7573 = vmatprep.subr.bf16.mxu0 0
        %7574 = vmatpush1.bf16.msra.mxu0 0
        %7575 = vmatprep.subr.bf16.mxu0 0
        %7576 = vmatpush1.bf16.msra.mxu0 0
        %7577 = vmatprep.subr.bf16.mxu0 0
        %7578 = vmatpush1.bf16.msra.mxu0 0
        %7579 = vmatprep.subr.bf16.mxu0 0
        %7580 = vmatpush1.bf16.msra.mxu0 0
        %7581 = vmatprep.subr.bf16.mxu0 0
        %7582 = vmatpush1.bf16.msra.mxu0 0
        %7583 = vmatprep.subr.bf16.mxu0 0
        %7584 = vmatpush1.bf16.msra.mxu0 0
        %7585 = vmatprep.subr.bf16.mxu0 0
        %7586 = vmatpush1.bf16.msra.mxu0 0
        %7587 = vmatprep.subr.bf16.mxu0 0
        %7588 = vmatpush1.bf16.msra.mxu0 0
        %7589 = vmatprep.subr.bf16.mxu0 0
        %7590 = vmatpush1.bf16.msra.mxu0 0
        %7591 = vmatprep.subr.bf16.mxu0 0
        %7592 = vmatpush1.bf16.msra.mxu0 0
        %7593 = vmatprep.subr.bf16.mxu0 0
        %7594 = vmatpush1.bf16.msra.mxu0 0
        %7595 = vmatprep.subr.bf16.mxu0 0
        %7596 = vmatpush1.bf16.msra.mxu0 0
        %7597 = vmatprep.subr.bf16.mxu0 0
        %7598 = vmatpush1.bf16.msra.mxu0 0
        %7599 = vmatprep.mubr.bf16.mxu0 0
        %7600 = vmatmul.mubr.bf16.gmra.mrb[0].mxu0 %v1141
        %v7601 = vpop.f32.mrb[0].mxu0
        %v7602 = vadd.f32 0.0, %v7601
        %v7603 = vpop.f32.mrb[0].mxu0
        %v7604 = vadd.f32 0.0, %v7603
        %v7605 = vpop.f32.mrb[0].mxu0
        %v7606 = vadd.f32 0.0, %v7605
        %v7607 = vpop.f32.mrb[0].mxu0
        %v7608 = vadd.f32 0.0, %v7607
        %7609 = vdwg.mxu0
        %7610 = vmatprep.subr.bf16.mxu0 %v7528
        %7611 = vmatpush1.bf16.msra.mxu0 %v7527
        %7612 = vmatprep.subr.bf16.mxu0 %v7556
        %7613 = vmatpush1.bf16.msra.mxu0 %v7553
        %7614 = vmatprep.subr.bf16.mxu0 0
        %7615 = vmatpush1.bf16.msra.mxu0 0
        %7616 = vmatprep.subr.bf16.mxu0 0
        %7617 = vmatpush1.bf16.msra.mxu0 0
        %7618 = vmatprep.subr.bf16.mxu0 0
        %7619 = vmatpush1.bf16.msra.mxu0 0
        %7620 = vmatprep.subr.bf16.mxu0 0
        %7621 = vmatpush1.bf16.msra.mxu0 0
        %7622 = vmatprep.subr.bf16.mxu0 0
        %7623 = vmatpush1.bf16.msra.mxu0 0
        %7624 = vmatprep.subr.bf16.mxu0 0
        %7625 = vmatpush1.bf16.msra.mxu0 0
        %7626 = vmatprep.subr.bf16.mxu0 0
        %7627 = vmatpush1.bf16.msra.mxu0 0
        %7628 = vmatprep.subr.bf16.mxu0 0
        %7629 = vmatpush1.bf16.msra.mxu0 0
        %7630 = vmatprep.subr.bf16.mxu0 0
        %7631 = vmatpush1.bf16.msra.mxu0 0
        %7632 = vmatprep.subr.bf16.mxu0 0
        %7633 = vmatpush1.bf16.msra.mxu0 0
        %7634 = vmatprep.subr.bf16.mxu0 0
        %7635 = vmatpush1.bf16.msra.mxu0 0
        %7636 = vmatprep.subr.bf16.mxu0 0
        %7637 = vmatpush1.bf16.msra.mxu0 0
        %7638 = vmatprep.subr.bf16.mxu0 0
        %7639 = vmatpush1.bf16.msra.mxu0 0
        %7640 = vmatprep.subr.bf16.mxu0 0
        %7641 = vmatpush1.bf16.msra.mxu0 0
        %7642 = vmatprep.mubr.bf16.mxu0 0
        %7643 = vmatmul.mubr.bf16.gmra.mrb[0].mxu0 %v1141
        %v7644 = vpop.f32.mrb[0].mxu0
        %v7645 = vadd.f32 0.0, %v7644
        %v7646 = vpop.f32.mrb[0].mxu0
        %v7647 = vadd.f32 0.0, %v7646
        %v7648 = vpop.f32.mrb[0].mxu0
        %v7649 = vadd.f32 0.0, %v7648
        %v7650 = vpop.f32.mrb[0].mxu0
        %v7651 = vadd.f32 0.0, %v7650
        %7652 = vdwg.mxu0
        %7653 = vmatprep.subr.bf16.mxu0 %v7530
        %7654 = vmatpush1.bf16.msra.mxu0 %v7529
        %7655 = vmatprep.subr.bf16.mxu0 %v7562
        %7656 = vmatpush1.bf16.msra.mxu0 %v7559
        %7657 = vmatprep.subr.bf16.mxu0 0
        %7658 = vmatpush1.bf16.msra.mxu0 0
        %7659 = vmatprep.subr.bf16.mxu0 0
        %7660 = vmatpush1.bf16.msra.mxu0 0
        %7661 = vmatprep.subr.bf16.mxu0 0
        %7662 = vmatpush1.bf16.msra.mxu0 0
        %7663 = vmatprep.subr.bf16.mxu0 0
        %7664 = vmatpush1.bf16.msra.mxu0 0
        %7665 = vmatprep.subr.bf16.mxu0 0
        %7666 = vmatpush1.bf16.msra.mxu0 0
        %7667 = vmatprep.subr.bf16.mxu0 0
        %7668 = vmatpush1.bf16.msra.mxu0 0
        %7669 = vmatprep.subr.bf16.mxu0 0
        %7670 = vmatpush1.bf16.msra.mxu0 0
        %7671 = vmatprep.subr.bf16.mxu0 0
        %7672 = vmatpush1.bf16.msra.mxu0 0
        %7673 = vmatprep.subr.bf16.mxu0 0
        %7674 = vmatpush1.bf16.msra.mxu0 0
        %7675 = vmatprep.subr.bf16.mxu0 0
        %7676 = vmatpush1.bf16.msra.mxu0 0
        %7677 = vmatprep.subr.bf16.mxu0 0
        %7678 = vmatpush1.bf16.msra.mxu0 0
        %7679 = vmatprep.subr.bf16.mxu0 0
        %7680 = vmatpush1.bf16.msra.mxu0 0
        %7681 = vmatprep.subr.bf16.mxu0 0
        %7682 = vmatpush1.bf16.msra.mxu0 0
        %7683 = vmatprep.subr.bf16.mxu0 0
        %7684 = vmatpush1.bf16.msra.mxu0 0
        %7685 = vmatprep.mubr.bf16.mxu0 0
        %7686 = vmatmul.mubr.bf16.gmra.mrb[0].mxu0 %v1141
        %v7687 = vpop.f32.mrb[0].mxu0
        %v7688 = vadd.f32 0.0, %v7687
        %v7689 = vpop.f32.mrb[0].mxu0
        %v7690 = vadd.f32 0.0, %v7689
        %v7691 = vpop.f32.mrb[0].mxu0
        %v7692 = vadd.f32 0.0, %v7691
        %v7693 = vpop.f32.mrb[0].mxu0
        %v7694 = vadd.f32 0.0, %v7693
        %7695 = vdwg.mxu0
        %7696 = vmatprep.subr.bf16.mxu0 0
        %7697 = vmatpush1.bf16.msra.mxu0 %v7531
        %7698 = vmatprep.subr.bf16.mxu0 0
        %7699 = vmatpush1.bf16.msra.mxu0 %v7565
        %7700 = vmatprep.subr.bf16.mxu0 0
        %7701 = vmatpush1.bf16.msra.mxu0 0
        %7702 = vmatprep.subr.bf16.mxu0 0
        %7703 = vmatpush1.bf16.msra.mxu0 0
        %7704 = vmatprep.subr.bf16.mxu0 0
        %7705 = vmatpush1.bf16.msra.mxu0 0
        %7706 = vmatprep.subr.bf16.mxu0 0
        %7707 = vmatpush1.bf16.msra.mxu0 0
        %7708 = vmatprep.subr.bf16.mxu0 0
        %7709 = vmatpush1.bf16.msra.mxu0 0
        %7710 = vmatprep.subr.bf16.mxu0 0
        %7711 = vmatpush1.bf16.msra.mxu0 0
        %7712 = vmatprep.subr.bf16.mxu0 0
        %7713 = vmatpush1.bf16.msra.mxu0 0
        %7714 = vmatprep.subr.bf16.mxu0 0
        %7715 = vmatpush1.bf16.msra.mxu0 0
        %7716 = vmatprep.subr.bf16.mxu0 0
        %7717 = vmatpush1.bf16.msra.mxu0 0
        %7718 = vmatprep.subr.bf16.mxu0 0
        %7719 = vmatpush1.bf16.msra.mxu0 0
        %7720 = vmatprep.subr.bf16.mxu0 0
        %7721 = vmatpush1.bf16.msra.mxu0 0
        %7722 = vmatprep.subr.bf16.mxu0 0
        %7723 = vmatpush1.bf16.msra.mxu0 0
        %7724 = vmatprep.subr.bf16.mxu0 0
        %7725 = vmatpush1.bf16.msra.mxu0 0
        %7726 = vmatprep.subr.bf16.mxu0 0
        %7727 = vmatpush1.bf16.msra.mxu0 0
        %7728 = vmatprep.mubr.bf16.mxu0 0
        %7729 = vmatmul.mubr.bf16.gmra.mrb[0].mxu0 %v1141
        %v7730 = vpop.f32.mrb[0].mxu0
        %v7731 = vadd.f32 0.0, %v7730
        %v7732 = vpop.f32.mrb[0].mxu0
        %v7733 = vpop.f32.mrb[0].mxu0
        %v7734 = vadd.f32 0.0, %v7733
        %v7735 = vpop.f32.mrb[0].mxu0
        %7736 = vdwg.mxu0
        %v7737 = vld [vmem:[%s1338 + $0x8c] sm:$0xff]
        %v7738 = vld [vmem:[%s1338 + $0x94] sm:$0xff]
        %v7739 = vld [vmem:[%s1338 + $0x9c] sm:$0xff]
        %v7740 = vld [vmem:[%s1338 + $0xa4] sm:$0xf]
        %v7741 = vld [vmem:[%s1338 + $0x150] sm:$0xff]
        %v7742 = vld [vmem:[%s1338 + $0x158] sm:$0xff]
        %v7743 = vld [vmem:[%s1338 + $0x160] sm:$0xff]
        %v7744 = vld [vmem:[%s1338 + $0x168] sm:$0xf]
        %v7745 = vld [vmem:[%s1338 + $0x214] sm:$0xff]
        %v7746 = vld [vmem:[%s1338 + $0x21c] sm:$0xff]
        %v7747 = vld [vmem:[%s1338 + $0x224] sm:$0xff]
        %v7748 = vld [vmem:[%s1338 + $0x22c] sm:$0xf]
        %v7749 = vld [vmem:[%s1338 + $0x2d8] sm:$0x33]
        %v7750 = vld [vmem:[%s1338 + $0x2e0] sm:$0x33]
        %v7751 = vld [vmem:[%s1338 + $0x2e8] sm:$0x33]
        %v7752 = vld [vmem:[%s1338 + $0x2f0] sm:$0x3]
        %v7769 = vunpack.c.l.b16 %v7737
        %v7770 = vunpack.c.h.b16 %v7737
        %v7771 = vunpack.c.l.b16 %v7738
        %v7772 = vunpack.c.h.b16 %v7738
        %v7773 = vunpack.c.l.b16 %v7739
        %v7774 = vunpack.c.h.b16 %v7739
        %v7775 = vunpack.c.l.b16 %v7740
        %v7776 = vunpack.c.l.b16 %v7741
        %v7777 = vunpack.c.h.b16 %v7741
        %v7778 = vunpack.c.l.b16 %v7742
        %v7779 = vunpack.c.h.b16 %v7742
        %v7780 = vunpack.c.l.b16 %v7743
        %v7781 = vunpack.c.h.b16 %v7743
        %v7782 = vunpack.c.l.b16 %v7744
        %v7783 = vunpack.c.l.b16 %v7745
        %v7784 = vunpack.c.h.b16 %v7745
        %v7785 = vunpack.c.l.b16 %v7746
        %v7786 = vunpack.c.h.b16 %v7746
        %v7787 = vunpack.c.l.b16 %v7747
        %v7788 = vunpack.c.h.b16 %v7747
        %v7789 = vunpack.c.l.b16 %v7748
        %v7790 = vunpack.c.l.b16 %v7749
        %v7791 = vunpack.c.h.b16 %v7749
        %v7792 = vunpack.c.l.b16 %v7750
        %v7793 = vunpack.c.h.b16 %v7750
        %v7794 = vunpack.c.l.b16 %v7751
        %v7795 = vunpack.c.h.b16 %v7751
        %v7796 = vunpack.c.l.b16 %v7752
        %v7797 = vpack.c.b16 %v7776, %v7769
        %v7798 = vpack.c.b16 %v7777, %v7770
        %v7799 = vpack.c.b16 %v7778, %v7771
        %v7800 = vpack.c.b16 %v7779, %v7772
        %v7801 = vpack.c.b16 %v7780, %v7773
        %v7802 = vpack.c.b16 %v7781, %v7774
        %v7803 = vpack.c.b16 %v7782, %v7775
        %v7804 = vpack.c.b16 %v7790, %v7783
        %v7805 = vpack.c.b16 %v7791, %v7784
        %v7806 = vpack.c.b16 %v7792, %v7785
        %v7807 = vpack.c.b16 %v7793, %v7786
        %v7808 = vpack.c.b16 %v7794, %v7787
        %v7809 = vpack.c.b16 %v7795, %v7788
        %v7810 = vpack.c.b16 %v7796, %v7789
        %v7819 = vand.u32 %v7804, %v1146
        %v7822 = vand.u32 %v7805, %v1146
        %v7825 = vand.u32 %v7806, %v1146
        %v7828 = vand.u32 %v7807, %v1146
        %v7831 = vand.u32 %v7808, %v1146
        %v7834 = vand.u32 %v7809, %v1146
        %v7837 = vand.u32 %v7810, %v1146
        %7839 = vmatprep.subr.bf16.mxu0 %v7798
        %7840 = vmatpush1.bf16.msra.mxu0 %v7797
        %7841 = vmatprep.subr.bf16.mxu0 %v7822
        %7842 = vmatpush1.bf16.msra.mxu0 %v7819
        %7843 = vmatprep.subr.bf16.mxu0 0
        %7844 = vmatpush1.bf16.msra.mxu0 0
        %7845 = vmatprep.subr.bf16.mxu0 0
        %7846 = vmatpush1.bf16.msra.mxu0 0
        %7847 = vmatprep.subr.bf16.mxu0 0
        %7848 = vmatpush1.bf16.msra.mxu0 0
        %7849 = vmatprep.subr.bf16.mxu0 0
        %7850 = vmatpush1.bf16.msra.mxu0 0
        %7851 = vmatprep.subr.bf16.mxu0 0
        %7852 = vmatpush1.bf16.msra.mxu0 0
        %7853 = vmatprep.subr.bf16.mxu0 0
        %7854 = vmatpush1.bf16.msra.mxu0 0
        %7855 = vmatprep.subr.bf16.mxu0 0
        %7856 = vmatpush1.bf16.msra.mxu0 0
        %7857 = vmatprep.subr.bf16.mxu0 0
        %7858 = vmatpush1.bf16.msra.mxu0 0
        %7859 = vmatprep.subr.bf16.mxu0 0
        %7860 = vmatpush1.bf16.msra.mxu0 0
        %7861 = vmatprep.subr.bf16.mxu0 0
        %7862 = vmatpush1.bf16.msra.mxu0 0
        %7863 = vmatprep.subr.bf16.mxu0 0
        %7864 = vmatpush1.bf16.msra.mxu0 0
        %7865 = vmatprep.subr.bf16.mxu0 0
        %7866 = vmatpush1.bf16.msra.mxu0 0
        %7867 = vmatprep.subr.bf16.mxu0 0
        %7868 = vmatpush1.bf16.msra.mxu0 0
        %7869 = vmatprep.subr.bf16.mxu0 0
        %7870 = vmatpush1.bf16.msra.mxu0 0
        %7871 = vmatprep.mubr.bf16.mxu0 0
        %7872 = vmatmul.mubr.bf16.gmra.mrb[0].mxu0 %v1141
        %v7873 = vpop.f32.mrb[0].mxu0
        %v7874 = vadd.f32 0.0, %v7873
        %v7875 = vpop.f32.mrb[0].mxu0
        %v7876 = vadd.f32 0.0, %v7875
        %v7877 = vpop.f32.mrb[0].mxu0
        %v7878 = vadd.f32 0.0, %v7877
        %v7879 = vpop.f32.mrb[0].mxu0
        %v7880 = vadd.f32 0.0, %v7879
        %7881 = vdwg.mxu0
        %7882 = vmatprep.subr.bf16.mxu0 %v7800
        %7883 = vmatpush1.bf16.msra.mxu0 %v7799
        %7884 = vmatprep.subr.bf16.mxu0 %v7828
        %7885 = vmatpush1.bf16.msra.mxu0 %v7825
        %7886 = vmatprep.subr.bf16.mxu0 0
        %7887 = vmatpush1.bf16.msra.mxu0 0
        %7888 = vmatprep.subr.bf16.mxu0 0
        %7889 = vmatpush1.bf16.msra.mxu0 0
        %7890 = vmatprep.subr.bf16.mxu0 0
        %7891 = vmatpush1.bf16.msra.mxu0 0
        %7892 = vmatprep.subr.bf16.mxu0 0
        %7893 = vmatpush1.bf16.msra.mxu0 0
        %7894 = vmatprep.subr.bf16.mxu0 0
        %7895 = vmatpush1.bf16.msra.mxu0 0
        %7896 = vmatprep.subr.bf16.mxu0 0
        %7897 = vmatpush1.bf16.msra.mxu0 0
        %7898 = vmatprep.subr.bf16.mxu0 0
        %7899 = vmatpush1.bf16.msra.mxu0 0
        %7900 = vmatprep.subr.bf16.mxu0 0
        %7901 = vmatpush1.bf16.msra.mxu0 0
        %7902 = vmatprep.subr.bf16.mxu0 0
        %7903 = vmatpush1.bf16.msra.mxu0 0
        %7904 = vmatprep.subr.bf16.mxu0 0
        %7905 = vmatpush1.bf16.msra.mxu0 0
        %7906 = vmatprep.subr.bf16.mxu0 0
        %7907 = vmatpush1.bf16.msra.mxu0 0
        %7908 = vmatprep.subr.bf16.mxu0 0
        %7909 = vmatpush1.bf16.msra.mxu0 0
        %7910 = vmatprep.subr.bf16.mxu0 0
        %7911 = vmatpush1.bf16.msra.mxu0 0
        %7912 = vmatprep.subr.bf16.mxu0 0
        %7913 = vmatpush1.bf16.msra.mxu0 0
        %7914 = vmatprep.mubr.bf16.mxu0 0
        %7915 = vmatmul.mubr.bf16.gmra.mrb[0].mxu0 %v1141
        %v7916 = vpop.f32.mrb[0].mxu0
        %v7917 = vadd.f32 0.0, %v7916
        %v7918 = vpop.f32.mrb[0].mxu0
        %v7919 = vadd.f32 0.0, %v7918
        %v7920 = vpop.f32.mrb[0].mxu0
        %v7921 = vadd.f32 0.0, %v7920
        %v7922 = vpop.f32.mrb[0].mxu0
        %v7923 = vadd.f32 0.0, %v7922
        %7924 = vdwg.mxu0
        %7925 = vmatprep.subr.bf16.mxu0 %v7802
        %7926 = vmatpush1.bf16.msra.mxu0 %v7801
        %7927 = vmatprep.subr.bf16.mxu0 %v7834
        %7928 = vmatpush1.bf16.msra.mxu0 %v7831
        %7929 = vmatprep.subr.bf16.mxu0 0
        %7930 = vmatpush1.bf16.msra.mxu0 0
        %7931 = vmatprep.subr.bf16.mxu0 0
        %7932 = vmatpush1.bf16.msra.mxu0 0
        %7933 = vmatprep.subr.bf16.mxu0 0
        %7934 = vmatpush1.bf16.msra.mxu0 0
        %7935 = vmatprep.subr.bf16.mxu0 0
        %7936 = vmatpush1.bf16.msra.mxu0 0
        %7937 = vmatprep.subr.bf16.mxu0 0
        %7938 = vmatpush1.bf16.msra.mxu0 0
        %7939 = vmatprep.subr.bf16.mxu0 0
        %7940 = vmatpush1.bf16.msra.mxu0 0
        %7941 = vmatprep.subr.bf16.mxu0 0
        %7942 = vmatpush1.bf16.msra.mxu0 0
        %7943 = vmatprep.subr.bf16.mxu0 0
        %7944 = vmatpush1.bf16.msra.mxu0 0
        %7945 = vmatprep.subr.bf16.mxu0 0
        %7946 = vmatpush1.bf16.msra.mxu0 0
        %7947 = vmatprep.subr.bf16.mxu0 0
        %7948 = vmatpush1.bf16.msra.mxu0 0
        %7949 = vmatprep.subr.bf16.mxu0 0
        %7950 = vmatpush1.bf16.msra.mxu0 0
        %7951 = vmatprep.subr.bf16.mxu0 0
        %7952 = vmatpush1.bf16.msra.mxu0 0
        %7953 = vmatprep.subr.bf16.mxu0 0
        %7954 = vmatpush1.bf16.msra.mxu0 0
        %7955 = vmatprep.subr.bf16.mxu0 0
        %7956 = vmatpush1.bf16.msra.mxu0 0
        %7957 = vmatprep.mubr.bf16.mxu0 0
        %7958 = vmatmul.mubr.bf16.gmra.mrb[0].mxu0 %v1141
        %v7959 = vpop.f32.mrb[0].mxu0
        %v7960 = vadd.f32 0.0, %v7959
        %v7961 = vpop.f32.mrb[0].mxu0
        %v7962 = vadd.f32 0.0, %v7961
        %v7963 = vpop.f32.mrb[0].mxu0
        %v7964 = vadd.f32 0.0, %v7963
        %v7965 = vpop.f32.mrb[0].mxu0
        %v7966 = vadd.f32 0.0, %v7965
        %7967 = vdwg.mxu0
        %7968 = vmatprep.subr.bf16.mxu0 0
        %7969 = vmatpush1.bf16.msra.mxu0 %v7803
        %7970 = vmatprep.subr.bf16.mxu0 0
        %7971 = vmatpush1.bf16.msra.mxu0 %v7837
        %7972 = vmatprep.subr.bf16.mxu0 0
        %7973 = vmatpush1.bf16.msra.mxu0 0
        %7974 = vmatprep.subr.bf16.mxu0 0
        %7975 = vmatpush1.bf16.msra.mxu0 0
        %7976 = vmatprep.subr.bf16.mxu0 0
        %7977 = vmatpush1.bf16.msra.mxu0 0
        %7978 = vmatprep.subr.bf16.mxu0 0
        %7979 = vmatpush1.bf16.msra.mxu0 0
        %7980 = vmatprep.subr.bf16.mxu0 0
        %7981 = vmatpush1.bf16.msra.mxu0 0
        %7982 = vmatprep.subr.bf16.mxu0 0
        %7983 = vmatpush1.bf16.msra.mxu0 0
        %7984 = vmatprep.subr.bf16.mxu0 0
        %7985 = vmatpush1.bf16.msra.mxu0 0
        %7986 = vmatprep.subr.bf16.mxu0 0
        %7987 = vmatpush1.bf16.msra.mxu0 0
        %7988 = vmatprep.subr.bf16.mxu0 0
        %7989 = vmatpush1.bf16.msra.mxu0 0
        %7990 = vmatprep.subr.bf16.mxu0 0
        %7991 = vmatpush1.bf16.msra.mxu0 0
        %7992 = vmatprep.subr.bf16.mxu0 0
        %7993 = vmatpush1.bf16.msra.mxu0 0
        %7994 = vmatprep.subr.bf16.mxu0 0
        %7995 = vmatpush1.bf16.msra.mxu0 0
        %7996 = vmatprep.subr.bf16.mxu0 0
        %7997 = vmatpush1.bf16.msra.mxu0 0
        %7998 = vmatprep.subr.bf16.mxu0 0
        %7999 = vmatpush1.bf16.msra.mxu0 0
        %8000 = vmatprep.mubr.bf16.mxu0 0
        %8001 = vmatmul.mubr.bf16.gmra.mrb[0].mxu0 %v1141
        %v8002 = vpop.f32.mrb[0].mxu0
        %v8003 = vadd.f32 0.0, %v8002
        %v8004 = vpop.f32.mrb[0].mxu0
        %v8005 = vpop.f32.mrb[0].mxu0
        %v8006 = vadd.f32 0.0, %v8005
        %v8007 = vpop.f32.mrb[0].mxu0
        %8008 = vdwg.mxu0
        %v8009 = vld [vmem:[%s1611 + $0x8c] sm:$0xff]
        %v8010 = vld [vmem:[%s1611 + $0x94] sm:$0xff]
        %v8011 = vld [vmem:[%s1611 + $0x9c] sm:$0xff]
        %v8012 = vld [vmem:[%s1611 + $0xa4] sm:$0xf]
        %v8013 = vld [vmem:[%s1611 + $0x150] sm:$0xff]
        %v8014 = vld [vmem:[%s1611 + $0x158] sm:$0xff]
        %v8015 = vld [vmem:[%s1611 + $0x160] sm:$0xff]
        %v8016 = vld [vmem:[%s1611 + $0x168] sm:$0xf]
        %v8017 = vld [vmem:[%s1611 + $0x214] sm:$0xff]
        %v8018 = vld [vmem:[%s1611 + $0x21c] sm:$0xff]
        %v8019 = vld [vmem:[%s1611 + $0x224] sm:$0xff]
        %v8020 = vld [vmem:[%s1611 + $0x22c] sm:$0xf]
        %v8021 = vld [vmem:[%s1611 + $0x2d8] sm:$0x33]
        %v8022 = vld [vmem:[%s1611 + $0x2e0] sm:$0x33]
        %v8023 = vld [vmem:[%s1611 + $0x2e8] sm:$0x33]
        %v8024 = vld [vmem:[%s1611 + $0x2f0] sm:$0x3]
        %v8041 = vunpack.c.l.b16 %v8009
        %v8042 = vunpack.c.h.b16 %v8009
        %v8043 = vunpack.c.l.b16 %v8010
        %v8044 = vunpack.c.h.b16 %v8010
        %v8045 = vunpack.c.l.b16 %v8011
        %v8046 = vunpack.c.h.b16 %v8011
        %v8047 = vunpack.c.l.b16 %v8012
        %v8048 = vunpack.c.l.b16 %v8013
        %v8049 = vunpack.c.h.b16 %v8013
        %v8050 = vunpack.c.l.b16 %v8014
        %v8051 = vunpack.c.h.b16 %v8014
        %v8052 = vunpack.c.l.b16 %v8015
        %v8053 = vunpack.c.h.b16 %v8015
        %v8054 = vunpack.c.l.b16 %v8016
        %v8055 = vunpack.c.l.b16 %v8017
        %v8056 = vunpack.c.h.b16 %v8017
        %v8057 = vunpack.c.l.b16 %v8018
        %v8058 = vunpack.c.h.b16 %v8018
        %v8059 = vunpack.c.l.b16 %v8019
        %v8060 = vunpack.c.h.b16 %v8019
        %v8061 = vunpack.c.l.b16 %v8020
        %v8062 = vunpack.c.l.b16 %v8021
        %v8063 = vunpack.c.h.b16 %v8021
        %v8064 = vunpack.c.l.b16 %v8022
        %v8065 = vunpack.c.h.b16 %v8022
        %v8066 = vunpack.c.l.b16 %v8023
        %v8067 = vunpack.c.h.b16 %v8023
        %v8068 = vunpack.c.l.b16 %v8024
        %v8069 = vpack.c.b16 %v8048, %v8041
        %v8070 = vpack.c.b16 %v8049, %v8042
        %v8071 = vpack.c.b16 %v8050, %v8043
        %v8072 = vpack.c.b16 %v8051, %v8044
        %v8073 = vpack.c.b16 %v8052, %v8045
        %v8074 = vpack.c.b16 %v8053, %v8046
        %v8075 = vpack.c.b16 %v8054, %v8047
        %v8076 = vpack.c.b16 %v8062, %v8055
        %v8077 = vpack.c.b16 %v8063, %v8056
        %v8078 = vpack.c.b16 %v8064, %v8057
        %v8079 = vpack.c.b16 %v8065, %v8058
        %v8080 = vpack.c.b16 %v8066, %v8059
        %v8081 = vpack.c.b16 %v8067, %v8060
        %v8082 = vpack.c.b16 %v8068, %v8061
        %v8091 = vand.u32 %v8076, %v1146
        %v8094 = vand.u32 %v8077, %v1146
        %v8097 = vand.u32 %v8078, %v1146
        %v8100 = vand.u32 %v8079, %v1146
        %v8103 = vand.u32 %v8080, %v1146
        %v8106 = vand.u32 %v8081, %v1146
        %v8109 = vand.u32 %v8082, %v1146
        %8111 = vmatprep.subr.bf16.mxu0 %v8070
        %8112 = vmatpush1.bf16.msra.mxu0 %v8069
        %8113 = vmatprep.subr.bf16.mxu0 %v8094
        %8114 = vmatpush1.bf16.msra.mxu0 %v8091
        %8115 = vmatprep.subr.bf16.mxu0 0
        %8116 = vmatpush1.bf16.msra.mxu0 0
        %8117 = vmatprep.subr.bf16.mxu0 0
        %8118 = vmatpush1.bf16.msra.mxu0 0
        %8119 = vmatprep.subr.bf16.mxu0 0
        %8120 = vmatpush1.bf16.msra.mxu0 0
        %8121 = vmatprep.subr.bf16.mxu0 0
        %8122 = vmatpush1.bf16.msra.mxu0 0
        %8123 = vmatprep.subr.bf16.mxu0 0
        %8124 = vmatpush1.bf16.msra.mxu0 0
        %8125 = vmatprep.subr.bf16.mxu0 0
        %8126 = vmatpush1.bf16.msra.mxu0 0
        %8127 = vmatprep.subr.bf16.mxu0 0
        %8128 = vmatpush1.bf16.msra.mxu0 0
        %8129 = vmatprep.subr.bf16.mxu0 0
        %8130 = vmatpush1.bf16.msra.mxu0 0
        %8131 = vmatprep.subr.bf16.mxu0 0
        %8132 = vmatpush1.bf16.msra.mxu0 0
        %8133 = vmatprep.subr.bf16.mxu0 0
        %8134 = vmatpush1.bf16.msra.mxu0 0
        %8135 = vmatprep.subr.bf16.mxu0 0
        %8136 = vmatpush1.bf16.msra.mxu0 0
        %8137 = vmatprep.subr.bf16.mxu0 0
        %8138 = vmatpush1.bf16.msra.mxu0 0
        %8139 = vmatprep.subr.bf16.mxu0 0
        %8140 = vmatpush1.bf16.msra.mxu0 0
        %8141 = vmatprep.subr.bf16.mxu0 0
        %8142 = vmatpush1.bf16.msra.mxu0 0
        %8143 = vmatprep.mubr.bf16.mxu0 0
        %8144 = vmatmul.mubr.bf16.gmra.mrb[0].mxu0 %v1141
        %v8145 = vpop.f32.mrb[0].mxu0
        %v8146 = vadd.f32 0.0, %v8145
        %v8147 = vpop.f32.mrb[0].mxu0
        %v8148 = vadd.f32 0.0, %v8147
        %v8149 = vpop.f32.mrb[0].mxu0
        %v8150 = vadd.f32 0.0, %v8149
        %v8151 = vpop.f32.mrb[0].mxu0
        %v8152 = vadd.f32 0.0, %v8151
        %8153 = vdwg.mxu0
        %8154 = vmatprep.subr.bf16.mxu0 %v8072
        %8155 = vmatpush1.bf16.msra.mxu0 %v8071
        %8156 = vmatprep.subr.bf16.mxu0 %v8100
        %8157 = vmatpush1.bf16.msra.mxu0 %v8097
        %8158 = vmatprep.subr.bf16.mxu0 0
        %8159 = vmatpush1.bf16.msra.mxu0 0
        %8160 = vmatprep.subr.bf16.mxu0 0
        %8161 = vmatpush1.bf16.msra.mxu0 0
        %8162 = vmatprep.subr.bf16.mxu0 0
        %8163 = vmatpush1.bf16.msra.mxu0 0
        %8164 = vmatprep.subr.bf16.mxu0 0
        %8165 = vmatpush1.bf16.msra.mxu0 0
        %8166 = vmatprep.subr.bf16.mxu0 0
        %8167 = vmatpush1.bf16.msra.mxu0 0
        %8168 = vmatprep.subr.bf16.mxu0 0
        %8169 = vmatpush1.bf16.msra.mxu0 0
        %8170 = vmatprep.subr.bf16.mxu0 0
        %8171 = vmatpush1.bf16.msra.mxu0 0
        %8172 = vmatprep.subr.bf16.mxu0 0
        %8173 = vmatpush1.bf16.msra.mxu0 0
        %8174 = vmatprep.subr.bf16.mxu0 0
        %8175 = vmatpush1.bf16.msra.mxu0 0
        %8176 = vmatprep.subr.bf16.mxu0 0
        %8177 = vmatpush1.bf16.msra.mxu0 0
        %8178 = vmatprep.subr.bf16.mxu0 0
        %8179 = vmatpush1.bf16.msra.mxu0 0
        %8180 = vmatprep.subr.bf16.mxu0 0
        %8181 = vmatpush1.bf16.msra.mxu0 0
        %8182 = vmatprep.subr.bf16.mxu0 0
        %8183 = vmatpush1.bf16.msra.mxu0 0
        %8184 = vmatprep.subr.bf16.mxu0 0
        %8185 = vmatpush1.bf16.msra.mxu0 0
        %8186 = vmatprep.mubr.bf16.mxu0 0
        %8187 = vmatmul.mubr.bf16.gmra.mrb[0].mxu0 %v1141
        %v8188 = vpop.f32.mrb[0].mxu0
        %v8189 = vadd.f32 0.0, %v8188
        %v8190 = vpop.f32.mrb[0].mxu0
        %v8191 = vadd.f32 0.0, %v8190
        %v8192 = vpop.f32.mrb[0].mxu0
        %v8193 = vadd.f32 0.0, %v8192
        %v8194 = vpop.f32.mrb[0].mxu0
        %v8195 = vadd.f32 0.0, %v8194
        %8196 = vdwg.mxu0
        %8197 = vmatprep.subr.bf16.mxu0 %v8074
        %8198 = vmatpush1.bf16.msra.mxu0 %v8073
        %8199 = vmatprep.subr.bf16.mxu0 %v8106
        %8200 = vmatpush1.bf16.msra.mxu0 %v8103
        %8201 = vmatprep.subr.bf16.mxu0 0
        %8202 = vmatpush1.bf16.msra.mxu0 0
        %8203 = vmatprep.subr.bf16.mxu0 0
        %8204 = vmatpush1.bf16.msra.mxu0 0
        %8205 = vmatprep.subr.bf16.mxu0 0
        %8206 = vmatpush1.bf16.msra.mxu0 0
        %8207 = vmatprep.subr.bf16.mxu0 0
        %8208 = vmatpush1.bf16.msra.mxu0 0
        %8209 = vmatprep.subr.bf16.mxu0 0
        %8210 = vmatpush1.bf16.msra.mxu0 0
        %8211 = vmatprep.subr.bf16.mxu0 0
        %8212 = vmatpush1.bf16.msra.mxu0 0
        %8213 = vmatprep.subr.bf16.mxu0 0
        %8214 = vmatpush1.bf16.msra.mxu0 0
        %8215 = vmatprep.subr.bf16.mxu0 0
        %8216 = vmatpush1.bf16.msra.mxu0 0
        %8217 = vmatprep.subr.bf16.mxu0 0
        %8218 = vmatpush1.bf16.msra.mxu0 0
        %8219 = vmatprep.subr.bf16.mxu0 0
        %8220 = vmatpush1.bf16.msra.mxu0 0
        %8221 = vmatprep.subr.bf16.mxu0 0
        %8222 = vmatpush1.bf16.msra.mxu0 0
        %8223 = vmatprep.subr.bf16.mxu0 0
        %8224 = vmatpush1.bf16.msra.mxu0 0
        %8225 = vmatprep.subr.bf16.mxu0 0
        %8226 = vmatpush1.bf16.msra.mxu0 0
        %8227 = vmatprep.subr.bf16.mxu0 0
        %8228 = vmatpush1.bf16.msra.mxu0 0
        %8229 = vmatprep.mubr.bf16.mxu0 0
        %8230 = vmatmul.mubr.bf16.gmra.mrb[0].mxu0 %v1141
        %v8231 = vpop.f32.mrb[0].mxu0
        %v8232 = vadd.f32 0.0, %v8231
        %v8233 = vpop.f32.mrb[0].mxu0
        %v8234 = vadd.f32 0.0, %v8233
        %v8235 = vpop.f32.mrb[0].mxu0
        %v8236 = vadd.f32 0.0, %v8235
        %v8237 = vpop.f32.mrb[0].mxu0
        %v8238 = vadd.f32 0.0, %v8237
        %8239 = vdwg.mxu0
        %8240 = vmatprep.subr.bf16.mxu0 0
        %8241 = vmatpush1.bf16.msra.mxu0 %v8075
        %8242 = vmatprep.subr.bf16.mxu0 0
        %8243 = vmatpush1.bf16.msra.mxu0 %v8109
        %8244 = vmatprep.subr.bf16.mxu0 0
        %8245 = vmatpush1.bf16.msra.mxu0 0
        %8246 = vmatprep.subr.bf16.mxu0 0
        %8247 = vmatpush1.bf16.msra.mxu0 0
        %8248 = vmatprep.subr.bf16.mxu0 0
        %8249 = vmatpush1.bf16.msra.mxu0 0
        %8250 = vmatprep.subr.bf16.mxu0 0
        %8251 = vmatpush1.bf16.msra.mxu0 0
        %8252 = vmatprep.subr.bf16.mxu0 0
        %8253 = vmatpush1.bf16.msra.mxu0 0
        %8254 = vmatprep.subr.bf16.mxu0 0
        %8255 = vmatpush1.bf16.msra.mxu0 0
        %8256 = vmatprep.subr.bf16.mxu0 0
        %8257 = vmatpush1.bf16.msra.mxu0 0
        %8258 = vmatprep.subr.bf16.mxu0 0
        %8259 = vmatpush1.bf16.msra.mxu0 0
        %8260 = vmatprep.subr.bf16.mxu0 0
        %8261 = vmatpush1.bf16.msra.mxu0 0
        %8262 = vmatprep.subr.bf16.mxu0 0
        %8263 = vmatpush1.bf16.msra.mxu0 0
        %8264 = vmatprep.subr.bf16.mxu0 0
        %8265 = vmatpush1.bf16.msra.mxu0 0
        %8266 = vmatprep.subr.bf16.mxu0 0
        %8267 = vmatpush1.bf16.msra.mxu0 0
        %8268 = vmatprep.subr.bf16.mxu0 0
        %8269 = vmatpush1.bf16.msra.mxu0 0
        %8270 = vmatprep.subr.bf16.mxu0 0
        %8271 = vmatpush1.bf16.msra.mxu0 0
        %8272 = vmatprep.mubr.bf16.mxu0 0
        %8273 = vmatmul.mubr.bf16.gmra.mrb[0].mxu0 %v1141
        %v8274 = vpop.f32.mrb[0].mxu0
        %v8275 = vadd.f32 0.0, %v8274
        %v8276 = vpop.f32.mrb[0].mxu0
        %v8277 = vpop.f32.mrb[0].mxu0
        %v8278 = vadd.f32 0.0, %v8277
        %v8279 = vpop.f32.mrb[0].mxu0
        %8280 = vdwg.mxu0
        %v8281 = vld [vmem:[%s1884 + $0x8c] sm:$0xff]
        %v8282 = vld [vmem:[%s1884 + $0x94] sm:$0xff]
        %v8283 = vld [vmem:[%s1884 + $0x9c] sm:$0xff]
        %v8284 = vld [vmem:[%s1884 + $0xa4] sm:$0xf]
        %v8285 = vld [vmem:[%s1884 + $0x150] sm:$0xff]
        %v8286 = vld [vmem:[%s1884 + $0x158] sm:$0xff]
        %v8287 = vld [vmem:[%s1884 + $0x160] sm:$0xff]
        %v8288 = vld [vmem:[%s1884 + $0x168] sm:$0xf]
        %v8289 = vld [vmem:[%s1884 + $0x214] sm:$0xff]
        %v8290 = vld [vmem:[%s1884 + $0x21c] sm:$0xff]
        %v8291 = vld [vmem:[%s1884 + $0x224] sm:$0xff]
        %v8292 = vld [vmem:[%s1884 + $0x22c] sm:$0xf]
        %v8293 = vld [vmem:[%s1884 + $0x2d8] sm:$0x33]
        %v8294 = vld [vmem:[%s1884 + $0x2e0] sm:$0x33]
        %v8295 = vld [vmem:[%s1884 + $0x2e8] sm:$0x33]
        %v8296 = vld [vmem:[%s1884 + $0x2f0] sm:$0x3]
        %v8313 = vunpack.c.l.b16 %v8281
        %v8314 = vunpack.c.h.b16 %v8281
        %v8315 = vunpack.c.l.b16 %v8282
        %v8316 = vunpack.c.h.b16 %v8282
        %v8317 = vunpack.c.l.b16 %v8283
        %v8318 = vunpack.c.h.b16 %v8283
        %v8319 = vunpack.c.l.b16 %v8284
        %v8320 = vunpack.c.l.b16 %v8285
        %v8321 = vunpack.c.h.b16 %v8285
        %v8322 = vunpack.c.l.b16 %v8286
        %v8323 = vunpack.c.h.b16 %v8286
        %v8324 = vunpack.c.l.b16 %v8287
        %v8325 = vunpack.c.h.b16 %v8287
        %v8326 = vunpack.c.l.b16 %v8288
        %v8327 = vunpack.c.l.b16 %v8289
        %v8328 = vunpack.c.h.b16 %v8289
        %v8329 = vunpack.c.l.b16 %v8290
        %v8330 = vunpack.c.h.b16 %v8290
        %v8331 = vunpack.c.l.b16 %v8291
        %v8332 = vunpack.c.h.b16 %v8291
        %v8333 = vunpack.c.l.b16 %v8292
        %v8334 = vunpack.c.l.b16 %v8293
        %v8335 = vunpack.c.h.b16 %v8293
        %v8336 = vunpack.c.l.b16 %v8294
        %v8337 = vunpack.c.h.b16 %v8294
        %v8338 = vunpack.c.l.b16 %v8295
        %v8339 = vunpack.c.h.b16 %v8295
        %v8340 = vunpack.c.l.b16 %v8296
        %v8341 = vpack.c.b16 %v8320, %v8313
        %v8342 = vpack.c.b16 %v8321, %v8314
        %v8343 = vpack.c.b16 %v8322, %v8315
        %v8344 = vpack.c.b16 %v8323, %v8316
        %v8345 = vpack.c.b16 %v8324, %v8317
        %v8346 = vpack.c.b16 %v8325, %v8318
        %v8347 = vpack.c.b16 %v8326, %v8319
        %v8348 = vpack.c.b16 %v8334, %v8327
        %v8349 = vpack.c.b16 %v8335, %v8328
        %v8350 = vpack.c.b16 %v8336, %v8329
        %v8351 = vpack.c.b16 %v8337, %v8330
        %v8352 = vpack.c.b16 %v8338, %v8331
        %v8353 = vpack.c.b16 %v8339, %v8332
        %v8354 = vpack.c.b16 %v8340, %v8333
        %v8363 = vand.u32 %v8348, %v1146
        %v8366 = vand.u32 %v8349, %v1146
        %v8369 = vand.u32 %v8350, %v1146
        %v8372 = vand.u32 %v8351, %v1146
        %v8375 = vand.u32 %v8352, %v1146
        %v8378 = vand.u32 %v8353, %v1146
        %v8381 = vand.u32 %v8354, %v1146
        %8383 = vmatprep.subr.bf16.mxu0 %v8342
        %8384 = vmatpush1.bf16.msra.mxu0 %v8341
        %8385 = vmatprep.subr.bf16.mxu0 %v8366
        %8386 = vmatpush1.bf16.msra.mxu0 %v8363
        %8387 = vmatprep.subr.bf16.mxu0 0
        %8388 = vmatpush1.bf16.msra.mxu0 0
        %8389 = vmatprep.subr.bf16.mxu0 0
        %8390 = vmatpush1.bf16.msra.mxu0 0
        %8391 = vmatprep.subr.bf16.mxu0 0
        %8392 = vmatpush1.bf16.msra.mxu0 0
        %8393 = vmatprep.subr.bf16.mxu0 0
        %8394 = vmatpush1.bf16.msra.mxu0 0
        %8395 = vmatprep.subr.bf16.mxu0 0
        %8396 = vmatpush1.bf16.msra.mxu0 0
        %8397 = vmatprep.subr.bf16.mxu0 0
        %8398 = vmatpush1.bf16.msra.mxu0 0
        %8399 = vmatprep.subr.bf16.mxu0 0
        %8400 = vmatpush1.bf16.msra.mxu0 0
        %8401 = vmatprep.subr.bf16.mxu0 0
        %8402 = vmatpush1.bf16.msra.mxu0 0
        %8403 = vmatprep.subr.bf16.mxu0 0
        %8404 = vmatpush1.bf16.msra.mxu0 0
        %8405 = vmatprep.subr.bf16.mxu0 0
        %8406 = vmatpush1.bf16.msra.mxu0 0
        %8407 = vmatprep.subr.bf16.mxu0 0
        %8408 = vmatpush1.bf16.msra.mxu0 0
        %8409 = vmatprep.subr.bf16.mxu0 0
        %8410 = vmatpush1.bf16.msra.mxu0 0
        %8411 = vmatprep.subr.bf16.mxu0 0
        %8412 = vmatpush1.bf16.msra.mxu0 0
        %8413 = vmatprep.subr.bf16.mxu0 0
        %8414 = vmatpush1.bf16.msra.mxu0 0
        %8415 = vmatprep.mubr.bf16.mxu0 0
        %8416 = vmatmul.mubr.bf16.gmra.mrb[0].mxu0 %v1141
        %v8417 = vpop.f32.mrb[0].mxu0
        %v8418 = vadd.f32 0.0, %v8417
        %v8419 = vpop.f32.mrb[0].mxu0
        %v8420 = vadd.f32 0.0, %v8419
        %v8421 = vpop.f32.mrb[0].mxu0
        %v8422 = vadd.f32 0.0, %v8421
        %v8423 = vpop.f32.mrb[0].mxu0
        %v8424 = vadd.f32 0.0, %v8423
        %8425 = vdwg.mxu0
        %8426 = vmatprep.subr.bf16.mxu0 %v8344
        %8427 = vmatpush1.bf16.msra.mxu0 %v8343
        %8428 = vmatprep.subr.bf16.mxu0 %v8372
        %8429 = vmatpush1.bf16.msra.mxu0 %v8369
        %8430 = vmatprep.subr.bf16.mxu0 0
        %8431 = vmatpush1.bf16.msra.mxu0 0
        %8432 = vmatprep.subr.bf16.mxu0 0
        %8433 = vmatpush1.bf16.msra.mxu0 0
        %8434 = vmatprep.subr.bf16.mxu0 0
        %8435 = vmatpush1.bf16.msra.mxu0 0
        %8436 = vmatprep.subr.bf16.mxu0 0
        %8437 = vmatpush1.bf16.msra.mxu0 0
        %8438 = vmatprep.subr.bf16.mxu0 0
        %8439 = vmatpush1.bf16.msra.mxu0 0
        %8440 = vmatprep.subr.bf16.mxu0 0
        %8441 = vmatpush1.bf16.msra.mxu0 0
        %8442 = vmatprep.subr.bf16.mxu0 0
        %8443 = vmatpush1.bf16.msra.mxu0 0
        %8444 = vmatprep.subr.bf16.mxu0 0
        %8445 = vmatpush1.bf16.msra.mxu0 0
        %8446 = vmatprep.subr.bf16.mxu0 0
        %8447 = vmatpush1.bf16.msra.mxu0 0
        %8448 = vmatprep.subr.bf16.mxu0 0
        %8449 = vmatpush1.bf16.msra.mxu0 0
        %8450 = vmatprep.subr.bf16.mxu0 0
        %8451 = vmatpush1.bf16.msra.mxu0 0
        %8452 = vmatprep.subr.bf16.mxu0 0
        %8453 = vmatpush1.bf16.msra.mxu0 0
        %8454 = vmatprep.subr.bf16.mxu0 0
        %8455 = vmatpush1.bf16.msra.mxu0 0
        %8456 = vmatprep.subr.bf16.mxu0 0
        %8457 = vmatpush1.bf16.msra.mxu0 0
        %8458 = vmatprep.mubr.bf16.mxu0 0
        %8459 = vmatmul.mubr.bf16.gmra.mrb[0].mxu0 %v1141
        %v8460 = vpop.f32.mrb[0].mxu0
        %v8461 = vadd.f32 0.0, %v8460
        %v8462 = vpop.f32.mrb[0].mxu0
        %v8463 = vadd.f32 0.0, %v8462
        %v8464 = vpop.f32.mrb[0].mxu0
        %v8465 = vadd.f32 0.0, %v8464
        %v8466 = vpop.f32.mrb[0].mxu0
        %v8467 = vadd.f32 0.0, %v8466
        %8468 = vdwg.mxu0
        %8469 = vmatprep.subr.bf16.mxu0 %v8346
        %8470 = vmatpush1.bf16.msra.mxu0 %v8345
        %8471 = vmatprep.subr.bf16.mxu0 %v8378
        %8472 = vmatpush1.bf16.msra.mxu0 %v8375
        %8473 = vmatprep.subr.bf16.mxu0 0
        %8474 = vmatpush1.bf16.msra.mxu0 0
        %8475 = vmatprep.subr.bf16.mxu0 0
        %8476 = vmatpush1.bf16.msra.mxu0 0
        %8477 = vmatprep.subr.bf16.mxu0 0
        %8478 = vmatpush1.bf16.msra.mxu0 0
        %8479 = vmatprep.subr.bf16.mxu0 0
        %8480 = vmatpush1.bf16.msra.mxu0 0
        %8481 = vmatprep.subr.bf16.mxu0 0
        %8482 = vmatpush1.bf16.msra.mxu0 0
        %8483 = vmatprep.subr.bf16.mxu0 0
        %8484 = vmatpush1.bf16.msra.mxu0 0
        %8485 = vmatprep.subr.bf16.mxu0 0
        %8486 = vmatpush1.bf16.msra.mxu0 0
        %8487 = vmatprep.subr.bf16.mxu0 0
        %8488 = vmatpush1.bf16.msra.mxu0 0
        %8489 = vmatprep.subr.bf16.mxu0 0
        %8490 = vmatpush1.bf16.msra.mxu0 0
        %8491 = vmatprep.subr.bf16.mxu0 0
        %8492 = vmatpush1.bf16.msra.mxu0 0
        %8493 = vmatprep.subr.bf16.mxu0 0
        %8494 = vmatpush1.bf16.msra.mxu0 0
        %8495 = vmatprep.subr.bf16.mxu0 0
        %8496 = vmatpush1.bf16.msra.mxu0 0
        %8497 = vmatprep.subr.bf16.mxu0 0
        %8498 = vmatpush1.bf16.msra.mxu0 0
        %8499 = vmatprep.subr.bf16.mxu0 0
        %8500 = vmatpush1.bf16.msra.mxu0 0
        %8501 = vmatprep.mubr.bf16.mxu0 0
        %8502 = vmatmul.mubr.bf16.gmra.mrb[0].mxu0 %v1141
        %v8503 = vpop.f32.mrb[0].mxu0
        %v8504 = vadd.f32 0.0, %v8503
        %v8505 = vpop.f32.mrb[0].mxu0
        %v8506 = vadd.f32 0.0, %v8505
        %v8507 = vpop.f32.mrb[0].mxu0
        %v8508 = vadd.f32 0.0, %v8507
        %v8509 = vpop.f32.mrb[0].mxu0
        %v8510 = vadd.f32 0.0, %v8509
        %8511 = vdwg.mxu0
        %8512 = vmatprep.subr.bf16.mxu0 0
        %8513 = vmatpush1.bf16.msra.mxu0 %v8347
        %8514 = vmatprep.subr.bf16.mxu0 0
        %8515 = vmatpush1.bf16.msra.mxu0 %v8381
        %8516 = vmatprep.subr.bf16.mxu0 0
        %8517 = vmatpush1.bf16.msra.mxu0 0
        %8518 = vmatprep.subr.bf16.mxu0 0
        %8519 = vmatpush1.bf16.msra.mxu0 0
        %8520 = vmatprep.subr.bf16.mxu0 0
        %8521 = vmatpush1.bf16.msra.mxu0 0
        %8522 = vmatprep.subr.bf16.mxu0 0
        %8523 = vmatpush1.bf16.msra.mxu0 0
        %8524 = vmatprep.subr.bf16.mxu0 0
        %8525 = vmatpush1.bf16.msra.mxu0 0
        %8526 = vmatprep.subr.bf16.mxu0 0
        %8527 = vmatpush1.bf16.msra.mxu0 0
        %8528 = vmatprep.subr.bf16.mxu0 0
        %8529 = vmatpush1.bf16.msra.mxu0 0
        %8530 = vmatprep.subr.bf16.mxu0 0
        %8531 = vmatpush1.bf16.msra.mxu0 0
        %8532 = vmatprep.subr.bf16.mxu0 0
        %8533 = vmatpush1.bf16.msra.mxu0 0
        %8534 = vmatprep.subr.bf16.mxu0 0
        %8535 = vmatpush1.bf16.msra.mxu0 0
        %8536 = vmatprep.subr.bf16.mxu0 0
        %8537 = vmatpush1.bf16.msra.mxu0 0
        %8538 = vmatprep.subr.bf16.mxu0 0
        %8539 = vmatpush1.bf16.msra.mxu0 0
        %8540 = vmatprep.subr.bf16.mxu0 0
        %8541 = vmatpush1.bf16.msra.mxu0 0
        %8542 = vmatprep.subr.bf16.mxu0 0
        %8543 = vmatpush1.bf16.msra.mxu0 0
        %8544 = vmatprep.mubr.bf16.mxu0 0
        %8545 = vmatmul.mubr.bf16.gmra.mrb[0].mxu0 %v1141
        %v8546 = vpop.f32.mrb[0].mxu0
        %v8547 = vadd.f32 0.0, %v8546
        %v8548 = vpop.f32.mrb[0].mxu0
        %v8549 = vpop.f32.mrb[0].mxu0
        %v8550 = vadd.f32 0.0, %v8549
        %v8551 = vpop.f32.mrb[0].mxu0
        %8552 = vdwg.mxu0
        %v8553 = vmax.f32 %v7602, %v7874
        %v8554 = vmax.f32 %v7604, %v7876
        %v8555 = vmax.f32 %v7645, %v7917
        %v8556 = vmax.f32 %v7647, %v7919
        %v8557 = vmax.f32 %v7688, %v7960
        %v8558 = vmax.f32 %v7690, %v7962
        %v8559 = vmax.f32 %v7731, %v8003
        %v8560 = vmax.f32 %v7606, %v7878
        %v8561 = vmax.f32 %v7608, %v7880
        %v8562 = vmax.f32 %v7649, %v7921
        %v8563 = vmax.f32 %v7651, %v7923
        %v8564 = vmax.f32 %v7692, %v7964
        %v8565 = vmax.f32 %v7694, %v7966
        %v8566 = vmax.f32 %v7734, %v8006
        %v8567 = vmax.f32 %v8146, %v8418
        %v8568 = vmax.f32 %v8148, %v8420
        %v8569 = vmax.f32 %v8189, %v8461
        %v8570 = vmax.f32 %v8191, %v8463
        %v8571 = vmax.f32 %v8232, %v8504
        %v8572 = vmax.f32 %v8234, %v8506
        %v8573 = vmax.f32 %v8275, %v8547
        %v8574 = vmax.f32 %v8150, %v8422
        %v8575 = vmax.f32 %v8152, %v8424
        %v8576 = vmax.f32 %v8193, %v8465
        %v8577 = vmax.f32 %v8195, %v8467
        %v8578 = vmax.f32 %v8236, %v8508
        %v8579 = vmax.f32 %v8238, %v8510
        %v8580 = vmax.f32 %v8278, %v8550
        %v8581 = vmax.f32 %v8553, %v8567
        %v8582 = vmax.f32 %v8554, %v8568
        %v8583 = vmax.f32 %v8555, %v8569
        %v8584 = vmax.f32 %v8556, %v8570
        %v8585 = vmax.f32 %v8557, %v8571
        %v8586 = vmax.f32 %v8558, %v8572
        %v8587 = vmax.f32 %v8559, %v8573
        %v8588 = vmax.f32 %v8560, %v8574
        %v8589 = vmax.f32 %v8561, %v8575
        %v8590 = vmax.f32 %v8562, %v8576
        %v8591 = vmax.f32 %v8563, %v8577
        %v8592 = vmax.f32 %v8564, %v8578
        %v8593 = vmax.f32 %v8565, %v8579
        %v8594 = vmax.f32 %v8566, %v8580
        %v8595 = vadd.f32 %v8581, %v2202
        %v8596 = vadd.f32 %v8582, %v2202
        %v8597 = vadd.f32 %v8583, %v2202
        %v8598 = vadd.f32 %v8584, %v2202
        %v8599 = vadd.f32 %v8585, %v2202
        %v8600 = vadd.f32 %v8586, %v2202
        %v8601 = vadd.f32 %v8587, %v2202
        %v8602 = vadd.f32 %v8588, %v2207
        %v8603 = vadd.f32 %v8589, %v2207
        %v8604 = vadd.f32 %v8590, %v2207
        %v8605 = vadd.f32 %v8591, %v2207
        %v8606 = vadd.f32 %v8592, %v2207
        %v8607 = vadd.f32 %v8593, %v2207
        %v8608 = vadd.f32 %v8594, %v2207
        %v8609 = vmax.f32 %v8595, 0.0
        %v8610 = vmax.f32 %v8596, 0.0
        %v8611 = vmax.f32 %v8597, 0.0
        %v8612 = vmax.f32 %v8598, 0.0
        %v8613 = vmax.f32 %v8599, 0.0
        %v8614 = vmax.f32 %v8600, 0.0
        %v8615 = vmax.f32 %v8601, 0.0
        %v8616 = vmax.f32 %v8602, 0.0
        %v8617 = vmax.f32 %v8603, 0.0
        %v8618 = vmax.f32 %v8604, 0.0
        %v8619 = vmax.f32 %v8605, 0.0
        %v8620 = vmax.f32 %v8606, 0.0
        %v8621 = vmax.f32 %v8607, 0.0
        %v8622 = vmax.f32 %v8608, 0.0
        %v8623 = vld [vmem:[%s2239 + $0x8c] sm:$0xff]
        %v8624 = vld [vmem:[%s2239 + $0x94] sm:$0xff]
        %v8625 = vld [vmem:[%s2239 + $0x9c] sm:$0xff]
        %v8626 = vld [vmem:[%s2239 + $0xa4] sm:$0xf]
        %v8627 = vld [vmem:[%s2239 + $0x150] sm:$0xff]
        %v8628 = vld [vmem:[%s2239 + $0x158] sm:$0xff]
        %v8629 = vld [vmem:[%s2239 + $0x160] sm:$0xff]
        %v8630 = vld [vmem:[%s2239 + $0x168] sm:$0xf]
        %v8631 = vunpack.c.l.bf16 %v8623
        %v8632 = vunpack.c.h.bf16 %v8623
        %v8633 = vunpack.c.l.bf16 %v8624
        %v8634 = vunpack.c.h.bf16 %v8624
        %v8635 = vunpack.c.l.bf16 %v8625
        %v8636 = vunpack.c.h.bf16 %v8625
        %v8637 = vunpack.c.l.bf16 %v8626
        %v8638 = vunpack.c.l.bf16 %v8627
        %v8639 = vunpack.c.h.bf16 %v8627
        %v8640 = vunpack.c.l.bf16 %v8628
        %v8641 = vunpack.c.h.bf16 %v8628
        %v8642 = vunpack.c.l.bf16 %v8629
        %v8643 = vunpack.c.h.bf16 %v8629
        %v8644 = vunpack.c.l.bf16 %v8630
        %v8645 = vld [vmem:[%s2264 + $0x8c] sm:$0xff]
        %v8646 = vld [vmem:[%s2264 + $0x94] sm:$0xff]
        %v8647 = vld [vmem:[%s2264 + $0x9c] sm:$0xff]
        %v8648 = vld [vmem:[%s2264 + $0xa4] sm:$0xf]
        %v8649 = vld [vmem:[%s2264 + $0x150] sm:$0xff]
        %v8650 = vld [vmem:[%s2264 + $0x158] sm:$0xff]
        %v8651 = vld [vmem:[%s2264 + $0x160] sm:$0xff]
        %v8652 = vld [vmem:[%s2264 + $0x168] sm:$0xf]
        %v8653 = vunpack.c.l.bf16 %v8645
        %v8654 = vunpack.c.h.bf16 %v8645
        %v8655 = vunpack.c.l.bf16 %v8646
        %v8656 = vunpack.c.h.bf16 %v8646
        %v8657 = vunpack.c.l.bf16 %v8647
        %v8658 = vunpack.c.h.bf16 %v8647
        %v8659 = vunpack.c.l.bf16 %v8648
        %v8660 = vunpack.c.l.bf16 %v8649
        %v8661 = vunpack.c.h.bf16 %v8649
        %v8662 = vunpack.c.l.bf16 %v8650
        %v8663 = vunpack.c.h.bf16 %v8650
        %v8664 = vunpack.c.l.bf16 %v8651
        %v8665 = vunpack.c.h.bf16 %v8651
        %v8666 = vunpack.c.l.bf16 %v8652
        %v8667 = vmul.f32 %v8609, %v8631
        %v8668 = vmul.f32 %v8610, %v8632
        %v8669 = vmul.f32 %v8611, %v8633
        %v8670 = vmul.f32 %v8612, %v8634
        %v8671 = vmul.f32 %v8613, %v8635
        %v8672 = vmul.f32 %v8614, %v8636
        %v8673 = vmul.f32 %v8615, %v8637
        %v8674 = vmul.f32 %v8616, %v8638
        %v8675 = vmul.f32 %v8617, %v8639
        %v8676 = vmul.f32 %v8618, %v8640
        %v8677 = vmul.f32 %v8619, %v8641
        %v8678 = vmul.f32 %v8620, %v8642
        %v8679 = vmul.f32 %v8621, %v8643
        %v8680 = vmul.f32 %v8622, %v8644
        %v8681 = vadd.f32 %v8667, %v8668
        %v8682 = vadd.f32 %v8681, %v8669
        %v8683 = vadd.f32 %v8682, %v8670
        %v8684 = vadd.f32 %v8683, %v8671
        %v8685 = vadd.f32 %v8684, %v8672
        %v8686 = vadd.f32 %v8685, %v8673
        %v8687 = vadd.f32 %v8686, %v8674
        %v8688 = vadd.f32 %v8687, %v8675
        %v8689 = vadd.f32 %v8688, %v8676
        %v8690 = vadd.f32 %v8689, %v8677
        %v8691 = vadd.f32 %v8690, %v8678
        %v8692 = vadd.f32 %v8691, %v8679
        %v8693 = vadd.f32 %v8692, %v8680
        %8694 = vadd.xlane.f32.xlu0 %v8693
        %v8695 = vpop.xlane.xlu0 %8694
        %v8696 = vrot.slane %v8695, 4
        %v8697 = vadd.f32 %v8695, %v8696
        %v8698 = vrot.slane %v8697, 2
        %v8699 = vadd.f32 %v8697, %v8698
        %v8700 = vrot.slane %v8699, 1
        %v8701 = vadd.f32 %v8699, %v8700
        %s8702 = vtos %v8701
        %s8703 = sadd.f32 %s7427, %s8702
        %v8704 = vmul.f32 %v8609, %v8653
        %v8705 = vmul.f32 %v8610, %v8654
        %v8706 = vmul.f32 %v8611, %v8655
        %v8707 = vmul.f32 %v8612, %v8656
        %v8708 = vmul.f32 %v8613, %v8657
        %v8709 = vmul.f32 %v8614, %v8658
        %v8710 = vmul.f32 %v8615, %v8659
        %v8711 = vmul.f32 %v8616, %v8660
        %v8712 = vmul.f32 %v8617, %v8661
        %v8713 = vmul.f32 %v8618, %v8662
        %v8714 = vmul.f32 %v8619, %v8663
        %v8715 = vmul.f32 %v8620, %v8664
        %v8716 = vmul.f32 %v8621, %v8665
        %v8717 = vmul.f32 %v8622, %v8666
        %v8718 = vadd.f32 %v8704, %v8705
        %v8719 = vadd.f32 %v8718, %v8706
        %v8720 = vadd.f32 %v8719, %v8707
        %v8721 = vadd.f32 %v8720, %v8708
        %v8722 = vadd.f32 %v8721, %v8709
        %v8723 = vadd.f32 %v8722, %v8710
        %v8724 = vadd.f32 %v8723, %v8711
        %v8725 = vadd.f32 %v8724, %v8712
        %v8726 = vadd.f32 %v8725, %v8713
        %v8727 = vadd.f32 %v8726, %v8714
        %v8728 = vadd.f32 %v8727, %v8715
        %v8729 = vadd.f32 %v8728, %v8716
        %v8730 = vadd.f32 %v8729, %v8717
        %8731 = vadd.xlane.f32.xlu0 %v8730
        %v8732 = vpop.xlane.xlu0 %8731
        %v8733 = vrot.slane %v8732, 4
        %v8734 = vadd.f32 %v8732, %v8733
        %v8735 = vrot.slane %v8734, 2
        %v8736 = vadd.f32 %v8734, %v8735
        %v8737 = vrot.slane %v8736, 1
        %v8738 = vadd.f32 %v8736, %v8737
        %s8739 = vtos %v8738
        %s8740 = sadd.f32 %s7464, %s8739
        %v8741 = vld [vmem:[%s1015 + $0xa8] sm:$0xff]
        %v8742 = vld [vmem:[%s1015 + $0xb0] sm:$0xff]
        %v8743 = vld [vmem:[%s1015 + $0xb8] sm:$0xff]
        %v8744 = vld [vmem:[%s1015 + $0xc0] sm:$0xf]
        %v8745 = vld [vmem:[%s1015 + $0x16c] sm:$0xff]
        %v8746 = vld [vmem:[%s1015 + $0x174] sm:$0xff]
        %v8747 = vld [vmem:[%s1015 + $0x17c] sm:$0xff]
        %v8748 = vld [vmem:[%s1015 + $0x184] sm:$0xf]
        %v8749 = vld [vmem:[%s1015 + $0x230] sm:$0xff]
        %v8750 = vld [vmem:[%s1015 + $0x238] sm:$0xff]
        %v8751 = vld [vmem:[%s1015 + $0x240] sm:$0xff]
        %v8752 = vld [vmem:[%s1015 + $0x248] sm:$0xf]
        %v8753 = vld [vmem:[%s1015 + $0x2f4] sm:$0x33]
        %v8754 = vld [vmem:[%s1015 + $0x2fc] sm:$0x33]
        %v8755 = vld [vmem:[%s1015 + $0x304] sm:$0x33]
        %v8756 = vld [vmem:[%s1015 + $0x30c] sm:$0x3]
        %v8773 = vunpack.c.l.b16 %v8741
        %v8774 = vunpack.c.h.b16 %v8741
        %v8775 = vunpack.c.l.b16 %v8742
        %v8776 = vunpack.c.h.b16 %v8742
        %v8777 = vunpack.c.l.b16 %v8743
        %v8778 = vunpack.c.h.b16 %v8743
        %v8779 = vunpack.c.l.b16 %v8744
        %v8780 = vunpack.c.l.b16 %v8745
        %v8781 = vunpack.c.h.b16 %v8745
        %v8782 = vunpack.c.l.b16 %v8746
        %v8783 = vunpack.c.h.b16 %v8746
        %v8784 = vunpack.c.l.b16 %v8747
        %v8785 = vunpack.c.h.b16 %v8747
        %v8786 = vunpack.c.l.b16 %v8748
        %v8787 = vunpack.c.l.b16 %v8749
        %v8788 = vunpack.c.h.b16 %v8749
        %v8789 = vunpack.c.l.b16 %v8750
        %v8790 = vunpack.c.h.b16 %v8750
        %v8791 = vunpack.c.l.b16 %v8751
        %v8792 = vunpack.c.h.b16 %v8751
        %v8793 = vunpack.c.l.b16 %v8752
        %v8794 = vunpack.c.l.b16 %v8753
        %v8795 = vunpack.c.h.b16 %v8753
        %v8796 = vunpack.c.l.b16 %v8754
        %v8797 = vunpack.c.h.b16 %v8754
        %v8798 = vunpack.c.l.b16 %v8755
        %v8799 = vunpack.c.h.b16 %v8755
        %v8800 = vunpack.c.l.b16 %v8756
        %v8801 = vpack.c.b16 %v8780, %v8773
        %v8802 = vpack.c.b16 %v8781, %v8774
        %v8803 = vpack.c.b16 %v8782, %v8775
        %v8804 = vpack.c.b16 %v8783, %v8776
        %v8805 = vpack.c.b16 %v8784, %v8777
        %v8806 = vpack.c.b16 %v8785, %v8778
        %v8807 = vpack.c.b16 %v8786, %v8779
        %v8808 = vpack.c.b16 %v8794, %v8787
        %v8809 = vpack.c.b16 %v8795, %v8788
        %v8810 = vpack.c.b16 %v8796, %v8789
        %v8811 = vpack.c.b16 %v8797, %v8790
        %v8812 = vpack.c.b16 %v8798, %v8791
        %v8813 = vpack.c.b16 %v8799, %v8792
        %v8814 = vpack.c.b16 %v8800, %v8793
        %v8823 = vand.u32 %v8808, %v1146
        %v8826 = vand.u32 %v8809, %v1146
        %v8829 = vand.u32 %v8810, %v1146
        %v8832 = vand.u32 %v8811, %v1146
        %v8835 = vand.u32 %v8812, %v1146
        %v8838 = vand.u32 %v8813, %v1146
        %v8841 = vand.u32 %v8814, %v1146
        %8843 = vmatprep.subr.bf16.mxu0 %v8802
        %8844 = vmatpush1.bf16.msra.mxu0 %v8801
        %8845 = vmatprep.subr.bf16.mxu0 %v8826
        %8846 = vmatpush1.bf16.msra.mxu0 %v8823
        %8847 = vmatprep.subr.bf16.mxu0 0
        %8848 = vmatpush1.bf16.msra.mxu0 0
        %8849 = vmatprep.subr.bf16.mxu0 0
        %8850 = vmatpush1.bf16.msra.mxu0 0
        %8851 = vmatprep.subr.bf16.mxu0 0
        %8852 = vmatpush1.bf16.msra.mxu0 0
        %8853 = vmatprep.subr.bf16.mxu0 0
        %8854 = vmatpush1.bf16.msra.mxu0 0
        %8855 = vmatprep.subr.bf16.mxu0 0
        %8856 = vmatpush1.bf16.msra.mxu0 0
        %8857 = vmatprep.subr.bf16.mxu0 0
        %8858 = vmatpush1.bf16.msra.mxu0 0
        %8859 = vmatprep.subr.bf16.mxu0 0
        %8860 = vmatpush1.bf16.msra.mxu0 0
        %8861 = vmatprep.subr.bf16.mxu0 0
        %8862 = vmatpush1.bf16.msra.mxu0 0
        %8863 = vmatprep.subr.bf16.mxu0 0
        %8864 = vmatpush1.bf16.msra.mxu0 0
        %8865 = vmatprep.subr.bf16.mxu0 0
        %8866 = vmatpush1.bf16.msra.mxu0 0
        %8867 = vmatprep.subr.bf16.mxu0 0
        %8868 = vmatpush1.bf16.msra.mxu0 0
        %8869 = vmatprep.subr.bf16.mxu0 0
        %8870 = vmatpush1.bf16.msra.mxu0 0
        %8871 = vmatprep.subr.bf16.mxu0 0
        %8872 = vmatpush1.bf16.msra.mxu0 0
        %8873 = vmatprep.subr.bf16.mxu0 0
        %8874 = vmatpush1.bf16.msra.mxu0 0
        %8875 = vmatprep.mubr.bf16.mxu0 0
        %8876 = vmatmul.mubr.bf16.gmra.mrb[0].mxu0 %v1141
        %v8877 = vpop.f32.mrb[0].mxu0
        %v8878 = vadd.f32 0.0, %v8877
        %v8879 = vpop.f32.mrb[0].mxu0
        %v8880 = vadd.f32 0.0, %v8879
        %v8881 = vpop.f32.mrb[0].mxu0
        %v8882 = vadd.f32 0.0, %v8881
        %v8883 = vpop.f32.mrb[0].mxu0
        %v8884 = vadd.f32 0.0, %v8883
        %8885 = vdwg.mxu0
        %8886 = vmatprep.subr.bf16.mxu0 %v8804
        %8887 = vmatpush1.bf16.msra.mxu0 %v8803
        %8888 = vmatprep.subr.bf16.mxu0 %v8832
        %8889 = vmatpush1.bf16.msra.mxu0 %v8829
        %8890 = vmatprep.subr.bf16.mxu0 0
        %8891 = vmatpush1.bf16.msra.mxu0 0
        %8892 = vmatprep.subr.bf16.mxu0 0
        %8893 = vmatpush1.bf16.msra.mxu0 0
        %8894 = vmatprep.subr.bf16.mxu0 0
        %8895 = vmatpush1.bf16.msra.mxu0 0
        %8896 = vmatprep.subr.bf16.mxu0 0
        %8897 = vmatpush1.bf16.msra.mxu0 0
        %8898 = vmatprep.subr.bf16.mxu0 0
        %8899 = vmatpush1.bf16.msra.mxu0 0
        %8900 = vmatprep.subr.bf16.mxu0 0
        %8901 = vmatpush1.bf16.msra.mxu0 0
        %8902 = vmatprep.subr.bf16.mxu0 0
        %8903 = vmatpush1.bf16.msra.mxu0 0
        %8904 = vmatprep.subr.bf16.mxu0 0
        %8905 = vmatpush1.bf16.msra.mxu0 0
        %8906 = vmatprep.subr.bf16.mxu0 0
        %8907 = vmatpush1.bf16.msra.mxu0 0
        %8908 = vmatprep.subr.bf16.mxu0 0
        %8909 = vmatpush1.bf16.msra.mxu0 0
        %8910 = vmatprep.subr.bf16.mxu0 0
        %8911 = vmatpush1.bf16.msra.mxu0 0
        %8912 = vmatprep.subr.bf16.mxu0 0
        %8913 = vmatpush1.bf16.msra.mxu0 0
        %8914 = vmatprep.subr.bf16.mxu0 0
        %8915 = vmatpush1.bf16.msra.mxu0 0
        %8916 = vmatprep.subr.bf16.mxu0 0
        %8917 = vmatpush1.bf16.msra.mxu0 0
        %8918 = vmatprep.mubr.bf16.mxu0 0
        %8919 = vmatmul.mubr.bf16.gmra.mrb[0].mxu0 %v1141
        %v8920 = vpop.f32.mrb[0].mxu0
        %v8921 = vadd.f32 0.0, %v8920
        %v8922 = vpop.f32.mrb[0].mxu0
        %v8923 = vadd.f32 0.0, %v8922
        %v8924 = vpop.f32.mrb[0].mxu0
        %v8925 = vadd.f32 0.0, %v8924
        %v8926 = vpop.f32.mrb[0].mxu0
        %v8927 = vadd.f32 0.0, %v8926
        %8928 = vdwg.mxu0
        %8929 = vmatprep.subr.bf16.mxu0 %v8806
        %8930 = vmatpush1.bf16.msra.mxu0 %v8805
        %8931 = vmatprep.subr.bf16.mxu0 %v8838
        %8932 = vmatpush1.bf16.msra.mxu0 %v8835
        %8933 = vmatprep.subr.bf16.mxu0 0
        %8934 = vmatpush1.bf16.msra.mxu0 0
        %8935 = vmatprep.subr.bf16.mxu0 0
        %8936 = vmatpush1.bf16.msra.mxu0 0
        %8937 = vmatprep.subr.bf16.mxu0 0
        %8938 = vmatpush1.bf16.msra.mxu0 0
        %8939 = vmatprep.subr.bf16.mxu0 0
        %8940 = vmatpush1.bf16.msra.mxu0 0
        %8941 = vmatprep.subr.bf16.mxu0 0
        %8942 = vmatpush1.bf16.msra.mxu0 0
        %8943 = vmatprep.subr.bf16.mxu0 0
        %8944 = vmatpush1.bf16.msra.mxu0 0
        %8945 = vmatprep.subr.bf16.mxu0 0
        %8946 = vmatpush1.bf16.msra.mxu0 0
        %8947 = vmatprep.subr.bf16.mxu0 0
        %8948 = vmatpush1.bf16.msra.mxu0 0
        %8949 = vmatprep.subr.bf16.mxu0 0
        %8950 = vmatpush1.bf16.msra.mxu0 0
        %8951 = vmatprep.subr.bf16.mxu0 0
        %8952 = vmatpush1.bf16.msra.mxu0 0
        %8953 = vmatprep.subr.bf16.mxu0 0
        %8954 = vmatpush1.bf16.msra.mxu0 0
        %8955 = vmatprep.subr.bf16.mxu0 0
        %8956 = vmatpush1.bf16.msra.mxu0 0
        %8957 = vmatprep.subr.bf16.mxu0 0
        %8958 = vmatpush1.bf16.msra.mxu0 0
        %8959 = vmatprep.subr.bf16.mxu0 0
        %8960 = vmatpush1.bf16.msra.mxu0 0
        %8961 = vmatprep.mubr.bf16.mxu0 0
        %8962 = vmatmul.mubr.bf16.gmra.mrb[0].mxu0 %v1141
        %v8963 = vpop.f32.mrb[0].mxu0
        %v8964 = vadd.f32 0.0, %v8963
        %v8965 = vpop.f32.mrb[0].mxu0
        %v8966 = vadd.f32 0.0, %v8965
        %v8967 = vpop.f32.mrb[0].mxu0
        %v8968 = vadd.f32 0.0, %v8967
        %v8969 = vpop.f32.mrb[0].mxu0
        %v8970 = vadd.f32 0.0, %v8969
        %8971 = vdwg.mxu0
        %8972 = vmatprep.subr.bf16.mxu0 0
        %8973 = vmatpush1.bf16.msra.mxu0 %v8807
        %8974 = vmatprep.subr.bf16.mxu0 0
        %8975 = vmatpush1.bf16.msra.mxu0 %v8841
        %8976 = vmatprep.subr.bf16.mxu0 0
        %8977 = vmatpush1.bf16.msra.mxu0 0
        %8978 = vmatprep.subr.bf16.mxu0 0
        %8979 = vmatpush1.bf16.msra.mxu0 0
        %8980 = vmatprep.subr.bf16.mxu0 0
        %8981 = vmatpush1.bf16.msra.mxu0 0
        %8982 = vmatprep.subr.bf16.mxu0 0
        %8983 = vmatpush1.bf16.msra.mxu0 0
        %8984 = vmatprep.subr.bf16.mxu0 0
        %8985 = vmatpush1.bf16.msra.mxu0 0
        %8986 = vmatprep.subr.bf16.mxu0 0
        %8987 = vmatpush1.bf16.msra.mxu0 0
        %8988 = vmatprep.subr.bf16.mxu0 0
        %8989 = vmatpush1.bf16.msra.mxu0 0
        %8990 = vmatprep.subr.bf16.mxu0 0
        %8991 = vmatpush1.bf16.msra.mxu0 0
        %8992 = vmatprep.subr.bf16.mxu0 0
        %8993 = vmatpush1.bf16.msra.mxu0 0
        %8994 = vmatprep.subr.bf16.mxu0 0
        %8995 = vmatpush1.bf16.msra.mxu0 0
        %8996 = vmatprep.subr.bf16.mxu0 0
        %8997 = vmatpush1.bf16.msra.mxu0 0
        %8998 = vmatprep.subr.bf16.mxu0 0
        %8999 = vmatpush1.bf16.msra.mxu0 0
        %9000 = vmatprep.subr.bf16.mxu0 0
        %9001 = vmatpush1.bf16.msra.mxu0 0
        %9002 = vmatprep.subr.bf16.mxu0 0
        %9003 = vmatpush1.bf16.msra.mxu0 0
        %9004 = vmatprep.mubr.bf16.mxu0 0
        %9005 = vmatmul.mubr.bf16.gmra.mrb[0].mxu0 %v1141
        %v9006 = vpop.f32.mrb[0].mxu0
        %v9007 = vadd.f32 0.0, %v9006
        %v9008 = vpop.f32.mrb[0].mxu0
        %v9009 = vpop.f32.mrb[0].mxu0
        %v9010 = vadd.f32 0.0, %v9009
        %v9011 = vpop.f32.mrb[0].mxu0
        %9012 = vdwg.mxu0
        %v9013 = vld [vmem:[%s1338 + $0xa8] sm:$0xff]
        %v9014 = vld [vmem:[%s1338 + $0xb0] sm:$0xff]
        %v9015 = vld [vmem:[%s1338 + $0xb8] sm:$0xff]
        %v9016 = vld [vmem:[%s1338 + $0xc0] sm:$0xf]
        %v9017 = vld [vmem:[%s1338 + $0x16c] sm:$0xff]
        %v9018 = vld [vmem:[%s1338 + $0x174] sm:$0xff]
        %v9019 = vld [vmem:[%s1338 + $0x17c] sm:$0xff]
        %v9020 = vld [vmem:[%s1338 + $0x184] sm:$0xf]
        %v9021 = vld [vmem:[%s1338 + $0x230] sm:$0xff]
        %v9022 = vld [vmem:[%s1338 + $0x238] sm:$0xff]
        %v9023 = vld [vmem:[%s1338 + $0x240] sm:$0xff]
        %v9024 = vld [vmem:[%s1338 + $0x248] sm:$0xf]
        %v9025 = vld [vmem:[%s1338 + $0x2f4] sm:$0x33]
        %v9026 = vld [vmem:[%s1338 + $0x2fc] sm:$0x33]
        %v9027 = vld [vmem:[%s1338 + $0x304] sm:$0x33]
        %v9028 = vld [vmem:[%s1338 + $0x30c] sm:$0x3]
        %v9045 = vunpack.c.l.b16 %v9013
        %v9046 = vunpack.c.h.b16 %v9013
        %v9047 = vunpack.c.l.b16 %v9014
        %v9048 = vunpack.c.h.b16 %v9014
        %v9049 = vunpack.c.l.b16 %v9015
        %v9050 = vunpack.c.h.b16 %v9015
        %v9051 = vunpack.c.l.b16 %v9016
        %v9052 = vunpack.c.l.b16 %v9017
        %v9053 = vunpack.c.h.b16 %v9017
        %v9054 = vunpack.c.l.b16 %v9018
        %v9055 = vunpack.c.h.b16 %v9018
        %v9056 = vunpack.c.l.b16 %v9019
        %v9057 = vunpack.c.h.b16 %v9019
        %v9058 = vunpack.c.l.b16 %v9020
        %v9059 = vunpack.c.l.b16 %v9021
        %v9060 = vunpack.c.h.b16 %v9021
        %v9061 = vunpack.c.l.b16 %v9022
        %v9062 = vunpack.c.h.b16 %v9022
        %v9063 = vunpack.c.l.b16 %v9023
        %v9064 = vunpack.c.h.b16 %v9023
        %v9065 = vunpack.c.l.b16 %v9024
        %v9066 = vunpack.c.l.b16 %v9025
        %v9067 = vunpack.c.h.b16 %v9025
        %v9068 = vunpack.c.l.b16 %v9026
        %v9069 = vunpack.c.h.b16 %v9026
        %v9070 = vunpack.c.l.b16 %v9027
        %v9071 = vunpack.c.h.b16 %v9027
        %v9072 = vunpack.c.l.b16 %v9028
        %v9073 = vpack.c.b16 %v9052, %v9045
        %v9074 = vpack.c.b16 %v9053, %v9046
        %v9075 = vpack.c.b16 %v9054, %v9047
        %v9076 = vpack.c.b16 %v9055, %v9048
        %v9077 = vpack.c.b16 %v9056, %v9049
        %v9078 = vpack.c.b16 %v9057, %v9050
        %v9079 = vpack.c.b16 %v9058, %v9051
        %v9080 = vpack.c.b16 %v9066, %v9059
        %v9081 = vpack.c.b16 %v9067, %v9060
        %v9082 = vpack.c.b16 %v9068, %v9061
        %v9083 = vpack.c.b16 %v9069, %v9062
        %v9084 = vpack.c.b16 %v9070, %v9063
        %v9085 = vpack.c.b16 %v9071, %v9064
        %v9086 = vpack.c.b16 %v9072, %v9065
        %v9095 = vand.u32 %v9080, %v1146
        %v9098 = vand.u32 %v9081, %v1146
        %v9101 = vand.u32 %v9082, %v1146
        %v9104 = vand.u32 %v9083, %v1146
        %v9107 = vand.u32 %v9084, %v1146
        %v9110 = vand.u32 %v9085, %v1146
        %v9113 = vand.u32 %v9086, %v1146
        %9115 = vmatprep.subr.bf16.mxu0 %v9074
        %9116 = vmatpush1.bf16.msra.mxu0 %v9073
        %9117 = vmatprep.subr.bf16.mxu0 %v9098
        %9118 = vmatpush1.bf16.msra.mxu0 %v9095
        %9119 = vmatprep.subr.bf16.mxu0 0
        %9120 = vmatpush1.bf16.msra.mxu0 0
        %9121 = vmatprep.subr.bf16.mxu0 0
        %9122 = vmatpush1.bf16.msra.mxu0 0
        %9123 = vmatprep.subr.bf16.mxu0 0
        %9124 = vmatpush1.bf16.msra.mxu0 0
        %9125 = vmatprep.subr.bf16.mxu0 0
        %9126 = vmatpush1.bf16.msra.mxu0 0
        %9127 = vmatprep.subr.bf16.mxu0 0
        %9128 = vmatpush1.bf16.msra.mxu0 0
        %9129 = vmatprep.subr.bf16.mxu0 0
        %9130 = vmatpush1.bf16.msra.mxu0 0
        %9131 = vmatprep.subr.bf16.mxu0 0
        %9132 = vmatpush1.bf16.msra.mxu0 0
        %9133 = vmatprep.subr.bf16.mxu0 0
        %9134 = vmatpush1.bf16.msra.mxu0 0
        %9135 = vmatprep.subr.bf16.mxu0 0
        %9136 = vmatpush1.bf16.msra.mxu0 0
        %9137 = vmatprep.subr.bf16.mxu0 0
        %9138 = vmatpush1.bf16.msra.mxu0 0
        %9139 = vmatprep.subr.bf16.mxu0 0
        %9140 = vmatpush1.bf16.msra.mxu0 0
        %9141 = vmatprep.subr.bf16.mxu0 0
        %9142 = vmatpush1.bf16.msra.mxu0 0
        %9143 = vmatprep.subr.bf16.mxu0 0
        %9144 = vmatpush1.bf16.msra.mxu0 0
        %9145 = vmatprep.subr.bf16.mxu0 0
        %9146 = vmatpush1.bf16.msra.mxu0 0
        %9147 = vmatprep.mubr.bf16.mxu0 0
        %9148 = vmatmul.mubr.bf16.gmra.mrb[0].mxu0 %v1141
        %v9149 = vpop.f32.mrb[0].mxu0
        %v9150 = vadd.f32 0.0, %v9149
        %v9151 = vpop.f32.mrb[0].mxu0
        %v9152 = vadd.f32 0.0, %v9151
        %v9153 = vpop.f32.mrb[0].mxu0
        %v9154 = vadd.f32 0.0, %v9153
        %v9155 = vpop.f32.mrb[0].mxu0
        %v9156 = vadd.f32 0.0, %v9155
        %9157 = vdwg.mxu0
        %9158 = vmatprep.subr.bf16.mxu0 %v9076
        %9159 = vmatpush1.bf16.msra.mxu0 %v9075
        %9160 = vmatprep.subr.bf16.mxu0 %v9104
        %9161 = vmatpush1.bf16.msra.mxu0 %v9101
        %9162 = vmatprep.subr.bf16.mxu0 0
        %9163 = vmatpush1.bf16.msra.mxu0 0
        %9164 = vmatprep.subr.bf16.mxu0 0
        %9165 = vmatpush1.bf16.msra.mxu0 0
        %9166 = vmatprep.subr.bf16.mxu0 0
        %9167 = vmatpush1.bf16.msra.mxu0 0
        %9168 = vmatprep.subr.bf16.mxu0 0
        %9169 = vmatpush1.bf16.msra.mxu0 0
        %9170 = vmatprep.subr.bf16.mxu0 0
        %9171 = vmatpush1.bf16.msra.mxu0 0
        %9172 = vmatprep.subr.bf16.mxu0 0
        %9173 = vmatpush1.bf16.msra.mxu0 0
        %9174 = vmatprep.subr.bf16.mxu0 0
        %9175 = vmatpush1.bf16.msra.mxu0 0
        %9176 = vmatprep.subr.bf16.mxu0 0
        %9177 = vmatpush1.bf16.msra.mxu0 0
        %9178 = vmatprep.subr.bf16.mxu0 0
        %9179 = vmatpush1.bf16.msra.mxu0 0
        %9180 = vmatprep.subr.bf16.mxu0 0
        %9181 = vmatpush1.bf16.msra.mxu0 0
        %9182 = vmatprep.subr.bf16.mxu0 0
        %9183 = vmatpush1.bf16.msra.mxu0 0
        %9184 = vmatprep.subr.bf16.mxu0 0
        %9185 = vmatpush1.bf16.msra.mxu0 0
        %9186 = vmatprep.subr.bf16.mxu0 0
        %9187 = vmatpush1.bf16.msra.mxu0 0
        %9188 = vmatprep.subr.bf16.mxu0 0
        %9189 = vmatpush1.bf16.msra.mxu0 0
        %9190 = vmatprep.mubr.bf16.mxu0 0
        %9191 = vmatmul.mubr.bf16.gmra.mrb[0].mxu0 %v1141
        %v9192 = vpop.f32.mrb[0].mxu0
        %v9193 = vadd.f32 0.0, %v9192
        %v9194 = vpop.f32.mrb[0].mxu0
        %v9195 = vadd.f32 0.0, %v9194
        %v9196 = vpop.f32.mrb[0].mxu0
        %v9197 = vadd.f32 0.0, %v9196
        %v9198 = vpop.f32.mrb[0].mxu0
        %v9199 = vadd.f32 0.0, %v9198
        %9200 = vdwg.mxu0
        %9201 = vmatprep.subr.bf16.mxu0 %v9078
        %9202 = vmatpush1.bf16.msra.mxu0 %v9077
        %9203 = vmatprep.subr.bf16.mxu0 %v9110
        %9204 = vmatpush1.bf16.msra.mxu0 %v9107
        %9205 = vmatprep.subr.bf16.mxu0 0
        %9206 = vmatpush1.bf16.msra.mxu0 0
        %9207 = vmatprep.subr.bf16.mxu0 0
        %9208 = vmatpush1.bf16.msra.mxu0 0
        %9209 = vmatprep.subr.bf16.mxu0 0
        %9210 = vmatpush1.bf16.msra.mxu0 0
        %9211 = vmatprep.subr.bf16.mxu0 0
        %9212 = vmatpush1.bf16.msra.mxu0 0
        %9213 = vmatprep.subr.bf16.mxu0 0
        %9214 = vmatpush1.bf16.msra.mxu0 0
        %9215 = vmatprep.subr.bf16.mxu0 0
        %9216 = vmatpush1.bf16.msra.mxu0 0
        %9217 = vmatprep.subr.bf16.mxu0 0
        %9218 = vmatpush1.bf16.msra.mxu0 0
        %9219 = vmatprep.subr.bf16.mxu0 0
        %9220 = vmatpush1.bf16.msra.mxu0 0
        %9221 = vmatprep.subr.bf16.mxu0 0
        %9222 = vmatpush1.bf16.msra.mxu0 0
        %9223 = vmatprep.subr.bf16.mxu0 0
        %9224 = vmatpush1.bf16.msra.mxu0 0
        %9225 = vmatprep.subr.bf16.mxu0 0
        %9226 = vmatpush1.bf16.msra.mxu0 0
        %9227 = vmatprep.subr.bf16.mxu0 0
        %9228 = vmatpush1.bf16.msra.mxu0 0
        %9229 = vmatprep.subr.bf16.mxu0 0
        %9230 = vmatpush1.bf16.msra.mxu0 0
        %9231 = vmatprep.subr.bf16.mxu0 0
        %9232 = vmatpush1.bf16.msra.mxu0 0
        %9233 = vmatprep.mubr.bf16.mxu0 0
        %9234 = vmatmul.mubr.bf16.gmra.mrb[0].mxu0 %v1141
        %v9235 = vpop.f32.mrb[0].mxu0
        %v9236 = vadd.f32 0.0, %v9235
        %v9237 = vpop.f32.mrb[0].mxu0
        %v9238 = vadd.f32 0.0, %v9237
        %v9239 = vpop.f32.mrb[0].mxu0
        %v9240 = vadd.f32 0.0, %v9239
        %v9241 = vpop.f32.mrb[0].mxu0
        %v9242 = vadd.f32 0.0, %v9241
        %9243 = vdwg.mxu0
        %9244 = vmatprep.subr.bf16.mxu0 0
        %9245 = vmatpush1.bf16.msra.mxu0 %v9079
        %9246 = vmatprep.subr.bf16.mxu0 0
        %9247 = vmatpush1.bf16.msra.mxu0 %v9113
        %9248 = vmatprep.subr.bf16.mxu0 0
        %9249 = vmatpush1.bf16.msra.mxu0 0
        %9250 = vmatprep.subr.bf16.mxu0 0
        %9251 = vmatpush1.bf16.msra.mxu0 0
        %9252 = vmatprep.subr.bf16.mxu0 0
        %9253 = vmatpush1.bf16.msra.mxu0 0
        %9254 = vmatprep.subr.bf16.mxu0 0
        %9255 = vmatpush1.bf16.msra.mxu0 0
        %9256 = vmatprep.subr.bf16.mxu0 0
        %9257 = vmatpush1.bf16.msra.mxu0 0
        %9258 = vmatprep.subr.bf16.mxu0 0
        %9259 = vmatpush1.bf16.msra.mxu0 0
        %9260 = vmatprep.subr.bf16.mxu0 0
        %9261 = vmatpush1.bf16.msra.mxu0 0
        %9262 = vmatprep.subr.bf16.mxu0 0
        %9263 = vmatpush1.bf16.msra.mxu0 0
        %9264 = vmatprep.subr.bf16.mxu0 0
        %9265 = vmatpush1.bf16.msra.mxu0 0
        %9266 = vmatprep.subr.bf16.mxu0 0
        %9267 = vmatpush1.bf16.msra.mxu0 0
        %9268 = vmatprep.subr.bf16.mxu0 0
        %9269 = vmatpush1.bf16.msra.mxu0 0
        %9270 = vmatprep.subr.bf16.mxu0 0
        %9271 = vmatpush1.bf16.msra.mxu0 0
        %9272 = vmatprep.subr.bf16.mxu0 0
        %9273 = vmatpush1.bf16.msra.mxu0 0
        %9274 = vmatprep.subr.bf16.mxu0 0
        %9275 = vmatpush1.bf16.msra.mxu0 0
        %9276 = vmatprep.mubr.bf16.mxu0 0
        %9277 = vmatmul.mubr.bf16.gmra.mrb[0].mxu0 %v1141
        %v9278 = vpop.f32.mrb[0].mxu0
        %v9279 = vadd.f32 0.0, %v9278
        %v9280 = vpop.f32.mrb[0].mxu0
        %v9281 = vpop.f32.mrb[0].mxu0
        %v9282 = vadd.f32 0.0, %v9281
        %v9283 = vpop.f32.mrb[0].mxu0
        %9284 = vdwg.mxu0
        %v9285 = vld [vmem:[%s1611 + $0xa8] sm:$0xff]
        %v9286 = vld [vmem:[%s1611 + $0xb0] sm:$0xff]
        %v9287 = vld [vmem:[%s1611 + $0xb8] sm:$0xff]
        %v9288 = vld [vmem:[%s1611 + $0xc0] sm:$0xf]
        %v9289 = vld [vmem:[%s1611 + $0x16c] sm:$0xff]
        %v9290 = vld [vmem:[%s1611 + $0x174] sm:$0xff]
        %v9291 = vld [vmem:[%s1611 + $0x17c] sm:$0xff]
        %v9292 = vld [vmem:[%s1611 + $0x184] sm:$0xf]
        %v9293 = vld [vmem:[%s1611 + $0x230] sm:$0xff]
        %v9294 = vld [vmem:[%s1611 + $0x238] sm:$0xff]
        %v9295 = vld [vmem:[%s1611 + $0x240] sm:$0xff]
        %v9296 = vld [vmem:[%s1611 + $0x248] sm:$0xf]
        %v9297 = vld [vmem:[%s1611 + $0x2f4] sm:$0x33]
        %v9298 = vld [vmem:[%s1611 + $0x2fc] sm:$0x33]
        %v9299 = vld [vmem:[%s1611 + $0x304] sm:$0x33]
        %v9300 = vld [vmem:[%s1611 + $0x30c] sm:$0x3]
        %v9317 = vunpack.c.l.b16 %v9285
        %v9318 = vunpack.c.h.b16 %v9285
        %v9319 = vunpack.c.l.b16 %v9286
        %v9320 = vunpack.c.h.b16 %v9286
        %v9321 = vunpack.c.l.b16 %v9287
        %v9322 = vunpack.c.h.b16 %v9287
        %v9323 = vunpack.c.l.b16 %v9288
        %v9324 = vunpack.c.l.b16 %v9289
        %v9325 = vunpack.c.h.b16 %v9289
        %v9326 = vunpack.c.l.b16 %v9290
        %v9327 = vunpack.c.h.b16 %v9290
        %v9328 = vunpack.c.l.b16 %v9291
        %v9329 = vunpack.c.h.b16 %v9291
        %v9330 = vunpack.c.l.b16 %v9292
        %v9331 = vunpack.c.l.b16 %v9293
        %v9332 = vunpack.c.h.b16 %v9293
        %v9333 = vunpack.c.l.b16 %v9294
        %v9334 = vunpack.c.h.b16 %v9294
        %v9335 = vunpack.c.l.b16 %v9295
        %v9336 = vunpack.c.h.b16 %v9295
        %v9337 = vunpack.c.l.b16 %v9296
        %v9338 = vunpack.c.l.b16 %v9297
        %v9339 = vunpack.c.h.b16 %v9297
        %v9340 = vunpack.c.l.b16 %v9298
        %v9341 = vunpack.c.h.b16 %v9298
        %v9342 = vunpack.c.l.b16 %v9299
        %v9343 = vunpack.c.h.b16 %v9299
        %v9344 = vunpack.c.l.b16 %v9300
        %v9345 = vpack.c.b16 %v9324, %v9317
        %v9346 = vpack.c.b16 %v9325, %v9318
        %v9347 = vpack.c.b16 %v9326, %v9319
        %v9348 = vpack.c.b16 %v9327, %v9320
        %v9349 = vpack.c.b16 %v9328, %v9321
        %v9350 = vpack.c.b16 %v9329, %v9322
        %v9351 = vpack.c.b16 %v9330, %v9323
        %v9352 = vpack.c.b16 %v9338, %v9331
        %v9353 = vpack.c.b16 %v9339, %v9332
        %v9354 = vpack.c.b16 %v9340, %v9333
        %v9355 = vpack.c.b16 %v9341, %v9334
        %v9356 = vpack.c.b16 %v9342, %v9335
        %v9357 = vpack.c.b16 %v9343, %v9336
        %v9358 = vpack.c.b16 %v9344, %v9337
        %v9367 = vand.u32 %v9352, %v1146
        %v9370 = vand.u32 %v9353, %v1146
        %v9373 = vand.u32 %v9354, %v1146
        %v9376 = vand.u32 %v9355, %v1146
        %v9379 = vand.u32 %v9356, %v1146
        %v9382 = vand.u32 %v9357, %v1146
        %v9385 = vand.u32 %v9358, %v1146
        %9387 = vmatprep.subr.bf16.mxu0 %v9346
        %9388 = vmatpush1.bf16.msra.mxu0 %v9345
        %9389 = vmatprep.subr.bf16.mxu0 %v9370
        %9390 = vmatpush1.bf16.msra.mxu0 %v9367
        %9391 = vmatprep.subr.bf16.mxu0 0
        %9392 = vmatpush1.bf16.msra.mxu0 0
        %9393 = vmatprep.subr.bf16.mxu0 0
        %9394 = vmatpush1.bf16.msra.mxu0 0
        %9395 = vmatprep.subr.bf16.mxu0 0
        %9396 = vmatpush1.bf16.msra.mxu0 0
        %9397 = vmatprep.subr.bf16.mxu0 0
        %9398 = vmatpush1.bf16.msra.mxu0 0
        %9399 = vmatprep.subr.bf16.mxu0 0
        %9400 = vmatpush1.bf16.msra.mxu0 0
        %9401 = vmatprep.subr.bf16.mxu0 0
        %9402 = vmatpush1.bf16.msra.mxu0 0
        %9403 = vmatprep.subr.bf16.mxu0 0
        %9404 = vmatpush1.bf16.msra.mxu0 0
        %9405 = vmatprep.subr.bf16.mxu0 0
        %9406 = vmatpush1.bf16.msra.mxu0 0
        %9407 = vmatprep.subr.bf16.mxu0 0
        %9408 = vmatpush1.bf16.msra.mxu0 0
        %9409 = vmatprep.subr.bf16.mxu0 0
        %9410 = vmatpush1.bf16.msra.mxu0 0
        %9411 = vmatprep.subr.bf16.mxu0 0
        %9412 = vmatpush1.bf16.msra.mxu0 0
        %9413 = vmatprep.subr.bf16.mxu0 0
        %9414 = vmatpush1.bf16.msra.mxu0 0
        %9415 = vmatprep.subr.bf16.mxu0 0
        %9416 = vmatpush1.bf16.msra.mxu0 0
        %9417 = vmatprep.subr.bf16.mxu0 0
        %9418 = vmatpush1.bf16.msra.mxu0 0
        %9419 = vmatprep.mubr.bf16.mxu0 0
        %9420 = vmatmul.mubr.bf16.gmra.mrb[0].mxu0 %v1141
        %v9421 = vpop.f32.mrb[0].mxu0
        %v9422 = vadd.f32 0.0, %v9421
        %v9423 = vpop.f32.mrb[0].mxu0
        %v9424 = vadd.f32 0.0, %v9423
        %v9425 = vpop.f32.mrb[0].mxu0
        %v9426 = vadd.f32 0.0, %v9425
        %v9427 = vpop.f32.mrb[0].mxu0
        %v9428 = vadd.f32 0.0, %v9427
        %9429 = vdwg.mxu0
        %9430 = vmatprep.subr.bf16.mxu0 %v9348
        %9431 = vmatpush1.bf16.msra.mxu0 %v9347
        %9432 = vmatprep.subr.bf16.mxu0 %v9376
        %9433 = vmatpush1.bf16.msra.mxu0 %v9373
        %9434 = vmatprep.subr.bf16.mxu0 0
        %9435 = vmatpush1.bf16.msra.mxu0 0
        %9436 = vmatprep.subr.bf16.mxu0 0
        %9437 = vmatpush1.bf16.msra.mxu0 0
        %9438 = vmatprep.subr.bf16.mxu0 0
        %9439 = vmatpush1.bf16.msra.mxu0 0
        %9440 = vmatprep.subr.bf16.mxu0 0
        %9441 = vmatpush1.bf16.msra.mxu0 0
        %9442 = vmatprep.subr.bf16.mxu0 0
        %9443 = vmatpush1.bf16.msra.mxu0 0
        %9444 = vmatprep.subr.bf16.mxu0 0
        %9445 = vmatpush1.bf16.msra.mxu0 0
        %9446 = vmatprep.subr.bf16.mxu0 0
        %9447 = vmatpush1.bf16.msra.mxu0 0
        %9448 = vmatprep.subr.bf16.mxu0 0
        %9449 = vmatpush1.bf16.msra.mxu0 0
        %9450 = vmatprep.subr.bf16.mxu0 0
        %9451 = vmatpush1.bf16.msra.mxu0 0
        %9452 = vmatprep.subr.bf16.mxu0 0
        %9453 = vmatpush1.bf16.msra.mxu0 0
        %9454 = vmatprep.subr.bf16.mxu0 0
        %9455 = vmatpush1.bf16.msra.mxu0 0
        %9456 = vmatprep.subr.bf16.mxu0 0
        %9457 = vmatpush1.bf16.msra.mxu0 0
        %9458 = vmatprep.subr.bf16.mxu0 0
        %9459 = vmatpush1.bf16.msra.mxu0 0
        %9460 = vmatprep.subr.bf16.mxu0 0
        %9461 = vmatpush1.bf16.msra.mxu0 0
        %9462 = vmatprep.mubr.bf16.mxu0 0
        %9463 = vmatmul.mubr.bf16.gmra.mrb[0].mxu0 %v1141
        %v9464 = vpop.f32.mrb[0].mxu0
        %v9465 = vadd.f32 0.0, %v9464
        %v9466 = vpop.f32.mrb[0].mxu0
        %v9467 = vadd.f32 0.0, %v9466
        %v9468 = vpop.f32.mrb[0].mxu0
        %v9469 = vadd.f32 0.0, %v9468
        %v9470 = vpop.f32.mrb[0].mxu0
        %v9471 = vadd.f32 0.0, %v9470
        %9472 = vdwg.mxu0
        %9473 = vmatprep.subr.bf16.mxu0 %v9350
        %9474 = vmatpush1.bf16.msra.mxu0 %v9349
        %9475 = vmatprep.subr.bf16.mxu0 %v9382
        %9476 = vmatpush1.bf16.msra.mxu0 %v9379
        %9477 = vmatprep.subr.bf16.mxu0 0
        %9478 = vmatpush1.bf16.msra.mxu0 0
        %9479 = vmatprep.subr.bf16.mxu0 0
        %9480 = vmatpush1.bf16.msra.mxu0 0
        %9481 = vmatprep.subr.bf16.mxu0 0
        %9482 = vmatpush1.bf16.msra.mxu0 0
        %9483 = vmatprep.subr.bf16.mxu0 0
        %9484 = vmatpush1.bf16.msra.mxu0 0
        %9485 = vmatprep.subr.bf16.mxu0 0
        %9486 = vmatpush1.bf16.msra.mxu0 0
        %9487 = vmatprep.subr.bf16.mxu0 0
        %9488 = vmatpush1.bf16.msra.mxu0 0
        %9489 = vmatprep.subr.bf16.mxu0 0
        %9490 = vmatpush1.bf16.msra.mxu0 0
        %9491 = vmatprep.subr.bf16.mxu0 0
        %9492 = vmatpush1.bf16.msra.mxu0 0
        %9493 = vmatprep.subr.bf16.mxu0 0
        %9494 = vmatpush1.bf16.msra.mxu0 0
        %9495 = vmatprep.subr.bf16.mxu0 0
        %9496 = vmatpush1.bf16.msra.mxu0 0
        %9497 = vmatprep.subr.bf16.mxu0 0
        %9498 = vmatpush1.bf16.msra.mxu0 0
        %9499 = vmatprep.subr.bf16.mxu0 0
        %9500 = vmatpush1.bf16.msra.mxu0 0
        %9501 = vmatprep.subr.bf16.mxu0 0
        %9502 = vmatpush1.bf16.msra.mxu0 0
        %9503 = vmatprep.subr.bf16.mxu0 0
        %9504 = vmatpush1.bf16.msra.mxu0 0
        %9505 = vmatprep.mubr.bf16.mxu0 0
        %9506 = vmatmul.mubr.bf16.gmra.mrb[0].mxu0 %v1141
        %v9507 = vpop.f32.mrb[0].mxu0
        %v9508 = vadd.f32 0.0, %v9507
        %v9509 = vpop.f32.mrb[0].mxu0
        %v9510 = vadd.f32 0.0, %v9509
        %v9511 = vpop.f32.mrb[0].mxu0
        %v9512 = vadd.f32 0.0, %v9511
        %v9513 = vpop.f32.mrb[0].mxu0
        %v9514 = vadd.f32 0.0, %v9513
        %9515 = vdwg.mxu0
        %9516 = vmatprep.subr.bf16.mxu0 0
        %9517 = vmatpush1.bf16.msra.mxu0 %v9351
        %9518 = vmatprep.subr.bf16.mxu0 0
        %9519 = vmatpush1.bf16.msra.mxu0 %v9385
        %9520 = vmatprep.subr.bf16.mxu0 0
        %9521 = vmatpush1.bf16.msra.mxu0 0
        %9522 = vmatprep.subr.bf16.mxu0 0
        %9523 = vmatpush1.bf16.msra.mxu0 0
        %9524 = vmatprep.subr.bf16.mxu0 0
        %9525 = vmatpush1.bf16.msra.mxu0 0
        %9526 = vmatprep.subr.bf16.mxu0 0
        %9527 = vmatpush1.bf16.msra.mxu0 0
        %9528 = vmatprep.subr.bf16.mxu0 0
        %9529 = vmatpush1.bf16.msra.mxu0 0
        %9530 = vmatprep.subr.bf16.mxu0 0
        %9531 = vmatpush1.bf16.msra.mxu0 0
        %9532 = vmatprep.subr.bf16.mxu0 0
        %9533 = vmatpush1.bf16.msra.mxu0 0
        %9534 = vmatprep.subr.bf16.mxu0 0
        %9535 = vmatpush1.bf16.msra.mxu0 0
        %9536 = vmatprep.subr.bf16.mxu0 0
        %9537 = vmatpush1.bf16.msra.mxu0 0
        %9538 = vmatprep.subr.bf16.mxu0 0
        %9539 = vmatpush1.bf16.msra.mxu0 0
        %9540 = vmatprep.subr.bf16.mxu0 0
        %9541 = vmatpush1.bf16.msra.mxu0 0
        %9542 = vmatprep.subr.bf16.mxu0 0
        %9543 = vmatpush1.bf16.msra.mxu0 0
        %9544 = vmatprep.subr.bf16.mxu0 0
        %9545 = vmatpush1.bf16.msra.mxu0 0
        %9546 = vmatprep.subr.bf16.mxu0 0
        %9547 = vmatpush1.bf16.msra.mxu0 0
        %9548 = vmatprep.mubr.bf16.mxu0 0
        %9549 = vmatmul.mubr.bf16.gmra.mrb[0].mxu0 %v1141
        %v9550 = vpop.f32.mrb[0].mxu0
        %v9551 = vadd.f32 0.0, %v9550
        %v9552 = vpop.f32.mrb[0].mxu0
        %v9553 = vpop.f32.mrb[0].mxu0
        %v9554 = vadd.f32 0.0, %v9553
        %v9555 = vpop.f32.mrb[0].mxu0
        %9556 = vdwg.mxu0
        %v9557 = vld [vmem:[%s1884 + $0xa8] sm:$0xff]
        %v9558 = vld [vmem:[%s1884 + $0xb0] sm:$0xff]
        %v9559 = vld [vmem:[%s1884 + $0xb8] sm:$0xff]
        %v9560 = vld [vmem:[%s1884 + $0xc0] sm:$0xf]
        %v9561 = vld [vmem:[%s1884 + $0x16c] sm:$0xff]
        %v9562 = vld [vmem:[%s1884 + $0x174] sm:$0xff]
        %v9563 = vld [vmem:[%s1884 + $0x17c] sm:$0xff]
        %v9564 = vld [vmem:[%s1884 + $0x184] sm:$0xf]
        %v9565 = vld [vmem:[%s1884 + $0x230] sm:$0xff]
        %v9566 = vld [vmem:[%s1884 + $0x238] sm:$0xff]
        %v9567 = vld [vmem:[%s1884 + $0x240] sm:$0xff]
        %v9568 = vld [vmem:[%s1884 + $0x248] sm:$0xf]
        %v9569 = vld [vmem:[%s1884 + $0x2f4] sm:$0x33]
        %v9570 = vld [vmem:[%s1884 + $0x2fc] sm:$0x33]
        %v9571 = vld [vmem:[%s1884 + $0x304] sm:$0x33]
        %v9572 = vld [vmem:[%s1884 + $0x30c] sm:$0x3]
        %v9589 = vunpack.c.l.b16 %v9557
        %v9590 = vunpack.c.h.b16 %v9557
        %v9591 = vunpack.c.l.b16 %v9558
        %v9592 = vunpack.c.h.b16 %v9558
        %v9593 = vunpack.c.l.b16 %v9559
        %v9594 = vunpack.c.h.b16 %v9559
        %v9595 = vunpack.c.l.b16 %v9560
        %v9596 = vunpack.c.l.b16 %v9561
        %v9597 = vunpack.c.h.b16 %v9561
        %v9598 = vunpack.c.l.b16 %v9562
        %v9599 = vunpack.c.h.b16 %v9562
        %v9600 = vunpack.c.l.b16 %v9563
        %v9601 = vunpack.c.h.b16 %v9563
        %v9602 = vunpack.c.l.b16 %v9564
        %v9603 = vunpack.c.l.b16 %v9565
        %v9604 = vunpack.c.h.b16 %v9565
        %v9605 = vunpack.c.l.b16 %v9566
        %v9606 = vunpack.c.h.b16 %v9566
        %v9607 = vunpack.c.l.b16 %v9567
        %v9608 = vunpack.c.h.b16 %v9567
        %v9609 = vunpack.c.l.b16 %v9568
        %v9610 = vunpack.c.l.b16 %v9569
        %v9611 = vunpack.c.h.b16 %v9569
        %v9612 = vunpack.c.l.b16 %v9570
        %v9613 = vunpack.c.h.b16 %v9570
        %v9614 = vunpack.c.l.b16 %v9571
        %v9615 = vunpack.c.h.b16 %v9571
        %v9616 = vunpack.c.l.b16 %v9572
        %v9617 = vpack.c.b16 %v9596, %v9589
        %v9618 = vpack.c.b16 %v9597, %v9590
        %v9619 = vpack.c.b16 %v9598, %v9591
        %v9620 = vpack.c.b16 %v9599, %v9592
        %v9621 = vpack.c.b16 %v9600, %v9593
        %v9622 = vpack.c.b16 %v9601, %v9594
        %v9623 = vpack.c.b16 %v9602, %v9595
        %v9624 = vpack.c.b16 %v9610, %v9603
        %v9625 = vpack.c.b16 %v9611, %v9604
        %v9626 = vpack.c.b16 %v9612, %v9605
        %v9627 = vpack.c.b16 %v9613, %v9606
        %v9628 = vpack.c.b16 %v9614, %v9607
        %v9629 = vpack.c.b16 %v9615, %v9608
        %v9630 = vpack.c.b16 %v9616, %v9609
        %v9639 = vand.u32 %v9624, %v1146
        %v9642 = vand.u32 %v9625, %v1146
        %v9645 = vand.u32 %v9626, %v1146
        %v9648 = vand.u32 %v9627, %v1146
        %v9651 = vand.u32 %v9628, %v1146
        %v9654 = vand.u32 %v9629, %v1146
        %v9657 = vand.u32 %v9630, %v1146
        %9659 = vmatprep.subr.bf16.mxu0 %v9618
        %9660 = vmatpush1.bf16.msra.mxu0 %v9617
        %9661 = vmatprep.subr.bf16.mxu0 %v9642
        %9662 = vmatpush1.bf16.msra.mxu0 %v9639
        %9663 = vmatprep.subr.bf16.mxu0 0
        %9664 = vmatpush1.bf16.msra.mxu0 0
        %9665 = vmatprep.subr.bf16.mxu0 0
        %9666 = vmatpush1.bf16.msra.mxu0 0
        %9667 = vmatprep.subr.bf16.mxu0 0
        %9668 = vmatpush1.bf16.msra.mxu0 0
        %9669 = vmatprep.subr.bf16.mxu0 0
        %9670 = vmatpush1.bf16.msra.mxu0 0
        %9671 = vmatprep.subr.bf16.mxu0 0
        %9672 = vmatpush1.bf16.msra.mxu0 0
        %9673 = vmatprep.subr.bf16.mxu0 0
        %9674 = vmatpush1.bf16.msra.mxu0 0
        %9675 = vmatprep.subr.bf16.mxu0 0
        %9676 = vmatpush1.bf16.msra.mxu0 0
        %9677 = vmatprep.subr.bf16.mxu0 0
        %9678 = vmatpush1.bf16.msra.mxu0 0
        %9679 = vmatprep.subr.bf16.mxu0 0
        %9680 = vmatpush1.bf16.msra.mxu0 0
        %9681 = vmatprep.subr.bf16.mxu0 0
        %9682 = vmatpush1.bf16.msra.mxu0 0
        %9683 = vmatprep.subr.bf16.mxu0 0
        %9684 = vmatpush1.bf16.msra.mxu0 0
        %9685 = vmatprep.subr.bf16.mxu0 0
        %9686 = vmatpush1.bf16.msra.mxu0 0
        %9687 = vmatprep.subr.bf16.mxu0 0
        %9688 = vmatpush1.bf16.msra.mxu0 0
        %9689 = vmatprep.subr.bf16.mxu0 0
        %9690 = vmatpush1.bf16.msra.mxu0 0
        %9691 = vmatprep.mubr.bf16.mxu0 0
        %9692 = vmatmul.mubr.bf16.gmra.mrb[0].mxu0 %v1141
        %v9693 = vpop.f32.mrb[0].mxu0
        %v9694 = vadd.f32 0.0, %v9693
        %v9695 = vpop.f32.mrb[0].mxu0
        %v9696 = vadd.f32 0.0, %v9695
        %v9697 = vpop.f32.mrb[0].mxu0
        %v9698 = vadd.f32 0.0, %v9697
        %v9699 = vpop.f32.mrb[0].mxu0
        %v9700 = vadd.f32 0.0, %v9699
        %9701 = vdwg.mxu0
        %9702 = vmatprep.subr.bf16.mxu0 %v9620
        %9703 = vmatpush1.bf16.msra.mxu0 %v9619
        %9704 = vmatprep.subr.bf16.mxu0 %v9648
        %9705 = vmatpush1.bf16.msra.mxu0 %v9645
        %9706 = vmatprep.subr.bf16.mxu0 0
        %9707 = vmatpush1.bf16.msra.mxu0 0
        %9708 = vmatprep.subr.bf16.mxu0 0
        %9709 = vmatpush1.bf16.msra.mxu0 0
        %9710 = vmatprep.subr.bf16.mxu0 0
        %9711 = vmatpush1.bf16.msra.mxu0 0
        %9712 = vmatprep.subr.bf16.mxu0 0
        %9713 = vmatpush1.bf16.msra.mxu0 0
        %9714 = vmatprep.subr.bf16.mxu0 0
        %9715 = vmatpush1.bf16.msra.mxu0 0
        %9716 = vmatprep.subr.bf16.mxu0 0
        %9717 = vmatpush1.bf16.msra.mxu0 0
        %9718 = vmatprep.subr.bf16.mxu0 0
        %9719 = vmatpush1.bf16.msra.mxu0 0
        %9720 = vmatprep.subr.bf16.mxu0 0
        %9721 = vmatpush1.bf16.msra.mxu0 0
        %9722 = vmatprep.subr.bf16.mxu0 0
        %9723 = vmatpush1.bf16.msra.mxu0 0
        %9724 = vmatprep.subr.bf16.mxu0 0
        %9725 = vmatpush1.bf16.msra.mxu0 0
        %9726 = vmatprep.subr.bf16.mxu0 0
        %9727 = vmatpush1.bf16.msra.mxu0 0
        %9728 = vmatprep.subr.bf16.mxu0 0
        %9729 = vmatpush1.bf16.msra.mxu0 0
        %9730 = vmatprep.subr.bf16.mxu0 0
        %9731 = vmatpush1.bf16.msra.mxu0 0
        %9732 = vmatprep.subr.bf16.mxu0 0
        %9733 = vmatpush1.bf16.msra.mxu0 0
        %9734 = vmatprep.mubr.bf16.mxu0 0
        %9735 = vmatmul.mubr.bf16.gmra.mrb[0].mxu0 %v1141
        %v9736 = vpop.f32.mrb[0].mxu0
        %v9737 = vadd.f32 0.0, %v9736
        %v9738 = vpop.f32.mrb[0].mxu0
        %v9739 = vadd.f32 0.0, %v9738
        %v9740 = vpop.f32.mrb[0].mxu0
        %v9741 = vadd.f32 0.0, %v9740
        %v9742 = vpop.f32.mrb[0].mxu0
        %v9743 = vadd.f32 0.0, %v9742
        %9744 = vdwg.mxu0
        %9745 = vmatprep.subr.bf16.mxu0 %v9622
        %9746 = vmatpush1.bf16.msra.mxu0 %v9621
        %9747 = vmatprep.subr.bf16.mxu0 %v9654
        %9748 = vmatpush1.bf16.msra.mxu0 %v9651
        %9749 = vmatprep.subr.bf16.mxu0 0
        %9750 = vmatpush1.bf16.msra.mxu0 0
        %9751 = vmatprep.subr.bf16.mxu0 0
        %9752 = vmatpush1.bf16.msra.mxu0 0
        %9753 = vmatprep.subr.bf16.mxu0 0
        %9754 = vmatpush1.bf16.msra.mxu0 0
        %9755 = vmatprep.subr.bf16.mxu0 0
        %9756 = vmatpush1.bf16.msra.mxu0 0
        %9757 = vmatprep.subr.bf16.mxu0 0
        %9758 = vmatpush1.bf16.msra.mxu0 0
        %9759 = vmatprep.subr.bf16.mxu0 0
        %9760 = vmatpush1.bf16.msra.mxu0 0
        %9761 = vmatprep.subr.bf16.mxu0 0
        %9762 = vmatpush1.bf16.msra.mxu0 0
        %9763 = vmatprep.subr.bf16.mxu0 0
        %9764 = vmatpush1.bf16.msra.mxu0 0
        %9765 = vmatprep.subr.bf16.mxu0 0
        %9766 = vmatpush1.bf16.msra.mxu0 0
        %9767 = vmatprep.subr.bf16.mxu0 0
        %9768 = vmatpush1.bf16.msra.mxu0 0
        %9769 = vmatprep.subr.bf16.mxu0 0
        %9770 = vmatpush1.bf16.msra.mxu0 0
        %9771 = vmatprep.subr.bf16.mxu0 0
        %9772 = vmatpush1.bf16.msra.mxu0 0
        %9773 = vmatprep.subr.bf16.mxu0 0
        %9774 = vmatpush1.bf16.msra.mxu0 0
        %9775 = vmatprep.subr.bf16.mxu0 0
        %9776 = vmatpush1.bf16.msra.mxu0 0
        %9777 = vmatprep.mubr.bf16.mxu0 0
        %9778 = vmatmul.mubr.bf16.gmra.mrb[0].mxu0 %v1141
        %v9779 = vpop.f32.mrb[0].mxu0
        %v9780 = vadd.f32 0.0, %v9779
        %v9781 = vpop.f32.mrb[0].mxu0
        %v9782 = vadd.f32 0.0, %v9781
        %v9783 = vpop.f32.mrb[0].mxu0
        %v9784 = vadd.f32 0.0, %v9783
        %v9785 = vpop.f32.mrb[0].mxu0
        %v9786 = vadd.f32 0.0, %v9785
        %9787 = vdwg.mxu0
        %9788 = vmatprep.subr.bf16.mxu0 0
        %9789 = vmatpush1.bf16.msra.mxu0 %v9623
        %9790 = vmatprep.subr.bf16.mxu0 0
        %9791 = vmatpush1.bf16.msra.mxu0 %v9657
        %9792 = vmatprep.subr.bf16.mxu0 0
        %9793 = vmatpush1.bf16.msra.mxu0 0
        %9794 = vmatprep.subr.bf16.mxu0 0
        %9795 = vmatpush1.bf16.msra.mxu0 0
        %9796 = vmatprep.subr.bf16.mxu0 0
        %9797 = vmatpush1.bf16.msra.mxu0 0
        %9798 = vmatprep.subr.bf16.mxu0 0
        %9799 = vmatpush1.bf16.msra.mxu0 0
        %9800 = vmatprep.subr.bf16.mxu0 0
        %9801 = vmatpush1.bf16.msra.mxu0 0
        %9802 = vmatprep.subr.bf16.mxu0 0
        %9803 = vmatpush1.bf16.msra.mxu0 0
        %9804 = vmatprep.subr.bf16.mxu0 0
        %9805 = vmatpush1.bf16.msra.mxu0 0
        %9806 = vmatprep.subr.bf16.mxu0 0
        %9807 = vmatpush1.bf16.msra.mxu0 0
        %9808 = vmatprep.subr.bf16.mxu0 0
        %9809 = vmatpush1.bf16.msra.mxu0 0
        %9810 = vmatprep.subr.bf16.mxu0 0
        %9811 = vmatpush1.bf16.msra.mxu0 0
        %9812 = vmatprep.subr.bf16.mxu0 0
        %9813 = vmatpush1.bf16.msra.mxu0 0
        %9814 = vmatprep.subr.bf16.mxu0 0
        %9815 = vmatpush1.bf16.msra.mxu0 0
        %9816 = vmatprep.subr.bf16.mxu0 0
        %9817 = vmatpush1.bf16.msra.mxu0 0
        %9818 = vmatprep.subr.bf16.mxu0 0
        %9819 = vmatpush1.bf16.msra.mxu0 0
        %9820 = vmatprep.mubr.bf16.mxu0 0
        %9821 = vmatmul.mubr.bf16.gmra.mrb[0].mxu0 %v1141
        %v9822 = vpop.f32.mrb[0].mxu0
        %v9823 = vadd.f32 0.0, %v9822
        %v9824 = vpop.f32.mrb[0].mxu0
        %v9825 = vpop.f32.mrb[0].mxu0
        %v9826 = vadd.f32 0.0, %v9825
        %v9827 = vpop.f32.mrb[0].mxu0
        %9828 = vdwg.mxu0
        %v9829 = vmax.f32 %v8878, %v9150
        %v9830 = vmax.f32 %v8880, %v9152
        %v9831 = vmax.f32 %v8921, %v9193
        %v9832 = vmax.f32 %v8923, %v9195
        %v9833 = vmax.f32 %v8964, %v9236
        %v9834 = vmax.f32 %v8966, %v9238
        %v9835 = vmax.f32 %v9007, %v9279
        %v9836 = vmax.f32 %v8882, %v9154
        %v9837 = vmax.f32 %v8884, %v9156
        %v9838 = vmax.f32 %v8925, %v9197
        %v9839 = vmax.f32 %v8927, %v9199
        %v9840 = vmax.f32 %v8968, %v9240
        %v9841 = vmax.f32 %v8970, %v9242
        %v9842 = vmax.f32 %v9010, %v9282
        %v9843 = vmax.f32 %v9422, %v9694
        %v9844 = vmax.f32 %v9424, %v9696
        %v9845 = vmax.f32 %v9465, %v9737
        %v9846 = vmax.f32 %v9467, %v9739
        %v9847 = vmax.f32 %v9508, %v9780
        %v9848 = vmax.f32 %v9510, %v9782
        %v9849 = vmax.f32 %v9551, %v9823
        %v9850 = vmax.f32 %v9426, %v9698
        %v9851 = vmax.f32 %v9428, %v9700
        %v9852 = vmax.f32 %v9469, %v9741
        %v9853 = vmax.f32 %v9471, %v9743
        %v9854 = vmax.f32 %v9512, %v9784
        %v9855 = vmax.f32 %v9514, %v9786
        %v9856 = vmax.f32 %v9554, %v9826
        %v9857 = vmax.f32 %v9829, %v9843
        %v9858 = vmax.f32 %v9830, %v9844
        %v9859 = vmax.f32 %v9831, %v9845
        %v9860 = vmax.f32 %v9832, %v9846
        %v9861 = vmax.f32 %v9833, %v9847
        %v9862 = vmax.f32 %v9834, %v9848
        %v9863 = vmax.f32 %v9835, %v9849
        %v9864 = vmax.f32 %v9836, %v9850
        %v9865 = vmax.f32 %v9837, %v9851
        %v9866 = vmax.f32 %v9838, %v9852
        %v9867 = vmax.f32 %v9839, %v9853
        %v9868 = vmax.f32 %v9840, %v9854
        %v9869 = vmax.f32 %v9841, %v9855
        %v9870 = vmax.f32 %v9842, %v9856
        %v9871 = vadd.f32 %v9857, %v2202
        %v9872 = vadd.f32 %v9858, %v2202
        %v9873 = vadd.f32 %v9859, %v2202
        %v9874 = vadd.f32 %v9860, %v2202
        %v9875 = vadd.f32 %v9861, %v2202
        %v9876 = vadd.f32 %v9862, %v2202
        %v9877 = vadd.f32 %v9863, %v2202
        %v9878 = vadd.f32 %v9864, %v2207
        %v9879 = vadd.f32 %v9865, %v2207
        %v9880 = vadd.f32 %v9866, %v2207
        %v9881 = vadd.f32 %v9867, %v2207
        %v9882 = vadd.f32 %v9868, %v2207
        %v9883 = vadd.f32 %v9869, %v2207
        %v9884 = vadd.f32 %v9870, %v2207
        %v9885 = vmax.f32 %v9871, 0.0
        %v9886 = vmax.f32 %v9872, 0.0
        %v9887 = vmax.f32 %v9873, 0.0
        %v9888 = vmax.f32 %v9874, 0.0
        %v9889 = vmax.f32 %v9875, 0.0
        %v9890 = vmax.f32 %v9876, 0.0
        %v9891 = vmax.f32 %v9877, 0.0
        %v9892 = vmax.f32 %v9878, 0.0
        %v9893 = vmax.f32 %v9879, 0.0
        %v9894 = vmax.f32 %v9880, 0.0
        %v9895 = vmax.f32 %v9881, 0.0
        %v9896 = vmax.f32 %v9882, 0.0
        %v9897 = vmax.f32 %v9883, 0.0
        %v9898 = vmax.f32 %v9884, 0.0
        %v9899 = vld [vmem:[%s2239 + $0xa8] sm:$0xff]
        %v9900 = vld [vmem:[%s2239 + $0xb0] sm:$0xff]
        %v9901 = vld [vmem:[%s2239 + $0xb8] sm:$0xff]
        %v9902 = vld [vmem:[%s2239 + $0xc0] sm:$0xf]
        %v9903 = vld [vmem:[%s2239 + $0x16c] sm:$0xff]
        %v9904 = vld [vmem:[%s2239 + $0x174] sm:$0xff]
        %v9905 = vld [vmem:[%s2239 + $0x17c] sm:$0xff]
        %v9906 = vld [vmem:[%s2239 + $0x184] sm:$0xf]
        %v9907 = vunpack.c.l.bf16 %v9899
        %v9908 = vunpack.c.h.bf16 %v9899
        %v9909 = vunpack.c.l.bf16 %v9900
        %v9910 = vunpack.c.h.bf16 %v9900
        %v9911 = vunpack.c.l.bf16 %v9901
        %v9912 = vunpack.c.h.bf16 %v9901
        %v9913 = vunpack.c.l.bf16 %v9902
        %v9914 = vunpack.c.l.bf16 %v9903
        %v9915 = vunpack.c.h.bf16 %v9903
        %v9916 = vunpack.c.l.bf16 %v9904
        %v9917 = vunpack.c.h.bf16 %v9904
        %v9918 = vunpack.c.l.bf16 %v9905
        %v9919 = vunpack.c.h.bf16 %v9905
        %v9920 = vunpack.c.l.bf16 %v9906
        %v9921 = vld [vmem:[%s2264 + $0xa8] sm:$0xff]
        %v9922 = vld [vmem:[%s2264 + $0xb0] sm:$0xff]
        %v9923 = vld [vmem:[%s2264 + $0xb8] sm:$0xff]
        %v9924 = vld [vmem:[%s2264 + $0xc0] sm:$0xf]
        %v9925 = vld [vmem:[%s2264 + $0x16c] sm:$0xff]
        %v9926 = vld [vmem:[%s2264 + $0x174] sm:$0xff]
        %v9927 = vld [vmem:[%s2264 + $0x17c] sm:$0xff]
        %v9928 = vld [vmem:[%s2264 + $0x184] sm:$0xf]
        %v9929 = vunpack.c.l.bf16 %v9921
        %v9930 = vunpack.c.h.bf16 %v9921
        %v9931 = vunpack.c.l.bf16 %v9922
        %v9932 = vunpack.c.h.bf16 %v9922
        %v9933 = vunpack.c.l.bf16 %v9923
        %v9934 = vunpack.c.h.bf16 %v9923
        %v9935 = vunpack.c.l.bf16 %v9924
        %v9936 = vunpack.c.l.bf16 %v9925
        %v9937 = vunpack.c.h.bf16 %v9925
        %v9938 = vunpack.c.l.bf16 %v9926
        %v9939 = vunpack.c.h.bf16 %v9926
        %v9940 = vunpack.c.l.bf16 %v9927
        %v9941 = vunpack.c.h.bf16 %v9927
        %v9942 = vunpack.c.l.bf16 %v9928
        %v9943 = vmul.f32 %v9885, %v9907
        %v9944 = vmul.f32 %v9886, %v9908
        %v9945 = vmul.f32 %v9887, %v9909
        %v9946 = vmul.f32 %v9888, %v9910
        %v9947 = vmul.f32 %v9889, %v9911
        %v9948 = vmul.f32 %v9890, %v9912
        %v9949 = vmul.f32 %v9891, %v9913
        %v9950 = vmul.f32 %v9892, %v9914
        %v9951 = vmul.f32 %v9893, %v9915
        %v9952 = vmul.f32 %v9894, %v9916
        %v9953 = vmul.f32 %v9895, %v9917
        %v9954 = vmul.f32 %v9896, %v9918
        %v9955 = vmul.f32 %v9897, %v9919
        %v9956 = vmul.f32 %v9898, %v9920
        %v9957 = vadd.f32 %v9943, %v9944
        %v9958 = vadd.f32 %v9957, %v9945
        %v9959 = vadd.f32 %v9958, %v9946
        %v9960 = vadd.f32 %v9959, %v9947
        %v9961 = vadd.f32 %v9960, %v9948
        %v9962 = vadd.f32 %v9961, %v9949
        %v9963 = vadd.f32 %v9962, %v9950
        %v9964 = vadd.f32 %v9963, %v9951
        %v9965 = vadd.f32 %v9964, %v9952
        %v9966 = vadd.f32 %v9965, %v9953
        %v9967 = vadd.f32 %v9966, %v9954
        %v9968 = vadd.f32 %v9967, %v9955
        %v9969 = vadd.f32 %v9968, %v9956
        %9970 = vadd.xlane.f32.xlu0 %v9969
        %v9971 = vpop.xlane.xlu0 %9970
        %v9972 = vrot.slane %v9971, 4
        %v9973 = vadd.f32 %v9971, %v9972
        %v9974 = vrot.slane %v9973, 2
        %v9975 = vadd.f32 %v9973, %v9974
        %v9976 = vrot.slane %v9975, 1
        %v9977 = vadd.f32 %v9975, %v9976
        %s9978 = vtos %v9977
        %s9979 = sadd.f32 %s8703, %s9978
        %v9980 = vmul.f32 %v9885, %v9929
        %v9981 = vmul.f32 %v9886, %v9930
        %v9982 = vmul.f32 %v9887, %v9931
        %v9983 = vmul.f32 %v9888, %v9932
        %v9984 = vmul.f32 %v9889, %v9933
        %v9985 = vmul.f32 %v9890, %v9934
        %v9986 = vmul.f32 %v9891, %v9935
        %v9987 = vmul.f32 %v9892, %v9936
        %v9988 = vmul.f32 %v9893, %v9937
        %v9989 = vmul.f32 %v9894, %v9938
        %v9990 = vmul.f32 %v9895, %v9939
        %v9991 = vmul.f32 %v9896, %v9940
        %v9992 = vmul.f32 %v9897, %v9941
        %v9993 = vmul.f32 %v9898, %v9942
        %v9994 = vadd.f32 %v9980, %v9981
        %v9995 = vadd.f32 %v9994, %v9982
        %v9996 = vadd.f32 %v9995, %v9983
        %v9997 = vadd.f32 %v9996, %v9984
        %v9998 = vadd.f32 %v9997, %v9985
        %v9999 = vadd.f32 %v9998, %v9986
        %v10000 = vadd.f32 %v9999, %v9987
        %v10001 = vadd.f32 %v10000, %v9988
        %v10002 = vadd.f32 %v10001, %v9989
        %v10003 = vadd.f32 %v10002, %v9990
        %v10004 = vadd.f32 %v10003, %v9991
        %v10005 = vadd.f32 %v10004, %v9992
        %v10006 = vadd.f32 %v10005, %v9993
        %10007 = vadd.xlane.f32.xlu0 %v10006
        %v10008 = vpop.xlane.xlu0 %10007
        %v10009 = vrot.slane %v10008, 4
        %v10010 = vadd.f32 %v10008, %v10009
        %v10011 = vrot.slane %v10010, 2
        %v10012 = vadd.f32 %v10010, %v10011
        %v10013 = vrot.slane %v10012, 1
        %v10014 = vadd.f32 %v10012, %v10013
        %s10015 = vtos %v10014
        %s10016 = sadd.f32 %s8740, %s10015
        %v10017 = vlaneseq
        %v10018 = vand.u32 %v10017, 127
        %vm10019 = vcmp.eq.s32.totalorder %v10018, 0
        %v10020 = vstv %s9979
        %v10021 = vstv %s10016
        %v10022 = vsel %vm10019, %v10020, %v10021
        %vm10023 = vcmask 8192
        %10024 = vst.msk [vmem:[%s1047] sm:$0x1] %vm10023, %v10022
        %p10025 = scmp.lt.s32.totalorder %s19, 1
        %s10026 = scalar_select %p10025, %s19, 1
        %p10027 = scmp.lt.s32.totalorder %s20, 1
        %s10028 = scalar_select %p10027, %s20, 1
        %s10029 = smul.addr %s10026, 2
        %s10030 = sadd.s32 %s10028, %s10029
        %s10031 = scalar_lea.vmem %s4, %s10030
        // Predicated region
        $region63: #{simple_cnn_forward.1} parent=57 // pred_check
          %p10032 = pneg %p138
        $region64: #{simple_cnn_forward.1} parent=57 // pred_check_branch
          %10034 = sbr.rel (%p10032) target = $region66
        $region65: #{simple_cnn_forward.1} parent=57 // pred_region
          _
        $region66: #{simple_cnn_forward.1} parent=57 // pred_fallthru
          _
      $region58: #{simple_cnn_forward.1} parent=5 // pred_fallthru
        _
      %p10035 = scmp.le.s32.totalorder 2, %s10
      // Predicated region
      $region67: #{simple_cnn_forward.1} parent=5 // pred_check
        %p10036 = pneg %p10035
      $region68: #{simple_cnn_forward.1} parent=5 // pred_check_branch
        %10038 = sbr.rel (%p10036) target = $region70
      $region69: #{simple_cnn_forward.1} parent=5 // pred_region
        %s10039 = ssub.s32 %s10, 2
        // Predicated region
        $region71: #{simple_cnn_forward.1} parent=69 // pred_check
          %p10040 = pneg %p144
        $region72: #{simple_cnn_forward.1} parent=69 // pred_check_branch
          %10042 = sbr.rel (%p10040) target = $region74
        $region73: #{simple_cnn_forward.1} parent=69 // pred_region
          %p10043 = scmp.lt.s32.totalorder %s21, 1
          %s10044 = scalar_select %p10043, %s21, 1
          %p10045 = scmp.lt.s32.totalorder %s22, 1
          %s10046 = scalar_select %p10045, %s22, 1
          %s10047 = smul.addr %s10044, 2
          %s10048 = sadd.s32 %s10046, %s10047
          %s10049 = scalar_lea.vmem %s4, %s10048
        $region74: #{simple_cnn_forward.1} parent=69 // pred_fallthru
          _
      $region70: #{simple_cnn_forward.1} parent=5 // pred_fallthru
        _
    $region6: #{simple_cnn_forward.1} parent=1 // loop_footer
      %s14 = sadd.s32 1, %s10
    $region7: #{simple_cnn_forward.1} parent=1 // loop_footer_branch
      %9 = sbr.rel target = $region3
    $region8: #{simple_cnn_forward.1} parent=1 // loop_exit
      _

</llo_original>
